<compile_context>
chip_gen: v6e
topology: v6e:2x2x1
jax: 0.10.0
libtpu: 0.0.40
codegen_flags: <defaults>
</compile_context>

<pallas_src>
import math

import jax
import jax.numpy as jnp
from jax.experimental import pallas as pl
from jax.experimental.pallas import tpu as pltpu

# ----------------------------- tiny config -----------------------------------
TEXT_HIDDEN = 32
TEXT_LAYERS = 2
TEXT_HEADS = 4
TEXT_FFN = 4 * TEXT_HIDDEN
VOCAB = 64
TYPE_VOCAB = 1
PAD_ID = 1            # roberta padding_idx
MAX_POS = 16
LN_EPS = 1e-5

VIS_HIDDEN = 48
VIS_LAYERS = 2
VIS_HEADS = 4
VIS_FFN = 4 * VIS_HIDDEN
IMG = 16
PATCH = 8
CHANNELS = 3
NUM_PATCHES = (IMG // PATCH) ** 2          # 4
VIS_SEQ = NUM_PATCHES + 1                  # 5 real tokens (CLS + patches)
VIS_SEQ_PAD = 8                            # padded to a sublane multiple
NUM_CLASSES = 3

BATCH = 2
SEQ = 8


# ----------------------------- in-kernel helpers ------------------------------
def _ln(x, g, b, eps=LN_EPS):
    m = jnp.mean(x, axis=-1, keepdims=True)
    c = x - m
    v = jnp.mean(c * c, axis=-1, keepdims=True)
    return c * jax.lax.rsqrt(v + eps) * g + b


def _gelu_tanh(x):
    # TODO(synk): HF XLM-R 'gelu' is erf-exact; tanh approximation used because
    # lax.erf has no guaranteed Mosaic lowering.
    c = math.sqrt(2.0 / math.pi)
    return 0.5 * x * (1.0 + jnp.tanh(c * (x + 0.044715 * x * x * x)))


def _quick_gelu(x):
    return x * jax.nn.sigmoid(1.702 * x)


def _softmax_last(s):
    m = jnp.max(s, axis=-1, keepdims=True)
    p = jnp.exp(s - m)
    return p / jnp.sum(p, axis=-1, keepdims=True)


def _head_column_masks(hidden, num_heads):
    """Float (1, hidden) masks selecting each head's column range."""
    hd = hidden // num_heads
    lane = jax.lax.broadcasted_iota(jnp.int32, (1, hidden), 1)
    return [((lane >= h * hd) & (lane < (h + 1) * hd)).astype(jnp.float32)
            for h in range(num_heads)]


def _cls_selector(num_rows_per_item):
    """(B, B*rows) 0/1 matrix picking row 0 of each item (gather-as-matmul)."""
    n = BATCH * num_rows_per_item
    rows = jax.lax.broadcasted_iota(jnp.int32, (BATCH, n), 0)
    cols = jax.lax.broadcasted_iota(jnp.int32, (BATCH, n), 1)
    return (cols == rows * num_rows_per_item).astype(jnp.float32)


def _mha(x, bias, wq, bq, wk, bk, wv, bv, wo, bo, head_masks, scale):
    """Multi-head self-attention on a flattened (rows, hidden) block.

    `bias` is an additive (rows, rows) score bias that already removes
    cross-sequence and padded-key attention.  Head separation via K/V column
    masking is exactly equivalent to split-heads attention.
    """
    q = jnp.dot(x, wq, preferred_element_type=jnp.float32) + bq
    k = jnp.dot(x, wk, preferred_element_type=jnp.float32) + bk
    v = jnp.dot(x, wv, preferred_element_type=jnp.float32) + bv
    ctx = jnp.zeros_like(q)
    for hm in head_masks:
        kh = k * hm
        vh = v * hm
        s = jnp.dot(q, kh.T, preferred_element_type=jnp.float32) * scale + bias
        p = _softmax_last(s)
        ctx = ctx + jnp.dot(p, vh, preferred_element_type=jnp.float32)
    return jnp.dot(ctx, wo, preferred_element_type=jnp.float32) + bo


# ----------------------------- fused branch kernels ---------------------------
def _text_branch_kernel(
    x_emb_ref, bias_ref,
    emb_ln_g_ref, emb_ln_b_ref,
    wq_ref, bq_ref, wk_ref, bk_ref, wv_ref, bv_ref, wo_ref, bo_ref,
    ln1_g_ref, ln1_b_ref,
    fc_in_w_ref, fc_in_b_ref, fc_out_w_ref, fc_out_b_ref,
    ln2_g_ref, ln2_b_ref,
    pool_w_ref, pool_b_ref,
    pooled_ref,
):
    head_masks = _head_column_masks(TEXT_HIDDEN, TEXT_HEADS)
    scale = 1.0 / math.sqrt(TEXT_HIDDEN // TEXT_HEADS)
    bias = bias_ref[...]

    # embeddings LayerNorm
    x = _ln(x_emb_ref[...], emb_ln_g_ref[...], emb_ln_b_ref[...])       # (B*S, H)

    # post-LN (BERT/RoBERTa style) transformer layers
    for l in range(TEXT_LAYERS):
        attn = _mha(x, bias,
                    wq_ref[l], bq_ref[l], wk_ref[l], bk_ref[l],
                    wv_ref[l], bv_ref[l], wo_ref[l], bo_ref[l],
                    head_masks, scale)
        x = _ln(attn + x, ln1_g_ref[l], ln1_b_ref[l])
        h = _gelu_tanh(jnp.dot(x, fc_in_w_ref[l],
                               preferred_element_type=jnp.float32) + fc_in_b_ref[l])
        h = jnp.dot(h, fc_out_w_ref[l],
                    preferred_element_type=jnp.float32) + fc_out_b_ref[l]
        x = _ln(h + x, ln2_g_ref[l], ln2_b_ref[l])

    # pooler = tanh(dense(hidden[:, 0]))  (CLS rows gathered with a tiny matmul)
    sel = _cls_selector(SEQ)                                            # (B, B*S)
    cls = jnp.dot(sel, x, preferred_element_type=jnp.float32)           # (B, H)
    pooled_ref[...] = jnp.tanh(
        jnp.dot(cls, pool_w_ref[...], preferred_element_type=jnp.float32)
        + pool_b_ref[...])


def _vision_head_kernel(
    patches_ref, base_ref, bias_ref, text_pool_ref,
    patch_w_ref, pre_ln_g_ref, pre_ln_b_ref,
    wq_ref, bq_ref, wk_ref, bk_ref, wv_ref, bv_ref, wo_ref, bo_ref,
    ln1_g_ref, ln1_b_ref, ln2_g_ref, ln2_b_ref,
    fc1_w_ref, fc1_b_ref, fc2_w_ref, fc2_b_ref,
    post_ln_g_ref, post_ln_b_ref,
    head_wt_ref, head_wv_ref, head_b_ref,
    logits_ref,
):
    head_masks = _head_column_masks(VIS_HIDDEN, VIS_HEADS)
    scale = 1.0 / math.sqrt(VIS_HIDDEN // VIS_HEADS)
    bias = bias_ref[...]

    # patch "conv" (stride=patch, no bias) as one matmul; CLS / pad rows of the
    # padded patch matrix are zero, `base` carries CLS + position embeddings.
    pe = jnp.dot(patches_ref[...], patch_w_ref[...],
                 preferred_element_type=jnp.float32)                    # (B*Tp, Hv)
    x = _ln(pe + base_ref[...], pre_ln_g_ref[...], pre_ln_b_ref[...])   # pre_layrnorm

    # pre-LN (CLIP style) transformer layers
    for l in range(VIS_LAYERS):
        res = x
        h = _ln(x, ln1_g_ref[l], ln1_b_ref[l])
        h = _mha(h, bias,
                 wq_ref[l], bq_ref[l], wk_ref[l], bk_ref[l],
                 wv_ref[l], bv_ref[l], wo_ref[l], bo_ref[l],
                 head_masks, scale)
        x = res + h
        res = x
        h = _ln(x, ln2_g_ref[l], ln2_b_ref[l])
        h = _quick_gelu(jnp.dot(h, fc1_w_ref[l],
                                preferred_element_type=jnp.float32) + fc1_b_ref[l])
        h = jnp.dot(h, fc2_w_ref[l],
                    preferred_element_type=jnp.float32) + fc2_b_ref[l]
        x = res + h

    # pooled = post_layernorm(hidden[:, 0])
    sel = _cls_selector(VIS_SEQ_PAD)                                    # (B, B*Tp)
    cls = jnp.dot(sel, x, preferred_element_type=jnp.float32)           # (B, Hv)
    vis_pool = _ln(cls, post_ln_g_ref[...], post_ln_b_ref[...])

    # fused classifier head:  fc(concat(text_pool, vision_pool))
    logits_ref[...] = (
        jnp.dot(text_pool_ref[...], head_wt_ref[...],
                preferred_element_type=jnp.float32)
        + jnp.dot(vis_pool, head_wv_ref[...], preferred_element_type=jnp.float32)
        + head_b_ref[...])


# ----------------------------- pallas_call wrappers ---------------------------
def _vmem():
    return pl.BlockSpec(memory_space=pltpu.MemorySpace.VMEM)


def text_branch(tp, x_emb, text_bias):
    args = (x_emb, text_bias,
            tp["emb_ln_g"], tp["emb_ln_b"],
            tp["wq"], tp["bq"], tp["wk"], tp["bk"], tp["wv"], tp["bv"],
            tp["wo"], tp["bo"],
            tp["ln1_g"], tp["ln1_b"],
            tp["fc_in_w"], tp["fc_in_b"], tp["fc_out_w"], tp["fc_out_b"],
            tp["ln2_g"], tp["ln2_b"],
            tp["pool_w"], tp["pool_b"])
    return pl.pallas_call(
        _text_branch_kernel,
        out_shape=jax.ShapeDtypeStruct((BATCH, TEXT_HIDDEN), jnp.float32),
        in_specs=[_vmem()] * len(args),
        out_specs=_vmem(),
    )(*args)


def vision_branch_and_head(vp, hp, patches, base, vis_bias, text_pool):
    args = (patches, base, vis_bias, text_pool,
            vp["patch_w"], vp["pre_ln_g"], vp["pre_ln_b"],
            vp["wq"], vp["bq"], vp["wk"], vp["bk"], vp["wv"], vp["bv"],
            vp["wo"], vp["bo"],
            vp["ln1_g"], vp["ln1_b"], vp["ln2_g"], vp["ln2_b"],
            vp["fc1_w"], vp["fc1_b"], vp["fc2_w"], vp["fc2_b"],
            vp["post_ln_g"], vp["post_ln_b"],
            hp["w_text"], hp["w_vis"], hp["b"])
    return pl.pallas_call(
        _vision_head_kernel,
        out_shape=jax.ShapeDtypeStruct((BATCH, NUM_CLASSES), jnp.float32),
        in_specs=[_vmem()] * len(args),
        out_specs=_vmem(),
    )(*args)


# ----------------------------- parameters ------------------------------------
def init_params(key):
    keys = iter(jax.random.split(key, 64))

    def w(shape, scale=0.02):
        return jax.random.normal(next(keys), shape, jnp.float32) * scale

    def zeros(s):
        return jnp.zeros(s, jnp.float32)

    def ones(s):
        return jnp.ones(s, jnp.float32)

    L, H, F = TEXT_LAYERS, TEXT_HIDDEN, TEXT_FFN
    text = dict(
        word_emb=w((VOCAB, H)), pos_emb=w((MAX_POS, H)), type_emb=w((TYPE_VOCAB, H)),
        emb_ln_g=ones((1, H)), emb_ln_b=zeros((1, H)),
        # all linear weights stored pre-transposed: (in, out)
        wq=w((L, H, H)), bq=zeros((L, 1, H)),
        wk=w((L, H, H)), bk=zeros((L, 1, H)),
        wv=w((L, H, H)), bv=zeros((L, 1, H)),
        wo=w((L, H, H)), bo=zeros((L, 1, H)),
        ln1_g=ones((L, 1, H)), ln1_b=zeros((L, 1, H)),
        fc_in_w=w((L, H, F)), fc_in_b=zeros((L, 1, F)),
        fc_out_w=w((L, F, H)), fc_out_b=zeros((L, 1, H)),
        ln2_g=ones((L, 1, H)), ln2_b=zeros((L, 1, H)),
        pool_w=w((H, H)), pool_b=zeros((1, H)),
    )

    Lv, Hv, Fv = VIS_LAYERS, VIS_HIDDEN, VIS_FFN
    cpp = CHANNELS * PATCH * PATCH
    vision = dict(
        class_emb=w((1, Hv)),
        patch_w=w((cpp, Hv)),                       # flattened conv weight, (in, out)
        pos_emb=w((VIS_SEQ, Hv)),
        pre_ln_g=ones((1, Hv)), pre_ln_b=zeros((1, Hv)),
        wq=w((Lv, Hv, Hv)), bq=zeros((Lv, 1, Hv)),
        wk=w((Lv, Hv, Hv)), bk=zeros((Lv, 1, Hv)),
        wv=w((Lv, Hv, Hv)), bv=zeros((Lv, 1, Hv)),
        wo=w((Lv, Hv, Hv)), bo=zeros((Lv, 1, Hv)),
        ln1_g=ones((Lv, 1, Hv)), ln1_b=zeros((Lv, 1, Hv)),
        ln2_g=ones((Lv, 1, Hv)), ln2_b=zeros((Lv, 1, Hv)),
        fc1_w=w((Lv, Hv, Fv)), fc1_b=zeros((Lv, 1, Fv)),
        fc2_w=w((Lv, Fv, Hv)), fc2_b=zeros((Lv, 1, Hv)),
        post_ln_g=ones((1, Hv)), post_ln_b=zeros((1, Hv)),
    )

    # classifier fc over concat(text, vision), stored pre-split & pre-transposed
    head = dict(
        w_text=w((TEXT_HIDDEN, NUM_CLASSES)),
        w_vis=w((VIS_HIDDEN, NUM_CLASSES)),
        b=zeros((1, NUM_CLASSES)),
    )
    return dict(text=text, vision=vision, head=head)


# ----------------------------- forward (glue + kernels) ----------------------
def model_forward(params, input_ids, pixel_values, attention_mask):
    tp, vp, hp = params["text"], params["vision"], params["head"]
    B, S = input_ids.shape

    # ---- text embeddings (gathers stay in XLA glue) ----
    not_pad = (input_ids != PAD_ID).astype(jnp.int32)
    position_ids = jnp.cumsum(not_pad, axis=1) * not_pad + PAD_ID
    token_type_ids = jnp.zeros_like(input_ids)
    emb = (jnp.take(tp["word_emb"], input_ids, axis=0)
           + jnp.take(tp["pos_emb"], position_ids, axis=0)
           + jnp.take(tp["type_emb"], token_type_ids, axis=0))
    x_emb = emb.reshape(B * S, TEXT_HIDDEN)

    # additive attention bias on the flattened (B*S, B*S) score matrix:
    # -1e9 on cross-sequence pairs and on padded keys, 0 elsewhere.
    am = attention_mask.astype(jnp.float32).reshape(B * S)
    bid = jnp.arange(B * S) // S
    text_bias = jnp.where((bid[:, None] == bid[None, :]) & (am[None, :] > 0.5),
                          0.0, jnp.float32(-1e9))

    text_pool = text_branch(tp, x_emb, text_bias)                       # (B, 32)

    # ---- vision patch extraction (NCHW, stride=patch conv -> matmul) ----
    g = IMG // PATCH
    cpp = CHANNELS * PATCH * PATCH
    patches = pixel_values.reshape(B, CHANNELS, g, PATCH, g, PATCH)
    patches = patches.transpose(0, 2, 4, 1, 3, 5).reshape(B, NUM_PATCHES, cpp)
    # pad each image's sequence to VIS_SEQ_PAD rows: [CLS, p0..p3, pad, pad, pad]
    patches_padded = (jnp.zeros((B, VIS_SEQ_PAD, cpp), jnp.float32)
                      .at[:, 1:1 + NUM_PATCHES, :].set(patches)
                      .reshape(B * VIS_SEQ_PAD, cpp))
    # CLS + position embeddings, zeros on the pad rows
    base_single = (jnp.zeros((VIS_SEQ_PAD, VIS_HIDDEN), jnp.float32)
                   .at[0:1, :].set(vp["class_emb"] + vp["pos_emb"][0:1, :])
                   .at[1:1 + NUM_PATCHES, :].set(vp["pos_emb"][1:, :]))
    base = jnp.tile(base_single, (B, 1))                                # (B*Tp, Hv)

    idx = jnp.arange(B * VIS_SEQ_PAD)
    bidv = idx // VIS_SEQ_PAD
    key_valid = (idx % VIS_SEQ_PAD) < VIS_SEQ
    vis_bias = jnp.where((bidv[:, None] == bidv[None, :]) & key_valid[None, :],
                         0.0, jnp.float32(-1e9))

    logits = vision_branch_and_head(vp, hp, patches_padded, base, vis_bias,
                                    text_pool)
    return {"logits": logits}


# ----------------------------------- main -------------------------------------
if __name__ == "__main__":
    root = jax.random.PRNGKey(0)
    k_params, k_ids, k_pix = jax.random.split(root, 3)

    params = init_params(k_params)

    input_ids = jax.random.randint(k_ids, (BATCH, SEQ), 2, VOCAB, dtype=jnp.int32)
    # make the second sequence end with padding to exercise the attention mask
    input_ids = input_ids.at[1, -2:].set(PAD_ID)
    attention_mask = jnp.ones((BATCH, SEQ), jnp.int32).at[1, -2:].set(0)
    pixel_values = jax.random.normal(k_pix, (BATCH, CHANNELS, IMG, IMG), jnp.float32)

    fwd = jax.jit(model_forward)
    out = fwd(params, input_ids, pixel_values, attention_mask)
    logits = jax.block_until_ready(out["logits"])

    assert logits.shape == (BATCH, NUM_CLASSES)
    assert bool(jnp.all(jnp.isfinite(logits)))
    print("KERNEL_OK")
</pallas_src>

<mosaic_0001>
module attributes {stable_mosaic.version = 11 : i64} {
  func.func @_text_branch_kernel(%arg0: memref<16x32xf32, #tpu.memory_space<vmem>>, %arg1: memref<16x16xf32, #tpu.memory_space<vmem>>, %arg2: memref<1x32xf32, #tpu.memory_space<vmem>>, %arg3: memref<1x32xf32, #tpu.memory_space<vmem>>, %arg4: memref<2x32x32xf32, #tpu.memory_space<vmem>>, %arg5: memref<2x1x32xf32, #tpu.memory_space<vmem>>, %arg6: memref<2x32x32xf32, #tpu.memory_space<vmem>>, %arg7: memref<2x1x32xf32, #tpu.memory_space<vmem>>, %arg8: memref<2x32x32xf32, #tpu.memory_space<vmem>>, %arg9: memref<2x1x32xf32, #tpu.memory_space<vmem>>, %arg10: memref<2x32x32xf32, #tpu.memory_space<vmem>>, %arg11: memref<2x1x32xf32, #tpu.memory_space<vmem>>, %arg12: memref<2x1x32xf32, #tpu.memory_space<vmem>>, %arg13: memref<2x1x32xf32, #tpu.memory_space<vmem>>, %arg14: memref<2x32x128xf32, #tpu.memory_space<vmem>>, %arg15: memref<2x1x128xf32, #tpu.memory_space<vmem>>, %arg16: memref<2x128x32xf32, #tpu.memory_space<vmem>>, %arg17: memref<2x1x32xf32, #tpu.memory_space<vmem>>, %arg18: memref<2x1x32xf32, #tpu.memory_space<vmem>>, %arg19: memref<2x1x32xf32, #tpu.memory_space<vmem>>, %arg20: memref<32x32xf32, #tpu.memory_space<vmem>>, %arg21: memref<1x32xf32, #tpu.memory_space<vmem>>, %arg22: memref<2x32xf32, #tpu.memory_space<vmem>>) attributes {dimension_semantics = [], scalar_prefetch = 0 : i64, scratch_operands = 0 : i64, tpu.core_type = #tpu.core_type<tc>} {
    %0 = tpu.iota {dimensions = array<i32: 1>} : vector<1x32xi32>
    %c0_i32 = arith.constant 0 : i32
    %1 = vector.broadcast %c0_i32 : i32 to vector<1x32xi32>
    %2 = arith.cmpi sge, %0, %1 : vector<1x32xi32>
    %c8_i32 = arith.constant 8 : i32
    %3 = vector.broadcast %c8_i32 : i32 to vector<1x32xi32>
    %4 = arith.cmpi slt, %0, %3 : vector<1x32xi32>
    %5 = arith.andi %2, %4 : vector<1x32xi1>
    %6 = arith.extui %5 : vector<1x32xi1> to vector<1x32xi32>
    %7 = arith.sitofp %6 : vector<1x32xi32> to vector<1x32xf32>
    %c8_i32_0 = arith.constant 8 : i32
    %8 = vector.broadcast %c8_i32_0 : i32 to vector<1x32xi32>
    %9 = arith.cmpi sge, %0, %8 : vector<1x32xi32>
    %c16_i32 = arith.constant 16 : i32
    %10 = vector.broadcast %c16_i32 : i32 to vector<1x32xi32>
    %11 = arith.cmpi slt, %0, %10 : vector<1x32xi32>
    %12 = arith.andi %9, %11 : vector<1x32xi1>
    %13 = arith.extui %12 : vector<1x32xi1> to vector<1x32xi32>
    %14 = arith.sitofp %13 : vector<1x32xi32> to vector<1x32xf32>
    %c16_i32_1 = arith.constant 16 : i32
    %15 = vector.broadcast %c16_i32_1 : i32 to vector<1x32xi32>
    %16 = arith.cmpi sge, %0, %15 : vector<1x32xi32>
    %c24_i32 = arith.constant 24 : i32
    %17 = vector.broadcast %c24_i32 : i32 to vector<1x32xi32>
    %18 = arith.cmpi slt, %0, %17 : vector<1x32xi32>
    %19 = arith.andi %16, %18 : vector<1x32xi1>
    %20 = arith.extui %19 : vector<1x32xi1> to vector<1x32xi32>
    %21 = arith.sitofp %20 : vector<1x32xi32> to vector<1x32xf32>
    %c24_i32_2 = arith.constant 24 : i32
    %22 = vector.broadcast %c24_i32_2 : i32 to vector<1x32xi32>
    %23 = arith.cmpi sge, %0, %22 : vector<1x32xi32>
    %c32_i32 = arith.constant 32 : i32
    %24 = vector.broadcast %c32_i32 : i32 to vector<1x32xi32>
    %25 = arith.cmpi slt, %0, %24 : vector<1x32xi32>
    %26 = arith.andi %23, %25 : vector<1x32xi1>
    %27 = arith.extui %26 : vector<1x32xi1> to vector<1x32xi32>
    %28 = arith.sitofp %27 : vector<1x32xi32> to vector<1x32xf32>
    %c0 = arith.constant 0 : index
    %c0_3 = arith.constant 0 : index
    %29 = vector.load %arg1[%c0, %c0_3] : memref<16x16xf32, #tpu.memory_space<vmem>>, vector<16x16xf32>
    %c0_4 = arith.constant 0 : index
    %c0_5 = arith.constant 0 : index
    %30 = vector.load %arg0[%c0_4, %c0_5] : memref<16x32xf32, #tpu.memory_space<vmem>>, vector<16x32xf32>
    %c0_6 = arith.constant 0 : index
    %c0_7 = arith.constant 0 : index
    %31 = vector.load %arg2[%c0_6, %c0_7] : memref<1x32xf32, #tpu.memory_space<vmem>>, vector<1x32xf32>
    %c0_8 = arith.constant 0 : index
    %c0_9 = arith.constant 0 : index
    %32 = vector.load %arg3[%c0_8, %c0_9] : memref<1x32xf32, #tpu.memory_space<vmem>>, vector<1x32xf32>
    %cst = arith.constant dense<0.000000e+00> : vector<16xf32>
    %33 = vector.multi_reduction <add>, %30, %cst [1] : vector<16x32xf32> to vector<16xf32>
    %34 = vector.shape_cast %33 : vector<16xf32> to vector<16x1xf32>
    %cst_10 = arith.constant 3.200000e+01 : f32
    %35 = vector.broadcast %cst_10 : f32 to vector<16x1xf32>
    %36 = arith.divf %34, %35 : vector<16x1xf32>
    %37 = vector.broadcast %36 : vector<16x1xf32> to vector<16x32xf32>
    %38 = arith.subf %30, %37 : vector<16x32xf32>
    %39 = arith.mulf %38, %38 : vector<16x32xf32>
    %cst_11 = arith.constant dense<0.000000e+00> : vector<16xf32>
    %40 = vector.multi_reduction <add>, %39, %cst_11 [1] : vector<16x32xf32> to vector<16xf32>
    %41 = vector.shape_cast %40 : vector<16xf32> to vector<16x1xf32>
    %cst_12 = arith.constant 3.200000e+01 : f32
    %42 = vector.broadcast %cst_12 : f32 to vector<16x1xf32>
    %43 = arith.divf %41, %42 : vector<16x1xf32>
    %cst_13 = arith.constant 9.99999974E-6 : f32
    %44 = vector.broadcast %cst_13 : f32 to vector<16x1xf32>
    %45 = arith.addf %43, %44 : vector<16x1xf32>
    %46 = math.rsqrt %45 : vector<16x1xf32>
    %47 = vector.broadcast %46 : vector<16x1xf32> to vector<16x32xf32>
    %48 = arith.mulf %38, %47 : vector<16x32xf32>
    %49 = vector.broadcast %31 : vector<1x32xf32> to vector<16x32xf32>
    %50 = arith.mulf %48, %49 : vector<16x32xf32>
    %51 = vector.broadcast %32 : vector<1x32xf32> to vector<16x32xf32>
    %52 = arith.addf %50, %51 : vector<16x32xf32>
    %c0_14 = arith.constant 0 : index
    %c0_15 = arith.constant 0 : index
    %c0_16 = arith.constant 0 : index
    %53 = vector.load %arg4[%c0_14, %c0_15, %c0_16] : memref<2x32x32xf32, #tpu.memory_space<vmem>>, vector<1x32x32xf32>
    %54 = vector.shape_cast %53 : vector<1x32x32xf32> to vector<32x32xf32>
    %c0_17 = arith.constant 0 : index
    %c0_18 = arith.constant 0 : index
    %c0_19 = arith.constant 0 : index
    %55 = vector.load %arg5[%c0_17, %c0_18, %c0_19] : memref<2x1x32xf32, #tpu.memory_space<vmem>>, vector<1x1x32xf32>
    %56 = vector.shape_cast %55 : vector<1x1x32xf32> to vector<1x32xf32>
    %c0_20 = arith.constant 0 : index
    %c0_21 = arith.constant 0 : index
    %c0_22 = arith.constant 0 : index
    %57 = vector.load %arg6[%c0_20, %c0_21, %c0_22] : memref<2x32x32xf32, #tpu.memory_space<vmem>>, vector<1x32x32xf32>
    %58 = vector.shape_cast %57 : vector<1x32x32xf32> to vector<32x32xf32>
    %c0_23 = arith.constant 0 : index
    %c0_24 = arith.constant 0 : index
    %c0_25 = arith.constant 0 : index
    %59 = vector.load %arg7[%c0_23, %c0_24, %c0_25] : memref<2x1x32xf32, #tpu.memory_space<vmem>>, vector<1x1x32xf32>
    %60 = vector.shape_cast %59 : vector<1x1x32xf32> to vector<1x32xf32>
    %c0_26 = arith.constant 0 : index
    %c0_27 = arith.constant 0 : index
    %c0_28 = arith.constant 0 : index
    %61 = vector.load %arg8[%c0_26, %c0_27, %c0_28] : memref<2x32x32xf32, #tpu.memory_space<vmem>>, vector<1x32x32xf32>
    %62 = vector.shape_cast %61 : vector<1x32x32xf32> to vector<32x32xf32>
    %c0_29 = arith.constant 0 : index
    %c0_30 = arith.constant 0 : index
    %c0_31 = arith.constant 0 : index
    %63 = vector.load %arg9[%c0_29, %c0_30, %c0_31] : memref<2x1x32xf32, #tpu.memory_space<vmem>>, vector<1x1x32xf32>
    %64 = vector.shape_cast %63 : vector<1x1x32xf32> to vector<1x32xf32>
    %c0_32 = arith.constant 0 : index
    %c0_33 = arith.constant 0 : index
    %c0_34 = arith.constant 0 : index
    %65 = vector.load %arg10[%c0_32, %c0_33, %c0_34] : memref<2x32x32xf32, #tpu.memory_space<vmem>>, vector<1x32x32xf32>
    %66 = vector.shape_cast %65 : vector<1x32x32xf32> to vector<32x32xf32>
    %c0_35 = arith.constant 0 : index
    %c0_36 = arith.constant 0 : index
    %c0_37 = arith.constant 0 : index
    %67 = vector.load %arg11[%c0_35, %c0_36, %c0_37] : memref<2x1x32xf32, #tpu.memory_space<vmem>>, vector<1x1x32xf32>
    %68 = vector.shape_cast %67 : vector<1x1x32xf32> to vector<1x32xf32>
    %cst_38 = arith.constant dense<0.000000e+00> : vector<16x32xf32>
    %69 = tpu.matmul %52, %54, %cst_38 {dimension_numbers = #tpu.dot_dimension_numbers<[1], [0], [0], [1], [0, 0, 1, 1], [], []>} : vector<16x32xf32>, vector<32x32xf32>, vector<16x32xf32> -> vector<16x32xf32>
    %70 = vector.broadcast %56 : vector<1x32xf32> to vector<16x32xf32>
    %71 = arith.addf %69, %70 : vector<16x32xf32>
    %cst_39 = arith.constant dense<0.000000e+00> : vector<16x32xf32>
    %72 = tpu.matmul %52, %58, %cst_39 {dimension_numbers = #tpu.dot_dimension_numbers<[1], [0], [0], [1], [0, 0, 1, 1], [], []>} : vector<16x32xf32>, vector<32x32xf32>, vector<16x32xf32> -> vector<16x32xf32>
    %73 = vector.broadcast %60 : vector<1x32xf32> to vector<16x32xf32>
    %74 = arith.addf %72, %73 : vector<16x32xf32>
    %cst_40 = arith.constant dense<0.000000e+00> : vector<16x32xf32>
    %75 = tpu.matmul %52, %62, %cst_40 {dimension_numbers = #tpu.dot_dimension_numbers<[1], [0], [0], [1], [0, 0, 1, 1], [], []>} : vector<16x32xf32>, vector<32x32xf32>, vector<16x32xf32> -> vector<16x32xf32>
    %76 = vector.broadcast %64 : vector<1x32xf32> to vector<16x32xf32>
    %77 = arith.addf %75, %76 : vector<16x32xf32>
    %cst_41 = arith.constant 0.000000e+00 : f32
    %78 = vector.broadcast %cst_41 : f32 to vector<16x32xf32>
    %79 = vector.broadcast %7 : vector<1x32xf32> to vector<16x32xf32>
    %80 = arith.mulf %74, %79 : vector<16x32xf32>
    %81 = vector.broadcast %7 : vector<1x32xf32> to vector<16x32xf32>
    %82 = arith.mulf %77, %81 : vector<16x32xf32>
    %83 = tpu.transpose %80, [1, 0] : vector<16x32xf32> -> vector<32x16xf32>
    %cst_42 = arith.constant dense<0.000000e+00> : vector<16x16xf32>
    %84 = tpu.matmul %71, %83, %cst_42 {dimension_numbers = #tpu.dot_dimension_numbers<[1], [0], [0], [1], [0, 0, 1, 1], [], []>} : vector<16x32xf32>, vector<32x16xf32>, vector<16x16xf32> -> vector<16x16xf32>
    %cst_43 = arith.constant 0.353553385 : f32
    %85 = vector.broadcast %cst_43 : f32 to vector<16x16xf32>
    %86 = arith.mulf %84, %85 : vector<16x16xf32>
    %87 = arith.addf %86, %29 : vector<16x16xf32>
    %cst_44 = arith.constant dense<0xFF800000> : vector<16xf32>
    %88 = vector.multi_reduction <maximumf>, %87, %cst_44 [1] : vector<16x16xf32> to vector<16xf32>
    %89 = vector.shape_cast %88 : vector<16xf32> to vector<16x1xf32>
    %90 = vector.broadcast %89 : vector<16x1xf32> to vector<16x16xf32>
    %91 = arith.subf %87, %90 : vector<16x16xf32>
    %92 = math.exp %91 : vector<16x16xf32>
    %cst_45 = arith.constant dense<0.000000e+00> : vector<16xf32>
    %93 = vector.multi_reduction <add>, %92, %cst_45 [1] : vector<16x16xf32> to vector<16xf32>
    %94 = vector.shape_cast %93 : vector<16xf32> to vector<16x1xf32>
    %95 = vector.broadcast %94 : vector<16x1xf32> to vector<16x16xf32>
    %96 = arith.divf %92, %95 : vector<16x16xf32>
    %cst_46 = arith.constant dense<0.000000e+00> : vector<16x32xf32>
    %97 = tpu.matmul %96, %82, %cst_46 {dimension_numbers = #tpu.dot_dimension_numbers<[1], [0], [0], [1], [0, 0, 1, 1], [], []>} : vector<16x16xf32>, vector<16x32xf32>, vector<16x32xf32> -> vector<16x32xf32>
    %98 = arith.addf %78, %97 : vector<16x32xf32>
    %99 = vector.broadcast %14 : vector<1x32xf32> to vector<16x32xf32>
    %100 = arith.mulf %74, %99 : vector<16x32xf32>
    %101 = vector.broadcast %14 : vector<1x32xf32> to vector<16x32xf32>
    %102 = arith.mulf %77, %101 : vector<16x32xf32>
    %103 = tpu.transpose %100, [1, 0] : vector<16x32xf32> -> vector<32x16xf32>
    %cst_47 = arith.constant dense<0.000000e+00> : vector<16x16xf32>
    %104 = tpu.matmul %71, %103, %cst_47 {dimension_numbers = #tpu.dot_dimension_numbers<[1], [0], [0], [1], [0, 0, 1, 1], [], []>} : vector<16x32xf32>, vector<32x16xf32>, vector<16x16xf32> -> vector<16x16xf32>
    %cst_48 = arith.constant 0.353553385 : f32
    %105 = vector.broadcast %cst_48 : f32 to vector<16x16xf32>
    %106 = arith.mulf %104, %105 : vector<16x16xf32>
    %107 = arith.addf %106, %29 : vector<16x16xf32>
    %cst_49 = arith.constant dense<0xFF800000> : vector<16xf32>
    %108 = vector.multi_reduction <maximumf>, %107, %cst_49 [1] : vector<16x16xf32> to vector<16xf32>
    %109 = vector.shape_cast %108 : vector<16xf32> to vector<16x1xf32>
    %110 = vector.broadcast %109 : vector<16x1xf32> to vector<16x16xf32>
    %111 = arith.subf %107, %110 : vector<16x16xf32>
    %112 = math.exp %111 : vector<16x16xf32>
    %cst_50 = arith.constant dense<0.000000e+00> : vector<16xf32>
    %113 = vector.multi_reduction <add>, %112, %cst_50 [1] : vector<16x16xf32> to vector<16xf32>
    %114 = vector.shape_cast %113 : vector<16xf32> to vector<16x1xf32>
    %115 = vector.broadcast %114 : vector<16x1xf32> to vector<16x16xf32>
    %116 = arith.divf %112, %115 : vector<16x16xf32>
    %cst_51 = arith.constant dense<0.000000e+00> : vector<16x32xf32>
    %117 = tpu.matmul %116, %102, %cst_51 {dimension_numbers = #tpu.dot_dimension_numbers<[1], [0], [0], [1], [0, 0, 1, 1], [], []>} : vector<16x16xf32>, vector<16x32xf32>, vector<16x32xf32> -> vector<16x32xf32>
    %118 = arith.addf %98, %117 : vector<16x32xf32>
    %119 = vector.broadcast %21 : vector<1x32xf32> to vector<16x32xf32>
    %120 = arith.mulf %74, %119 : vector<16x32xf32>
    %121 = vector.broadcast %21 : vector<1x32xf32> to vector<16x32xf32>
    %122 = arith.mulf %77, %121 : vector<16x32xf32>
    %123 = tpu.transpose %120, [1, 0] : vector<16x32xf32> -> vector<32x16xf32>
    %cst_52 = arith.constant dense<0.000000e+00> : vector<16x16xf32>
    %124 = tpu.matmul %71, %123, %cst_52 {dimension_numbers = #tpu.dot_dimension_numbers<[1], [0], [0], [1], [0, 0, 1, 1], [], []>} : vector<16x32xf32>, vector<32x16xf32>, vector<16x16xf32> -> vector<16x16xf32>
    %cst_53 = arith.constant 0.353553385 : f32
    %125 = vector.broadcast %cst_53 : f32 to vector<16x16xf32>
    %126 = arith.mulf %124, %125 : vector<16x16xf32>
    %127 = arith.addf %126, %29 : vector<16x16xf32>
    %cst_54 = arith.constant dense<0xFF800000> : vector<16xf32>
    %128 = vector.multi_reduction <maximumf>, %127, %cst_54 [1] : vector<16x16xf32> to vector<16xf32>
    %129 = vector.shape_cast %128 : vector<16xf32> to vector<16x1xf32>
    %130 = vector.broadcast %129 : vector<16x1xf32> to vector<16x16xf32>
    %131 = arith.subf %127, %130 : vector<16x16xf32>
    %132 = math.exp %131 : vector<16x16xf32>
    %cst_55 = arith.constant dense<0.000000e+00> : vector<16xf32>
    %133 = vector.multi_reduction <add>, %132, %cst_55 [1] : vector<16x16xf32> to vector<16xf32>
    %134 = vector.shape_cast %133 : vector<16xf32> to vector<16x1xf32>
    %135 = vector.broadcast %134 : vector<16x1xf32> to vector<16x16xf32>
    %136 = arith.divf %132, %135 : vector<16x16xf32>
    %cst_56 = arith.constant dense<0.000000e+00> : vector<16x32xf32>
    %137 = tpu.matmul %136, %122, %cst_56 {dimension_numbers = #tpu.dot_dimension_numbers<[1], [0], [0], [1], [0, 0, 1, 1], [], []>} : vector<16x16xf32>, vector<16x32xf32>, vector<16x32xf32> -> vector<16x32xf32>
    %138 = arith.addf %118, %137 : vector<16x32xf32>
    %139 = vector.broadcast %28 : vector<1x32xf32> to vector<16x32xf32>
    %140 = arith.mulf %74, %139 : vector<16x32xf32>
    %141 = vector.broadcast %28 : vector<1x32xf32> to vector<16x32xf32>
    %142 = arith.mulf %77, %141 : vector<16x32xf32>
    %143 = tpu.transpose %140, [1, 0] : vector<16x32xf32> -> vector<32x16xf32>
    %cst_57 = arith.constant dense<0.000000e+00> : vector<16x16xf32>
    %144 = tpu.matmul %71, %143, %cst_57 {dimension_numbers = #tpu.dot_dimension_numbers<[1], [0], [0], [1], [0, 0, 1, 1], [], []>} : vector<16x32xf32>, vector<32x16xf32>, vector<16x16xf32> -> vector<16x16xf32>
    %cst_58 = arith.constant 0.353553385 : f32
    %145 = vector.broadcast %cst_58 : f32 to vector<16x16xf32>
    %146 = arith.mulf %144, %145 : vector<16x16xf32>
    %147 = arith.addf %146, %29 : vector<16x16xf32>
    %cst_59 = arith.constant dense<0xFF800000> : vector<16xf32>
    %148 = vector.multi_reduction <maximumf>, %147, %cst_59 [1] : vector<16x16xf32> to vector<16xf32>
    %149 = vector.shape_cast %148 : vector<16xf32> to vector<16x1xf32>
    %150 = vector.broadcast %149 : vector<16x1xf32> to vector<16x16xf32>
    %151 = arith.subf %147, %150 : vector<16x16xf32>
    %152 = math.exp %151 : vector<16x16xf32>
    %cst_60 = arith.constant dense<0.000000e+00> : vector<16xf32>
    %153 = vector.multi_reduction <add>, %152, %cst_60 [1] : vector<16x16xf32> to vector<16xf32>
    %154 = vector.shape_cast %153 : vector<16xf32> to vector<16x1xf32>
    %155 = vector.broadcast %154 : vector<16x1xf32> to vector<16x16xf32>
    %156 = arith.divf %152, %155 : vector<16x16xf32>
    %cst_61 = arith.constant dense<0.000000e+00> : vector<16x32xf32>
    %157 = tpu.matmul %156, %142, %cst_61 {dimension_numbers = #tpu.dot_dimension_numbers<[1], [0], [0], [1], [0, 0, 1, 1], [], []>} : vector<16x16xf32>, vector<16x32xf32>, vector<16x32xf32> -> vector<16x32xf32>
    %158 = arith.addf %138, %157 : vector<16x32xf32>
    %cst_62 = arith.constant dense<0.000000e+00> : vector<16x32xf32>
    %159 = tpu.matmul %158, %66, %cst_62 {dimension_numbers = #tpu.dot_dimension_numbers<[1], [0], [0], [1], [0, 0, 1, 1], [], []>} : vector<16x32xf32>, vector<32x32xf32>, vector<16x32xf32> -> vector<16x32xf32>
    %160 = vector.broadcast %68 : vector<1x32xf32> to vector<16x32xf32>
    %161 = arith.addf %159, %160 : vector<16x32xf32>
    %162 = arith.addf %161, %52 : vector<16x32xf32>
    %c0_63 = arith.constant 0 : index
    %c0_64 = arith.constant 0 : index
    %c0_65 = arith.constant 0 : index
    %163 = vector.load %arg12[%c0_63, %c0_64, %c0_65] : memref<2x1x32xf32, #tpu.memory_space<vmem>>, vector<1x1x32xf32>
    %164 = vector.shape_cast %163 : vector<1x1x32xf32> to vector<1x32xf32>
    %c0_66 = arith.constant 0 : index
    %c0_67 = arith.constant 0 : index
    %c0_68 = arith.constant 0 : index
    %165 = vector.load %arg13[%c0_66, %c0_67, %c0_68] : memref<2x1x32xf32, #tpu.memory_space<vmem>>, vector<1x1x32xf32>
    %166 = vector.shape_cast %165 : vector<1x1x32xf32> to vector<1x32xf32>
    %cst_69 = arith.constant dense<0.000000e+00> : vector<16xf32>
    %167 = vector.multi_reduction <add>, %162, %cst_69 [1] : vector<16x32xf32> to vector<16xf32>
    %168 = vector.shape_cast %167 : vector<16xf32> to vector<16x1xf32>
    %cst_70 = arith.constant 3.200000e+01 : f32
    %169 = vector.broadcast %cst_70 : f32 to vector<16x1xf32>
    %170 = arith.divf %168, %169 : vector<16x1xf32>
    %171 = vector.broadcast %170 : vector<16x1xf32> to vector<16x32xf32>
    %172 = arith.subf %162, %171 : vector<16x32xf32>
    %173 = arith.mulf %172, %172 : vector<16x32xf32>
    %cst_71 = arith.constant dense<0.000000e+00> : vector<16xf32>
    %174 = vector.multi_reduction <add>, %173, %cst_71 [1] : vector<16x32xf32> to vector<16xf32>
    %175 = vector.shape_cast %174 : vector<16xf32> to vector<16x1xf32>
    %cst_72 = arith.constant 3.200000e+01 : f32
    %176 = vector.broadcast %cst_72 : f32 to vector<16x1xf32>
    %177 = arith.divf %175, %176 : vector<16x1xf32>
    %cst_73 = arith.constant 9.99999974E-6 : f32
    %178 = vector.broadcast %cst_73 : f32 to vector<16x1xf32>
    %179 = arith.addf %177, %178 : vector<16x1xf32>
    %180 = math.rsqrt %179 : vector<16x1xf32>
    %181 = vector.broadcast %180 : vector<16x1xf32> to vector<16x32xf32>
    %182 = arith.mulf %172, %181 : vector<16x32xf32>
    %183 = vector.broadcast %164 : vector<1x32xf32> to vector<16x32xf32>
    %184 = arith.mulf %182, %183 : vector<16x32xf32>
    %185 = vector.broadcast %166 : vector<1x32xf32> to vector<16x32xf32>
    %186 = arith.addf %184, %185 : vector<16x32xf32>
    %c0_74 = arith.constant 0 : index
    %c0_75 = arith.constant 0 : index
    %c0_76 = arith.constant 0 : index
    %187 = vector.load %arg14[%c0_74, %c0_75, %c0_76] : memref<2x32x128xf32, #tpu.memory_space<vmem>>, vector<1x32x128xf32>
    %188 = vector.shape_cast %187 : vector<1x32x128xf32> to vector<32x128xf32>
    %cst_77 = arith.constant dense<0.000000e+00> : vector<16x128xf32>
    %189 = tpu.matmul %186, %188, %cst_77 {dimension_numbers = #tpu.dot_dimension_numbers<[1], [0], [0], [1], [0, 0, 1, 1], [], []>} : vector<16x32xf32>, vector<32x128xf32>, vector<16x128xf32> -> vector<16x128xf32>
    %c0_78 = arith.constant 0 : index
    %c0_79 = arith.constant 0 : index
    %c0_80 = arith.constant 0 : index
    %190 = vector.load %arg15[%c0_78, %c0_79, %c0_80] : memref<2x1x128xf32, #tpu.memory_space<vmem>>, vector<1x1x128xf32>
    %191 = vector.shape_cast %190 : vector<1x1x128xf32> to vector<1x128xf32>
    %192 = vector.broadcast %191 : vector<1x128xf32> to vector<16x128xf32>
    %193 = arith.addf %189, %192 : vector<16x128xf32>
    %cst_81 = arith.constant 5.000000e-01 : f32
    %194 = vector.broadcast %cst_81 : f32 to vector<16x128xf32>
    %195 = arith.mulf %194, %193 : vector<16x128xf32>
    %cst_82 = arith.constant 4.471500e-02 : f32
    %196 = vector.broadcast %cst_82 : f32 to vector<16x128xf32>
    %197 = arith.mulf %196, %193 : vector<16x128xf32>
    %198 = arith.mulf %197, %193 : vector<16x128xf32>
    %199 = arith.mulf %198, %193 : vector<16x128xf32>
    %200 = arith.addf %193, %199 : vector<16x128xf32>
    %cst_83 = arith.constant 0.797884583 : f32
    %201 = vector.broadcast %cst_83 : f32 to vector<16x128xf32>
    %202 = arith.mulf %201, %200 : vector<16x128xf32>
    %203 = math.tanh %202 : vector<16x128xf32>
    %cst_84 = arith.constant 1.000000e+00 : f32
    %204 = vector.broadcast %cst_84 : f32 to vector<16x128xf32>
    %205 = arith.addf %204, %203 : vector<16x128xf32>
    %206 = arith.mulf %195, %205 : vector<16x128xf32>
    %c0_85 = arith.constant 0 : index
    %c0_86 = arith.constant 0 : index
    %c0_87 = arith.constant 0 : index
    %207 = vector.load %arg16[%c0_85, %c0_86, %c0_87] : memref<2x128x32xf32, #tpu.memory_space<vmem>>, vector<1x128x32xf32>
    %208 = vector.shape_cast %207 : vector<1x128x32xf32> to vector<128x32xf32>
    %cst_88 = arith.constant dense<0.000000e+00> : vector<16x32xf32>
    %209 = tpu.matmul %206, %208, %cst_88 {dimension_numbers = #tpu.dot_dimension_numbers<[1], [0], [0], [1], [0, 0, 1, 1], [], []>} : vector<16x128xf32>, vector<128x32xf32>, vector<16x32xf32> -> vector<16x32xf32>
    %c0_89 = arith.constant 0 : index
    %c0_90 = arith.constant 0 : index
    %c0_91 = arith.constant 0 : index
    %210 = vector.load %arg17[%c0_89, %c0_90, %c0_91] : memref<2x1x32xf32, #tpu.memory_space<vmem>>, vector<1x1x32xf32>
    %211 = vector.shape_cast %210 : vector<1x1x32xf32> to vector<1x32xf32>
    %212 = vector.broadcast %211 : vector<1x32xf32> to vector<16x32xf32>
    %213 = arith.addf %209, %212 : vector<16x32xf32>
    %214 = arith.addf %213, %186 : vector<16x32xf32>
    %c0_92 = arith.constant 0 : index
    %c0_93 = arith.constant 0 : index
    %c0_94 = arith.constant 0 : index
    %215 = vector.load %arg18[%c0_92, %c0_93, %c0_94] : memref<2x1x32xf32, #tpu.memory_space<vmem>>, vector<1x1x32xf32>
    %216 = vector.shape_cast %215 : vector<1x1x32xf32> to vector<1x32xf32>
    %c0_95 = arith.constant 0 : index
    %c0_96 = arith.constant 0 : index
    %c0_97 = arith.constant 0 : index
    %217 = vector.load %arg19[%c0_95, %c0_96, %c0_97] : memref<2x1x32xf32, #tpu.memory_space<vmem>>, vector<1x1x32xf32>
    %218 = vector.shape_cast %217 : vector<1x1x32xf32> to vector<1x32xf32>
    %cst_98 = arith.constant dense<0.000000e+00> : vector<16xf32>
    %219 = vector.multi_reduction <add>, %214, %cst_98 [1] : vector<16x32xf32> to vector<16xf32>
    %220 = vector.shape_cast %219 : vector<16xf32> to vector<16x1xf32>
    %cst_99 = arith.constant 3.200000e+01 : f32
    %221 = vector.broadcast %cst_99 : f32 to vector<16x1xf32>
    %222 = arith.divf %220, %221 : vector<16x1xf32>
    %223 = vector.broadcast %222 : vector<16x1xf32> to vector<16x32xf32>
    %224 = arith.subf %214, %223 : vector<16x32xf32>
    %225 = arith.mulf %224, %224 : vector<16x32xf32>
    %cst_100 = arith.constant dense<0.000000e+00> : vector<16xf32>
    %226 = vector.multi_reduction <add>, %225, %cst_100 [1] : vector<16x32xf32> to vector<16xf32>
    %227 = vector.shape_cast %226 : vector<16xf32> to vector<16x1xf32>
    %cst_101 = arith.constant 3.200000e+01 : f32
    %228 = vector.broadcast %cst_101 : f32 to vector<16x1xf32>
    %229 = arith.divf %227, %228 : vector<16x1xf32>
    %cst_102 = arith.constant 9.99999974E-6 : f32
    %230 = vector.broadcast %cst_102 : f32 to vector<16x1xf32>
    %231 = arith.addf %229, %230 : vector<16x1xf32>
    %232 = math.rsqrt %231 : vector<16x1xf32>
    %233 = vector.broadcast %232 : vector<16x1xf32> to vector<16x32xf32>
    %234 = arith.mulf %224, %233 : vector<16x32xf32>
    %235 = vector.broadcast %216 : vector<1x32xf32> to vector<16x32xf32>
    %236 = arith.mulf %234, %235 : vector<16x32xf32>
    %237 = vector.broadcast %218 : vector<1x32xf32> to vector<16x32xf32>
    %238 = arith.addf %236, %237 : vector<16x32xf32>
    %c1 = arith.constant 1 : index
    %c0_103 = arith.constant 0 : index
    %c0_104 = arith.constant 0 : index
    %239 = vector.load %arg4[%c1, %c0_103, %c0_104] : memref<2x32x32xf32, #tpu.memory_space<vmem>>, vector<1x32x32xf32>
    %240 = vector.shape_cast %239 : vector<1x32x32xf32> to vector<32x32xf32>
    %c1_105 = arith.constant 1 : index
    %c0_106 = arith.constant 0 : index
    %c0_107 = arith.constant 0 : index
    %241 = vector.load %arg5[%c1_105, %c0_106, %c0_107] : memref<2x1x32xf32, #tpu.memory_space<vmem>>, vector<1x1x32xf32>
    %242 = vector.shape_cast %241 : vector<1x1x32xf32> to vector<1x32xf32>
    %c1_108 = arith.constant 1 : index
    %c0_109 = arith.constant 0 : index
    %c0_110 = arith.constant 0 : index
    %243 = vector.load %arg6[%c1_108, %c0_109, %c0_110] : memref<2x32x32xf32, #tpu.memory_space<vmem>>, vector<1x32x32xf32>
    %244 = vector.shape_cast %243 : vector<1x32x32xf32> to vector<32x32xf32>
    %c1_111 = arith.constant 1 : index
    %c0_112 = arith.constant 0 : index
    %c0_113 = arith.constant 0 : index
    %245 = vector.load %arg7[%c1_111, %c0_112, %c0_113] : memref<2x1x32xf32, #tpu.memory_space<vmem>>, vector<1x1x32xf32>
    %246 = vector.shape_cast %245 : vector<1x1x32xf32> to vector<1x32xf32>
    %c1_114 = arith.constant 1 : index
    %c0_115 = arith.constant 0 : index
    %c0_116 = arith.constant 0 : index
    %247 = vector.load %arg8[%c1_114, %c0_115, %c0_116] : memref<2x32x32xf32, #tpu.memory_space<vmem>>, vector<1x32x32xf32>
    %248 = vector.shape_cast %247 : vector<1x32x32xf32> to vector<32x32xf32>
    %c1_117 = arith.constant 1 : index
    %c0_118 = arith.constant 0 : index
    %c0_119 = arith.constant 0 : index
    %249 = vector.load %arg9[%c1_117, %c0_118, %c0_119] : memref<2x1x32xf32, #tpu.memory_space<vmem>>, vector<1x1x32xf32>
    %250 = vector.shape_cast %249 : vector<1x1x32xf32> to vector<1x32xf32>
    %c1_120 = arith.constant 1 : index
    %c0_121 = arith.constant 0 : index
    %c0_122 = arith.constant 0 : index
    %251 = vector.load %arg10[%c1_120, %c0_121, %c0_122] : memref<2x32x32xf32, #tpu.memory_space<vmem>>, vector<1x32x32xf32>
    %252 = vector.shape_cast %251 : vector<1x32x32xf32> to vector<32x32xf32>
    %c1_123 = arith.constant 1 : index
    %c0_124 = arith.constant 0 : index
    %c0_125 = arith.constant 0 : index
    %253 = vector.load %arg11[%c1_123, %c0_124, %c0_125] : memref<2x1x32xf32, #tpu.memory_space<vmem>>, vector<1x1x32xf32>
    %254 = vector.shape_cast %253 : vector<1x1x32xf32> to vector<1x32xf32>
    %cst_126 = arith.constant dense<0.000000e+00> : vector<16x32xf32>
    %255 = tpu.matmul %238, %240, %cst_126 {dimension_numbers = #tpu.dot_dimension_numbers<[1], [0], [0], [1], [0, 0, 1, 1], [], []>} : vector<16x32xf32>, vector<32x32xf32>, vector<16x32xf32> -> vector<16x32xf32>
    %256 = vector.broadcast %242 : vector<1x32xf32> to vector<16x32xf32>
    %257 = arith.addf %255, %256 : vector<16x32xf32>
    %cst_127 = arith.constant dense<0.000000e+00> : vector<16x32xf32>
    %258 = tpu.matmul %238, %244, %cst_127 {dimension_numbers = #tpu.dot_dimension_numbers<[1], [0], [0], [1], [0, 0, 1, 1], [], []>} : vector<16x32xf32>, vector<32x32xf32>, vector<16x32xf32> -> vector<16x32xf32>
    %259 = vector.broadcast %246 : vector<1x32xf32> to vector<16x32xf32>
    %260 = arith.addf %258, %259 : vector<16x32xf32>
    %cst_128 = arith.constant dense<0.000000e+00> : vector<16x32xf32>
    %261 = tpu.matmul %238, %248, %cst_128 {dimension_numbers = #tpu.dot_dimension_numbers<[1], [0], [0], [1], [0, 0, 1, 1], [], []>} : vector<16x32xf32>, vector<32x32xf32>, vector<16x32xf32> -> vector<16x32xf32>
    %262 = vector.broadcast %250 : vector<1x32xf32> to vector<16x32xf32>
    %263 = arith.addf %261, %262 : vector<16x32xf32>
    %cst_129 = arith.constant 0.000000e+00 : f32
    %264 = vector.broadcast %cst_129 : f32 to vector<16x32xf32>
    %265 = vector.broadcast %7 : vector<1x32xf32> to vector<16x32xf32>
    %266 = arith.mulf %260, %265 : vector<16x32xf32>
    %267 = vector.broadcast %7 : vector<1x32xf32> to vector<16x32xf32>
    %268 = arith.mulf %263, %267 : vector<16x32xf32>
    %269 = tpu.transpose %266, [1, 0] : vector<16x32xf32> -> vector<32x16xf32>
    %cst_130 = arith.constant dense<0.000000e+00> : vector<16x16xf32>
    %270 = tpu.matmul %257, %269, %cst_130 {dimension_numbers = #tpu.dot_dimension_numbers<[1], [0], [0], [1], [0, 0, 1, 1], [], []>} : vector<16x32xf32>, vector<32x16xf32>, vector<16x16xf32> -> vector<16x16xf32>
    %cst_131 = arith.constant 0.353553385 : f32
    %271 = vector.broadcast %cst_131 : f32 to vector<16x16xf32>
    %272 = arith.mulf %270, %271 : vector<16x16xf32>
    %273 = arith.addf %272, %29 : vector<16x16xf32>
    %cst_132 = arith.constant dense<0xFF800000> : vector<16xf32>
    %274 = vector.multi_reduction <maximumf>, %273, %cst_132 [1] : vector<16x16xf32> to vector<16xf32>
    %275 = vector.shape_cast %274 : vector<16xf32> to vector<16x1xf32>
    %276 = vector.broadcast %275 : vector<16x1xf32> to vector<16x16xf32>
    %277 = arith.subf %273, %276 : vector<16x16xf32>
    %278 = math.exp %277 : vector<16x16xf32>
    %cst_133 = arith.constant dense<0.000000e+00> : vector<16xf32>
    %279 = vector.multi_reduction <add>, %278, %cst_133 [1] : vector<16x16xf32> to vector<16xf32>
    %280 = vector.shape_cast %279 : vector<16xf32> to vector<16x1xf32>
    %281 = vector.broadcast %280 : vector<16x1xf32> to vector<16x16xf32>
    %282 = arith.divf %278, %281 : vector<16x16xf32>
    %cst_134 = arith.constant dense<0.000000e+00> : vector<16x32xf32>
    %283 = tpu.matmul %282, %268, %cst_134 {dimension_numbers = #tpu.dot_dimension_numbers<[1], [0], [0], [1], [0, 0, 1, 1], [], []>} : vector<16x16xf32>, vector<16x32xf32>, vector<16x32xf32> -> vector<16x32xf32>
    %284 = arith.addf %264, %283 : vector<16x32xf32>
    %285 = vector.broadcast %14 : vector<1x32xf32> to vector<16x32xf32>
    %286 = arith.mulf %260, %285 : vector<16x32xf32>
    %287 = vector.broadcast %14 : vector<1x32xf32> to vector<16x32xf32>
    %288 = arith.mulf %263, %287 : vector<16x32xf32>
    %289 = tpu.transpose %286, [1, 0] : vector<16x32xf32> -> vector<32x16xf32>
    %cst_135 = arith.constant dense<0.000000e+00> : vector<16x16xf32>
    %290 = tpu.matmul %257, %289, %cst_135 {dimension_numbers = #tpu.dot_dimension_numbers<[1], [0], [0], [1], [0, 0, 1, 1], [], []>} : vector<16x32xf32>, vector<32x16xf32>, vector<16x16xf32> -> vector<16x16xf32>
    %cst_136 = arith.constant 0.353553385 : f32
    %291 = vector.broadcast %cst_136 : f32 to vector<16x16xf32>
    %292 = arith.mulf %290, %291 : vector<16x16xf32>
    %293 = arith.addf %292, %29 : vector<16x16xf32>
    %cst_137 = arith.constant dense<0xFF800000> : vector<16xf32>
    %294 = vector.multi_reduction <maximumf>, %293, %cst_137 [1] : vector<16x16xf32> to vector<16xf32>
    %295 = vector.shape_cast %294 : vector<16xf32> to vector<16x1xf32>
    %296 = vector.broadcast %295 : vector<16x1xf32> to vector<16x16xf32>
    %297 = arith.subf %293, %296 : vector<16x16xf32>
    %298 = math.exp %297 : vector<16x16xf32>
    %cst_138 = arith.constant dense<0.000000e+00> : vector<16xf32>
    %299 = vector.multi_reduction <add>, %298, %cst_138 [1] : vector<16x16xf32> to vector<16xf32>
    %300 = vector.shape_cast %299 : vector<16xf32> to vector<16x1xf32>
    %301 = vector.broadcast %300 : vector<16x1xf32> to vector<16x16xf32>
    %302 = arith.divf %298, %301 : vector<16x16xf32>
    %cst_139 = arith.constant dense<0.000000e+00> : vector<16x32xf32>
    %303 = tpu.matmul %302, %288, %cst_139 {dimension_numbers = #tpu.dot_dimension_numbers<[1], [0], [0], [1], [0, 0, 1, 1], [], []>} : vector<16x16xf32>, vector<16x32xf32>, vector<16x32xf32> -> vector<16x32xf32>
    %304 = arith.addf %284, %303 : vector<16x32xf32>
    %305 = vector.broadcast %21 : vector<1x32xf32> to vector<16x32xf32>
    %306 = arith.mulf %260, %305 : vector<16x32xf32>
    %307 = vector.broadcast %21 : vector<1x32xf32> to vector<16x32xf32>
    %308 = arith.mulf %263, %307 : vector<16x32xf32>
    %309 = tpu.transpose %306, [1, 0] : vector<16x32xf32> -> vector<32x16xf32>
    %cst_140 = arith.constant dense<0.000000e+00> : vector<16x16xf32>
    %310 = tpu.matmul %257, %309, %cst_140 {dimension_numbers = #tpu.dot_dimension_numbers<[1], [0], [0], [1], [0, 0, 1, 1], [], []>} : vector<16x32xf32>, vector<32x16xf32>, vector<16x16xf32> -> vector<16x16xf32>
    %cst_141 = arith.constant 0.353553385 : f32
    %311 = vector.broadcast %cst_141 : f32 to vector<16x16xf32>
    %312 = arith.mulf %310, %311 : vector<16x16xf32>
    %313 = arith.addf %312, %29 : vector<16x16xf32>
    %cst_142 = arith.constant dense<0xFF800000> : vector<16xf32>
    %314 = vector.multi_reduction <maximumf>, %313, %cst_142 [1] : vector<16x16xf32> to vector<16xf32>
    %315 = vector.shape_cast %314 : vector<16xf32> to vector<16x1xf32>
    %316 = vector.broadcast %315 : vector<16x1xf32> to vector<16x16xf32>
    %317 = arith.subf %313, %316 : vector<16x16xf32>
    %318 = math.exp %317 : vector<16x16xf32>
    %cst_143 = arith.constant dense<0.000000e+00> : vector<16xf32>
    %319 = vector.multi_reduction <add>, %318, %cst_143 [1] : vector<16x16xf32> to vector<16xf32>
    %320 = vector.shape_cast %319 : vector<16xf32> to vector<16x1xf32>
    %321 = vector.broadcast %320 : vector<16x1xf32> to vector<16x16xf32>
    %322 = arith.divf %318, %321 : vector<16x16xf32>
    %cst_144 = arith.constant dense<0.000000e+00> : vector<16x32xf32>
    %323 = tpu.matmul %322, %308, %cst_144 {dimension_numbers = #tpu.dot_dimension_numbers<[1], [0], [0], [1], [0, 0, 1, 1], [], []>} : vector<16x16xf32>, vector<16x32xf32>, vector<16x32xf32> -> vector<16x32xf32>
    %324 = arith.addf %304, %323 : vector<16x32xf32>
    %325 = vector.broadcast %28 : vector<1x32xf32> to vector<16x32xf32>
    %326 = arith.mulf %260, %325 : vector<16x32xf32>
    %327 = vector.broadcast %28 : vector<1x32xf32> to vector<16x32xf32>
    %328 = arith.mulf %263, %327 : vector<16x32xf32>
    %329 = tpu.transpose %326, [1, 0] : vector<16x32xf32> -> vector<32x16xf32>
    %cst_145 = arith.constant dense<0.000000e+00> : vector<16x16xf32>
    %330 = tpu.matmul %257, %329, %cst_145 {dimension_numbers = #tpu.dot_dimension_numbers<[1], [0], [0], [1], [0, 0, 1, 1], [], []>} : vector<16x32xf32>, vector<32x16xf32>, vector<16x16xf32> -> vector<16x16xf32>
    %cst_146 = arith.constant 0.353553385 : f32
    %331 = vector.broadcast %cst_146 : f32 to vector<16x16xf32>
    %332 = arith.mulf %330, %331 : vector<16x16xf32>
    %333 = arith.addf %332, %29 : vector<16x16xf32>
    %cst_147 = arith.constant dense<0xFF800000> : vector<16xf32>
    %334 = vector.multi_reduction <maximumf>, %333, %cst_147 [1] : vector<16x16xf32> to vector<16xf32>
    %335 = vector.shape_cast %334 : vector<16xf32> to vector<16x1xf32>
    %336 = vector.broadcast %335 : vector<16x1xf32> to vector<16x16xf32>
    %337 = arith.subf %333, %336 : vector<16x16xf32>
    %338 = math.exp %337 : vector<16x16xf32>
    %cst_148 = arith.constant dense<0.000000e+00> : vector<16xf32>
    %339 = vector.multi_reduction <add>, %338, %cst_148 [1] : vector<16x16xf32> to vector<16xf32>
    %340 = vector.shape_cast %339 : vector<16xf32> to vector<16x1xf32>
    %341 = vector.broadcast %340 : vector<16x1xf32> to vector<16x16xf32>
    %342 = arith.divf %338, %341 : vector<16x16xf32>
    %cst_149 = arith.constant dense<0.000000e+00> : vector<16x32xf32>
    %343 = tpu.matmul %342, %328, %cst_149 {dimension_numbers = #tpu.dot_dimension_numbers<[1], [0], [0], [1], [0, 0, 1, 1], [], []>} : vector<16x16xf32>, vector<16x32xf32>, vector<16x32xf32> -> vector<16x32xf32>
    %344 = arith.addf %324, %343 : vector<16x32xf32>
    %cst_150 = arith.constant dense<0.000000e+00> : vector<16x32xf32>
    %345 = tpu.matmul %344, %252, %cst_150 {dimension_numbers = #tpu.dot_dimension_numbers<[1], [0], [0], [1], [0, 0, 1, 1], [], []>} : vector<16x32xf32>, vector<32x32xf32>, vector<16x32xf32> -> vector<16x32xf32>
    %346 = vector.broadcast %254 : vector<1x32xf32> to vector<16x32xf32>
    %347 = arith.addf %345, %346 : vector<16x32xf32>
    %348 = arith.addf %347, %238 : vector<16x32xf32>
    %c1_151 = arith.constant 1 : index
    %c0_152 = arith.constant 0 : index
    %c0_153 = arith.constant 0 : index
    %349 = vector.load %arg12[%c1_151, %c0_152, %c0_153] : memref<2x1x32xf32, #tpu.memory_space<vmem>>, vector<1x1x32xf32>
    %350 = vector.shape_cast %349 : vector<1x1x32xf32> to vector<1x32xf32>
    %c1_154 = arith.constant 1 : index
    %c0_155 = arith.constant 0 : index
    %c0_156 = arith.constant 0 : index
    %351 = vector.load %arg13[%c1_154, %c0_155, %c0_156] : memref<2x1x32xf32, #tpu.memory_space<vmem>>, vector<1x1x32xf32>
    %352 = vector.shape_cast %351 : vector<1x1x32xf32> to vector<1x32xf32>
    %cst_157 = arith.constant dense<0.000000e+00> : vector<16xf32>
    %353 = vector.multi_reduction <add>, %348, %cst_157 [1] : vector<16x32xf32> to vector<16xf32>
    %354 = vector.shape_cast %353 : vector<16xf32> to vector<16x1xf32>
    %cst_158 = arith.constant 3.200000e+01 : f32
    %355 = vector.broadcast %cst_158 : f32 to vector<16x1xf32>
    %356 = arith.divf %354, %355 : vector<16x1xf32>
    %357 = vector.broadcast %356 : vector<16x1xf32> to vector<16x32xf32>
    %358 = arith.subf %348, %357 : vector<16x32xf32>
    %359 = arith.mulf %358, %358 : vector<16x32xf32>
    %cst_159 = arith.constant dense<0.000000e+00> : vector<16xf32>
    %360 = vector.multi_reduction <add>, %359, %cst_159 [1] : vector<16x32xf32> to vector<16xf32>
    %361 = vector.shape_cast %360 : vector<16xf32> to vector<16x1xf32>
    %cst_160 = arith.constant 3.200000e+01 : f32
    %362 = vector.broadcast %cst_160 : f32 to vector<16x1xf32>
    %363 = arith.divf %361, %362 : vector<16x1xf32>
    %cst_161 = arith.constant 9.99999974E-6 : f32
    %364 = vector.broadcast %cst_161 : f32 to vector<16x1xf32>
    %365 = arith.addf %363, %364 : vector<16x1xf32>
    %366 = math.rsqrt %365 : vector<16x1xf32>
    %367 = vector.broadcast %366 : vector<16x1xf32> to vector<16x32xf32>
    %368 = arith.mulf %358, %367 : vector<16x32xf32>
    %369 = vector.broadcast %350 : vector<1x32xf32> to vector<16x32xf32>
    %370 = arith.mulf %368, %369 : vector<16x32xf32>
    %371 = vector.broadcast %352 : vector<1x32xf32> to vector<16x32xf32>
    %372 = arith.addf %370, %371 : vector<16x32xf32>
    %c1_162 = arith.constant 1 : index
    %c0_163 = arith.constant 0 : index
    %c0_164 = arith.constant 0 : index
    %373 = vector.load %arg14[%c1_162, %c0_163, %c0_164] : memref<2x32x128xf32, #tpu.memory_space<vmem>>, vector<1x32x128xf32>
    %374 = vector.shape_cast %373 : vector<1x32x128xf32> to vector<32x128xf32>
    %cst_165 = arith.constant dense<0.000000e+00> : vector<16x128xf32>
    %375 = tpu.matmul %372, %374, %cst_165 {dimension_numbers = #tpu.dot_dimension_numbers<[1], [0], [0], [1], [0, 0, 1, 1], [], []>} : vector<16x32xf32>, vector<32x128xf32>, vector<16x128xf32> -> vector<16x128xf32>
    %c1_166 = arith.constant 1 : index
    %c0_167 = arith.constant 0 : index
    %c0_168 = arith.constant 0 : index
    %376 = vector.load %arg15[%c1_166, %c0_167, %c0_168] : memref<2x1x128xf32, #tpu.memory_space<vmem>>, vector<1x1x128xf32>
    %377 = vector.shape_cast %376 : vector<1x1x128xf32> to vector<1x128xf32>
    %378 = vector.broadcast %377 : vector<1x128xf32> to vector<16x128xf32>
    %379 = arith.addf %375, %378 : vector<16x128xf32>
    %cst_169 = arith.constant 5.000000e-01 : f32
    %380 = vector.broadcast %cst_169 : f32 to vector<16x128xf32>
    %381 = arith.mulf %380, %379 : vector<16x128xf32>
    %cst_170 = arith.constant 4.471500e-02 : f32
    %382 = vector.broadcast %cst_170 : f32 to vector<16x128xf32>
    %383 = arith.mulf %382, %379 : vector<16x128xf32>
    %384 = arith.mulf %383, %379 : vector<16x128xf32>
    %385 = arith.mulf %384, %379 : vector<16x128xf32>
    %386 = arith.addf %379, %385 : vector<16x128xf32>
    %cst_171 = arith.constant 0.797884583 : f32
    %387 = vector.broadcast %cst_171 : f32 to vector<16x128xf32>
    %388 = arith.mulf %387, %386 : vector<16x128xf32>
    %389 = math.tanh %388 : vector<16x128xf32>
    %cst_172 = arith.constant 1.000000e+00 : f32
    %390 = vector.broadcast %cst_172 : f32 to vector<16x128xf32>
    %391 = arith.addf %390, %389 : vector<16x128xf32>
    %392 = arith.mulf %381, %391 : vector<16x128xf32>
    %c1_173 = arith.constant 1 : index
    %c0_174 = arith.constant 0 : index
    %c0_175 = arith.constant 0 : index
    %393 = vector.load %arg16[%c1_173, %c0_174, %c0_175] : memref<2x128x32xf32, #tpu.memory_space<vmem>>, vector<1x128x32xf32>
    %394 = vector.shape_cast %393 : vector<1x128x32xf32> to vector<128x32xf32>
    %cst_176 = arith.constant dense<0.000000e+00> : vector<16x32xf32>
    %395 = tpu.matmul %392, %394, %cst_176 {dimension_numbers = #tpu.dot_dimension_numbers<[1], [0], [0], [1], [0, 0, 1, 1], [], []>} : vector<16x128xf32>, vector<128x32xf32>, vector<16x32xf32> -> vector<16x32xf32>
    %c1_177 = arith.constant 1 : index
    %c0_178 = arith.constant 0 : index
    %c0_179 = arith.constant 0 : index
    %396 = vector.load %arg17[%c1_177, %c0_178, %c0_179] : memref<2x1x32xf32, #tpu.memory_space<vmem>>, vector<1x1x32xf32>
    %397 = vector.shape_cast %396 : vector<1x1x32xf32> to vector<1x32xf32>
    %398 = vector.broadcast %397 : vector<1x32xf32> to vector<16x32xf32>
    %399 = arith.addf %395, %398 : vector<16x32xf32>
    %400 = arith.addf %399, %372 : vector<16x32xf32>
    %c1_180 = arith.constant 1 : index
    %c0_181 = arith.constant 0 : index
    %c0_182 = arith.constant 0 : index
    %401 = vector.load %arg18[%c1_180, %c0_181, %c0_182] : memref<2x1x32xf32, #tpu.memory_space<vmem>>, vector<1x1x32xf32>
    %402 = vector.shape_cast %401 : vector<1x1x32xf32> to vector<1x32xf32>
    %c1_183 = arith.constant 1 : index
    %c0_184 = arith.constant 0 : index
    %c0_185 = arith.constant 0 : index
    %403 = vector.load %arg19[%c1_183, %c0_184, %c0_185] : memref<2x1x32xf32, #tpu.memory_space<vmem>>, vector<1x1x32xf32>
    %404 = vector.shape_cast %403 : vector<1x1x32xf32> to vector<1x32xf32>
    %cst_186 = arith.constant dense<0.000000e+00> : vector<16xf32>
    %405 = vector.multi_reduction <add>, %400, %cst_186 [1] : vector<16x32xf32> to vector<16xf32>
    %406 = vector.shape_cast %405 : vector<16xf32> to vector<16x1xf32>
    %cst_187 = arith.constant 3.200000e+01 : f32
    %407 = vector.broadcast %cst_187 : f32 to vector<16x1xf32>
    %408 = arith.divf %406, %407 : vector<16x1xf32>
    %409 = vector.broadcast %408 : vector<16x1xf32> to vector<16x32xf32>
    %410 = arith.subf %400, %409 : vector<16x32xf32>
    %411 = arith.mulf %410, %410 : vector<16x32xf32>
    %cst_188 = arith.constant dense<0.000000e+00> : vector<16xf32>
    %412 = vector.multi_reduction <add>, %411, %cst_188 [1] : vector<16x32xf32> to vector<16xf32>
    %413 = vector.shape_cast %412 : vector<16xf32> to vector<16x1xf32>
    %cst_189 = arith.constant 3.200000e+01 : f32
    %414 = vector.broadcast %cst_189 : f32 to vector<16x1xf32>
    %415 = arith.divf %413, %414 : vector<16x1xf32>
    %cst_190 = arith.constant 9.99999974E-6 : f32
    %416 = vector.broadcast %cst_190 : f32 to vector<16x1xf32>
    %417 = arith.addf %415, %416 : vector<16x1xf32>
    %418 = math.rsqrt %417 : vector<16x1xf32>
    %419 = vector.broadcast %418 : vector<16x1xf32> to vector<16x32xf32>
    %420 = arith.mulf %410, %419 : vector<16x32xf32>
    %421 = vector.broadcast %402 : vector<1x32xf32> to vector<16x32xf32>
    %422 = arith.mulf %420, %421 : vector<16x32xf32>
    %423 = vector.broadcast %404 : vector<1x32xf32> to vector<16x32xf32>
    %424 = arith.addf %422, %423 : vector<16x32xf32>
    %425 = tpu.iota {dimensions = array<i32: 0>} : vector<2x16xi32>
    %426 = tpu.iota {dimensions = array<i32: 1>} : vector<2x16xi32>
    %c8_i32_191 = arith.constant 8 : i32
    %427 = vector.broadcast %c8_i32_191 : i32 to vector<2x16xi32>
    %428 = arith.muli %425, %427 : vector<2x16xi32>
    %429 = arith.cmpi eq, %426, %428 : vector<2x16xi32>
    %430 = arith.extui %429 : vector<2x16xi1> to vector<2x16xi32>
    %431 = arith.sitofp %430 : vector<2x16xi32> to vector<2x16xf32>
    %cst_192 = arith.constant dense<0.000000e+00> : vector<2x32xf32>
    %432 = tpu.matmul %431, %424, %cst_192 {dimension_numbers = #tpu.dot_dimension_numbers<[1], [0], [0], [1], [0, 0, 1, 1], [], []>} : vector<2x16xf32>, vector<16x32xf32>, vector<2x32xf32> -> vector<2x32xf32>
    %c0_193 = arith.constant 0 : index
    %c0_194 = arith.constant 0 : index
    %433 = vector.load %arg20[%c0_193, %c0_194] : memref<32x32xf32, #tpu.memory_space<vmem>>, vector<32x32xf32>
    %cst_195 = arith.constant dense<0.000000e+00> : vector<2x32xf32>
    %434 = tpu.matmul %432, %433, %cst_195 {dimension_numbers = #tpu.dot_dimension_numbers<[1], [0], [0], [1], [0, 0, 1, 1], [], []>} : vector<2x32xf32>, vector<32x32xf32>, vector<2x32xf32> -> vector<2x32xf32>
    %c0_196 = arith.constant 0 : index
    %c0_197 = arith.constant 0 : index
    %435 = vector.load %arg21[%c0_196, %c0_197] : memref<1x32xf32, #tpu.memory_space<vmem>>, vector<1x32xf32>
    %436 = vector.broadcast %435 : vector<1x32xf32> to vector<2x32xf32>
    %437 = arith.addf %434, %436 : vector<2x32xf32>
    %438 = math.tanh %437 : vector<2x32xf32>
    %c0_198 = arith.constant 0 : index
    %c0_199 = arith.constant 0 : index
    %439 = vector.load %arg22[%c0_198, %c0_199] : memref<2x32xf32, #tpu.memory_space<vmem>>, vector<2x32xf32>
    tpu.vector_store %arg22[%c0_198, %c0_199], %438 {strides = array<i32>} : memref<2x32xf32, #tpu.memory_space<vmem>>, vector<2x32xf32>,
    return
  }
}

module attributes {stable_mosaic.version = 11 : i64} {
  func.func @_vision_head_kernel(%arg0: memref<16x192xf32, #tpu.memory_space<vmem>>, %arg1: memref<16x48xf32, #tpu.memory_space<vmem>>, %arg2: memref<16x16xf32, #tpu.memory_space<vmem>>, %arg3: memref<2x32xf32, #tpu.memory_space<vmem>>, %arg4: memref<192x48xf32, #tpu.memory_space<vmem>>, %arg5: memref<1x48xf32, #tpu.memory_space<vmem>>, %arg6: memref<1x48xf32, #tpu.memory_space<vmem>>, %arg7: memref<2x48x48xf32, #tpu.memory_space<vmem>>, %arg8: memref<2x1x48xf32, #tpu.memory_space<vmem>>, %arg9: memref<2x48x48xf32, #tpu.memory_space<vmem>>, %arg10: memref<2x1x48xf32, #tpu.memory_space<vmem>>, %arg11: memref<2x48x48xf32, #tpu.memory_space<vmem>>, %arg12: memref<2x1x48xf32, #tpu.memory_space<vmem>>, %arg13: memref<2x48x48xf32, #tpu.memory_space<vmem>>, %arg14: memref<2x1x48xf32, #tpu.memory_space<vmem>>, %arg15: memref<2x1x48xf32, #tpu.memory_space<vmem>>, %arg16: memref<2x1x48xf32, #tpu.memory_space<vmem>>, %arg17: memref<2x1x48xf32, #tpu.memory_space<vmem>>, %arg18: memref<2x1x48xf32, #tpu.memory_space<vmem>>, %arg19: memref<2x48x192xf32, #tpu.memory_space<vmem>>, %arg20: memref<2x1x192xf32, #tpu.memory_space<vmem>>, %arg21: memref<2x192x48xf32, #tpu.memory_space<vmem>>, %arg22: memref<2x1x48xf32, #tpu.memory_space<vmem>>, %arg23: memref<1x48xf32, #tpu.memory_space<vmem>>, %arg24: memref<1x48xf32, #tpu.memory_space<vmem>>, %arg25: memref<32x3xf32, #tpu.memory_space<vmem>>, %arg26: memref<48x3xf32, #tpu.memory_space<vmem>>, %arg27: memref<1x3xf32, #tpu.memory_space<vmem>>, %arg28: memref<2x3xf32, #tpu.memory_space<vmem>>) attributes {dimension_semantics = [], scalar_prefetch = 0 : i64, scratch_operands = 0 : i64, tpu.core_type = #tpu.core_type<tc>} {
    %0 = tpu.iota {dimensions = array<i32: 1>} : vector<1x48xi32>
    %c0_i32 = arith.constant 0 : i32
    %1 = vector.broadcast %c0_i32 : i32 to vector<1x48xi32>
    %2 = arith.cmpi sge, %0, %1 : vector<1x48xi32>
    %c12_i32 = arith.constant 12 : i32
    %3 = vector.broadcast %c12_i32 : i32 to vector<1x48xi32>
    %4 = arith.cmpi slt, %0, %3 : vector<1x48xi32>
    %5 = arith.andi %2, %4 : vector<1x48xi1>
    %6 = arith.extui %5 : vector<1x48xi1> to vector<1x48xi32>
    %7 = arith.sitofp %6 : vector<1x48xi32> to vector<1x48xf32>
    %c12_i32_0 = arith.constant 12 : i32
    %8 = vector.broadcast %c12_i32_0 : i32 to vector<1x48xi32>
    %9 = arith.cmpi sge, %0, %8 : vector<1x48xi32>
    %c24_i32 = arith.constant 24 : i32
    %10 = vector.broadcast %c24_i32 : i32 to vector<1x48xi32>
    %11 = arith.cmpi slt, %0, %10 : vector<1x48xi32>
    %12 = arith.andi %9, %11 : vector<1x48xi1>
    %13 = arith.extui %12 : vector<1x48xi1> to vector<1x48xi32>
    %14 = arith.sitofp %13 : vector<1x48xi32> to vector<1x48xf32>
    %c24_i32_1 = arith.constant 24 : i32
    %15 = vector.broadcast %c24_i32_1 : i32 to vector<1x48xi32>
    %16 = arith.cmpi sge, %0, %15 : vector<1x48xi32>
    %c36_i32 = arith.constant 36 : i32
    %17 = vector.broadcast %c36_i32 : i32 to vector<1x48xi32>
    %18 = arith.cmpi slt, %0, %17 : vector<1x48xi32>
    %19 = arith.andi %16, %18 : vector<1x48xi1>
    %20 = arith.extui %19 : vector<1x48xi1> to vector<1x48xi32>
    %21 = arith.sitofp %20 : vector<1x48xi32> to vector<1x48xf32>
    %c36_i32_2 = arith.constant 36 : i32
    %22 = vector.broadcast %c36_i32_2 : i32 to vector<1x48xi32>
    %23 = arith.cmpi sge, %0, %22 : vector<1x48xi32>
    %c48_i32 = arith.constant 48 : i32
    %24 = vector.broadcast %c48_i32 : i32 to vector<1x48xi32>
    %25 = arith.cmpi slt, %0, %24 : vector<1x48xi32>
    %26 = arith.andi %23, %25 : vector<1x48xi1>
    %27 = arith.extui %26 : vector<1x48xi1> to vector<1x48xi32>
    %28 = arith.sitofp %27 : vector<1x48xi32> to vector<1x48xf32>
    %c0 = arith.constant 0 : index
    %c0_3 = arith.constant 0 : index
    %29 = vector.load %arg2[%c0, %c0_3] : memref<16x16xf32, #tpu.memory_space<vmem>>, vector<16x16xf32>
    %c0_4 = arith.constant 0 : index
    %c0_5 = arith.constant 0 : index
    %30 = vector.load %arg0[%c0_4, %c0_5] : memref<16x192xf32, #tpu.memory_space<vmem>>, vector<16x192xf32>
    %c0_6 = arith.constant 0 : index
    %c0_7 = arith.constant 0 : index
    %31 = vector.load %arg4[%c0_6, %c0_7] : memref<192x48xf32, #tpu.memory_space<vmem>>, vector<192x48xf32>
    %cst = arith.constant dense<0.000000e+00> : vector<16x48xf32>
    %32 = tpu.matmul %30, %31, %cst {dimension_numbers = #tpu.dot_dimension_numbers<[1], [0], [0], [1], [0, 0, 1, 1], [], []>} : vector<16x192xf32>, vector<192x48xf32>, vector<16x48xf32> -> vector<16x48xf32>
    %c0_8 = arith.constant 0 : index
    %c0_9 = arith.constant 0 : index
    %33 = vector.load %arg1[%c0_8, %c0_9] : memref<16x48xf32, #tpu.memory_space<vmem>>, vector<16x48xf32>
    %34 = arith.addf %32, %33 : vector<16x48xf32>
    %c0_10 = arith.constant 0 : index
    %c0_11 = arith.constant 0 : index
    %35 = vector.load %arg5[%c0_10, %c0_11] : memref<1x48xf32, #tpu.memory_space<vmem>>, vector<1x48xf32>
    %c0_12 = arith.constant 0 : index
    %c0_13 = arith.constant 0 : index
    %36 = vector.load %arg6[%c0_12, %c0_13] : memref<1x48xf32, #tpu.memory_space<vmem>>, vector<1x48xf32>
    %cst_14 = arith.constant dense<0.000000e+00> : vector<16xf32>
    %37 = vector.multi_reduction <add>, %34, %cst_14 [1] : vector<16x48xf32> to vector<16xf32>
    %38 = vector.shape_cast %37 : vector<16xf32> to vector<16x1xf32>
    %cst_15 = arith.constant 4.800000e+01 : f32
    %39 = vector.broadcast %cst_15 : f32 to vector<16x1xf32>
    %40 = arith.divf %38, %39 : vector<16x1xf32>
    %41 = vector.broadcast %40 : vector<16x1xf32> to vector<16x48xf32>
    %42 = arith.subf %34, %41 : vector<16x48xf32>
    %43 = arith.mulf %42, %42 : vector<16x48xf32>
    %cst_16 = arith.constant dense<0.000000e+00> : vector<16xf32>
    %44 = vector.multi_reduction <add>, %43, %cst_16 [1] : vector<16x48xf32> to vector<16xf32>
    %45 = vector.shape_cast %44 : vector<16xf32> to vector<16x1xf32>
    %cst_17 = arith.constant 4.800000e+01 : f32
    %46 = vector.broadcast %cst_17 : f32 to vector<16x1xf32>
    %47 = arith.divf %45, %46 : vector<16x1xf32>
    %cst_18 = arith.constant 9.99999974E-6 : f32
    %48 = vector.broadcast %cst_18 : f32 to vector<16x1xf32>
    %49 = arith.addf %47, %48 : vector<16x1xf32>
    %50 = math.rsqrt %49 : vector<16x1xf32>
    %51 = vector.broadcast %50 : vector<16x1xf32> to vector<16x48xf32>
    %52 = arith.mulf %42, %51 : vector<16x48xf32>
    %53 = vector.broadcast %35 : vector<1x48xf32> to vector<16x48xf32>
    %54 = arith.mulf %52, %53 : vector<16x48xf32>
    %55 = vector.broadcast %36 : vector<1x48xf32> to vector<16x48xf32>
    %56 = arith.addf %54, %55 : vector<16x48xf32>
    %c0_19 = arith.constant 0 : index
    %c0_20 = arith.constant 0 : index
    %c0_21 = arith.constant 0 : index
    %57 = vector.load %arg15[%c0_19, %c0_20, %c0_21] : memref<2x1x48xf32, #tpu.memory_space<vmem>>, vector<1x1x48xf32>
    %58 = vector.shape_cast %57 : vector<1x1x48xf32> to vector<1x48xf32>
    %c0_22 = arith.constant 0 : index
    %c0_23 = arith.constant 0 : index
    %c0_24 = arith.constant 0 : index
    %59 = vector.load %arg16[%c0_22, %c0_23, %c0_24] : memref<2x1x48xf32, #tpu.memory_space<vmem>>, vector<1x1x48xf32>
    %60 = vector.shape_cast %59 : vector<1x1x48xf32> to vector<1x48xf32>
    %cst_25 = arith.constant dense<0.000000e+00> : vector<16xf32>
    %61 = vector.multi_reduction <add>, %56, %cst_25 [1] : vector<16x48xf32> to vector<16xf32>
    %62 = vector.shape_cast %61 : vector<16xf32> to vector<16x1xf32>
    %cst_26 = arith.constant 4.800000e+01 : f32
    %63 = vector.broadcast %cst_26 : f32 to vector<16x1xf32>
    %64 = arith.divf %62, %63 : vector<16x1xf32>
    %65 = vector.broadcast %64 : vector<16x1xf32> to vector<16x48xf32>
    %66 = arith.subf %56, %65 : vector<16x48xf32>
    %67 = arith.mulf %66, %66 : vector<16x48xf32>
    %cst_27 = arith.constant dense<0.000000e+00> : vector<16xf32>
    %68 = vector.multi_reduction <add>, %67, %cst_27 [1] : vector<16x48xf32> to vector<16xf32>
    %69 = vector.shape_cast %68 : vector<16xf32> to vector<16x1xf32>
    %cst_28 = arith.constant 4.800000e+01 : f32
    %70 = vector.broadcast %cst_28 : f32 to vector<16x1xf32>
    %71 = arith.divf %69, %70 : vector<16x1xf32>
    %cst_29 = arith.constant 9.99999974E-6 : f32
    %72 = vector.broadcast %cst_29 : f32 to vector<16x1xf32>
    %73 = arith.addf %71, %72 : vector<16x1xf32>
    %74 = math.rsqrt %73 : vector<16x1xf32>
    %75 = vector.broadcast %74 : vector<16x1xf32> to vector<16x48xf32>
    %76 = arith.mulf %66, %75 : vector<16x48xf32>
    %77 = vector.broadcast %58 : vector<1x48xf32> to vector<16x48xf32>
    %78 = arith.mulf %76, %77 : vector<16x48xf32>
    %79 = vector.broadcast %60 : vector<1x48xf32> to vector<16x48xf32>
    %80 = arith.addf %78, %79 : vector<16x48xf32>
    %c0_30 = arith.constant 0 : index
    %c0_31 = arith.constant 0 : index
    %c0_32 = arith.constant 0 : index
    %81 = vector.load %arg7[%c0_30, %c0_31, %c0_32] : memref<2x48x48xf32, #tpu.memory_space<vmem>>, vector<1x48x48xf32>
    %82 = vector.shape_cast %81 : vector<1x48x48xf32> to vector<48x48xf32>
    %c0_33 = arith.constant 0 : index
    %c0_34 = arith.constant 0 : index
    %c0_35 = arith.constant 0 : index
    %83 = vector.load %arg8[%c0_33, %c0_34, %c0_35] : memref<2x1x48xf32, #tpu.memory_space<vmem>>, vector<1x1x48xf32>
    %84 = vector.shape_cast %83 : vector<1x1x48xf32> to vector<1x48xf32>
    %c0_36 = arith.constant 0 : index
    %c0_37 = arith.constant 0 : index
    %c0_38 = arith.constant 0 : index
    %85 = vector.load %arg9[%c0_36, %c0_37, %c0_38] : memref<2x48x48xf32, #tpu.memory_space<vmem>>, vector<1x48x48xf32>
    %86 = vector.shape_cast %85 : vector<1x48x48xf32> to vector<48x48xf32>
    %c0_39 = arith.constant 0 : index
    %c0_40 = arith.constant 0 : index
    %c0_41 = arith.constant 0 : index
    %87 = vector.load %arg10[%c0_39, %c0_40, %c0_41] : memref<2x1x48xf32, #tpu.memory_space<vmem>>, vector<1x1x48xf32>
    %88 = vector.shape_cast %87 : vector<1x1x48xf32> to vector<1x48xf32>
    %c0_42 = arith.constant 0 : index
    %c0_43 = arith.constant 0 : index
    %c0_44 = arith.constant 0 : index
    %89 = vector.load %arg11[%c0_42, %c0_43, %c0_44] : memref<2x48x48xf32, #tpu.memory_space<vmem>>, vector<1x48x48xf32>
    %90 = vector.shape_cast %89 : vector<1x48x48xf32> to vector<48x48xf32>
    %c0_45 = arith.constant 0 : index
    %c0_46 = arith.constant 0 : index
    %c0_47 = arith.constant 0 : index
    %91 = vector.load %arg12[%c0_45, %c0_46, %c0_47] : memref<2x1x48xf32, #tpu.memory_space<vmem>>, vector<1x1x48xf32>
    %92 = vector.shape_cast %91 : vector<1x1x48xf32> to vector<1x48xf32>
    %c0_48 = arith.constant 0 : index
    %c0_49 = arith.constant 0 : index
    %c0_50 = arith.constant 0 : index
    %93 = vector.load %arg13[%c0_48, %c0_49, %c0_50] : memref<2x48x48xf32, #tpu.memory_space<vmem>>, vector<1x48x48xf32>
    %94 = vector.shape_cast %93 : vector<1x48x48xf32> to vector<48x48xf32>
    %c0_51 = arith.constant 0 : index
    %c0_52 = arith.constant 0 : index
    %c0_53 = arith.constant 0 : index
    %95 = vector.load %arg14[%c0_51, %c0_52, %c0_53] : memref<2x1x48xf32, #tpu.memory_space<vmem>>, vector<1x1x48xf32>
    %96 = vector.shape_cast %95 : vector<1x1x48xf32> to vector<1x48xf32>
    %cst_54 = arith.constant dense<0.000000e+00> : vector<16x48xf32>
    %97 = tpu.matmul %80, %82, %cst_54 {dimension_numbers = #tpu.dot_dimension_numbers<[1], [0], [0], [1], [0, 0, 1, 1], [], []>} : vector<16x48xf32>, vector<48x48xf32>, vector<16x48xf32> -> vector<16x48xf32>
    %98 = vector.broadcast %84 : vector<1x48xf32> to vector<16x48xf32>
    %99 = arith.addf %97, %98 : vector<16x48xf32>
    %cst_55 = arith.constant dense<0.000000e+00> : vector<16x48xf32>
    %100 = tpu.matmul %80, %86, %cst_55 {dimension_numbers = #tpu.dot_dimension_numbers<[1], [0], [0], [1], [0, 0, 1, 1], [], []>} : vector<16x48xf32>, vector<48x48xf32>, vector<16x48xf32> -> vector<16x48xf32>
    %101 = vector.broadcast %88 : vector<1x48xf32> to vector<16x48xf32>
    %102 = arith.addf %100, %101 : vector<16x48xf32>
    %cst_56 = arith.constant dense<0.000000e+00> : vector<16x48xf32>
    %103 = tpu.matmul %80, %90, %cst_56 {dimension_numbers = #tpu.dot_dimension_numbers<[1], [0], [0], [1], [0, 0, 1, 1], [], []>} : vector<16x48xf32>, vector<48x48xf32>, vector<16x48xf32> -> vector<16x48xf32>
    %104 = vector.broadcast %92 : vector<1x48xf32> to vector<16x48xf32>
    %105 = arith.addf %103, %104 : vector<16x48xf32>
    %cst_57 = arith.constant 0.000000e+00 : f32
    %106 = vector.broadcast %cst_57 : f32 to vector<16x48xf32>
    %107 = vector.broadcast %7 : vector<1x48xf32> to vector<16x48xf32>
    %108 = arith.mulf %102, %107 : vector<16x48xf32>
    %109 = vector.broadcast %7 : vector<1x48xf32> to vector<16x48xf32>
    %110 = arith.mulf %105, %109 : vector<16x48xf32>
    %111 = tpu.transpose %108, [1, 0] : vector<16x48xf32> -> vector<48x16xf32>
    %cst_58 = arith.constant dense<0.000000e+00> : vector<16x16xf32>
    %112 = tpu.matmul %99, %111, %cst_58 {dimension_numbers = #tpu.dot_dimension_numbers<[1], [0], [0], [1], [0, 0, 1, 1], [], []>} : vector<16x48xf32>, vector<48x16xf32>, vector<16x16xf32> -> vector<16x16xf32>
    %cst_59 = arith.constant 0.288675129 : f32
    %113 = vector.broadcast %cst_59 : f32 to vector<16x16xf32>
    %114 = arith.mulf %112, %113 : vector<16x16xf32>
    %115 = arith.addf %114, %29 : vector<16x16xf32>
    %cst_60 = arith.constant dense<0xFF800000> : vector<16xf32>
    %116 = vector.multi_reduction <maximumf>, %115, %cst_60 [1] : vector<16x16xf32> to vector<16xf32>
    %117 = vector.shape_cast %116 : vector<16xf32> to vector<16x1xf32>
    %118 = vector.broadcast %117 : vector<16x1xf32> to vector<16x16xf32>
    %119 = arith.subf %115, %118 : vector<16x16xf32>
    %120 = math.exp %119 : vector<16x16xf32>
    %cst_61 = arith.constant dense<0.000000e+00> : vector<16xf32>
    %121 = vector.multi_reduction <add>, %120, %cst_61 [1] : vector<16x16xf32> to vector<16xf32>
    %122 = vector.shape_cast %121 : vector<16xf32> to vector<16x1xf32>
    %123 = vector.broadcast %122 : vector<16x1xf32> to vector<16x16xf32>
    %124 = arith.divf %120, %123 : vector<16x16xf32>
    %cst_62 = arith.constant dense<0.000000e+00> : vector<16x48xf32>
    %125 = tpu.matmul %124, %110, %cst_62 {dimension_numbers = #tpu.dot_dimension_numbers<[1], [0], [0], [1], [0, 0, 1, 1], [], []>} : vector<16x16xf32>, vector<16x48xf32>, vector<16x48xf32> -> vector<16x48xf32>
    %126 = arith.addf %106, %125 : vector<16x48xf32>
    %127 = vector.broadcast %14 : vector<1x48xf32> to vector<16x48xf32>
    %128 = arith.mulf %102, %127 : vector<16x48xf32>
    %129 = vector.broadcast %14 : vector<1x48xf32> to vector<16x48xf32>
    %130 = arith.mulf %105, %129 : vector<16x48xf32>
    %131 = tpu.transpose %128, [1, 0] : vector<16x48xf32> -> vector<48x16xf32>
    %cst_63 = arith.constant dense<0.000000e+00> : vector<16x16xf32>
    %132 = tpu.matmul %99, %131, %cst_63 {dimension_numbers = #tpu.dot_dimension_numbers<[1], [0], [0], [1], [0, 0, 1, 1], [], []>} : vector<16x48xf32>, vector<48x16xf32>, vector<16x16xf32> -> vector<16x16xf32>
    %cst_64 = arith.constant 0.288675129 : f32
    %133 = vector.broadcast %cst_64 : f32 to vector<16x16xf32>
    %134 = arith.mulf %132, %133 : vector<16x16xf32>
    %135 = arith.addf %134, %29 : vector<16x16xf32>
    %cst_65 = arith.constant dense<0xFF800000> : vector<16xf32>
    %136 = vector.multi_reduction <maximumf>, %135, %cst_65 [1] : vector<16x16xf32> to vector<16xf32>
    %137 = vector.shape_cast %136 : vector<16xf32> to vector<16x1xf32>
    %138 = vector.broadcast %137 : vector<16x1xf32> to vector<16x16xf32>
    %139 = arith.subf %135, %138 : vector<16x16xf32>
    %140 = math.exp %139 : vector<16x16xf32>
    %cst_66 = arith.constant dense<0.000000e+00> : vector<16xf32>
    %141 = vector.multi_reduction <add>, %140, %cst_66 [1] : vector<16x16xf32> to vector<16xf32>
    %142 = vector.shape_cast %141 : vector<16xf32> to vector<16x1xf32>
    %143 = vector.broadcast %142 : vector<16x1xf32> to vector<16x16xf32>
    %144 = arith.divf %140, %143 : vector<16x16xf32>
    %cst_67 = arith.constant dense<0.000000e+00> : vector<16x48xf32>
    %145 = tpu.matmul %144, %130, %cst_67 {dimension_numbers = #tpu.dot_dimension_numbers<[1], [0], [0], [1], [0, 0, 1, 1], [], []>} : vector<16x16xf32>, vector<16x48xf32>, vector<16x48xf32> -> vector<16x48xf32>
    %146 = arith.addf %126, %145 : vector<16x48xf32>
    %147 = vector.broadcast %21 : vector<1x48xf32> to vector<16x48xf32>
    %148 = arith.mulf %102, %147 : vector<16x48xf32>
    %149 = vector.broadcast %21 : vector<1x48xf32> to vector<16x48xf32>
    %150 = arith.mulf %105, %149 : vector<16x48xf32>
    %151 = tpu.transpose %148, [1, 0] : vector<16x48xf32> -> vector<48x16xf32>
    %cst_68 = arith.constant dense<0.000000e+00> : vector<16x16xf32>
    %152 = tpu.matmul %99, %151, %cst_68 {dimension_numbers = #tpu.dot_dimension_numbers<[1], [0], [0], [1], [0, 0, 1, 1], [], []>} : vector<16x48xf32>, vector<48x16xf32>, vector<16x16xf32> -> vector<16x16xf32>
    %cst_69 = arith.constant 0.288675129 : f32
    %153 = vector.broadcast %cst_69 : f32 to vector<16x16xf32>
    %154 = arith.mulf %152, %153 : vector<16x16xf32>
    %155 = arith.addf %154, %29 : vector<16x16xf32>
    %cst_70 = arith.constant dense<0xFF800000> : vector<16xf32>
    %156 = vector.multi_reduction <maximumf>, %155, %cst_70 [1] : vector<16x16xf32> to vector<16xf32>
    %157 = vector.shape_cast %156 : vector<16xf32> to vector<16x1xf32>
    %158 = vector.broadcast %157 : vector<16x1xf32> to vector<16x16xf32>
    %159 = arith.subf %155, %158 : vector<16x16xf32>
    %160 = math.exp %159 : vector<16x16xf32>
    %cst_71 = arith.constant dense<0.000000e+00> : vector<16xf32>
    %161 = vector.multi_reduction <add>, %160, %cst_71 [1] : vector<16x16xf32> to vector<16xf32>
    %162 = vector.shape_cast %161 : vector<16xf32> to vector<16x1xf32>
    %163 = vector.broadcast %162 : vector<16x1xf32> to vector<16x16xf32>
    %164 = arith.divf %160, %163 : vector<16x16xf32>
    %cst_72 = arith.constant dense<0.000000e+00> : vector<16x48xf32>
    %165 = tpu.matmul %164, %150, %cst_72 {dimension_numbers = #tpu.dot_dimension_numbers<[1], [0], [0], [1], [0, 0, 1, 1], [], []>} : vector<16x16xf32>, vector<16x48xf32>, vector<16x48xf32> -> vector<16x48xf32>
    %166 = arith.addf %146, %165 : vector<16x48xf32>
    %167 = vector.broadcast %28 : vector<1x48xf32> to vector<16x48xf32>
    %168 = arith.mulf %102, %167 : vector<16x48xf32>
    %169 = vector.broadcast %28 : vector<1x48xf32> to vector<16x48xf32>
    %170 = arith.mulf %105, %169 : vector<16x48xf32>
    %171 = tpu.transpose %168, [1, 0] : vector<16x48xf32> -> vector<48x16xf32>
    %cst_73 = arith.constant dense<0.000000e+00> : vector<16x16xf32>
    %172 = tpu.matmul %99, %171, %cst_73 {dimension_numbers = #tpu.dot_dimension_numbers<[1], [0], [0], [1], [0, 0, 1, 1], [], []>} : vector<16x48xf32>, vector<48x16xf32>, vector<16x16xf32> -> vector<16x16xf32>
    %cst_74 = arith.constant 0.288675129 : f32
    %173 = vector.broadcast %cst_74 : f32 to vector<16x16xf32>
    %174 = arith.mulf %172, %173 : vector<16x16xf32>
    %175 = arith.addf %174, %29 : vector<16x16xf32>
    %cst_75 = arith.constant dense<0xFF800000> : vector<16xf32>
    %176 = vector.multi_reduction <maximumf>, %175, %cst_75 [1] : vector<16x16xf32> to vector<16xf32>
    %177 = vector.shape_cast %176 : vector<16xf32> to vector<16x1xf32>
    %178 = vector.broadcast %177 : vector<16x1xf32> to vector<16x16xf32>
    %179 = arith.subf %175, %178 : vector<16x16xf32>
    %180 = math.exp %179 : vector<16x16xf32>
    %cst_76 = arith.constant dense<0.000000e+00> : vector<16xf32>
    %181 = vector.multi_reduction <add>, %180, %cst_76 [1] : vector<16x16xf32> to vector<16xf32>
    %182 = vector.shape_cast %181 : vector<16xf32> to vector<16x1xf32>
    %183 = vector.broadcast %182 : vector<16x1xf32> to vector<16x16xf32>
    %184 = arith.divf %180, %183 : vector<16x16xf32>
    %cst_77 = arith.constant dense<0.000000e+00> : vector<16x48xf32>
    %185 = tpu.matmul %184, %170, %cst_77 {dimension_numbers = #tpu.dot_dimension_numbers<[1], [0], [0], [1], [0, 0, 1, 1], [], []>} : vector<16x16xf32>, vector<16x48xf32>, vector<16x48xf32> -> vector<16x48xf32>
    %186 = arith.addf %166, %185 : vector<16x48xf32>
    %cst_78 = arith.constant dense<0.000000e+00> : vector<16x48xf32>
    %187 = tpu.matmul %186, %94, %cst_78 {dimension_numbers = #tpu.dot_dimension_numbers<[1], [0], [0], [1], [0, 0, 1, 1], [], []>} : vector<16x48xf32>, vector<48x48xf32>, vector<16x48xf32> -> vector<16x48xf32>
    %188 = vector.broadcast %96 : vector<1x48xf32> to vector<16x48xf32>
    %189 = arith.addf %187, %188 : vector<16x48xf32>
    %190 = arith.addf %56, %189 : vector<16x48xf32>
    %c0_79 = arith.constant 0 : index
    %c0_80 = arith.constant 0 : index
    %c0_81 = arith.constant 0 : index
    %191 = vector.load %arg17[%c0_79, %c0_80, %c0_81] : memref<2x1x48xf32, #tpu.memory_space<vmem>>, vector<1x1x48xf32>
    %192 = vector.shape_cast %191 : vector<1x1x48xf32> to vector<1x48xf32>
    %c0_82 = arith.constant 0 : index
    %c0_83 = arith.constant 0 : index
    %c0_84 = arith.constant 0 : index
    %193 = vector.load %arg18[%c0_82, %c0_83, %c0_84] : memref<2x1x48xf32, #tpu.memory_space<vmem>>, vector<1x1x48xf32>
    %194 = vector.shape_cast %193 : vector<1x1x48xf32> to vector<1x48xf32>
    %cst_85 = arith.constant dense<0.000000e+00> : vector<16xf32>
    %195 = vector.multi_reduction <add>, %190, %cst_85 [1] : vector<16x48xf32> to vector<16xf32>
    %196 = vector.shape_cast %195 : vector<16xf32> to vector<16x1xf32>
    %cst_86 = arith.constant 4.800000e+01 : f32
    %197 = vector.broadcast %cst_86 : f32 to vector<16x1xf32>
    %198 = arith.divf %196, %197 : vector<16x1xf32>
    %199 = vector.broadcast %198 : vector<16x1xf32> to vector<16x48xf32>
    %200 = arith.subf %190, %199 : vector<16x48xf32>
    %201 = arith.mulf %200, %200 : vector<16x48xf32>
    %cst_87 = arith.constant dense<0.000000e+00> : vector<16xf32>
    %202 = vector.multi_reduction <add>, %201, %cst_87 [1] : vector<16x48xf32> to vector<16xf32>
    %203 = vector.shape_cast %202 : vector<16xf32> to vector<16x1xf32>
    %cst_88 = arith.constant 4.800000e+01 : f32
    %204 = vector.broadcast %cst_88 : f32 to vector<16x1xf32>
    %205 = arith.divf %203, %204 : vector<16x1xf32>
    %cst_89 = arith.constant 9.99999974E-6 : f32
    %206 = vector.broadcast %cst_89 : f32 to vector<16x1xf32>
    %207 = arith.addf %205, %206 : vector<16x1xf32>
    %208 = math.rsqrt %207 : vector<16x1xf32>
    %209 = vector.broadcast %208 : vector<16x1xf32> to vector<16x48xf32>
    %210 = arith.mulf %200, %209 : vector<16x48xf32>
    %211 = vector.broadcast %192 : vector<1x48xf32> to vector<16x48xf32>
    %212 = arith.mulf %210, %211 : vector<16x48xf32>
    %213 = vector.broadcast %194 : vector<1x48xf32> to vector<16x48xf32>
    %214 = arith.addf %212, %213 : vector<16x48xf32>
    %c0_90 = arith.constant 0 : index
    %c0_91 = arith.constant 0 : index
    %c0_92 = arith.constant 0 : index
    %215 = vector.load %arg19[%c0_90, %c0_91, %c0_92] : memref<2x48x192xf32, #tpu.memory_space<vmem>>, vector<1x48x192xf32>
    %216 = vector.shape_cast %215 : vector<1x48x192xf32> to vector<48x192xf32>
    %cst_93 = arith.constant dense<0.000000e+00> : vector<16x192xf32>
    %217 = tpu.matmul %214, %216, %cst_93 {dimension_numbers = #tpu.dot_dimension_numbers<[1], [0], [0], [1], [0, 0, 1, 1], [], []>} : vector<16x48xf32>, vector<48x192xf32>, vector<16x192xf32> -> vector<16x192xf32>
    %c0_94 = arith.constant 0 : index
    %c0_95 = arith.constant 0 : index
    %c0_96 = arith.constant 0 : index
    %218 = vector.load %arg20[%c0_94, %c0_95, %c0_96] : memref<2x1x192xf32, #tpu.memory_space<vmem>>, vector<1x1x192xf32>
    %219 = vector.shape_cast %218 : vector<1x1x192xf32> to vector<1x192xf32>
    %220 = vector.broadcast %219 : vector<1x192xf32> to vector<16x192xf32>
    %221 = arith.addf %217, %220 : vector<16x192xf32>
    %cst_97 = arith.constant 1.702000e+00 : f32
    %222 = vector.broadcast %cst_97 : f32 to vector<16x192xf32>
    %223 = arith.mulf %222, %221 : vector<16x192xf32>
    %224 = arith.negf %223 : vector<16x192xf32>
    %225 = math.exp %224 : vector<16x192xf32>
    %cst_98 = arith.constant 1.000000e+00 : f32
    %226 = vector.broadcast %cst_98 : f32 to vector<16x192xf32>
    %227 = arith.addf %226, %225 : vector<16x192xf32>
    %228 = arith.divf %226, %227 : vector<16x192xf32>
    %229 = arith.mulf %221, %228 : vector<16x192xf32>
    %c0_99 = arith.constant 0 : index
    %c0_100 = arith.constant 0 : index
    %c0_101 = arith.constant 0 : index
    %230 = vector.load %arg21[%c0_99, %c0_100, %c0_101] : memref<2x192x48xf32, #tpu.memory_space<vmem>>, vector<1x192x48xf32>
    %231 = vector.shape_cast %230 : vector<1x192x48xf32> to vector<192x48xf32>
    %cst_102 = arith.constant dense<0.000000e+00> : vector<16x48xf32>
    %232 = tpu.matmul %229, %231, %cst_102 {dimension_numbers = #tpu.dot_dimension_numbers<[1], [0], [0], [1], [0, 0, 1, 1], [], []>} : vector<16x192xf32>, vector<192x48xf32>, vector<16x48xf32> -> vector<16x48xf32>
    %c0_103 = arith.constant 0 : index
    %c0_104 = arith.constant 0 : index
    %c0_105 = arith.constant 0 : index
    %233 = vector.load %arg22[%c0_103, %c0_104, %c0_105] : memref<2x1x48xf32, #tpu.memory_space<vmem>>, vector<1x1x48xf32>
    %234 = vector.shape_cast %233 : vector<1x1x48xf32> to vector<1x48xf32>
    %235 = vector.broadcast %234 : vector<1x48xf32> to vector<16x48xf32>
    %236 = arith.addf %232, %235 : vector<16x48xf32>
    %237 = arith.addf %190, %236 : vector<16x48xf32>
    %c1 = arith.constant 1 : index
    %c0_106 = arith.constant 0 : index
    %c0_107 = arith.constant 0 : index
    %238 = vector.load %arg15[%c1, %c0_106, %c0_107] : memref<2x1x48xf32, #tpu.memory_space<vmem>>, vector<1x1x48xf32>
    %239 = vector.shape_cast %238 : vector<1x1x48xf32> to vector<1x48xf32>
    %c1_108 = arith.constant 1 : index
    %c0_109 = arith.constant 0 : index
    %c0_110 = arith.constant 0 : index
    %240 = vector.load %arg16[%c1_108, %c0_109, %c0_110] : memref<2x1x48xf32, #tpu.memory_space<vmem>>, vector<1x1x48xf32>
    %241 = vector.shape_cast %240 : vector<1x1x48xf32> to vector<1x48xf32>
    %cst_111 = arith.constant dense<0.000000e+00> : vector<16xf32>
    %242 = vector.multi_reduction <add>, %237, %cst_111 [1] : vector<16x48xf32> to vector<16xf32>
    %243 = vector.shape_cast %242 : vector<16xf32> to vector<16x1xf32>
    %cst_112 = arith.constant 4.800000e+01 : f32
    %244 = vector.broadcast %cst_112 : f32 to vector<16x1xf32>
    %245 = arith.divf %243, %244 : vector<16x1xf32>
    %246 = vector.broadcast %245 : vector<16x1xf32> to vector<16x48xf32>
    %247 = arith.subf %237, %246 : vector<16x48xf32>
    %248 = arith.mulf %247, %247 : vector<16x48xf32>
    %cst_113 = arith.constant dense<0.000000e+00> : vector<16xf32>
    %249 = vector.multi_reduction <add>, %248, %cst_113 [1] : vector<16x48xf32> to vector<16xf32>
    %250 = vector.shape_cast %249 : vector<16xf32> to vector<16x1xf32>
    %cst_114 = arith.constant 4.800000e+01 : f32
    %251 = vector.broadcast %cst_114 : f32 to vector<16x1xf32>
    %252 = arith.divf %250, %251 : vector<16x1xf32>
    %cst_115 = arith.constant 9.99999974E-6 : f32
    %253 = vector.broadcast %cst_115 : f32 to vector<16x1xf32>
    %254 = arith.addf %252, %253 : vector<16x1xf32>
    %255 = math.rsqrt %254 : vector<16x1xf32>
    %256 = vector.broadcast %255 : vector<16x1xf32> to vector<16x48xf32>
    %257 = arith.mulf %247, %256 : vector<16x48xf32>
    %258 = vector.broadcast %239 : vector<1x48xf32> to vector<16x48xf32>
    %259 = arith.mulf %257, %258 : vector<16x48xf32>
    %260 = vector.broadcast %241 : vector<1x48xf32> to vector<16x48xf32>
    %261 = arith.addf %259, %260 : vector<16x48xf32>
    %c1_116 = arith.constant 1 : index
    %c0_117 = arith.constant 0 : index
    %c0_118 = arith.constant 0 : index
    %262 = vector.load %arg7[%c1_116, %c0_117, %c0_118] : memref<2x48x48xf32, #tpu.memory_space<vmem>>, vector<1x48x48xf32>
    %263 = vector.shape_cast %262 : vector<1x48x48xf32> to vector<48x48xf32>
    %c1_119 = arith.constant 1 : index
    %c0_120 = arith.constant 0 : index
    %c0_121 = arith.constant 0 : index
    %264 = vector.load %arg8[%c1_119, %c0_120, %c0_121] : memref<2x1x48xf32, #tpu.memory_space<vmem>>, vector<1x1x48xf32>
    %265 = vector.shape_cast %264 : vector<1x1x48xf32> to vector<1x48xf32>
    %c1_122 = arith.constant 1 : index
    %c0_123 = arith.constant 0 : index
    %c0_124 = arith.constant 0 : index
    %266 = vector.load %arg9[%c1_122, %c0_123, %c0_124] : memref<2x48x48xf32, #tpu.memory_space<vmem>>, vector<1x48x48xf32>
    %267 = vector.shape_cast %266 : vector<1x48x48xf32> to vector<48x48xf32>
    %c1_125 = arith.constant 1 : index
    %c0_126 = arith.constant 0 : index
    %c0_127 = arith.constant 0 : index
    %268 = vector.load %arg10[%c1_125, %c0_126, %c0_127] : memref<2x1x48xf32, #tpu.memory_space<vmem>>, vector<1x1x48xf32>
    %269 = vector.shape_cast %268 : vector<1x1x48xf32> to vector<1x48xf32>
    %c1_128 = arith.constant 1 : index
    %c0_129 = arith.constant 0 : index
    %c0_130 = arith.constant 0 : index
    %270 = vector.load %arg11[%c1_128, %c0_129, %c0_130] : memref<2x48x48xf32, #tpu.memory_space<vmem>>, vector<1x48x48xf32>
    %271 = vector.shape_cast %270 : vector<1x48x48xf32> to vector<48x48xf32>
    %c1_131 = arith.constant 1 : index
    %c0_132 = arith.constant 0 : index
    %c0_133 = arith.constant 0 : index
    %272 = vector.load %arg12[%c1_131, %c0_132, %c0_133] : memref<2x1x48xf32, #tpu.memory_space<vmem>>, vector<1x1x48xf32>
    %273 = vector.shape_cast %272 : vector<1x1x48xf32> to vector<1x48xf32>
    %c1_134 = arith.constant 1 : index
    %c0_135 = arith.constant 0 : index
    %c0_136 = arith.constant 0 : index
    %274 = vector.load %arg13[%c1_134, %c0_135, %c0_136] : memref<2x48x48xf32, #tpu.memory_space<vmem>>, vector<1x48x48xf32>
    %275 = vector.shape_cast %274 : vector<1x48x48xf32> to vector<48x48xf32>
    %c1_137 = arith.constant 1 : index
    %c0_138 = arith.constant 0 : index
    %c0_139 = arith.constant 0 : index
    %276 = vector.load %arg14[%c1_137, %c0_138, %c0_139] : memref<2x1x48xf32, #tpu.memory_space<vmem>>, vector<1x1x48xf32>
    %277 = vector.shape_cast %276 : vector<1x1x48xf32> to vector<1x48xf32>
    %cst_140 = arith.constant dense<0.000000e+00> : vector<16x48xf32>
    %278 = tpu.matmul %261, %263, %cst_140 {dimension_numbers = #tpu.dot_dimension_numbers<[1], [0], [0], [1], [0, 0, 1, 1], [], []>} : vector<16x48xf32>, vector<48x48xf32>, vector<16x48xf32> -> vector<16x48xf32>
    %279 = vector.broadcast %265 : vector<1x48xf32> to vector<16x48xf32>
    %280 = arith.addf %278, %279 : vector<16x48xf32>
    %cst_141 = arith.constant dense<0.000000e+00> : vector<16x48xf32>
    %281 = tpu.matmul %261, %267, %cst_141 {dimension_numbers = #tpu.dot_dimension_numbers<[1], [0], [0], [1], [0, 0, 1, 1], [], []>} : vector<16x48xf32>, vector<48x48xf32>, vector<16x48xf32> -> vector<16x48xf32>
    %282 = vector.broadcast %269 : vector<1x48xf32> to vector<16x48xf32>
    %283 = arith.addf %281, %282 : vector<16x48xf32>
    %cst_142 = arith.constant dense<0.000000e+00> : vector<16x48xf32>
    %284 = tpu.matmul %261, %271, %cst_142 {dimension_numbers = #tpu.dot_dimension_numbers<[1], [0], [0], [1], [0, 0, 1, 1], [], []>} : vector<16x48xf32>, vector<48x48xf32>, vector<16x48xf32> -> vector<16x48xf32>
    %285 = vector.broadcast %273 : vector<1x48xf32> to vector<16x48xf32>
    %286 = arith.addf %284, %285 : vector<16x48xf32>
    %cst_143 = arith.constant 0.000000e+00 : f32
    %287 = vector.broadcast %cst_143 : f32 to vector<16x48xf32>
    %288 = vector.broadcast %7 : vector<1x48xf32> to vector<16x48xf32>
    %289 = arith.mulf %283, %288 : vector<16x48xf32>
    %290 = vector.broadcast %7 : vector<1x48xf32> to vector<16x48xf32>
    %291 = arith.mulf %286, %290 : vector<16x48xf32>
    %292 = tpu.transpose %289, [1, 0] : vector<16x48xf32> -> vector<48x16xf32>
    %cst_144 = arith.constant dense<0.000000e+00> : vector<16x16xf32>
    %293 = tpu.matmul %280, %292, %cst_144 {dimension_numbers = #tpu.dot_dimension_numbers<[1], [0], [0], [1], [0, 0, 1, 1], [], []>} : vector<16x48xf32>, vector<48x16xf32>, vector<16x16xf32> -> vector<16x16xf32>
    %cst_145 = arith.constant 0.288675129 : f32
    %294 = vector.broadcast %cst_145 : f32 to vector<16x16xf32>
    %295 = arith.mulf %293, %294 : vector<16x16xf32>
    %296 = arith.addf %295, %29 : vector<16x16xf32>
    %cst_146 = arith.constant dense<0xFF800000> : vector<16xf32>
    %297 = vector.multi_reduction <maximumf>, %296, %cst_146 [1] : vector<16x16xf32> to vector<16xf32>
    %298 = vector.shape_cast %297 : vector<16xf32> to vector<16x1xf32>
    %299 = vector.broadcast %298 : vector<16x1xf32> to vector<16x16xf32>
    %300 = arith.subf %296, %299 : vector<16x16xf32>
    %301 = math.exp %300 : vector<16x16xf32>
    %cst_147 = arith.constant dense<0.000000e+00> : vector<16xf32>
    %302 = vector.multi_reduction <add>, %301, %cst_147 [1] : vector<16x16xf32> to vector<16xf32>
    %303 = vector.shape_cast %302 : vector<16xf32> to vector<16x1xf32>
    %304 = vector.broadcast %303 : vector<16x1xf32> to vector<16x16xf32>
    %305 = arith.divf %301, %304 : vector<16x16xf32>
    %cst_148 = arith.constant dense<0.000000e+00> : vector<16x48xf32>
    %306 = tpu.matmul %305, %291, %cst_148 {dimension_numbers = #tpu.dot_dimension_numbers<[1], [0], [0], [1], [0, 0, 1, 1], [], []>} : vector<16x16xf32>, vector<16x48xf32>, vector<16x48xf32> -> vector<16x48xf32>
    %307 = arith.addf %287, %306 : vector<16x48xf32>
    %308 = vector.broadcast %14 : vector<1x48xf32> to vector<16x48xf32>
    %309 = arith.mulf %283, %308 : vector<16x48xf32>
    %310 = vector.broadcast %14 : vector<1x48xf32> to vector<16x48xf32>
    %311 = arith.mulf %286, %310 : vector<16x48xf32>
    %312 = tpu.transpose %309, [1, 0] : vector<16x48xf32> -> vector<48x16xf32>
    %cst_149 = arith.constant dense<0.000000e+00> : vector<16x16xf32>
    %313 = tpu.matmul %280, %312, %cst_149 {dimension_numbers = #tpu.dot_dimension_numbers<[1], [0], [0], [1], [0, 0, 1, 1], [], []>} : vector<16x48xf32>, vector<48x16xf32>, vector<16x16xf32> -> vector<16x16xf32>
    %cst_150 = arith.constant 0.288675129 : f32
    %314 = vector.broadcast %cst_150 : f32 to vector<16x16xf32>
    %315 = arith.mulf %313, %314 : vector<16x16xf32>
    %316 = arith.addf %315, %29 : vector<16x16xf32>
    %cst_151 = arith.constant dense<0xFF800000> : vector<16xf32>
    %317 = vector.multi_reduction <maximumf>, %316, %cst_151 [1] : vector<16x16xf32> to vector<16xf32>
    %318 = vector.shape_cast %317 : vector<16xf32> to vector<16x1xf32>
    %319 = vector.broadcast %318 : vector<16x1xf32> to vector<16x16xf32>
    %320 = arith.subf %316, %319 : vector<16x16xf32>
    %321 = math.exp %320 : vector<16x16xf32>
    %cst_152 = arith.constant dense<0.000000e+00> : vector<16xf32>
    %322 = vector.multi_reduction <add>, %321, %cst_152 [1] : vector<16x16xf32> to vector<16xf32>
    %323 = vector.shape_cast %322 : vector<16xf32> to vector<16x1xf32>
    %324 = vector.broadcast %323 : vector<16x1xf32> to vector<16x16xf32>
    %325 = arith.divf %321, %324 : vector<16x16xf32>
    %cst_153 = arith.constant dense<0.000000e+00> : vector<16x48xf32>
    %326 = tpu.matmul %325, %311, %cst_153 {dimension_numbers = #tpu.dot_dimension_numbers<[1], [0], [0], [1], [0, 0, 1, 1], [], []>} : vector<16x16xf32>, vector<16x48xf32>, vector<16x48xf32> -> vector<16x48xf32>
    %327 = arith.addf %307, %326 : vector<16x48xf32>
    %328 = vector.broadcast %21 : vector<1x48xf32> to vector<16x48xf32>
    %329 = arith.mulf %283, %328 : vector<16x48xf32>
    %330 = vector.broadcast %21 : vector<1x48xf32> to vector<16x48xf32>
    %331 = arith.mulf %286, %330 : vector<16x48xf32>
    %332 = tpu.transpose %329, [1, 0] : vector<16x48xf32> -> vector<48x16xf32>
    %cst_154 = arith.constant dense<0.000000e+00> : vector<16x16xf32>
    %333 = tpu.matmul %280, %332, %cst_154 {dimension_numbers = #tpu.dot_dimension_numbers<[1], [0], [0], [1], [0, 0, 1, 1], [], []>} : vector<16x48xf32>, vector<48x16xf32>, vector<16x16xf32> -> vector<16x16xf32>
    %cst_155 = arith.constant 0.288675129 : f32
    %334 = vector.broadcast %cst_155 : f32 to vector<16x16xf32>
    %335 = arith.mulf %333, %334 : vector<16x16xf32>
    %336 = arith.addf %335, %29 : vector<16x16xf32>
    %cst_156 = arith.constant dense<0xFF800000> : vector<16xf32>
    %337 = vector.multi_reduction <maximumf>, %336, %cst_156 [1] : vector<16x16xf32> to vector<16xf32>
    %338 = vector.shape_cast %337 : vector<16xf32> to vector<16x1xf32>
    %339 = vector.broadcast %338 : vector<16x1xf32> to vector<16x16xf32>
    %340 = arith.subf %336, %339 : vector<16x16xf32>
    %341 = math.exp %340 : vector<16x16xf32>
    %cst_157 = arith.constant dense<0.000000e+00> : vector<16xf32>
    %342 = vector.multi_reduction <add>, %341, %cst_157 [1] : vector<16x16xf32> to vector<16xf32>
    %343 = vector.shape_cast %342 : vector<16xf32> to vector<16x1xf32>
    %344 = vector.broadcast %343 : vector<16x1xf32> to vector<16x16xf32>
    %345 = arith.divf %341, %344 : vector<16x16xf32>
    %cst_158 = arith.constant dense<0.000000e+00> : vector<16x48xf32>
    %346 = tpu.matmul %345, %331, %cst_158 {dimension_numbers = #tpu.dot_dimension_numbers<[1], [0], [0], [1], [0, 0, 1, 1], [], []>} : vector<16x16xf32>, vector<16x48xf32>, vector<16x48xf32> -> vector<16x48xf32>
    %347 = arith.addf %327, %346 : vector<16x48xf32>
    %348 = vector.broadcast %28 : vector<1x48xf32> to vector<16x48xf32>
    %349 = arith.mulf %283, %348 : vector<16x48xf32>
    %350 = vector.broadcast %28 : vector<1x48xf32> to vector<16x48xf32>
    %351 = arith.mulf %286, %350 : vector<16x48xf32>
    %352 = tpu.transpose %349, [1, 0] : vector<16x48xf32> -> vector<48x16xf32>
    %cst_159 = arith.constant dense<0.000000e+00> : vector<16x16xf32>
    %353 = tpu.matmul %280, %352, %cst_159 {dimension_numbers = #tpu.dot_dimension_numbers<[1], [0], [0], [1], [0, 0, 1, 1], [], []>} : vector<16x48xf32>, vector<48x16xf32>, vector<16x16xf32> -> vector<16x16xf32>
    %cst_160 = arith.constant 0.288675129 : f32
    %354 = vector.broadcast %cst_160 : f32 to vector<16x16xf32>
    %355 = arith.mulf %353, %354 : vector<16x16xf32>
    %356 = arith.addf %355, %29 : vector<16x16xf32>
    %cst_161 = arith.constant dense<0xFF800000> : vector<16xf32>
    %357 = vector.multi_reduction <maximumf>, %356, %cst_161 [1] : vector<16x16xf32> to vector<16xf32>
    %358 = vector.shape_cast %357 : vector<16xf32> to vector<16x1xf32>
    %359 = vector.broadcast %358 : vector<16x1xf32> to vector<16x16xf32>
    %360 = arith.subf %356, %359 : vector<16x16xf32>
    %361 = math.exp %360 : vector<16x16xf32>
    %cst_162 = arith.constant dense<0.000000e+00> : vector<16xf32>
    %362 = vector.multi_reduction <add>, %361, %cst_162 [1] : vector<16x16xf32> to vector<16xf32>
    %363 = vector.shape_cast %362 : vector<16xf32> to vector<16x1xf32>
    %364 = vector.broadcast %363 : vector<16x1xf32> to vector<16x16xf32>
    %365 = arith.divf %361, %364 : vector<16x16xf32>
    %cst_163 = arith.constant dense<0.000000e+00> : vector<16x48xf32>
    %366 = tpu.matmul %365, %351, %cst_163 {dimension_numbers = #tpu.dot_dimension_numbers<[1], [0], [0], [1], [0, 0, 1, 1], [], []>} : vector<16x16xf32>, vector<16x48xf32>, vector<16x48xf32> -> vector<16x48xf32>
    %367 = arith.addf %347, %366 : vector<16x48xf32>
    %cst_164 = arith.constant dense<0.000000e+00> : vector<16x48xf32>
    %368 = tpu.matmul %367, %275, %cst_164 {dimension_numbers = #tpu.dot_dimension_numbers<[1], [0], [0], [1], [0, 0, 1, 1], [], []>} : vector<16x48xf32>, vector<48x48xf32>, vector<16x48xf32> -> vector<16x48xf32>
    %369 = vector.broadcast %277 : vector<1x48xf32> to vector<16x48xf32>
    %370 = arith.addf %368, %369 : vector<16x48xf32>
    %371 = arith.addf %237, %370 : vector<16x48xf32>
    %c1_165 = arith.constant 1 : index
    %c0_166 = arith.constant 0 : index
    %c0_167 = arith.constant 0 : index
    %372 = vector.load %arg17[%c1_165, %c0_166, %c0_167] : memref<2x1x48xf32, #tpu.memory_space<vmem>>, vector<1x1x48xf32>
    %373 = vector.shape_cast %372 : vector<1x1x48xf32> to vector<1x48xf32>
    %c1_168 = arith.constant 1 : index
    %c0_169 = arith.constant 0 : index
    %c0_170 = arith.constant 0 : index
    %374 = vector.load %arg18[%c1_168, %c0_169, %c0_170] : memref<2x1x48xf32, #tpu.memory_space<vmem>>, vector<1x1x48xf32>
    %375 = vector.shape_cast %374 : vector<1x1x48xf32> to vector<1x48xf32>
    %cst_171 = arith.constant dense<0.000000e+00> : vector<16xf32>
    %376 = vector.multi_reduction <add>, %371, %cst_171 [1] : vector<16x48xf32> to vector<16xf32>
    %377 = vector.shape_cast %376 : vector<16xf32> to vector<16x1xf32>
    %cst_172 = arith.constant 4.800000e+01 : f32
    %378 = vector.broadcast %cst_172 : f32 to vector<16x1xf32>
    %379 = arith.divf %377, %378 : vector<16x1xf32>
    %380 = vector.broadcast %379 : vector<16x1xf32> to vector<16x48xf32>
    %381 = arith.subf %371, %380 : vector<16x48xf32>
    %382 = arith.mulf %381, %381 : vector<16x48xf32>
    %cst_173 = arith.constant dense<0.000000e+00> : vector<16xf32>
    %383 = vector.multi_reduction <add>, %382, %cst_173 [1] : vector<16x48xf32> to vector<16xf32>
    %384 = vector.shape_cast %383 : vector<16xf32> to vector<16x1xf32>
    %cst_174 = arith.constant 4.800000e+01 : f32
    %385 = vector.broadcast %cst_174 : f32 to vector<16x1xf32>
    %386 = arith.divf %384, %385 : vector<16x1xf32>
    %cst_175 = arith.constant 9.99999974E-6 : f32
    %387 = vector.broadcast %cst_175 : f32 to vector<16x1xf32>
    %388 = arith.addf %386, %387 : vector<16x1xf32>
    %389 = math.rsqrt %388 : vector<16x1xf32>
    %390 = vector.broadcast %389 : vector<16x1xf32> to vector<16x48xf32>
    %391 = arith.mulf %381, %390 : vector<16x48xf32>
    %392 = vector.broadcast %373 : vector<1x48xf32> to vector<16x48xf32>
    %393 = arith.mulf %391, %392 : vector<16x48xf32>
    %394 = vector.broadcast %375 : vector<1x48xf32> to vector<16x48xf32>
    %395 = arith.addf %393, %394 : vector<16x48xf32>
    %c1_176 = arith.constant 1 : index
    %c0_177 = arith.constant 0 : index
    %c0_178 = arith.constant 0 : index
    %396 = vector.load %arg19[%c1_176, %c0_177, %c0_178] : memref<2x48x192xf32, #tpu.memory_space<vmem>>, vector<1x48x192xf32>
    %397 = vector.shape_cast %396 : vector<1x48x192xf32> to vector<48x192xf32>
    %cst_179 = arith.constant dense<0.000000e+00> : vector<16x192xf32>
    %398 = tpu.matmul %395, %397, %cst_179 {dimension_numbers = #tpu.dot_dimension_numbers<[1], [0], [0], [1], [0, 0, 1, 1], [], []>} : vector<16x48xf32>, vector<48x192xf32>, vector<16x192xf32> -> vector<16x192xf32>
    %c1_180 = arith.constant 1 : index
    %c0_181 = arith.constant 0 : index
    %c0_182 = arith.constant 0 : index
    %399 = vector.load %arg20[%c1_180, %c0_181, %c0_182] : memref<2x1x192xf32, #tpu.memory_space<vmem>>, vector<1x1x192xf32>
    %400 = vector.shape_cast %399 : vector<1x1x192xf32> to vector<1x192xf32>
    %401 = vector.broadcast %400 : vector<1x192xf32> to vector<16x192xf32>
    %402 = arith.addf %398, %401 : vector<16x192xf32>
    %cst_183 = arith.constant 1.702000e+00 : f32
    %403 = vector.broadcast %cst_183 : f32 to vector<16x192xf32>
    %404 = arith.mulf %403, %402 : vector<16x192xf32>
    %405 = arith.negf %404 : vector<16x192xf32>
    %406 = math.exp %405 : vector<16x192xf32>
    %cst_184 = arith.constant 1.000000e+00 : f32
    %407 = vector.broadcast %cst_184 : f32 to vector<16x192xf32>
    %408 = arith.addf %407, %406 : vector<16x192xf32>
    %409 = arith.divf %407, %408 : vector<16x192xf32>
    %410 = arith.mulf %402, %409 : vector<16x192xf32>
    %c1_185 = arith.constant 1 : index
    %c0_186 = arith.constant 0 : index
    %c0_187 = arith.constant 0 : index
    %411 = vector.load %arg21[%c1_185, %c0_186, %c0_187] : memref<2x192x48xf32, #tpu.memory_space<vmem>>, vector<1x192x48xf32>
    %412 = vector.shape_cast %411 : vector<1x192x48xf32> to vector<192x48xf32>
    %cst_188 = arith.constant dense<0.000000e+00> : vector<16x48xf32>
    %413 = tpu.matmul %410, %412, %cst_188 {dimension_numbers = #tpu.dot_dimension_numbers<[1], [0], [0], [1], [0, 0, 1, 1], [], []>} : vector<16x192xf32>, vector<192x48xf32>, vector<16x48xf32> -> vector<16x48xf32>
    %c1_189 = arith.constant 1 : index
    %c0_190 = arith.constant 0 : index
    %c0_191 = arith.constant 0 : index
    %414 = vector.load %arg22[%c1_189, %c0_190, %c0_191] : memref<2x1x48xf32, #tpu.memory_space<vmem>>, vector<1x1x48xf32>
    %415 = vector.shape_cast %414 : vector<1x1x48xf32> to vector<1x48xf32>
    %416 = vector.broadcast %415 : vector<1x48xf32> to vector<16x48xf32>
    %417 = arith.addf %413, %416 : vector<16x48xf32>
    %418 = arith.addf %371, %417 : vector<16x48xf32>
    %419 = tpu.iota {dimensions = array<i32: 0>} : vector<2x16xi32>
    %420 = tpu.iota {dimensions = array<i32: 1>} : vector<2x16xi32>
    %c8_i32 = arith.constant 8 : i32
    %421 = vector.broadcast %c8_i32 : i32 to vector<2x16xi32>
    %422 = arith.muli %419, %421 : vector<2x16xi32>
    %423 = arith.cmpi eq, %420, %422 : vector<2x16xi32>
    %424 = arith.extui %423 : vector<2x16xi1> to vector<2x16xi32>
    %425 = arith.sitofp %424 : vector<2x16xi32> to vector<2x16xf32>
    %cst_192 = arith.constant dense<0.000000e+00> : vector<2x48xf32>
    %426 = tpu.matmul %425, %418, %cst_192 {dimension_numbers = #tpu.dot_dimension_numbers<[1], [0], [0], [1], [0, 0, 1, 1], [], []>} : vector<2x16xf32>, vector<16x48xf32>, vector<2x48xf32> -> vector<2x48xf32>
    %c0_193 = arith.constant 0 : index
    %c0_194 = arith.constant 0 : index
    %427 = vector.load %arg23[%c0_193, %c0_194] : memref<1x48xf32, #tpu.memory_space<vmem>>, vector<1x48xf32>
    %c0_195 = arith.constant 0 : index
    %c0_196 = arith.constant 0 : index
    %428 = vector.load %arg24[%c0_195, %c0_196] : memref<1x48xf32, #tpu.memory_space<vmem>>, vector<1x48xf32>
    %cst_197 = arith.constant dense<0.000000e+00> : vector<2xf32>
    %429 = vector.multi_reduction <add>, %426, %cst_197 [1] : vector<2x48xf32> to vector<2xf32>
    %430 = vector.shape_cast %429 : vector<2xf32> to vector<2x1xf32>
    %cst_198 = arith.constant 4.800000e+01 : f32
    %431 = vector.broadcast %cst_198 : f32 to vector<2x1xf32>
    %432 = arith.divf %430, %431 : vector<2x1xf32>
    %433 = vector.broadcast %432 : vector<2x1xf32> to vector<2x48xf32>
    %434 = arith.subf %426, %433 : vector<2x48xf32>
    %435 = arith.mulf %434, %434 : vector<2x48xf32>
    %cst_199 = arith.constant dense<0.000000e+00> : vector<2xf32>
    %436 = vector.multi_reduction <add>, %435, %cst_199 [1] : vector<2x48xf32> to vector<2xf32>
    %437 = vector.shape_cast %436 : vector<2xf32> to vector<2x1xf32>
    %cst_200 = arith.constant 4.800000e+01 : f32
    %438 = vector.broadcast %cst_200 : f32 to vector<2x1xf32>
    %439 = arith.divf %437, %438 : vector<2x1xf32>
    %cst_201 = arith.constant 9.99999974E-6 : f32
    %440 = vector.broadcast %cst_201 : f32 to vector<2x1xf32>
    %441 = arith.addf %439, %440 : vector<2x1xf32>
    %442 = math.rsqrt %441 : vector<2x1xf32>
    %443 = vector.broadcast %442 : vector<2x1xf32> to vector<2x48xf32>
    %444 = arith.mulf %434, %443 : vector<2x48xf32>
    %445 = vector.broadcast %427 : vector<1x48xf32> to vector<2x48xf32>
    %446 = arith.mulf %444, %445 : vector<2x48xf32>
    %447 = vector.broadcast %428 : vector<1x48xf32> to vector<2x48xf32>
    %448 = arith.addf %446, %447 : vector<2x48xf32>
    %c0_202 = arith.constant 0 : index
    %c0_203 = arith.constant 0 : index
    %449 = vector.load %arg3[%c0_202, %c0_203] : memref<2x32xf32, #tpu.memory_space<vmem>>, vector<2x32xf32>
    %c0_204 = arith.constant 0 : index
    %c0_205 = arith.constant 0 : index
    %450 = vector.load %arg25[%c0_204, %c0_205] : memref<32x3xf32, #tpu.memory_space<vmem>>, vector<32x3xf32>
    %cst_206 = arith.constant dense<0.000000e+00> : vector<2x3xf32>
    %451 = tpu.matmul %449, %450, %cst_206 {dimension_numbers = #tpu.dot_dimension_numbers<[1], [0], [0], [1], [0, 0, 1, 1], [], []>} : vector<2x32xf32>, vector<32x3xf32>, vector<2x3xf32> -> vector<2x3xf32>
    %c0_207 = arith.constant 0 : index
    %c0_208 = arith.constant 0 : index
    %452 = vector.load %arg26[%c0_207, %c0_208] : memref<48x3xf32, #tpu.memory_space<vmem>>, vector<48x3xf32>
    %cst_209 = arith.constant dense<0.000000e+00> : vector<2x3xf32>
    %453 = tpu.matmul %448, %452, %cst_209 {dimension_numbers = #tpu.dot_dimension_numbers<[1], [0], [0], [1], [0, 0, 1, 1], [], []>} : vector<2x48xf32>, vector<48x3xf32>, vector<2x3xf32> -> vector<2x3xf32>
    %454 = arith.addf %451, %453 : vector<2x3xf32>
    %c0_210 = arith.constant 0 : index
    %c0_211 = arith.constant 0 : index
    %455 = vector.load %arg27[%c0_210, %c0_211] : memref<1x3xf32, #tpu.memory_space<vmem>>, vector<1x3xf32>
    %456 = vector.broadcast %455 : vector<1x3xf32> to vector<2x3xf32>
    %457 = arith.addf %454, %456 : vector<2x3xf32>
    %c0_212 = arith.constant 0 : index
    %c0_213 = arith.constant 0 : index
    %458 = vector.load %arg28[%c0_212, %c0_213] : memref<2x3xf32, #tpu.memory_space<vmem>>, vector<2x3xf32>
    tpu.vector_store %arg28[%c0_212, %c0_213], %457 {strides = array<i32>} : memref<2x3xf32, #tpu.memory_space<vmem>>, vector<2x3xf32>,
    return
  }
}

</mosaic_0001>

<llo_original>
// kernel: model_forward.2
$region0: #{model_forward.2}
  #allocation0 [shape = 'u32[]', space=smem, size = 0x4, offset = 0x4, fixed_abs, tag = 'smem constant byte address 0x4 - core index']
  #allocation1 [shape = 'u32[144,128]{1,0:T(1,128)}', space=vmem, size = 0x12000, scoped, tag = 'internal scratch']
  %s0 = inlined_call_operand.vmem [shape: f32[16,32], index: 0, kind: input, shape index: {}]
  %s1 = inlined_call_operand.vmem [shape: f32[16,16], index: 1, kind: input, shape index: {}]
  %s2 = inlined_call_operand.vmem [shape: f32[1,32], index: 2, kind: input, shape index: {}]
  %s3 = inlined_call_operand.vmem [shape: f32[1,32], index: 3, kind: input, shape index: {}]
  %s4 = inlined_call_operand.vmem [shape: f32[2,32,32], index: 4, kind: input, shape index: {}]
  %s5 = inlined_call_operand.vmem [shape: f32[2,1,32], index: 5, kind: input, shape index: {}]
  %s6 = inlined_call_operand.vmem [shape: f32[2,32,32], index: 6, kind: input, shape index: {}]
  %s7 = inlined_call_operand.vmem [shape: f32[2,1,32], index: 7, kind: input, shape index: {}]
  %s8 = inlined_call_operand.vmem [shape: f32[2,32,32], index: 8, kind: input, shape index: {}]
  %s9 = inlined_call_operand.vmem [shape: f32[2,1,32], index: 9, kind: input, shape index: {}]
  %s10 = inlined_call_operand.vmem [shape: f32[2,32,32], index: 10, kind: input, shape index: {}]
  %s11 = inlined_call_operand.vmem [shape: f32[2,1,32], index: 11, kind: input, shape index: {}]
  %s12 = inlined_call_operand.vmem [shape: f32[2,1,32], index: 12, kind: input, shape index: {}]
  %s13 = inlined_call_operand.vmem [shape: f32[2,1,32], index: 13, kind: input, shape index: {}]
  %s14 = inlined_call_operand.vmem [shape: f32[2,32,128], index: 14, kind: input, shape index: {}]
  %s15 = inlined_call_operand.vmem [shape: f32[2,1,128], index: 15, kind: input, shape index: {}]
  %s16 = inlined_call_operand.vmem [shape: f32[2,128,32], index: 16, kind: input, shape index: {}]
  %s17 = inlined_call_operand.vmem [shape: f32[2,1,32], index: 17, kind: input, shape index: {}]
  %s18 = inlined_call_operand.vmem [shape: f32[2,1,32], index: 18, kind: input, shape index: {}]
  %s19 = inlined_call_operand.vmem [shape: f32[2,1,32], index: 19, kind: input, shape index: {}]
  %s20 = inlined_call_operand.vmem [shape: f32[32,32], index: 20, kind: input, shape index: {}]
  %s21 = inlined_call_operand.vmem [shape: f32[1,32], index: 21, kind: input, shape index: {}]
  %s22 = inlined_call_operand.vmem [shape: f32[2,32], index: 22, kind: output, shape index: {}]
  %s23 = sld [smem:[#allocation0]]
  $region98: #{model_forward.2} parent=0
    _
  %s25 = ssub.s32 1, %s23
  %s26 = scalar_select 0, %s25, %s23
  // Predicated region
  $region2: #{model_forward.2} parent=0 // pred_check
    _
  $region3: #{model_forward.2} parent=0 // pred_check_branch
    %28 = sbr.rel (0) target = $region5
  $region4: #{model_forward.2} parent=0 // pred_region
    _
  $region5: #{model_forward.2} parent=0 // pred_fallthru
    _
  // Predicated region
  $region6: #{model_forward.2} parent=0 // pred_check
    _
  $region7: #{model_forward.2} parent=0 // pred_check_branch
    %30 = sbr.rel (0) target = $region9
  $region8: #{model_forward.2} parent=0 // pred_region
    _
  $region9: #{model_forward.2} parent=0 // pred_fallthru
    _
  // Predicated region
  $region10: #{model_forward.2} parent=0 // pred_check
    _
  $region11: #{model_forward.2} parent=0 // pred_check_branch
    %32 = sbr.rel (0) target = $region13
  $region12: #{model_forward.2} parent=0 // pred_region
    _
  $region13: #{model_forward.2} parent=0 // pred_fallthru
    _
  // Predicated region
  $region14: #{model_forward.2} parent=0 // pred_check
    _
  $region15: #{model_forward.2} parent=0 // pred_check_branch
    %34 = sbr.rel (0) target = $region17
  $region16: #{model_forward.2} parent=0 // pred_region
    _
  $region17: #{model_forward.2} parent=0 // pred_fallthru
    _
  // Predicated region
  $region18: #{model_forward.2} parent=0 // pred_check
    _
  $region19: #{model_forward.2} parent=0 // pred_check_branch
    %36 = sbr.rel (0) target = $region21
  $region20: #{model_forward.2} parent=0 // pred_region
    _
  $region21: #{model_forward.2} parent=0 // pred_fallthru
    _
  // Predicated region
  $region22: #{model_forward.2} parent=0 // pred_check
    _
  $region23: #{model_forward.2} parent=0 // pred_check_branch
    %38 = sbr.rel (0) target = $region25
  $region24: #{model_forward.2} parent=0 // pred_region
    _
  $region25: #{model_forward.2} parent=0 // pred_fallthru
    _
  // Predicated region
  $region26: #{model_forward.2} parent=0 // pred_check
    _
  $region27: #{model_forward.2} parent=0 // pred_check_branch
    %40 = sbr.rel (0) target = $region29
  $region28: #{model_forward.2} parent=0 // pred_region
    _
  $region29: #{model_forward.2} parent=0 // pred_fallthru
    _
  // Predicated region
  $region30: #{model_forward.2} parent=0 // pred_check
    _
  $region31: #{model_forward.2} parent=0 // pred_check_branch
    %42 = sbr.rel (0) target = $region33
  $region32: #{model_forward.2} parent=0 // pred_region
    _
  $region33: #{model_forward.2} parent=0 // pred_fallthru
    _
  // Predicated region
  $region34: #{model_forward.2} parent=0 // pred_check
    _
  $region35: #{model_forward.2} parent=0 // pred_check_branch
    %44 = sbr.rel (0) target = $region37
  $region36: #{model_forward.2} parent=0 // pred_region
    _
  $region37: #{model_forward.2} parent=0 // pred_fallthru
    _
  // Predicated region
  $region38: #{model_forward.2} parent=0 // pred_check
    _
  $region39: #{model_forward.2} parent=0 // pred_check_branch
    %46 = sbr.rel (0) target = $region41
  $region40: #{model_forward.2} parent=0 // pred_region
    _
  $region41: #{model_forward.2} parent=0 // pred_fallthru
    _
  // Predicated region
  $region42: #{model_forward.2} parent=0 // pred_check
    _
  $region43: #{model_forward.2} parent=0 // pred_check_branch
    %48 = sbr.rel (0) target = $region45
  $region44: #{model_forward.2} parent=0 // pred_region
    _
  $region45: #{model_forward.2} parent=0 // pred_fallthru
    _
  // Predicated region
  $region46: #{model_forward.2} parent=0 // pred_check
    _
  $region47: #{model_forward.2} parent=0 // pred_check_branch
    %50 = sbr.rel (0) target = $region49
  $region48: #{model_forward.2} parent=0 // pred_region
    _
  $region49: #{model_forward.2} parent=0 // pred_fallthru
    _
  // Predicated region
  $region50: #{model_forward.2} parent=0 // pred_check
    _
  $region51: #{model_forward.2} parent=0 // pred_check_branch
    %52 = sbr.rel (0) target = $region53
  $region52: #{model_forward.2} parent=0 // pred_region
    _
  $region53: #{model_forward.2} parent=0 // pred_fallthru
    _
  // Predicated region
  $region54: #{model_forward.2} parent=0 // pred_check
    _
  $region55: #{model_forward.2} parent=0 // pred_check_branch
    %54 = sbr.rel (0) target = $region57
  $region56: #{model_forward.2} parent=0 // pred_region
    _
  $region57: #{model_forward.2} parent=0 // pred_fallthru
    _
  // Predicated region
  $region58: #{model_forward.2} parent=0 // pred_check
    _
  $region59: #{model_forward.2} parent=0 // pred_check_branch
    %56 = sbr.rel (0) target = $region61
  $region60: #{model_forward.2} parent=0 // pred_region
    _
  $region61: #{model_forward.2} parent=0 // pred_fallthru
    _
  // Predicated region
  $region62: #{model_forward.2} parent=0 // pred_check
    _
  $region63: #{model_forward.2} parent=0 // pred_check_branch
    %58 = sbr.rel (0) target = $region65
  $region64: #{model_forward.2} parent=0 // pred_region
    _
  $region65: #{model_forward.2} parent=0 // pred_fallthru
    _
  // Predicated region
  $region66: #{model_forward.2} parent=0 // pred_check
    _
  $region67: #{model_forward.2} parent=0 // pred_check_branch
    %60 = sbr.rel (0) target = $region69
  $region68: #{model_forward.2} parent=0 // pred_region
    _
  $region69: #{model_forward.2} parent=0 // pred_fallthru
    _
  // Predicated region
  $region70: #{model_forward.2} parent=0 // pred_check
    _
  $region71: #{model_forward.2} parent=0 // pred_check_branch
    %62 = sbr.rel (0) target = $region73
  $region72: #{model_forward.2} parent=0 // pred_region
    _
  $region73: #{model_forward.2} parent=0 // pred_fallthru
    _
  // Predicated region
  $region74: #{model_forward.2} parent=0 // pred_check
    _
  $region75: #{model_forward.2} parent=0 // pred_check_branch
    %64 = sbr.rel (0) target = $region77
  $region76: #{model_forward.2} parent=0 // pred_region
    _
  $region77: #{model_forward.2} parent=0 // pred_fallthru
    _
  // Predicated region
  $region78: #{model_forward.2} parent=0 // pred_check
    _
  $region79: #{model_forward.2} parent=0 // pred_check_branch
    %66 = sbr.rel (0) target = $region81
  $region80: #{model_forward.2} parent=0 // pred_region
    _
  $region81: #{model_forward.2} parent=0 // pred_fallthru
    _
  // Predicated region
  $region82: #{model_forward.2} parent=0 // pred_check
    _
  $region83: #{model_forward.2} parent=0 // pred_check_branch
    %68 = sbr.rel (0) target = $region85
  $region84: #{model_forward.2} parent=0 // pred_region
    _
  $region85: #{model_forward.2} parent=0 // pred_fallthru
    _
  // Predicated region
  $region86: #{model_forward.2} parent=0 // pred_check
    _
  $region87: #{model_forward.2} parent=0 // pred_check_branch
    %70 = sbr.rel (0) target = $region89
  $region88: #{model_forward.2} parent=0 // pred_region
    _
  $region89: #{model_forward.2} parent=0 // pred_fallthru
    _
  %v71 = vlaneseq
  %v72 = vand.u32 %v71, 127
  %vm73 = vcmp.ge.s32.totalorder %v72, 0
  %vm74 = vcmp.lt.s32.totalorder %v72, 8
  %vm75 = vmand %vm73, %vm74
  %v76 = vsel %vm75, 1, 0
  %v77 = vcvt.s32.f32 %v76
  %vm78 = vcmp.ge.s32.totalorder %v72, 8
  %vm79 = vcmp.lt.s32.totalorder %v72, 16
  %vm80 = vmand %vm78, %vm79
  %v81 = vsel %vm80, 1, 0
  %v82 = vcvt.s32.f32 %v81
  %vm83 = vcmp.ge.s32.totalorder %v72, 16
  %vm84 = vcmp.lt.s32.totalorder %v72, 24
  %vm85 = vmand %vm83, %vm84
  %v86 = vsel %vm85, 1, 0
  %v87 = vcvt.s32.f32 %v86
  %vm88 = vcmp.ge.s32.totalorder %v72, 24
  %vm89 = vcmp.lt.s32.totalorder %v72, 32
  %vm90 = vmand %vm88, %vm89
  %v91 = vsel %vm90, 1, 0
  %v92 = vcvt.s32.f32 %v91
  %v93 = vld [vmem:[%s1] sm:$0xff]
  %v94 = vld [vmem:[%s1 + $0x8] sm:$0xff]
  %v95 = vld [vmem:[%s0] sm:$0xff]
  %v96 = vld [vmem:[%s0 + $0x8] sm:$0xff]
  %v97 = vld [vmem:[%s2] sm:$0x1]
  %v98 = vld [vmem:[%s3] sm:$0x1]
  %vm99 = vcmask 261120
  %v100 = vsel %vm99, %v95, 0.0
  %101 = vadd.xlane.f32.xlu0 %v100
  %v102 = vpop.xlane.xlu0 %101
  %v103 = vsel %vm99, %v96, 0.0
  %104 = vadd.xlane.f32.xlu0 %v103
  %v105 = vpop.xlane.xlu0 %104
  %v106 = vrcp.pop 32.0
  %v107 = vmul.f32 %v102, %v106
  %v108 = vmul.f32 %v105, %v106
  %v109 = vsub.f32 %v95, %v107
  %v110 = vsub.f32 %v96, %v108
  %v111 = vmul.f32 %v109, %v109
  %v112 = vmul.f32 %v110, %v110
  %v113 = vsel %vm99, %v111, 0.0
  %114 = vadd.xlane.f32.xlu0 %v113
  %v115 = vpop.xlane.xlu0 %114
  %v116 = vsel %vm99, %v112, 0.0
  %117 = vadd.xlane.f32.xlu0 %v116
  %v118 = vpop.xlane.xlu0 %117
  %v119 = vmul.f32 %v115, %v106
  %v120 = vmul.f32 %v118, %v106
  %v121 = vadd.f32 %v119, 1e-05
  %v122 = vadd.f32 %v120, 1e-05
  %v123 = vrsqrt.pop %v121
  %v124 = vrsqrt.pop %v122
  %v125 = vmul.f32 %v109, %v123
  %v126 = vmul.f32 %v110, %v124
  %v128 = vlaneseq
  %v129 = vshrl.u32 %v128, 7
  %v130 = vsub.s32 0, %v129
  %v131 = vrot.slane %v97, %v130
  %v133 = vmul.f32 %v125, %v131
  %v134 = vmul.f32 %v126, %v131
  %v136 = vlaneseq
  %v137 = vshrl.u32 %v136, 7
  %v138 = vsub.s32 0, %v137
  %v139 = vrot.slane %v98, %v138
  %v141 = vadd.f32 %v133, %v139
  %v142 = vadd.f32 %v134, %v139
  %v143 = vld [vmem:[%s4] sm:$0xff]
  %v144 = vld [vmem:[%s4 + $0x8] sm:$0xff]
  %v145 = vld [vmem:[%s4 + $0x10] sm:$0xff]
  %v146 = vld [vmem:[%s4 + $0x18] sm:$0xff]
  %v147 = vld [vmem:[%s5] sm:$0x1]
  %v148 = vld [vmem:[%s6] sm:$0xff]
  %v149 = vld [vmem:[%s6 + $0x8] sm:$0xff]
  %v150 = vld [vmem:[%s6 + $0x10] sm:$0xff]
  %v151 = vld [vmem:[%s6 + $0x18] sm:$0xff]
  %v152 = vld [vmem:[%s7] sm:$0x1]
  %v153 = vld [vmem:[%s8] sm:$0xff]
  %v154 = vld [vmem:[%s8 + $0x8] sm:$0xff]
  %v155 = vld [vmem:[%s8 + $0x10] sm:$0xff]
  %v156 = vld [vmem:[%s8 + $0x18] sm:$0xff]
  %v157 = vld [vmem:[%s9] sm:$0x1]
  %v158 = vld [vmem:[%s10] sm:$0xff]
  %v159 = vld [vmem:[%s10 + $0x8] sm:$0xff]
  %v160 = vld [vmem:[%s10 + $0x10] sm:$0xff]
  %v161 = vld [vmem:[%s10 + $0x18] sm:$0xff]
  %v162 = vld [vmem:[%s11] sm:$0x1]
  %v164 = vlaneseq
  %v165 = vshrl.u32 %v164, 7
  %v166 = vsub.s32 0, %v165
  %v167 = vrot.slane %v147, %v166
  %v170 = vsel %vm99, %v141, 0
  %v173 = vsel %vm99, %v142, 0
  %175 = vmatprep.subr.mxu0 0.0
  %176 = vmatpush1.msra.mxu0 0.0
  %177 = vmatprep.subr.mxu0 0.0
  %178 = vmatpush1.msra.mxu0 0.0
  %179 = vmatprep.subr.mxu0 0.0
  %180 = vmatpush1.msra.mxu0 0.0
  %181 = vmatprep.subr.mxu0 0.0
  %182 = vmatpush1.msra.mxu0 0.0
  %183 = vmatprep.subr.mxu0 0.0
  %184 = vmatpush1.msra.mxu0 0.0
  %185 = vmatprep.subr.mxu0 0.0
  %186 = vmatpush1.msra.mxu0 0.0
  %187 = vmatprep.subr.mxu0 0.0
  %188 = vmatpush1.msra.mxu0 0.0
  %189 = vmatprep.subr.mxu0 0.0
  %190 = vmatpush1.msra.mxu0 0.0
  %191 = vmatprep.subr.mxu0 0.0
  %192 = vmatpush1.msra.mxu0 0.0
  %193 = vmatprep.subr.mxu0 0.0
  %194 = vmatpush1.msra.mxu0 0.0
  %195 = vmatprep.subr.mxu0 0.0
  %196 = vmatpush1.msra.mxu0 0.0
  %197 = vmatprep.subr.mxu0 0.0
  %198 = vmatpush1.msra.mxu0 0.0
  %199 = vmatprep.subr.mxu0 0.0
  %200 = vmatpush1.msra.mxu0 %v146
  %201 = vmatprep.subr.mxu0 0.0
  %202 = vmatpush1.msra.mxu0 %v145
  %203 = vmatprep.subr.mxu0 0.0
  %204 = vmatpush1.msra.mxu0 %v144
  %205 = vmatprep.subr.mxu0 0.0
  %206 = vmatpush1.msra.mxu0 %v143
  %207 = vmatprep.subr.mxu0 0.0
  %208 = vmatpush2.msra.mxu0 0.0
  %209 = vmatprep.subr.mxu0 0.0
  %210 = vmatpush2.msra.mxu0 0.0
  %211 = vmatprep.subr.mxu0 0.0
  %212 = vmatpush2.msra.mxu0 0.0
  %213 = vmatprep.subr.mxu0 0.0
  %214 = vmatpush2.msra.mxu0 0.0
  %215 = vmatprep.subr.mxu0 0.0
  %216 = vmatpush2.msra.mxu0 0.0
  %217 = vmatprep.subr.mxu0 0.0
  %218 = vmatpush2.msra.mxu0 0.0
  %219 = vmatprep.subr.mxu0 0.0
  %220 = vmatpush2.msra.mxu0 0.0
  %221 = vmatprep.subr.mxu0 0.0
  %222 = vmatpush2.msra.mxu0 0.0
  %223 = vmatprep.subr.mxu0 0.0
  %224 = vmatpush2.msra.mxu0 0.0
  %225 = vmatprep.subr.mxu0 0.0
  %226 = vmatpush2.msra.mxu0 0.0
  %227 = vmatprep.subr.mxu0 0.0
  %228 = vmatpush2.msra.mxu0 0.0
  %229 = vmatprep.subr.mxu0 0.0
  %230 = vmatpush2.msra.mxu0 0.0
  %231 = vmatprep.subr.mxu0 0.0
  %232 = vmatpush2.msra.mxu0 0.0
  %233 = vmatprep.subr.mxu0 0.0
  %234 = vmatpush2.msra.mxu0 0.0
  %235 = vmatprep.subr.mxu0 0.0
  %236 = vmatpush2.msra.mxu0 0.0
  %237 = vmatprep.subr.mxu0 0.0
  %238 = vmatpush2.msra.mxu0 0.0
  %239 = vmatprep.mubr.f32.mxu0 0.0
  %240 = vmatmul.mubr.f32.gmra.mxu0 %v170
  %v241 = vpop.f32.mrf.mxu0
  %v242 = vadd.f32 %v167, %v241
  %v243 = vpop.f32.mrf.mxu0
  %244 = vmatprep.mubr.f32.mxu0 0.0
  %245 = vmatmul.mubr.f32.gmra.mxu0 %v173
  %v246 = vpop.f32.mrf.mxu0
  %v247 = vadd.f32 %v167, %v246
  %v248 = vpop.f32.mrf.mxu0
  %249 = vdwg.mxu0
  %v251 = vlaneseq
  %v252 = vshrl.u32 %v251, 7
  %v253 = vsub.s32 0, %v252
  %v254 = vrot.slane %v152, %v253
  %256 = vmatprep.subr.mxu0 0.0
  %257 = vmatpush1.msra.mxu0 0.0
  %258 = vmatprep.subr.mxu0 0.0
  %259 = vmatpush1.msra.mxu0 0.0
  %260 = vmatprep.subr.mxu0 0.0
  %261 = vmatpush1.msra.mxu0 0.0
  %262 = vmatprep.subr.mxu0 0.0
  %263 = vmatpush1.msra.mxu0 0.0
  %264 = vmatprep.subr.mxu0 0.0
  %265 = vmatpush1.msra.mxu0 0.0
  %266 = vmatprep.subr.mxu0 0.0
  %267 = vmatpush1.msra.mxu0 0.0
  %268 = vmatprep.subr.mxu0 0.0
  %269 = vmatpush1.msra.mxu0 0.0
  %270 = vmatprep.subr.mxu0 0.0
  %271 = vmatpush1.msra.mxu0 0.0
  %272 = vmatprep.subr.mxu0 0.0
  %273 = vmatpush1.msra.mxu0 0.0
  %274 = vmatprep.subr.mxu0 0.0
  %275 = vmatpush1.msra.mxu0 0.0
  %276 = vmatprep.subr.mxu0 0.0
  %277 = vmatpush1.msra.mxu0 0.0
  %278 = vmatprep.subr.mxu0 0.0
  %279 = vmatpush1.msra.mxu0 0.0
  %280 = vmatprep.subr.mxu0 0.0
  %281 = vmatpush1.msra.mxu0 %v151
  %282 = vmatprep.subr.mxu0 0.0
  %283 = vmatpush1.msra.mxu0 %v150
  %284 = vmatprep.subr.mxu0 0.0
  %285 = vmatpush1.msra.mxu0 %v149
  %286 = vmatprep.subr.mxu0 0.0
  %287 = vmatpush1.msra.mxu0 %v148
  %288 = vmatprep.subr.mxu0 0.0
  %289 = vmatpush2.msra.mxu0 0.0
  %290 = vmatprep.subr.mxu0 0.0
  %291 = vmatpush2.msra.mxu0 0.0
  %292 = vmatprep.subr.mxu0 0.0
  %293 = vmatpush2.msra.mxu0 0.0
  %294 = vmatprep.subr.mxu0 0.0
  %295 = vmatpush2.msra.mxu0 0.0
  %296 = vmatprep.subr.mxu0 0.0
  %297 = vmatpush2.msra.mxu0 0.0
  %298 = vmatprep.subr.mxu0 0.0
  %299 = vmatpush2.msra.mxu0 0.0
  %300 = vmatprep.subr.mxu0 0.0
  %301 = vmatpush2.msra.mxu0 0.0
  %302 = vmatprep.subr.mxu0 0.0
  %303 = vmatpush2.msra.mxu0 0.0
  %304 = vmatprep.subr.mxu0 0.0
  %305 = vmatpush2.msra.mxu0 0.0
  %306 = vmatprep.subr.mxu0 0.0
  %307 = vmatpush2.msra.mxu0 0.0
  %308 = vmatprep.subr.mxu0 0.0
  %309 = vmatpush2.msra.mxu0 0.0
  %310 = vmatprep.subr.mxu0 0.0
  %311 = vmatpush2.msra.mxu0 0.0
  %312 = vmatprep.subr.mxu0 0.0
  %313 = vmatpush2.msra.mxu0 0.0
  %314 = vmatprep.subr.mxu0 0.0
  %315 = vmatpush2.msra.mxu0 0.0
  %316 = vmatprep.subr.mxu0 0.0
  %317 = vmatpush2.msra.mxu0 0.0
  %318 = vmatprep.subr.mxu0 0.0
  %319 = vmatpush2.msra.mxu0 0.0
  %320 = vmatprep.mubr.f32.mxu0 0.0
  %321 = vmatmul.mubr.f32.gmra.mxu0 %v170
  %v322 = vpop.f32.mrf.mxu0
  %v323 = vadd.f32 %v254, %v322
  %v324 = vpop.f32.mrf.mxu0
  %325 = vmatprep.mubr.f32.mxu0 0.0
  %326 = vmatmul.mubr.f32.gmra.mxu0 %v173
  %v327 = vpop.f32.mrf.mxu0
  %v328 = vadd.f32 %v254, %v327
  %v329 = vpop.f32.mrf.mxu0
  %330 = vdwg.mxu0
  %v332 = vlaneseq
  %v333 = vshrl.u32 %v332, 7
  %v334 = vsub.s32 0, %v333
  %v335 = vrot.slane %v157, %v334
  %337 = vmatprep.subr.mxu0 0.0
  %338 = vmatpush1.msra.mxu0 0.0
  %339 = vmatprep.subr.mxu0 0.0
  %340 = vmatpush1.msra.mxu0 0.0
  %341 = vmatprep.subr.mxu0 0.0
  %342 = vmatpush1.msra.mxu0 0.0
  %343 = vmatprep.subr.mxu0 0.0
  %344 = vmatpush1.msra.mxu0 0.0
  %345 = vmatprep.subr.mxu0 0.0
  %346 = vmatpush1.msra.mxu0 0.0
  %347 = vmatprep.subr.mxu0 0.0
  %348 = vmatpush1.msra.mxu0 0.0
  %349 = vmatprep.subr.mxu0 0.0
  %350 = vmatpush1.msra.mxu0 0.0
  %351 = vmatprep.subr.mxu0 0.0
  %352 = vmatpush1.msra.mxu0 0.0
  %353 = vmatprep.subr.mxu0 0.0
  %354 = vmatpush1.msra.mxu0 0.0
  %355 = vmatprep.subr.mxu0 0.0
  %356 = vmatpush1.msra.mxu0 0.0
  %357 = vmatprep.subr.mxu0 0.0
  %358 = vmatpush1.msra.mxu0 0.0
  %359 = vmatprep.subr.mxu0 0.0
  %360 = vmatpush1.msra.mxu0 0.0
  %361 = vmatprep.subr.mxu0 0.0
  %362 = vmatpush1.msra.mxu0 %v156
  %363 = vmatprep.subr.mxu0 0.0
  %364 = vmatpush1.msra.mxu0 %v155
  %365 = vmatprep.subr.mxu0 0.0
  %366 = vmatpush1.msra.mxu0 %v154
  %367 = vmatprep.subr.mxu0 0.0
  %368 = vmatpush1.msra.mxu0 %v153
  %369 = vmatprep.subr.mxu0 0.0
  %370 = vmatpush2.msra.mxu0 0.0
  %371 = vmatprep.subr.mxu0 0.0
  %372 = vmatpush2.msra.mxu0 0.0
  %373 = vmatprep.subr.mxu0 0.0
  %374 = vmatpush2.msra.mxu0 0.0
  %375 = vmatprep.subr.mxu0 0.0
  %376 = vmatpush2.msra.mxu0 0.0
  %377 = vmatprep.subr.mxu0 0.0
  %378 = vmatpush2.msra.mxu0 0.0
  %379 = vmatprep.subr.mxu0 0.0
  %380 = vmatpush2.msra.mxu0 0.0
  %381 = vmatprep.subr.mxu0 0.0
  %382 = vmatpush2.msra.mxu0 0.0
  %383 = vmatprep.subr.mxu0 0.0
  %384 = vmatpush2.msra.mxu0 0.0
  %385 = vmatprep.subr.mxu0 0.0
  %386 = vmatpush2.msra.mxu0 0.0
  %387 = vmatprep.subr.mxu0 0.0
  %388 = vmatpush2.msra.mxu0 0.0
  %389 = vmatprep.subr.mxu0 0.0
  %390 = vmatpush2.msra.mxu0 0.0
  %391 = vmatprep.subr.mxu0 0.0
  %392 = vmatpush2.msra.mxu0 0.0
  %393 = vmatprep.subr.mxu0 0.0
  %394 = vmatpush2.msra.mxu0 0.0
  %395 = vmatprep.subr.mxu0 0.0
  %396 = vmatpush2.msra.mxu0 0.0
  %397 = vmatprep.subr.mxu0 0.0
  %398 = vmatpush2.msra.mxu0 0.0
  %399 = vmatprep.subr.mxu0 0.0
  %400 = vmatpush2.msra.mxu0 0.0
  %401 = vmatprep.mubr.f32.mxu0 0.0
  %402 = vmatmul.mubr.f32.gmra.mxu0 %v170
  %v403 = vpop.f32.mrf.mxu0
  %v404 = vadd.f32 %v335, %v403
  %v405 = vpop.f32.mrf.mxu0
  %406 = vmatprep.mubr.f32.mxu0 0.0
  %407 = vmatmul.mubr.f32.gmra.mxu0 %v173
  %v408 = vpop.f32.mrf.mxu0
  %v409 = vadd.f32 %v335, %v408
  %v410 = vpop.f32.mrf.mxu0
  %411 = vdwg.mxu0
  %v412 = vmul.f32 %v323, %v77
  %v413 = vmul.f32 %v328, %v77
  %v414 = vmul.f32 %v404, %v77
  %v415 = vmul.f32 %v409, %v77
  %v417 = vsel %vm99, %v242, 0
  %v420 = vsel %vm99, %v247, 0
  %v423 = vsel %vm99, %v412, 0
  %v426 = vsel %vm99, %v413, 0
  %428 = vmatprep.subr.mxu0 0.0
  %429 = vmatpush1.xpose.msra.mxu0 0.0
  %430 = vmatprep.subr.mxu0 0.0
  %431 = vmatpush1.xpose.msra.mxu0 0.0
  %432 = vmatprep.subr.mxu0 0.0
  %433 = vmatpush1.xpose.msra.mxu0 0.0
  %434 = vmatprep.subr.mxu0 0.0
  %435 = vmatpush1.xpose.msra.mxu0 0.0
  %436 = vmatprep.subr.mxu0 0.0
  %437 = vmatpush1.xpose.msra.mxu0 0.0
  %438 = vmatprep.subr.mxu0 0.0
  %439 = vmatpush1.xpose.msra.mxu0 0.0
  %440 = vmatprep.subr.mxu0 0.0
  %441 = vmatpush1.xpose.msra.mxu0 0.0
  %442 = vmatprep.subr.mxu0 0.0
  %443 = vmatpush1.xpose.msra.mxu0 0.0
  %444 = vmatprep.subr.mxu0 0.0
  %445 = vmatpush1.xpose.msra.mxu0 0.0
  %446 = vmatprep.subr.mxu0 0.0
  %447 = vmatpush1.xpose.msra.mxu0 0.0
  %448 = vmatprep.subr.mxu0 0.0
  %449 = vmatpush1.xpose.msra.mxu0 0.0
  %450 = vmatprep.subr.mxu0 0.0
  %451 = vmatpush1.xpose.msra.mxu0 0.0
  %452 = vmatprep.subr.mxu0 0.0
  %453 = vmatpush1.xpose.msra.mxu0 0.0
  %454 = vmatprep.subr.mxu0 0.0
  %455 = vmatpush1.xpose.msra.mxu0 0.0
  %456 = vmatprep.subr.mxu0 0.0
  %457 = vmatpush1.xpose.msra.mxu0 %v426
  %458 = vmatprep.subr.mxu0 0.0
  %459 = vmatpush1.xpose.msra.mxu0 %v423
  %460 = vmatprep.subr.mxu0 0.0
  %461 = vmatpush2.xpose.msra.mxu0 0.0
  %462 = vmatprep.subr.mxu0 0.0
  %463 = vmatpush2.xpose.msra.mxu0 0.0
  %464 = vmatprep.subr.mxu0 0.0
  %465 = vmatpush2.xpose.msra.mxu0 0.0
  %466 = vmatprep.subr.mxu0 0.0
  %467 = vmatpush2.xpose.msra.mxu0 0.0
  %468 = vmatprep.subr.mxu0 0.0
  %469 = vmatpush2.xpose.msra.mxu0 0.0
  %470 = vmatprep.subr.mxu0 0.0
  %471 = vmatpush2.xpose.msra.mxu0 0.0
  %472 = vmatprep.subr.mxu0 0.0
  %473 = vmatpush2.xpose.msra.mxu0 0.0
  %474 = vmatprep.subr.mxu0 0.0
  %475 = vmatpush2.xpose.msra.mxu0 0.0
  %476 = vmatprep.subr.mxu0 0.0
  %477 = vmatpush2.xpose.msra.mxu0 0.0
  %478 = vmatprep.subr.mxu0 0.0
  %479 = vmatpush2.xpose.msra.mxu0 0.0
  %480 = vmatprep.subr.mxu0 0.0
  %481 = vmatpush2.xpose.msra.mxu0 0.0
  %482 = vmatprep.subr.mxu0 0.0
  %483 = vmatpush2.xpose.msra.mxu0 0.0
  %484 = vmatprep.subr.mxu0 0.0
  %485 = vmatpush2.xpose.msra.mxu0 0.0
  %486 = vmatprep.subr.mxu0 0.0
  %487 = vmatpush2.xpose.msra.mxu0 0.0
  %488 = vmatprep.subr.mxu0 0.0
  %489 = vmatpush2.xpose.msra.mxu0 0.0
  %490 = vmatprep.subr.mxu0 0.0
  %491 = vmatpush2.xpose.msra.mxu0 0.0
  %492 = vmatprep.mubr.f32.mxu0 0.0
  %493 = vmatmul.mubr.f32.gmra.mxu0 %v417
  %v494 = vpop.f32.mrf.mxu0
  %v495 = vadd.f32 0.0, %v494
  %v496 = vpop.f32.mrf.mxu0
  %497 = vmatprep.mubr.f32.mxu0 0.0
  %498 = vmatmul.mubr.f32.gmra.mxu0 %v420
  %v499 = vpop.f32.mrf.mxu0
  %v500 = vadd.f32 0.0, %v499
  %v501 = vpop.f32.mrf.mxu0
  %502 = vdwg.mxu0
  %v503 = vmul.f32 %v495, 0.35355338
  %v504 = vmul.f32 %v500, 0.35355338
  %v505 = vadd.f32 %v503, %v93
  %v506 = vadd.f32 %v504, %v94
  %vm507 = vcmask 130048
  %v508 = vsel %vm507, %v505, -inf
  %509 = vmax.xlane.f32.xlu0 %v508
  %v510 = vpop.xlane.xlu0 %509
  %v511 = vsel %vm507, %v506, -inf
  %512 = vmax.xlane.f32.xlu0 %v511
  %v513 = vpop.xlane.xlu0 %512
  %v514 = vsub.f32 %v505, %v510
  %v515 = vsub.f32 %v506, %v513
  %v516 = vmul.f32 %v514, 1.442695
  %v517 = vpow.pop %v516
  %v518 = vmul.f32 %v515, 1.442695
  %v519 = vpow.pop %v518
  %v520 = vsel %vm507, %v517, 0.0
  %521 = vadd.xlane.f32.xlu0 %v520
  %v522 = vpop.xlane.xlu0 %521
  %v523 = vsel %vm507, %v519, 0.0
  %524 = vadd.xlane.f32.xlu0 %v523
  %v525 = vpop.xlane.xlu0 %524
  %v526 = vrcp.pop %v522
  %v527 = vmul.f32 %v517, %v526
  %v528 = vrcp.pop %v525
  %v529 = vmul.f32 %v519, %v528
  %v530 = vmul.f32 %v323, %v82
  %v531 = vmul.f32 %v328, %v82
  %v532 = vmul.f32 %v404, %v82
  %v533 = vmul.f32 %v409, %v82
  %v535 = vsel %vm99, %v530, 0
  %v538 = vsel %vm99, %v531, 0
  %540 = vmatprep.subr.mxu0 0.0
  %541 = vmatpush1.xpose.msra.mxu0 0.0
  %542 = vmatprep.subr.mxu0 0.0
  %543 = vmatpush1.xpose.msra.mxu0 0.0
  %544 = vmatprep.subr.mxu0 0.0
  %545 = vmatpush1.xpose.msra.mxu0 0.0
  %546 = vmatprep.subr.mxu0 0.0
  %547 = vmatpush1.xpose.msra.mxu0 0.0
  %548 = vmatprep.subr.mxu0 0.0
  %549 = vmatpush1.xpose.msra.mxu0 0.0
  %550 = vmatprep.subr.mxu0 0.0
  %551 = vmatpush1.xpose.msra.mxu0 0.0
  %552 = vmatprep.subr.mxu0 0.0
  %553 = vmatpush1.xpose.msra.mxu0 0.0
  %554 = vmatprep.subr.mxu0 0.0
  %555 = vmatpush1.xpose.msra.mxu0 0.0
  %556 = vmatprep.subr.mxu0 0.0
  %557 = vmatpush1.xpose.msra.mxu0 0.0
  %558 = vmatprep.subr.mxu0 0.0
  %559 = vmatpush1.xpose.msra.mxu0 0.0
  %560 = vmatprep.subr.mxu0 0.0
  %561 = vmatpush1.xpose.msra.mxu0 0.0
  %562 = vmatprep.subr.mxu0 0.0
  %563 = vmatpush1.xpose.msra.mxu0 0.0
  %564 = vmatprep.subr.mxu0 0.0
  %565 = vmatpush1.xpose.msra.mxu0 0.0
  %566 = vmatprep.subr.mxu0 0.0
  %567 = vmatpush1.xpose.msra.mxu0 0.0
  %568 = vmatprep.subr.mxu0 0.0
  %569 = vmatpush1.xpose.msra.mxu0 %v538
  %570 = vmatprep.subr.mxu0 0.0
  %571 = vmatpush1.xpose.msra.mxu0 %v535
  %572 = vmatprep.subr.mxu0 0.0
  %573 = vmatpush2.xpose.msra.mxu0 0.0
  %574 = vmatprep.subr.mxu0 0.0
  %575 = vmatpush2.xpose.msra.mxu0 0.0
  %576 = vmatprep.subr.mxu0 0.0
  %577 = vmatpush2.xpose.msra.mxu0 0.0
  %578 = vmatprep.subr.mxu0 0.0
  %579 = vmatpush2.xpose.msra.mxu0 0.0
  %580 = vmatprep.subr.mxu0 0.0
  %581 = vmatpush2.xpose.msra.mxu0 0.0
  %582 = vmatprep.subr.mxu0 0.0
  %583 = vmatpush2.xpose.msra.mxu0 0.0
  %584 = vmatprep.subr.mxu0 0.0
  %585 = vmatpush2.xpose.msra.mxu0 0.0
  %586 = vmatprep.subr.mxu0 0.0
  %587 = vmatpush2.xpose.msra.mxu0 0.0
  %588 = vmatprep.subr.mxu0 0.0
  %589 = vmatpush2.xpose.msra.mxu0 0.0
  %590 = vmatprep.subr.mxu0 0.0
  %591 = vmatpush2.xpose.msra.mxu0 0.0
  %592 = vmatprep.subr.mxu0 0.0
  %593 = vmatpush2.xpose.msra.mxu0 0.0
  %594 = vmatprep.subr.mxu0 0.0
  %595 = vmatpush2.xpose.msra.mxu0 0.0
  %596 = vmatprep.subr.mxu0 0.0
  %597 = vmatpush2.xpose.msra.mxu0 0.0
  %598 = vmatprep.subr.mxu0 0.0
  %599 = vmatpush2.xpose.msra.mxu0 0.0
  %600 = vmatprep.subr.mxu0 0.0
  %601 = vmatpush2.xpose.msra.mxu0 0.0
  %602 = vmatprep.subr.mxu0 0.0
  %603 = vmatpush2.xpose.msra.mxu0 0.0
  %604 = vmatprep.mubr.f32.mxu0 0.0
  %605 = vmatmul.mubr.f32.gmra.mxu0 %v417
  %v606 = vpop.f32.mrf.mxu0
  %v607 = vadd.f32 0.0, %v606
  %v608 = vpop.f32.mrf.mxu0
  %609 = vmatprep.mubr.f32.mxu0 0.0
  %610 = vmatmul.mubr.f32.gmra.mxu0 %v420
  %v611 = vpop.f32.mrf.mxu0
  %v612 = vadd.f32 0.0, %v611
  %v613 = vpop.f32.mrf.mxu0
  %614 = vdwg.mxu0
  %v615 = vmul.f32 %v607, 0.35355338
  %v616 = vmul.f32 %v612, 0.35355338
  %v617 = vadd.f32 %v615, %v93
  %v618 = vadd.f32 %v616, %v94
  %v619 = vsel %vm507, %v617, -inf
  %620 = vmax.xlane.f32.xlu0 %v619
  %v621 = vpop.xlane.xlu0 %620
  %v622 = vsel %vm507, %v618, -inf
  %623 = vmax.xlane.f32.xlu0 %v622
  %v624 = vpop.xlane.xlu0 %623
  %v625 = vsub.f32 %v617, %v621
  %v626 = vsub.f32 %v618, %v624
  %v627 = vmul.f32 %v625, 1.442695
  %v628 = vpow.pop %v627
  %v629 = vmul.f32 %v626, 1.442695
  %v630 = vpow.pop %v629
  %v631 = vsel %vm507, %v628, 0.0
  %632 = vadd.xlane.f32.xlu0 %v631
  %v633 = vpop.xlane.xlu0 %632
  %v634 = vsel %vm507, %v630, 0.0
  %635 = vadd.xlane.f32.xlu0 %v634
  %v636 = vpop.xlane.xlu0 %635
  %v637 = vrcp.pop %v633
  %v638 = vmul.f32 %v628, %v637
  %v639 = vrcp.pop %v636
  %v640 = vmul.f32 %v630, %v639
  %v642 = vsel %vm507, %v638, 0
  %v645 = vsel %vm507, %v640, 0
  %647 = vmatprep.subr.mxu0 0.0
  %648 = vmatpush1.msra.mxu0 0.0
  %649 = vmatprep.subr.mxu0 0.0
  %650 = vmatpush1.msra.mxu0 0.0
  %651 = vmatprep.subr.mxu0 0.0
  %652 = vmatpush1.msra.mxu0 0.0
  %653 = vmatprep.subr.mxu0 0.0
  %654 = vmatpush1.msra.mxu0 0.0
  %655 = vmatprep.subr.mxu0 0.0
  %656 = vmatpush1.msra.mxu0 0.0
  %657 = vmatprep.subr.mxu0 0.0
  %658 = vmatpush1.msra.mxu0 0.0
  %659 = vmatprep.subr.mxu0 0.0
  %660 = vmatpush1.msra.mxu0 0.0
  %661 = vmatprep.subr.mxu0 0.0
  %662 = vmatpush1.msra.mxu0 0.0
  %663 = vmatprep.subr.mxu0 0.0
  %664 = vmatpush1.msra.mxu0 0.0
  %665 = vmatprep.subr.mxu0 0.0
  %666 = vmatpush1.msra.mxu0 0.0
  %667 = vmatprep.subr.mxu0 0.0
  %668 = vmatpush1.msra.mxu0 0.0
  %669 = vmatprep.subr.mxu0 0.0
  %670 = vmatpush1.msra.mxu0 0.0
  %671 = vmatprep.subr.mxu0 0.0
  %672 = vmatpush1.msra.mxu0 0.0
  %673 = vmatprep.subr.mxu0 0.0
  %674 = vmatpush1.msra.mxu0 0.0
  %675 = vmatprep.subr.mxu0 0.0
  %676 = vmatpush1.msra.mxu0 %v533
  %677 = vmatprep.subr.mxu0 0.0
  %678 = vmatpush1.msra.mxu0 %v532
  %679 = vmatprep.subr.mxu0 0.0
  %680 = vmatpush2.msra.mxu0 0.0
  %681 = vmatprep.subr.mxu0 0.0
  %682 = vmatpush2.msra.mxu0 0.0
  %683 = vmatprep.subr.mxu0 0.0
  %684 = vmatpush2.msra.mxu0 0.0
  %685 = vmatprep.subr.mxu0 0.0
  %686 = vmatpush2.msra.mxu0 0.0
  %687 = vmatprep.subr.mxu0 0.0
  %688 = vmatpush2.msra.mxu0 0.0
  %689 = vmatprep.subr.mxu0 0.0
  %690 = vmatpush2.msra.mxu0 0.0
  %691 = vmatprep.subr.mxu0 0.0
  %692 = vmatpush2.msra.mxu0 0.0
  %693 = vmatprep.subr.mxu0 0.0
  %694 = vmatpush2.msra.mxu0 0.0
  %695 = vmatprep.subr.mxu0 0.0
  %696 = vmatpush2.msra.mxu0 0.0
  %697 = vmatprep.subr.mxu0 0.0
  %698 = vmatpush2.msra.mxu0 0.0
  %699 = vmatprep.subr.mxu0 0.0
  %700 = vmatpush2.msra.mxu0 0.0
  %701 = vmatprep.subr.mxu0 0.0
  %702 = vmatpush2.msra.mxu0 0.0
  %703 = vmatprep.subr.mxu0 0.0
  %704 = vmatpush2.msra.mxu0 0.0
  %705 = vmatprep.subr.mxu0 0.0
  %706 = vmatpush2.msra.mxu0 0.0
  %707 = vmatprep.subr.mxu0 0.0
  %708 = vmatpush2.msra.mxu0 0.0
  %709 = vmatprep.subr.mxu0 0.0
  %710 = vmatpush2.msra.mxu0 0.0
  %711 = vmatprep.mubr.f32.mxu0 0.0
  %712 = vmatmul.mubr.f32.gmra.mxu0 %v642
  %v713 = vpop.f32.mrf.mxu0
  %v714 = vadd.f32 0.0, %v713
  %v715 = vpop.f32.mrf.mxu0
  %716 = vmatprep.mubr.f32.mxu0 0.0
  %717 = vmatmul.mubr.f32.gmra.mxu0 %v645
  %v718 = vpop.f32.mrf.mxu0
  %v719 = vadd.f32 0.0, %v718
  %v720 = vpop.f32.mrf.mxu0
  %721 = vdwg.mxu0
  %v723 = vsel %vm507, %v527, 0
  %v726 = vsel %vm507, %v529, 0
  %728 = vmatprep.subr.mxu0 0.0
  %729 = vmatpush1.msra.mxu0 0.0
  %730 = vmatprep.subr.mxu0 0.0
  %731 = vmatpush1.msra.mxu0 0.0
  %732 = vmatprep.subr.mxu0 0.0
  %733 = vmatpush1.msra.mxu0 0.0
  %734 = vmatprep.subr.mxu0 0.0
  %735 = vmatpush1.msra.mxu0 0.0
  %736 = vmatprep.subr.mxu0 0.0
  %737 = vmatpush1.msra.mxu0 0.0
  %738 = vmatprep.subr.mxu0 0.0
  %739 = vmatpush1.msra.mxu0 0.0
  %740 = vmatprep.subr.mxu0 0.0
  %741 = vmatpush1.msra.mxu0 0.0
  %742 = vmatprep.subr.mxu0 0.0
  %743 = vmatpush1.msra.mxu0 0.0
  %744 = vmatprep.subr.mxu0 0.0
  %745 = vmatpush1.msra.mxu0 0.0
  %746 = vmatprep.subr.mxu0 0.0
  %747 = vmatpush1.msra.mxu0 0.0
  %748 = vmatprep.subr.mxu0 0.0
  %749 = vmatpush1.msra.mxu0 0.0
  %750 = vmatprep.subr.mxu0 0.0
  %751 = vmatpush1.msra.mxu0 0.0
  %752 = vmatprep.subr.mxu0 0.0
  %753 = vmatpush1.msra.mxu0 0.0
  %754 = vmatprep.subr.mxu0 0.0
  %755 = vmatpush1.msra.mxu0 0.0
  %756 = vmatprep.subr.mxu0 0.0
  %757 = vmatpush1.msra.mxu0 %v415
  %758 = vmatprep.subr.mxu0 0.0
  %759 = vmatpush1.msra.mxu0 %v414
  %760 = vmatprep.subr.mxu0 0.0
  %761 = vmatpush2.msra.mxu0 0.0
  %762 = vmatprep.subr.mxu0 0.0
  %763 = vmatpush2.msra.mxu0 0.0
  %764 = vmatprep.subr.mxu0 0.0
  %765 = vmatpush2.msra.mxu0 0.0
  %766 = vmatprep.subr.mxu0 0.0
  %767 = vmatpush2.msra.mxu0 0.0
  %768 = vmatprep.subr.mxu0 0.0
  %769 = vmatpush2.msra.mxu0 0.0
  %770 = vmatprep.subr.mxu0 0.0
  %771 = vmatpush2.msra.mxu0 0.0
  %772 = vmatprep.subr.mxu0 0.0
  %773 = vmatpush2.msra.mxu0 0.0
  %774 = vmatprep.subr.mxu0 0.0
  %775 = vmatpush2.msra.mxu0 0.0
  %776 = vmatprep.subr.mxu0 0.0
  %777 = vmatpush2.msra.mxu0 0.0
  %778 = vmatprep.subr.mxu0 0.0
  %779 = vmatpush2.msra.mxu0 0.0
  %780 = vmatprep.subr.mxu0 0.0
  %781 = vmatpush2.msra.mxu0 0.0
  %782 = vmatprep.subr.mxu0 0.0
  %783 = vmatpush2.msra.mxu0 0.0
  %784 = vmatprep.subr.mxu0 0.0
  %785 = vmatpush2.msra.mxu0 0.0
  %786 = vmatprep.subr.mxu0 0.0
  %787 = vmatpush2.msra.mxu0 0.0
  %788 = vmatprep.subr.mxu0 0.0
  %789 = vmatpush2.msra.mxu0 0.0
  %790 = vmatprep.subr.mxu0 0.0
  %791 = vmatpush2.msra.mxu0 0.0
  %792 = vmatprep.mubr.f32.mxu0 0.0
  %793 = vmatmul.mubr.f32.gmra.mxu0 %v723
  %v794 = vpop.f32.mrf.mxu0
  %v795 = vadd.f32 %v714, %v794
  %v796 = vpop.f32.mrf.mxu0
  %797 = vmatprep.mubr.f32.mxu0 0.0
  %798 = vmatmul.mubr.f32.gmra.mxu0 %v726
  %v799 = vpop.f32.mrf.mxu0
  %v800 = vadd.f32 %v719, %v799
  %v801 = vpop.f32.mrf.mxu0
  %802 = vdwg.mxu0
  %v803 = vmul.f32 %v323, %v87
  %v804 = vmul.f32 %v328, %v87
  %v805 = vmul.f32 %v404, %v87
  %v806 = vmul.f32 %v409, %v87
  %v808 = vsel %vm99, %v803, 0
  %v811 = vsel %vm99, %v804, 0
  %813 = vmatprep.subr.mxu0 0.0
  %814 = vmatpush1.xpose.msra.mxu0 0.0
  %815 = vmatprep.subr.mxu0 0.0
  %816 = vmatpush1.xpose.msra.mxu0 0.0
  %817 = vmatprep.subr.mxu0 0.0
  %818 = vmatpush1.xpose.msra.mxu0 0.0
  %819 = vmatprep.subr.mxu0 0.0
  %820 = vmatpush1.xpose.msra.mxu0 0.0
  %821 = vmatprep.subr.mxu0 0.0
  %822 = vmatpush1.xpose.msra.mxu0 0.0
  %823 = vmatprep.subr.mxu0 0.0
  %824 = vmatpush1.xpose.msra.mxu0 0.0
  %825 = vmatprep.subr.mxu0 0.0
  %826 = vmatpush1.xpose.msra.mxu0 0.0
  %827 = vmatprep.subr.mxu0 0.0
  %828 = vmatpush1.xpose.msra.mxu0 0.0
  %829 = vmatprep.subr.mxu0 0.0
  %830 = vmatpush1.xpose.msra.mxu0 0.0
  %831 = vmatprep.subr.mxu0 0.0
  %832 = vmatpush1.xpose.msra.mxu0 0.0
  %833 = vmatprep.subr.mxu0 0.0
  %834 = vmatpush1.xpose.msra.mxu0 0.0
  %835 = vmatprep.subr.mxu0 0.0
  %836 = vmatpush1.xpose.msra.mxu0 0.0
  %837 = vmatprep.subr.mxu0 0.0
  %838 = vmatpush1.xpose.msra.mxu0 0.0
  %839 = vmatprep.subr.mxu0 0.0
  %840 = vmatpush1.xpose.msra.mxu0 0.0
  %841 = vmatprep.subr.mxu0 0.0
  %842 = vmatpush1.xpose.msra.mxu0 %v811
  %843 = vmatprep.subr.mxu0 0.0
  %844 = vmatpush1.xpose.msra.mxu0 %v808
  %845 = vmatprep.subr.mxu0 0.0
  %846 = vmatpush2.xpose.msra.mxu0 0.0
  %847 = vmatprep.subr.mxu0 0.0
  %848 = vmatpush2.xpose.msra.mxu0 0.0
  %849 = vmatprep.subr.mxu0 0.0
  %850 = vmatpush2.xpose.msra.mxu0 0.0
  %851 = vmatprep.subr.mxu0 0.0
  %852 = vmatpush2.xpose.msra.mxu0 0.0
  %853 = vmatprep.subr.mxu0 0.0
  %854 = vmatpush2.xpose.msra.mxu0 0.0
  %855 = vmatprep.subr.mxu0 0.0
  %856 = vmatpush2.xpose.msra.mxu0 0.0
  %857 = vmatprep.subr.mxu0 0.0
  %858 = vmatpush2.xpose.msra.mxu0 0.0
  %859 = vmatprep.subr.mxu0 0.0
  %860 = vmatpush2.xpose.msra.mxu0 0.0
  %861 = vmatprep.subr.mxu0 0.0
  %862 = vmatpush2.xpose.msra.mxu0 0.0
  %863 = vmatprep.subr.mxu0 0.0
  %864 = vmatpush2.xpose.msra.mxu0 0.0
  %865 = vmatprep.subr.mxu0 0.0
  %866 = vmatpush2.xpose.msra.mxu0 0.0
  %867 = vmatprep.subr.mxu0 0.0
  %868 = vmatpush2.xpose.msra.mxu0 0.0
  %869 = vmatprep.subr.mxu0 0.0
  %870 = vmatpush2.xpose.msra.mxu0 0.0
  %871 = vmatprep.subr.mxu0 0.0
  %872 = vmatpush2.xpose.msra.mxu0 0.0
  %873 = vmatprep.subr.mxu0 0.0
  %874 = vmatpush2.xpose.msra.mxu0 0.0
  %875 = vmatprep.subr.mxu0 0.0
  %876 = vmatpush2.xpose.msra.mxu0 0.0
  %877 = vmatprep.mubr.f32.mxu0 0.0
  %878 = vmatmul.mubr.f32.gmra.mxu0 %v417
  %v879 = vpop.f32.mrf.mxu0
  %v880 = vadd.f32 0.0, %v879
  %v881 = vpop.f32.mrf.mxu0
  %882 = vmatprep.mubr.f32.mxu0 0.0
  %883 = vmatmul.mubr.f32.gmra.mxu0 %v420
  %v884 = vpop.f32.mrf.mxu0
  %v885 = vadd.f32 0.0, %v884
  %v886 = vpop.f32.mrf.mxu0
  %887 = vdwg.mxu0
  %v888 = vmul.f32 %v880, 0.35355338
  %v889 = vmul.f32 %v885, 0.35355338
  %v890 = vadd.f32 %v888, %v93
  %v891 = vadd.f32 %v889, %v94
  %v892 = vsel %vm507, %v890, -inf
  %893 = vmax.xlane.f32.xlu0 %v892
  %v894 = vpop.xlane.xlu0 %893
  %v895 = vsel %vm507, %v891, -inf
  %896 = vmax.xlane.f32.xlu0 %v895
  %v897 = vpop.xlane.xlu0 %896
  %v898 = vsub.f32 %v890, %v894
  %v899 = vsub.f32 %v891, %v897
  %v900 = vmul.f32 %v898, 1.442695
  %v901 = vpow.pop %v900
  %v902 = vmul.f32 %v899, 1.442695
  %v903 = vpow.pop %v902
  %v904 = vsel %vm507, %v901, 0.0
  %905 = vadd.xlane.f32.xlu0 %v904
  %v906 = vpop.xlane.xlu0 %905
  %v907 = vsel %vm507, %v903, 0.0
  %908 = vadd.xlane.f32.xlu0 %v907
  %v909 = vpop.xlane.xlu0 %908
  %v910 = vrcp.pop %v906
  %v911 = vmul.f32 %v901, %v910
  %v912 = vrcp.pop %v909
  %v913 = vmul.f32 %v903, %v912
  %v915 = vsel %vm507, %v911, 0
  %v918 = vsel %vm507, %v913, 0
  %920 = vmatprep.subr.mxu0 0.0
  %921 = vmatpush1.msra.mxu0 0.0
  %922 = vmatprep.subr.mxu0 0.0
  %923 = vmatpush1.msra.mxu0 0.0
  %924 = vmatprep.subr.mxu0 0.0
  %925 = vmatpush1.msra.mxu0 0.0
  %926 = vmatprep.subr.mxu0 0.0
  %927 = vmatpush1.msra.mxu0 0.0
  %928 = vmatprep.subr.mxu0 0.0
  %929 = vmatpush1.msra.mxu0 0.0
  %930 = vmatprep.subr.mxu0 0.0
  %931 = vmatpush1.msra.mxu0 0.0
  %932 = vmatprep.subr.mxu0 0.0
  %933 = vmatpush1.msra.mxu0 0.0
  %934 = vmatprep.subr.mxu0 0.0
  %935 = vmatpush1.msra.mxu0 0.0
  %936 = vmatprep.subr.mxu0 0.0
  %937 = vmatpush1.msra.mxu0 0.0
  %938 = vmatprep.subr.mxu0 0.0
  %939 = vmatpush1.msra.mxu0 0.0
  %940 = vmatprep.subr.mxu0 0.0
  %941 = vmatpush1.msra.mxu0 0.0
  %942 = vmatprep.subr.mxu0 0.0
  %943 = vmatpush1.msra.mxu0 0.0
  %944 = vmatprep.subr.mxu0 0.0
  %945 = vmatpush1.msra.mxu0 0.0
  %946 = vmatprep.subr.mxu0 0.0
  %947 = vmatpush1.msra.mxu0 0.0
  %948 = vmatprep.subr.mxu0 0.0
  %949 = vmatpush1.msra.mxu0 %v806
  %950 = vmatprep.subr.mxu0 0.0
  %951 = vmatpush1.msra.mxu0 %v805
  %952 = vmatprep.subr.mxu0 0.0
  %953 = vmatpush2.msra.mxu0 0.0
  %954 = vmatprep.subr.mxu0 0.0
  %955 = vmatpush2.msra.mxu0 0.0
  %956 = vmatprep.subr.mxu0 0.0
  %957 = vmatpush2.msra.mxu0 0.0
  %958 = vmatprep.subr.mxu0 0.0
  %959 = vmatpush2.msra.mxu0 0.0
  %960 = vmatprep.subr.mxu0 0.0
  %961 = vmatpush2.msra.mxu0 0.0
  %962 = vmatprep.subr.mxu0 0.0
  %963 = vmatpush2.msra.mxu0 0.0
  %964 = vmatprep.subr.mxu0 0.0
  %965 = vmatpush2.msra.mxu0 0.0
  %966 = vmatprep.subr.mxu0 0.0
  %967 = vmatpush2.msra.mxu0 0.0
  %968 = vmatprep.subr.mxu0 0.0
  %969 = vmatpush2.msra.mxu0 0.0
  %970 = vmatprep.subr.mxu0 0.0
  %971 = vmatpush2.msra.mxu0 0.0
  %972 = vmatprep.subr.mxu0 0.0
  %973 = vmatpush2.msra.mxu0 0.0
  %974 = vmatprep.subr.mxu0 0.0
  %975 = vmatpush2.msra.mxu0 0.0
  %976 = vmatprep.subr.mxu0 0.0
  %977 = vmatpush2.msra.mxu0 0.0
  %978 = vmatprep.subr.mxu0 0.0
  %979 = vmatpush2.msra.mxu0 0.0
  %980 = vmatprep.subr.mxu0 0.0
  %981 = vmatpush2.msra.mxu0 0.0
  %982 = vmatprep.subr.mxu0 0.0
  %983 = vmatpush2.msra.mxu0 0.0
  %984 = vmatprep.mubr.f32.mxu0 0.0
  %985 = vmatmul.mubr.f32.gmra.mxu0 %v915
  %v986 = vpop.f32.mrf.mxu0
  %v987 = vadd.f32 0.0, %v986
  %v988 = vpop.f32.mrf.mxu0
  %989 = vmatprep.mubr.f32.mxu0 0.0
  %990 = vmatmul.mubr.f32.gmra.mxu0 %v918
  %v991 = vpop.f32.mrf.mxu0
  %v992 = vadd.f32 0.0, %v991
  %v993 = vpop.f32.mrf.mxu0
  %994 = vdwg.mxu0
  %v995 = vadd.f32 %v795, %v987
  %v996 = vadd.f32 %v800, %v992
  %v997 = vmul.f32 %v323, %v92
  %v998 = vmul.f32 %v328, %v92
  %v999 = vmul.f32 %v404, %v92
  %v1000 = vmul.f32 %v409, %v92
  %v1002 = vsel %vm99, %v997, 0
  %v1005 = vsel %vm99, %v998, 0
  %1007 = vmatprep.subr.mxu0 0.0
  %1008 = vmatpush1.xpose.msra.mxu0 0.0
  %1009 = vmatprep.subr.mxu0 0.0
  %1010 = vmatpush1.xpose.msra.mxu0 0.0
  %1011 = vmatprep.subr.mxu0 0.0
  %1012 = vmatpush1.xpose.msra.mxu0 0.0
  %1013 = vmatprep.subr.mxu0 0.0
  %1014 = vmatpush1.xpose.msra.mxu0 0.0
  %1015 = vmatprep.subr.mxu0 0.0
  %1016 = vmatpush1.xpose.msra.mxu0 0.0
  %1017 = vmatprep.subr.mxu0 0.0
  %1018 = vmatpush1.xpose.msra.mxu0 0.0
  %1019 = vmatprep.subr.mxu0 0.0
  %1020 = vmatpush1.xpose.msra.mxu0 0.0
  %1021 = vmatprep.subr.mxu0 0.0
  %1022 = vmatpush1.xpose.msra.mxu0 0.0
  %1023 = vmatprep.subr.mxu0 0.0
  %1024 = vmatpush1.xpose.msra.mxu0 0.0
  %1025 = vmatprep.subr.mxu0 0.0
  %1026 = vmatpush1.xpose.msra.mxu0 0.0
  %1027 = vmatprep.subr.mxu0 0.0
  %1028 = vmatpush1.xpose.msra.mxu0 0.0
  %1029 = vmatprep.subr.mxu0 0.0
  %1030 = vmatpush1.xpose.msra.mxu0 0.0
  %1031 = vmatprep.subr.mxu0 0.0
  %1032 = vmatpush1.xpose.msra.mxu0 0.0
  %1033 = vmatprep.subr.mxu0 0.0
  %1034 = vmatpush1.xpose.msra.mxu0 0.0
  %1035 = vmatprep.subr.mxu0 0.0
  %1036 = vmatpush1.xpose.msra.mxu0 %v1005
  %1037 = vmatprep.subr.mxu0 0.0
  %1038 = vmatpush1.xpose.msra.mxu0 %v1002
  %1039 = vmatprep.subr.mxu0 0.0
  %1040 = vmatpush2.xpose.msra.mxu0 0.0
  %1041 = vmatprep.subr.mxu0 0.0
  %1042 = vmatpush2.xpose.msra.mxu0 0.0
  %1043 = vmatprep.subr.mxu0 0.0
  %1044 = vmatpush2.xpose.msra.mxu0 0.0
  %1045 = vmatprep.subr.mxu0 0.0
  %1046 = vmatpush2.xpose.msra.mxu0 0.0
  %1047 = vmatprep.subr.mxu0 0.0
  %1048 = vmatpush2.xpose.msra.mxu0 0.0
  %1049 = vmatprep.subr.mxu0 0.0
  %1050 = vmatpush2.xpose.msra.mxu0 0.0
  %1051 = vmatprep.subr.mxu0 0.0
  %1052 = vmatpush2.xpose.msra.mxu0 0.0
  %1053 = vmatprep.subr.mxu0 0.0
  %1054 = vmatpush2.xpose.msra.mxu0 0.0
  %1055 = vmatprep.subr.mxu0 0.0
  %1056 = vmatpush2.xpose.msra.mxu0 0.0
  %1057 = vmatprep.subr.mxu0 0.0
  %1058 = vmatpush2.xpose.msra.mxu0 0.0
  %1059 = vmatprep.subr.mxu0 0.0
  %1060 = vmatpush2.xpose.msra.mxu0 0.0
  %1061 = vmatprep.subr.mxu0 0.0
  %1062 = vmatpush2.xpose.msra.mxu0 0.0
  %1063 = vmatprep.subr.mxu0 0.0
  %1064 = vmatpush2.xpose.msra.mxu0 0.0
  %1065 = vmatprep.subr.mxu0 0.0
  %1066 = vmatpush2.xpose.msra.mxu0 0.0
  %1067 = vmatprep.subr.mxu0 0.0
  %1068 = vmatpush2.xpose.msra.mxu0 0.0
  %1069 = vmatprep.subr.mxu0 0.0
  %1070 = vmatpush2.xpose.msra.mxu0 0.0
  %1071 = vmatprep.mubr.f32.mxu0 0.0
  %1072 = vmatmul.mubr.f32.gmra.mxu0 %v417
  %v1073 = vpop.f32.mrf.mxu0
  %v1074 = vadd.f32 0.0, %v1073
  %v1075 = vpop.f32.mrf.mxu0
  %1076 = vmatprep.mubr.f32.mxu0 0.0
  %1077 = vmatmul.mubr.f32.gmra.mxu0 %v420
  %v1078 = vpop.f32.mrf.mxu0
  %v1079 = vadd.f32 0.0, %v1078
  %v1080 = vpop.f32.mrf.mxu0
  %1081 = vdwg.mxu0
  %v1082 = vmul.f32 %v1074, 0.35355338
  %v1083 = vmul.f32 %v1079, 0.35355338
  %v1084 = vadd.f32 %v1082, %v93
  %v1085 = vadd.f32 %v1083, %v94
  %v1086 = vsel %vm507, %v1084, -inf
  %1087 = vmax.xlane.f32.xlu0 %v1086
  %v1088 = vpop.xlane.xlu0 %1087
  %v1089 = vsel %vm507, %v1085, -inf
  %1090 = vmax.xlane.f32.xlu0 %v1089
  %v1091 = vpop.xlane.xlu0 %1090
  %v1092 = vsub.f32 %v1084, %v1088
  %v1093 = vsub.f32 %v1085, %v1091
  %v1094 = vmul.f32 %v1092, 1.442695
  %v1095 = vpow.pop %v1094
  %v1096 = vmul.f32 %v1093, 1.442695
  %v1097 = vpow.pop %v1096
  %v1098 = vsel %vm507, %v1095, 0.0
  %1099 = vadd.xlane.f32.xlu0 %v1098
  %v1100 = vpop.xlane.xlu0 %1099
  %v1101 = vsel %vm507, %v1097, 0.0
  %1102 = vadd.xlane.f32.xlu0 %v1101
  %v1103 = vpop.xlane.xlu0 %1102
  %v1104 = vrcp.pop %v1100
  %v1105 = vmul.f32 %v1095, %v1104
  %v1106 = vrcp.pop %v1103
  %v1107 = vmul.f32 %v1097, %v1106
  %v1109 = vsel %vm507, %v1105, 0
  %v1112 = vsel %vm507, %v1107, 0
  %1114 = vmatprep.subr.mxu0 0.0
  %1115 = vmatpush1.msra.mxu0 0.0
  %1116 = vmatprep.subr.mxu0 0.0
  %1117 = vmatpush1.msra.mxu0 0.0
  %1118 = vmatprep.subr.mxu0 0.0
  %1119 = vmatpush1.msra.mxu0 0.0
  %1120 = vmatprep.subr.mxu0 0.0
  %1121 = vmatpush1.msra.mxu0 0.0
  %1122 = vmatprep.subr.mxu0 0.0
  %1123 = vmatpush1.msra.mxu0 0.0
  %1124 = vmatprep.subr.mxu0 0.0
  %1125 = vmatpush1.msra.mxu0 0.0
  %1126 = vmatprep.subr.mxu0 0.0
  %1127 = vmatpush1.msra.mxu0 0.0
  %1128 = vmatprep.subr.mxu0 0.0
  %1129 = vmatpush1.msra.mxu0 0.0
  %1130 = vmatprep.subr.mxu0 0.0
  %1131 = vmatpush1.msra.mxu0 0.0
  %1132 = vmatprep.subr.mxu0 0.0
  %1133 = vmatpush1.msra.mxu0 0.0
  %1134 = vmatprep.subr.mxu0 0.0
  %1135 = vmatpush1.msra.mxu0 0.0
  %1136 = vmatprep.subr.mxu0 0.0
  %1137 = vmatpush1.msra.mxu0 0.0
  %1138 = vmatprep.subr.mxu0 0.0
  %1139 = vmatpush1.msra.mxu0 0.0
  %1140 = vmatprep.subr.mxu0 0.0
  %1141 = vmatpush1.msra.mxu0 0.0
  %1142 = vmatprep.subr.mxu0 0.0
  %1143 = vmatpush1.msra.mxu0 %v1000
  %1144 = vmatprep.subr.mxu0 0.0
  %1145 = vmatpush1.msra.mxu0 %v999
  %1146 = vmatprep.subr.mxu0 0.0
  %1147 = vmatpush2.msra.mxu0 0.0
  %1148 = vmatprep.subr.mxu0 0.0
  %1149 = vmatpush2.msra.mxu0 0.0
  %1150 = vmatprep.subr.mxu0 0.0
  %1151 = vmatpush2.msra.mxu0 0.0
  %1152 = vmatprep.subr.mxu0 0.0
  %1153 = vmatpush2.msra.mxu0 0.0
  %1154 = vmatprep.subr.mxu0 0.0
  %1155 = vmatpush2.msra.mxu0 0.0
  %1156 = vmatprep.subr.mxu0 0.0
  %1157 = vmatpush2.msra.mxu0 0.0
  %1158 = vmatprep.subr.mxu0 0.0
  %1159 = vmatpush2.msra.mxu0 0.0
  %1160 = vmatprep.subr.mxu0 0.0
  %1161 = vmatpush2.msra.mxu0 0.0
  %1162 = vmatprep.subr.mxu0 0.0
  %1163 = vmatpush2.msra.mxu0 0.0
  %1164 = vmatprep.subr.mxu0 0.0
  %1165 = vmatpush2.msra.mxu0 0.0
  %1166 = vmatprep.subr.mxu0 0.0
  %1167 = vmatpush2.msra.mxu0 0.0
  %1168 = vmatprep.subr.mxu0 0.0
  %1169 = vmatpush2.msra.mxu0 0.0
  %1170 = vmatprep.subr.mxu0 0.0
  %1171 = vmatpush2.msra.mxu0 0.0
  %1172 = vmatprep.subr.mxu0 0.0
  %1173 = vmatpush2.msra.mxu0 0.0
  %1174 = vmatprep.subr.mxu0 0.0
  %1175 = vmatpush2.msra.mxu0 0.0
  %1176 = vmatprep.subr.mxu0 0.0
  %1177 = vmatpush2.msra.mxu0 0.0
  %1178 = vmatprep.mubr.f32.mxu0 0.0
  %1179 = vmatmul.mubr.f32.gmra.mxu0 %v1109
  %v1180 = vpop.f32.mrf.mxu0
  %v1181 = vadd.f32 0.0, %v1180
  %v1182 = vpop.f32.mrf.mxu0
  %1183 = vmatprep.mubr.f32.mxu0 0.0
  %1184 = vmatmul.mubr.f32.gmra.mxu0 %v1112
  %v1185 = vpop.f32.mrf.mxu0
  %v1186 = vadd.f32 0.0, %v1185
  %v1187 = vpop.f32.mrf.mxu0
  %1188 = vdwg.mxu0
  %v1189 = vadd.f32 %v995, %v1181
  %v1190 = vadd.f32 %v996, %v1186
  %v1192 = vlaneseq
  %v1193 = vshrl.u32 %v1192, 7
  %v1194 = vsub.s32 0, %v1193
  %v1195 = vrot.slane %v162, %v1194
  %v1198 = vsel %vm99, %v1189, 0
  %v1201 = vsel %vm99, %v1190, 0
  %1203 = vmatprep.subr.mxu0 0.0
  %1204 = vmatpush1.msra.mxu0 0.0
  %1205 = vmatprep.subr.mxu0 0.0
  %1206 = vmatpush1.msra.mxu0 0.0
  %1207 = vmatprep.subr.mxu0 0.0
  %1208 = vmatpush1.msra.mxu0 0.0
  %1209 = vmatprep.subr.mxu0 0.0
  %1210 = vmatpush1.msra.mxu0 0.0
  %1211 = vmatprep.subr.mxu0 0.0
  %1212 = vmatpush1.msra.mxu0 0.0
  %1213 = vmatprep.subr.mxu0 0.0
  %1214 = vmatpush1.msra.mxu0 0.0
  %1215 = vmatprep.subr.mxu0 0.0
  %1216 = vmatpush1.msra.mxu0 0.0
  %1217 = vmatprep.subr.mxu0 0.0
  %1218 = vmatpush1.msra.mxu0 0.0
  %1219 = vmatprep.subr.mxu0 0.0
  %1220 = vmatpush1.msra.mxu0 0.0
  %1221 = vmatprep.subr.mxu0 0.0
  %1222 = vmatpush1.msra.mxu0 0.0
  %1223 = vmatprep.subr.mxu0 0.0
  %1224 = vmatpush1.msra.mxu0 0.0
  %1225 = vmatprep.subr.mxu0 0.0
  %1226 = vmatpush1.msra.mxu0 0.0
  %1227 = vmatprep.subr.mxu0 0.0
  %1228 = vmatpush1.msra.mxu0 %v161
  %1229 = vmatprep.subr.mxu0 0.0
  %1230 = vmatpush1.msra.mxu0 %v160
  %1231 = vmatprep.subr.mxu0 0.0
  %1232 = vmatpush1.msra.mxu0 %v159
  %1233 = vmatprep.subr.mxu0 0.0
  %1234 = vmatpush1.msra.mxu0 %v158
  %1235 = vmatprep.subr.mxu0 0.0
  %1236 = vmatpush2.msra.mxu0 0.0
  %1237 = vmatprep.subr.mxu0 0.0
  %1238 = vmatpush2.msra.mxu0 0.0
  %1239 = vmatprep.subr.mxu0 0.0
  %1240 = vmatpush2.msra.mxu0 0.0
  %1241 = vmatprep.subr.mxu0 0.0
  %1242 = vmatpush2.msra.mxu0 0.0
  %1243 = vmatprep.subr.mxu0 0.0
  %1244 = vmatpush2.msra.mxu0 0.0
  %1245 = vmatprep.subr.mxu0 0.0
  %1246 = vmatpush2.msra.mxu0 0.0
  %1247 = vmatprep.subr.mxu0 0.0
  %1248 = vmatpush2.msra.mxu0 0.0
  %1249 = vmatprep.subr.mxu0 0.0
  %1250 = vmatpush2.msra.mxu0 0.0
  %1251 = vmatprep.subr.mxu0 0.0
  %1252 = vmatpush2.msra.mxu0 0.0
  %1253 = vmatprep.subr.mxu0 0.0
  %1254 = vmatpush2.msra.mxu0 0.0
  %1255 = vmatprep.subr.mxu0 0.0
  %1256 = vmatpush2.msra.mxu0 0.0
  %1257 = vmatprep.subr.mxu0 0.0
  %1258 = vmatpush2.msra.mxu0 0.0
  %1259 = vmatprep.subr.mxu0 0.0
  %1260 = vmatpush2.msra.mxu0 0.0
  %1261 = vmatprep.subr.mxu0 0.0
  %1262 = vmatpush2.msra.mxu0 0.0
  %1263 = vmatprep.subr.mxu0 0.0
  %1264 = vmatpush2.msra.mxu0 0.0
  %1265 = vmatprep.subr.mxu0 0.0
  %1266 = vmatpush2.msra.mxu0 0.0
  %1267 = vmatprep.mubr.f32.mxu0 0.0
  %1268 = vmatmul.mubr.f32.gmra.mxu0 %v1198
  %v1269 = vpop.f32.mrf.mxu0
  %v1270 = vadd.f32 %v1195, %v1269
  %v1271 = vpop.f32.mrf.mxu0
  %1272 = vmatprep.mubr.f32.mxu0 0.0
  %1273 = vmatmul.mubr.f32.gmra.mxu0 %v1201
  %v1274 = vpop.f32.mrf.mxu0
  %v1275 = vadd.f32 %v1195, %v1274
  %v1276 = vpop.f32.mrf.mxu0
  %1277 = vdwg.mxu0
  %v1278 = vadd.f32 %v1270, %v141
  %v1279 = vadd.f32 %v1275, %v142
  %v1280 = vld [vmem:[%s12] sm:$0x1]
  %v1281 = vld [vmem:[%s13] sm:$0x1]
  %v1282 = vsel %vm99, %v1278, 0.0
  %1283 = vadd.xlane.f32.xlu0 %v1282
  %v1284 = vpop.xlane.xlu0 %1283
  %v1285 = vsel %vm99, %v1279, 0.0
  %1286 = vadd.xlane.f32.xlu0 %v1285
  %v1287 = vpop.xlane.xlu0 %1286
  %v1288 = vmul.f32 %v1284, %v106
  %v1289 = vmul.f32 %v1287, %v106
  %v1290 = vsub.f32 %v1278, %v1288
  %v1291 = vsub.f32 %v1279, %v1289
  %v1292 = vmul.f32 %v1290, %v1290
  %v1293 = vmul.f32 %v1291, %v1291
  %v1294 = vsel %vm99, %v1292, 0.0
  %1295 = vadd.xlane.f32.xlu0 %v1294
  %v1296 = vpop.xlane.xlu0 %1295
  %v1297 = vsel %vm99, %v1293, 0.0
  %1298 = vadd.xlane.f32.xlu0 %v1297
  %v1299 = vpop.xlane.xlu0 %1298
  %v1300 = vmul.f32 %v1296, %v106
  %v1301 = vmul.f32 %v1299, %v106
  %v1302 = vadd.f32 %v1300, 1e-05
  %v1303 = vadd.f32 %v1301, 1e-05
  %v1304 = vrsqrt.pop %v1302
  %v1305 = vrsqrt.pop %v1303
  %v1306 = vmul.f32 %v1290, %v1304
  %v1307 = vmul.f32 %v1291, %v1305
  %v1309 = vlaneseq
  %v1310 = vshrl.u32 %v1309, 7
  %v1311 = vsub.s32 0, %v1310
  %v1312 = vrot.slane %v1280, %v1311
  %v1314 = vmul.f32 %v1306, %v1312
  %v1315 = vmul.f32 %v1307, %v1312
  %v1317 = vlaneseq
  %v1318 = vshrl.u32 %v1317, 7
  %v1319 = vsub.s32 0, %v1318
  %v1320 = vrot.slane %v1281, %v1319
  %v1322 = vadd.f32 %v1314, %v1320
  %v1323 = vadd.f32 %v1315, %v1320
  %v1324 = vld [vmem:[%s14] sm:$0xff]
  %v1325 = vld [vmem:[%s14 + $0x8] sm:$0xff]
  %v1326 = vld [vmem:[%s14 + $0x10] sm:$0xff]
  %v1327 = vld [vmem:[%s14 + $0x18] sm:$0xff]
  %v1328 = vld [vmem:[%s15] sm:$0x1]
  %v1330 = vlaneseq
  %v1331 = vshrl.u32 %v1330, 7
  %v1332 = vsub.s32 0, %v1331
  %v1333 = vrot.slane %v1328, %v1332
  %v1336 = vsel %vm99, %v1322, 0
  %v1339 = vsel %vm99, %v1323, 0
  %1341 = vmatprep.subr.mxu0 0.0
  %1342 = vmatpush1.msra.mxu0 0.0
  %1343 = vmatprep.subr.mxu0 0.0
  %1344 = vmatpush1.msra.mxu0 0.0
  %1345 = vmatprep.subr.mxu0 0.0
  %1346 = vmatpush1.msra.mxu0 0.0
  %1347 = vmatprep.subr.mxu0 0.0
  %1348 = vmatpush1.msra.mxu0 0.0
  %1349 = vmatprep.subr.mxu0 0.0
  %1350 = vmatpush1.msra.mxu0 0.0
  %1351 = vmatprep.subr.mxu0 0.0
  %1352 = vmatpush1.msra.mxu0 0.0
  %1353 = vmatprep.subr.mxu0 0.0
  %1354 = vmatpush1.msra.mxu0 0.0
  %1355 = vmatprep.subr.mxu0 0.0
  %1356 = vmatpush1.msra.mxu0 0.0
  %1357 = vmatprep.subr.mxu0 0.0
  %1358 = vmatpush1.msra.mxu0 0.0
  %1359 = vmatprep.subr.mxu0 0.0
  %1360 = vmatpush1.msra.mxu0 0.0
  %1361 = vmatprep.subr.mxu0 0.0
  %1362 = vmatpush1.msra.mxu0 0.0
  %1363 = vmatprep.subr.mxu0 0.0
  %1364 = vmatpush1.msra.mxu0 0.0
  %1365 = vmatprep.subr.mxu0 0.0
  %1366 = vmatpush1.msra.mxu0 %v1327
  %1367 = vmatprep.subr.mxu0 0.0
  %1368 = vmatpush1.msra.mxu0 %v1326
  %1369 = vmatprep.subr.mxu0 0.0
  %1370 = vmatpush1.msra.mxu0 %v1325
  %1371 = vmatprep.subr.mxu0 0.0
  %1372 = vmatpush1.msra.mxu0 %v1324
  %1373 = vmatprep.subr.mxu0 0.0
  %1374 = vmatpush2.msra.mxu0 0.0
  %1375 = vmatprep.subr.mxu0 0.0
  %1376 = vmatpush2.msra.mxu0 0.0
  %1377 = vmatprep.subr.mxu0 0.0
  %1378 = vmatpush2.msra.mxu0 0.0
  %1379 = vmatprep.subr.mxu0 0.0
  %1380 = vmatpush2.msra.mxu0 0.0
  %1381 = vmatprep.subr.mxu0 0.0
  %1382 = vmatpush2.msra.mxu0 0.0
  %1383 = vmatprep.subr.mxu0 0.0
  %1384 = vmatpush2.msra.mxu0 0.0
  %1385 = vmatprep.subr.mxu0 0.0
  %1386 = vmatpush2.msra.mxu0 0.0
  %1387 = vmatprep.subr.mxu0 0.0
  %1388 = vmatpush2.msra.mxu0 0.0
  %1389 = vmatprep.subr.mxu0 0.0
  %1390 = vmatpush2.msra.mxu0 0.0
  %1391 = vmatprep.subr.mxu0 0.0
  %1392 = vmatpush2.msra.mxu0 0.0
  %1393 = vmatprep.subr.mxu0 0.0
  %1394 = vmatpush2.msra.mxu0 0.0
  %1395 = vmatprep.subr.mxu0 0.0
  %1396 = vmatpush2.msra.mxu0 0.0
  %1397 = vmatprep.subr.mxu0 0.0
  %1398 = vmatpush2.msra.mxu0 0.0
  %1399 = vmatprep.subr.mxu0 0.0
  %1400 = vmatpush2.msra.mxu0 0.0
  %1401 = vmatprep.subr.mxu0 0.0
  %1402 = vmatpush2.msra.mxu0 0.0
  %1403 = vmatprep.subr.mxu0 0.0
  %1404 = vmatpush2.msra.mxu0 0.0
  %1405 = vmatprep.mubr.f32.mxu0 0.0
  %1406 = vmatmul.mubr.f32.gmra.mxu0 %v1336
  %v1407 = vpop.f32.mrf.mxu0
  %v1408 = vadd.f32 %v1333, %v1407
  %v1409 = vpop.f32.mrf.mxu0
  %1410 = vmatprep.mubr.f32.mxu0 0.0
  %1411 = vmatmul.mubr.f32.gmra.mxu0 %v1339
  %v1412 = vpop.f32.mrf.mxu0
  %v1413 = vadd.f32 %v1333, %v1412
  %v1414 = vpop.f32.mrf.mxu0
  %1415 = vdwg.mxu0
  %v1416 = vmul.f32 %v1408, 0.5
  %v1417 = vmul.f32 %v1413, 0.5
  %v1418 = vmul.f32 %v1408, 0.044715
  %v1419 = vmul.f32 %v1413, 0.044715
  %v1420 = vmul.f32 %v1418, %v1408
  %v1421 = vmul.f32 %v1419, %v1413
  %v1422 = vmul.f32 %v1420, %v1408
  %v1423 = vmul.f32 %v1421, %v1413
  %v1424 = vadd.f32 %v1408, %v1422
  %v1425 = vadd.f32 %v1413, %v1423
  %v1426 = vmul.f32 %v1424, 0.7978846
  %v1427 = vmul.f32 %v1425, 0.7978846
  %v1428 = vtanh.pop %v1426
  %v1429 = vtanh.pop %v1427
  %v1430 = vadd.f32 %v1428, 1.0
  %v1431 = vadd.f32 %v1429, 1.0
  %v1432 = vmul.f32 %v1416, %v1430
  %v1433 = vmul.f32 %v1417, %v1431
  %v1434 = vld [vmem:[%s16] sm:$0xff]
  %v1435 = vld [vmem:[%s16 + $0x8] sm:$0xff]
  %v1436 = vld [vmem:[%s16 + $0x10] sm:$0xff]
  %v1437 = vld [vmem:[%s16 + $0x18] sm:$0xff]
  %v1438 = vld [vmem:[%s16 + $0x20] sm:$0xff]
  %v1439 = vld [vmem:[%s16 + $0x28] sm:$0xff]
  %v1440 = vld [vmem:[%s16 + $0x30] sm:$0xff]
  %v1441 = vld [vmem:[%s16 + $0x38] sm:$0xff]
  %v1442 = vld [vmem:[%s16 + $0x40] sm:$0xff]
  %v1443 = vld [vmem:[%s16 + $0x48] sm:$0xff]
  %v1444 = vld [vmem:[%s16 + $0x50] sm:$0xff]
  %v1445 = vld [vmem:[%s16 + $0x58] sm:$0xff]
  %v1446 = vld [vmem:[%s16 + $0x60] sm:$0xff]
  %v1447 = vld [vmem:[%s16 + $0x68] sm:$0xff]
  %v1448 = vld [vmem:[%s16 + $0x70] sm:$0xff]
  %v1449 = vld [vmem:[%s16 + $0x78] sm:$0xff]
  %v1450 = vld [vmem:[%s17] sm:$0x1]
  %v1452 = vlaneseq
  %v1453 = vshrl.u32 %v1452, 7
  %v1454 = vsub.s32 0, %v1453
  %v1455 = vrot.slane %v1450, %v1454
  %1457 = vmatprep.subr.mxu0 0.0
  %1458 = vmatpush1.msra.mxu0 %v1449
  %1459 = vmatprep.subr.mxu0 0.0
  %1460 = vmatpush1.msra.mxu0 %v1448
  %1461 = vmatprep.subr.mxu0 0.0
  %1462 = vmatpush1.msra.mxu0 %v1447
  %1463 = vmatprep.subr.mxu0 0.0
  %1464 = vmatpush1.msra.mxu0 %v1446
  %1465 = vmatprep.subr.mxu0 0.0
  %1466 = vmatpush1.msra.mxu0 %v1445
  %1467 = vmatprep.subr.mxu0 0.0
  %1468 = vmatpush1.msra.mxu0 %v1444
  %1469 = vmatprep.subr.mxu0 0.0
  %1470 = vmatpush1.msra.mxu0 %v1443
  %1471 = vmatprep.subr.mxu0 0.0
  %1472 = vmatpush1.msra.mxu0 %v1442
  %1473 = vmatprep.subr.mxu0 0.0
  %1474 = vmatpush1.msra.mxu0 %v1441
  %1475 = vmatprep.subr.mxu0 0.0
  %1476 = vmatpush1.msra.mxu0 %v1440
  %1477 = vmatprep.subr.mxu0 0.0
  %1478 = vmatpush1.msra.mxu0 %v1439
  %1479 = vmatprep.subr.mxu0 0.0
  %1480 = vmatpush1.msra.mxu0 %v1438
  %1481 = vmatprep.subr.mxu0 0.0
  %1482 = vmatpush1.msra.mxu0 %v1437
  %1483 = vmatprep.subr.mxu0 0.0
  %1484 = vmatpush1.msra.mxu0 %v1436
  %1485 = vmatprep.subr.mxu0 0.0
  %1486 = vmatpush1.msra.mxu0 %v1435
  %1487 = vmatprep.subr.mxu0 0.0
  %1488 = vmatpush1.msra.mxu0 %v1434
  %1489 = vmatprep.subr.mxu0 0.0
  %1490 = vmatpush2.msra.mxu0 0.0
  %1491 = vmatprep.subr.mxu0 0.0
  %1492 = vmatpush2.msra.mxu0 0.0
  %1493 = vmatprep.subr.mxu0 0.0
  %1494 = vmatpush2.msra.mxu0 0.0
  %1495 = vmatprep.subr.mxu0 0.0
  %1496 = vmatpush2.msra.mxu0 0.0
  %1497 = vmatprep.subr.mxu0 0.0
  %1498 = vmatpush2.msra.mxu0 0.0
  %1499 = vmatprep.subr.mxu0 0.0
  %1500 = vmatpush2.msra.mxu0 0.0
  %1501 = vmatprep.subr.mxu0 0.0
  %1502 = vmatpush2.msra.mxu0 0.0
  %1503 = vmatprep.subr.mxu0 0.0
  %1504 = vmatpush2.msra.mxu0 0.0
  %1505 = vmatprep.subr.mxu0 0.0
  %1506 = vmatpush2.msra.mxu0 0.0
  %1507 = vmatprep.subr.mxu0 0.0
  %1508 = vmatpush2.msra.mxu0 0.0
  %1509 = vmatprep.subr.mxu0 0.0
  %1510 = vmatpush2.msra.mxu0 0.0
  %1511 = vmatprep.subr.mxu0 0.0
  %1512 = vmatpush2.msra.mxu0 0.0
  %1513 = vmatprep.subr.mxu0 0.0
  %1514 = vmatpush2.msra.mxu0 0.0
  %1515 = vmatprep.subr.mxu0 0.0
  %1516 = vmatpush2.msra.mxu0 0.0
  %1517 = vmatprep.subr.mxu0 0.0
  %1518 = vmatpush2.msra.mxu0 0.0
  %1519 = vmatprep.subr.mxu0 0.0
  %1520 = vmatpush2.msra.mxu0 0.0
  %1521 = vmatprep.mubr.f32.mxu0 0.0
  %1522 = vmatmul.mubr.f32.gmra.mxu0 %v1432
  %v1523 = vpop.f32.mrf.mxu0
  %v1524 = vadd.f32 %v1455, %v1523
  %v1525 = vpop.f32.mrf.mxu0
  %1526 = vmatprep.mubr.f32.mxu0 0.0
  %1527 = vmatmul.mubr.f32.gmra.mxu0 %v1433
  %v1528 = vpop.f32.mrf.mxu0
  %v1529 = vadd.f32 %v1455, %v1528
  %v1530 = vpop.f32.mrf.mxu0
  %1531 = vdwg.mxu0
  %v1532 = vadd.f32 %v1524, %v1322
  %v1533 = vadd.f32 %v1529, %v1323
  %v1534 = vld [vmem:[%s18] sm:$0x1]
  %v1535 = vld [vmem:[%s19] sm:$0x1]
  %v1536 = vsel %vm99, %v1532, 0.0
  %1537 = vadd.xlane.f32.xlu0 %v1536
  %v1538 = vpop.xlane.xlu0 %1537
  %v1539 = vsel %vm99, %v1533, 0.0
  %1540 = vadd.xlane.f32.xlu0 %v1539
  %v1541 = vpop.xlane.xlu0 %1540
  %v1542 = vmul.f32 %v1538, %v106
  %v1543 = vmul.f32 %v1541, %v106
  %v1544 = vsub.f32 %v1532, %v1542
  %v1545 = vsub.f32 %v1533, %v1543
  %v1546 = vmul.f32 %v1544, %v1544
  %v1547 = vmul.f32 %v1545, %v1545
  %v1548 = vsel %vm99, %v1546, 0.0
  %1549 = vadd.xlane.f32.xlu0 %v1548
  %v1550 = vpop.xlane.xlu0 %1549
  %v1551 = vsel %vm99, %v1547, 0.0
  %1552 = vadd.xlane.f32.xlu0 %v1551
  %v1553 = vpop.xlane.xlu0 %1552
  %v1554 = vmul.f32 %v1550, %v106
  %v1555 = vmul.f32 %v1553, %v106
  %v1556 = vadd.f32 %v1554, 1e-05
  %v1557 = vadd.f32 %v1555, 1e-05
  %v1558 = vrsqrt.pop %v1556
  %v1559 = vrsqrt.pop %v1557
  %v1560 = vmul.f32 %v1544, %v1558
  %v1561 = vmul.f32 %v1545, %v1559
  %v1563 = vlaneseq
  %v1564 = vshrl.u32 %v1563, 7
  %v1565 = vsub.s32 0, %v1564
  %v1566 = vrot.slane %v1534, %v1565
  %v1568 = vmul.f32 %v1560, %v1566
  %v1569 = vmul.f32 %v1561, %v1566
  %v1571 = vlaneseq
  %v1572 = vshrl.u32 %v1571, 7
  %v1573 = vsub.s32 0, %v1572
  %v1574 = vrot.slane %v1535, %v1573
  %v1576 = vadd.f32 %v1568, %v1574
  %v1577 = vadd.f32 %v1569, %v1574
  %s1578 = scalar_lea.vmem %s4, 32
  %v1579 = vld [vmem:[%s1578] sm:$0xff]
  %v1580 = vld [vmem:[%s1578 + $0x8] sm:$0xff]
  %v1581 = vld [vmem:[%s1578 + $0x10] sm:$0xff]
  %v1582 = vld [vmem:[%s1578 + $0x18] sm:$0xff]
  %s1583 = scalar_lea.vmem %s5, 1
  %v1584 = vld [vmem:[%s1583] sm:$0x1]
  %s1585 = scalar_lea.vmem %s6, 32
  %v1586 = vld [vmem:[%s1585] sm:$0xff]
  %v1587 = vld [vmem:[%s1585 + $0x8] sm:$0xff]
  %v1588 = vld [vmem:[%s1585 + $0x10] sm:$0xff]
  %v1589 = vld [vmem:[%s1585 + $0x18] sm:$0xff]
  %s1590 = scalar_lea.vmem %s7, 1
  %v1591 = vld [vmem:[%s1590] sm:$0x1]
  %s1592 = scalar_lea.vmem %s8, 32
  %v1593 = vld [vmem:[%s1592] sm:$0xff]
  %v1594 = vld [vmem:[%s1592 + $0x8] sm:$0xff]
  %v1595 = vld [vmem:[%s1592 + $0x10] sm:$0xff]
  %v1596 = vld [vmem:[%s1592 + $0x18] sm:$0xff]
  %s1597 = scalar_lea.vmem %s9, 1
  %v1598 = vld [vmem:[%s1597] sm:$0x1]
  %s1599 = scalar_lea.vmem %s10, 32
  %v1600 = vld [vmem:[%s1599] sm:$0xff]
  %v1601 = vld [vmem:[%s1599 + $0x8] sm:$0xff]
  %v1602 = vld [vmem:[%s1599 + $0x10] sm:$0xff]
  %v1603 = vld [vmem:[%s1599 + $0x18] sm:$0xff]
  %s1604 = scalar_lea.vmem %s11, 1
  %v1605 = vld [vmem:[%s1604] sm:$0x1]
  %v1607 = vlaneseq
  %v1608 = vshrl.u32 %v1607, 7
  %v1609 = vsub.s32 0, %v1608
  %v1610 = vrot.slane %v1584, %v1609
  %v1613 = vsel %vm99, %v1576, 0
  %v1616 = vsel %vm99, %v1577, 0
  %1618 = vmatprep.subr.mxu0 0.0
  %1619 = vmatpush1.msra.mxu0 0.0
  %1620 = vmatprep.subr.mxu0 0.0
  %1621 = vmatpush1.msra.mxu0 0.0
  %1622 = vmatprep.subr.mxu0 0.0
  %1623 = vmatpush1.msra.mxu0 0.0
  %1624 = vmatprep.subr.mxu0 0.0
  %1625 = vmatpush1.msra.mxu0 0.0
  %1626 = vmatprep.subr.mxu0 0.0
  %1627 = vmatpush1.msra.mxu0 0.0
  %1628 = vmatprep.subr.mxu0 0.0
  %1629 = vmatpush1.msra.mxu0 0.0
  %1630 = vmatprep.subr.mxu0 0.0
  %1631 = vmatpush1.msra.mxu0 0.0
  %1632 = vmatprep.subr.mxu0 0.0
  %1633 = vmatpush1.msra.mxu0 0.0
  %1634 = vmatprep.subr.mxu0 0.0
  %1635 = vmatpush1.msra.mxu0 0.0
  %1636 = vmatprep.subr.mxu0 0.0
  %1637 = vmatpush1.msra.mxu0 0.0
  %1638 = vmatprep.subr.mxu0 0.0
  %1639 = vmatpush1.msra.mxu0 0.0
  %1640 = vmatprep.subr.mxu0 0.0
  %1641 = vmatpush1.msra.mxu0 0.0
  %1642 = vmatprep.subr.mxu0 0.0
  %1643 = vmatpush1.msra.mxu0 %v1582
  %1644 = vmatprep.subr.mxu0 0.0
  %1645 = vmatpush1.msra.mxu0 %v1581
  %1646 = vmatprep.subr.mxu0 0.0
  %1647 = vmatpush1.msra.mxu0 %v1580
  %1648 = vmatprep.subr.mxu0 0.0
  %1649 = vmatpush1.msra.mxu0 %v1579
  %1650 = vmatprep.subr.mxu0 0.0
  %1651 = vmatpush2.msra.mxu0 0.0
  %1652 = vmatprep.subr.mxu0 0.0
  %1653 = vmatpush2.msra.mxu0 0.0
  %1654 = vmatprep.subr.mxu0 0.0
  %1655 = vmatpush2.msra.mxu0 0.0
  %1656 = vmatprep.subr.mxu0 0.0
  %1657 = vmatpush2.msra.mxu0 0.0
  %1658 = vmatprep.subr.mxu0 0.0
  %1659 = vmatpush2.msra.mxu0 0.0
  %1660 = vmatprep.subr.mxu0 0.0
  %1661 = vmatpush2.msra.mxu0 0.0
  %1662 = vmatprep.subr.mxu0 0.0
  %1663 = vmatpush2.msra.mxu0 0.0
  %1664 = vmatprep.subr.mxu0 0.0
  %1665 = vmatpush2.msra.mxu0 0.0
  %1666 = vmatprep.subr.mxu0 0.0
  %1667 = vmatpush2.msra.mxu0 0.0
  %1668 = vmatprep.subr.mxu0 0.0
  %1669 = vmatpush2.msra.mxu0 0.0
  %1670 = vmatprep.subr.mxu0 0.0
  %1671 = vmatpush2.msra.mxu0 0.0
  %1672 = vmatprep.subr.mxu0 0.0
  %1673 = vmatpush2.msra.mxu0 0.0
  %1674 = vmatprep.subr.mxu0 0.0
  %1675 = vmatpush2.msra.mxu0 0.0
  %1676 = vmatprep.subr.mxu0 0.0
  %1677 = vmatpush2.msra.mxu0 0.0
  %1678 = vmatprep.subr.mxu0 0.0
  %1679 = vmatpush2.msra.mxu0 0.0
  %1680 = vmatprep.subr.mxu0 0.0
  %1681 = vmatpush2.msra.mxu0 0.0
  %1682 = vmatprep.mubr.f32.mxu0 0.0
  %1683 = vmatmul.mubr.f32.gmra.mxu0 %v1613
  %v1684 = vpop.f32.mrf.mxu0
  %v1685 = vadd.f32 %v1610, %v1684
  %v1686 = vpop.f32.mrf.mxu0
  %1687 = vmatprep.mubr.f32.mxu0 0.0
  %1688 = vmatmul.mubr.f32.gmra.mxu0 %v1616
  %v1689 = vpop.f32.mrf.mxu0
  %v1690 = vadd.f32 %v1610, %v1689
  %v1691 = vpop.f32.mrf.mxu0
  %1692 = vdwg.mxu0
  %v1694 = vlaneseq
  %v1695 = vshrl.u32 %v1694, 7
  %v1696 = vsub.s32 0, %v1695
  %v1697 = vrot.slane %v1591, %v1696
  %1699 = vmatprep.subr.mxu0 0.0
  %1700 = vmatpush1.msra.mxu0 0.0
  %1701 = vmatprep.subr.mxu0 0.0
  %1702 = vmatpush1.msra.mxu0 0.0
  %1703 = vmatprep.subr.mxu0 0.0
  %1704 = vmatpush1.msra.mxu0 0.0
  %1705 = vmatprep.subr.mxu0 0.0
  %1706 = vmatpush1.msra.mxu0 0.0
  %1707 = vmatprep.subr.mxu0 0.0
  %1708 = vmatpush1.msra.mxu0 0.0
  %1709 = vmatprep.subr.mxu0 0.0
  %1710 = vmatpush1.msra.mxu0 0.0
  %1711 = vmatprep.subr.mxu0 0.0
  %1712 = vmatpush1.msra.mxu0 0.0
  %1713 = vmatprep.subr.mxu0 0.0
  %1714 = vmatpush1.msra.mxu0 0.0
  %1715 = vmatprep.subr.mxu0 0.0
  %1716 = vmatpush1.msra.mxu0 0.0
  %1717 = vmatprep.subr.mxu0 0.0
  %1718 = vmatpush1.msra.mxu0 0.0
  %1719 = vmatprep.subr.mxu0 0.0
  %1720 = vmatpush1.msra.mxu0 0.0
  %1721 = vmatprep.subr.mxu0 0.0
  %1722 = vmatpush1.msra.mxu0 0.0
  %1723 = vmatprep.subr.mxu0 0.0
  %1724 = vmatpush1.msra.mxu0 %v1589
  %1725 = vmatprep.subr.mxu0 0.0
  %1726 = vmatpush1.msra.mxu0 %v1588
  %1727 = vmatprep.subr.mxu0 0.0
  %1728 = vmatpush1.msra.mxu0 %v1587
  %1729 = vmatprep.subr.mxu0 0.0
  %1730 = vmatpush1.msra.mxu0 %v1586
  %1731 = vmatprep.subr.mxu0 0.0
  %1732 = vmatpush2.msra.mxu0 0.0
  %1733 = vmatprep.subr.mxu0 0.0
  %1734 = vmatpush2.msra.mxu0 0.0
  %1735 = vmatprep.subr.mxu0 0.0
  %1736 = vmatpush2.msra.mxu0 0.0
  %1737 = vmatprep.subr.mxu0 0.0
  %1738 = vmatpush2.msra.mxu0 0.0
  %1739 = vmatprep.subr.mxu0 0.0
  %1740 = vmatpush2.msra.mxu0 0.0
  %1741 = vmatprep.subr.mxu0 0.0
  %1742 = vmatpush2.msra.mxu0 0.0
  %1743 = vmatprep.subr.mxu0 0.0
  %1744 = vmatpush2.msra.mxu0 0.0
  %1745 = vmatprep.subr.mxu0 0.0
  %1746 = vmatpush2.msra.mxu0 0.0
  %1747 = vmatprep.subr.mxu0 0.0
  %1748 = vmatpush2.msra.mxu0 0.0
  %1749 = vmatprep.subr.mxu0 0.0
  %1750 = vmatpush2.msra.mxu0 0.0
  %1751 = vmatprep.subr.mxu0 0.0
  %1752 = vmatpush2.msra.mxu0 0.0
  %1753 = vmatprep.subr.mxu0 0.0
  %1754 = vmatpush2.msra.mxu0 0.0
  %1755 = vmatprep.subr.mxu0 0.0
  %1756 = vmatpush2.msra.mxu0 0.0
  %1757 = vmatprep.subr.mxu0 0.0
  %1758 = vmatpush2.msra.mxu0 0.0
  %1759 = vmatprep.subr.mxu0 0.0
  %1760 = vmatpush2.msra.mxu0 0.0
  %1761 = vmatprep.subr.mxu0 0.0
  %1762 = vmatpush2.msra.mxu0 0.0
  %1763 = vmatprep.mubr.f32.mxu0 0.0
  %1764 = vmatmul.mubr.f32.gmra.mxu0 %v1613
  %v1765 = vpop.f32.mrf.mxu0
  %v1766 = vadd.f32 %v1697, %v1765
  %v1767 = vpop.f32.mrf.mxu0
  %1768 = vmatprep.mubr.f32.mxu0 0.0
  %1769 = vmatmul.mubr.f32.gmra.mxu0 %v1616
  %v1770 = vpop.f32.mrf.mxu0
  %v1771 = vadd.f32 %v1697, %v1770
  %v1772 = vpop.f32.mrf.mxu0
  %1773 = vdwg.mxu0
  %v1775 = vlaneseq
  %v1776 = vshrl.u32 %v1775, 7
  %v1777 = vsub.s32 0, %v1776
  %v1778 = vrot.slane %v1598, %v1777
  %1780 = vmatprep.subr.mxu0 0.0
  %1781 = vmatpush1.msra.mxu0 0.0
  %1782 = vmatprep.subr.mxu0 0.0
  %1783 = vmatpush1.msra.mxu0 0.0
  %1784 = vmatprep.subr.mxu0 0.0
  %1785 = vmatpush1.msra.mxu0 0.0
  %1786 = vmatprep.subr.mxu0 0.0
  %1787 = vmatpush1.msra.mxu0 0.0
  %1788 = vmatprep.subr.mxu0 0.0
  %1789 = vmatpush1.msra.mxu0 0.0
  %1790 = vmatprep.subr.mxu0 0.0
  %1791 = vmatpush1.msra.mxu0 0.0
  %1792 = vmatprep.subr.mxu0 0.0
  %1793 = vmatpush1.msra.mxu0 0.0
  %1794 = vmatprep.subr.mxu0 0.0
  %1795 = vmatpush1.msra.mxu0 0.0
  %1796 = vmatprep.subr.mxu0 0.0
  %1797 = vmatpush1.msra.mxu0 0.0
  %1798 = vmatprep.subr.mxu0 0.0
  %1799 = vmatpush1.msra.mxu0 0.0
  %1800 = vmatprep.subr.mxu0 0.0
  %1801 = vmatpush1.msra.mxu0 0.0
  %1802 = vmatprep.subr.mxu0 0.0
  %1803 = vmatpush1.msra.mxu0 0.0
  %1804 = vmatprep.subr.mxu0 0.0
  %1805 = vmatpush1.msra.mxu0 %v1596
  %1806 = vmatprep.subr.mxu0 0.0
  %1807 = vmatpush1.msra.mxu0 %v1595
  %1808 = vmatprep.subr.mxu0 0.0
  %1809 = vmatpush1.msra.mxu0 %v1594
  %1810 = vmatprep.subr.mxu0 0.0
  %1811 = vmatpush1.msra.mxu0 %v1593
  %1812 = vmatprep.subr.mxu0 0.0
  %1813 = vmatpush2.msra.mxu0 0.0
  %1814 = vmatprep.subr.mxu0 0.0
  %1815 = vmatpush2.msra.mxu0 0.0
  %1816 = vmatprep.subr.mxu0 0.0
  %1817 = vmatpush2.msra.mxu0 0.0
  %1818 = vmatprep.subr.mxu0 0.0
  %1819 = vmatpush2.msra.mxu0 0.0
  %1820 = vmatprep.subr.mxu0 0.0
  %1821 = vmatpush2.msra.mxu0 0.0
  %1822 = vmatprep.subr.mxu0 0.0
  %1823 = vmatpush2.msra.mxu0 0.0
  %1824 = vmatprep.subr.mxu0 0.0
  %1825 = vmatpush2.msra.mxu0 0.0
  %1826 = vmatprep.subr.mxu0 0.0
  %1827 = vmatpush2.msra.mxu0 0.0
  %1828 = vmatprep.subr.mxu0 0.0
  %1829 = vmatpush2.msra.mxu0 0.0
  %1830 = vmatprep.subr.mxu0 0.0
  %1831 = vmatpush2.msra.mxu0 0.0
  %1832 = vmatprep.subr.mxu0 0.0
  %1833 = vmatpush2.msra.mxu0 0.0
  %1834 = vmatprep.subr.mxu0 0.0
  %1835 = vmatpush2.msra.mxu0 0.0
  %1836 = vmatprep.subr.mxu0 0.0
  %1837 = vmatpush2.msra.mxu0 0.0
  %1838 = vmatprep.subr.mxu0 0.0
  %1839 = vmatpush2.msra.mxu0 0.0
  %1840 = vmatprep.subr.mxu0 0.0
  %1841 = vmatpush2.msra.mxu0 0.0
  %1842 = vmatprep.subr.mxu0 0.0
  %1843 = vmatpush2.msra.mxu0 0.0
  %1844 = vmatprep.mubr.f32.mxu0 0.0
  %1845 = vmatmul.mubr.f32.gmra.mxu0 %v1613
  %v1846 = vpop.f32.mrf.mxu0
  %v1847 = vadd.f32 %v1778, %v1846
  %v1848 = vpop.f32.mrf.mxu0
  %1849 = vmatprep.mubr.f32.mxu0 0.0
  %1850 = vmatmul.mubr.f32.gmra.mxu0 %v1616
  %v1851 = vpop.f32.mrf.mxu0
  %v1852 = vadd.f32 %v1778, %v1851
  %v1853 = vpop.f32.mrf.mxu0
  %1854 = vdwg.mxu0
  %v1855 = vmul.f32 %v1766, %v77
  %v1856 = vmul.f32 %v1771, %v77
  %v1857 = vmul.f32 %v1847, %v77
  %v1858 = vmul.f32 %v1852, %v77
  %v1860 = vsel %vm99, %v1685, 0
  %v1863 = vsel %vm99, %v1690, 0
  %v1866 = vsel %vm99, %v1855, 0
  %v1869 = vsel %vm99, %v1856, 0
  %1871 = vmatprep.subr.mxu0 0.0
  %1872 = vmatpush1.xpose.msra.mxu0 0.0
  %1873 = vmatprep.subr.mxu0 0.0
  %1874 = vmatpush1.xpose.msra.mxu0 0.0
  %1875 = vmatprep.subr.mxu0 0.0
  %1876 = vmatpush1.xpose.msra.mxu0 0.0
  %1877 = vmatprep.subr.mxu0 0.0
  %1878 = vmatpush1.xpose.msra.mxu0 0.0
  %1879 = vmatprep.subr.mxu0 0.0
  %1880 = vmatpush1.xpose.msra.mxu0 0.0
  %1881 = vmatprep.subr.mxu0 0.0
  %1882 = vmatpush1.xpose.msra.mxu0 0.0
  %1883 = vmatprep.subr.mxu0 0.0
  %1884 = vmatpush1.xpose.msra.mxu0 0.0
  %1885 = vmatprep.subr.mxu0 0.0
  %1886 = vmatpush1.xpose.msra.mxu0 0.0
  %1887 = vmatprep.subr.mxu0 0.0
  %1888 = vmatpush1.xpose.msra.mxu0 0.0
  %1889 = vmatprep.subr.mxu0 0.0
  %1890 = vmatpush1.xpose.msra.mxu0 0.0
  %1891 = vmatprep.subr.mxu0 0.0
  %1892 = vmatpush1.xpose.msra.mxu0 0.0
  %1893 = vmatprep.subr.mxu0 0.0
  %1894 = vmatpush1.xpose.msra.mxu0 0.0
  %1895 = vmatprep.subr.mxu0 0.0
  %1896 = vmatpush1.xpose.msra.mxu0 0.0
  %1897 = vmatprep.subr.mxu0 0.0
  %1898 = vmatpush1.xpose.msra.mxu0 0.0
  %1899 = vmatprep.subr.mxu0 0.0
  %1900 = vmatpush1.xpose.msra.mxu0 %v1869
  %1901 = vmatprep.subr.mxu0 0.0
  %1902 = vmatpush1.xpose.msra.mxu0 %v1866
  %1903 = vmatprep.subr.mxu0 0.0
  %1904 = vmatpush2.xpose.msra.mxu0 0.0
  %1905 = vmatprep.subr.mxu0 0.0
  %1906 = vmatpush2.xpose.msra.mxu0 0.0
  %1907 = vmatprep.subr.mxu0 0.0
  %1908 = vmatpush2.xpose.msra.mxu0 0.0
  %1909 = vmatprep.subr.mxu0 0.0
  %1910 = vmatpush2.xpose.msra.mxu0 0.0
  %1911 = vmatprep.subr.mxu0 0.0
  %1912 = vmatpush2.xpose.msra.mxu0 0.0
  %1913 = vmatprep.subr.mxu0 0.0
  %1914 = vmatpush2.xpose.msra.mxu0 0.0
  %1915 = vmatprep.subr.mxu0 0.0
  %1916 = vmatpush2.xpose.msra.mxu0 0.0
  %1917 = vmatprep.subr.mxu0 0.0
  %1918 = vmatpush2.xpose.msra.mxu0 0.0
  %1919 = vmatprep.subr.mxu0 0.0
  %1920 = vmatpush2.xpose.msra.mxu0 0.0
  %1921 = vmatprep.subr.mxu0 0.0
  %1922 = vmatpush2.xpose.msra.mxu0 0.0
  %1923 = vmatprep.subr.mxu0 0.0
  %1924 = vmatpush2.xpose.msra.mxu0 0.0
  %1925 = vmatprep.subr.mxu0 0.0
  %1926 = vmatpush2.xpose.msra.mxu0 0.0
  %1927 = vmatprep.subr.mxu0 0.0
  %1928 = vmatpush2.xpose.msra.mxu0 0.0
  %1929 = vmatprep.subr.mxu0 0.0
  %1930 = vmatpush2.xpose.msra.mxu0 0.0
  %1931 = vmatprep.subr.mxu0 0.0
  %1932 = vmatpush2.xpose.msra.mxu0 0.0
  %1933 = vmatprep.subr.mxu0 0.0
  %1934 = vmatpush2.xpose.msra.mxu0 0.0
  %1935 = vmatprep.mubr.f32.mxu0 0.0
  %1936 = vmatmul.mubr.f32.gmra.mxu0 %v1860
  %v1937 = vpop.f32.mrf.mxu0
  %v1938 = vadd.f32 0.0, %v1937
  %v1939 = vpop.f32.mrf.mxu0
  %1940 = vmatprep.mubr.f32.mxu0 0.0
  %1941 = vmatmul.mubr.f32.gmra.mxu0 %v1863
  %v1942 = vpop.f32.mrf.mxu0
  %v1943 = vadd.f32 0.0, %v1942
  %v1944 = vpop.f32.mrf.mxu0
  %1945 = vdwg.mxu0
  %v1946 = vmul.f32 %v1938, 0.35355338
  %v1947 = vmul.f32 %v1943, 0.35355338
  %v1948 = vadd.f32 %v1946, %v93
  %v1949 = vadd.f32 %v1947, %v94
  %v1950 = vsel %vm507, %v1948, -inf
  %1951 = vmax.xlane.f32.xlu0 %v1950
  %v1952 = vpop.xlane.xlu0 %1951
  %v1953 = vsel %vm507, %v1949, -inf
  %1954 = vmax.xlane.f32.xlu0 %v1953
  %v1955 = vpop.xlane.xlu0 %1954
  %v1956 = vsub.f32 %v1948, %v1952
  %v1957 = vsub.f32 %v1949, %v1955
  %v1958 = vmul.f32 %v1956, 1.442695
  %v1959 = vpow.pop %v1958
  %v1960 = vmul.f32 %v1957, 1.442695
  %v1961 = vpow.pop %v1960
  %v1962 = vsel %vm507, %v1959, 0.0
  %1963 = vadd.xlane.f32.xlu0 %v1962
  %v1964 = vpop.xlane.xlu0 %1963
  %v1965 = vsel %vm507, %v1961, 0.0
  %1966 = vadd.xlane.f32.xlu0 %v1965
  %v1967 = vpop.xlane.xlu0 %1966
  %v1968 = vrcp.pop %v1964
  %v1969 = vmul.f32 %v1959, %v1968
  %v1970 = vrcp.pop %v1967
  %v1971 = vmul.f32 %v1961, %v1970
  %v1972 = vmul.f32 %v1766, %v82
  %v1973 = vmul.f32 %v1771, %v82
  %v1974 = vmul.f32 %v1847, %v82
  %v1975 = vmul.f32 %v1852, %v82
  %v1977 = vsel %vm99, %v1972, 0
  %v1980 = vsel %vm99, %v1973, 0
  %1982 = vmatprep.subr.mxu0 0.0
  %1983 = vmatpush1.xpose.msra.mxu0 0.0
  %1984 = vmatprep.subr.mxu0 0.0
  %1985 = vmatpush1.xpose.msra.mxu0 0.0
  %1986 = vmatprep.subr.mxu0 0.0
  %1987 = vmatpush1.xpose.msra.mxu0 0.0
  %1988 = vmatprep.subr.mxu0 0.0
  %1989 = vmatpush1.xpose.msra.mxu0 0.0
  %1990 = vmatprep.subr.mxu0 0.0
  %1991 = vmatpush1.xpose.msra.mxu0 0.0
  %1992 = vmatprep.subr.mxu0 0.0
  %1993 = vmatpush1.xpose.msra.mxu0 0.0
  %1994 = vmatprep.subr.mxu0 0.0
  %1995 = vmatpush1.xpose.msra.mxu0 0.0
  %1996 = vmatprep.subr.mxu0 0.0
  %1997 = vmatpush1.xpose.msra.mxu0 0.0
  %1998 = vmatprep.subr.mxu0 0.0
  %1999 = vmatpush1.xpose.msra.mxu0 0.0
  %2000 = vmatprep.subr.mxu0 0.0
  %2001 = vmatpush1.xpose.msra.mxu0 0.0
  %2002 = vmatprep.subr.mxu0 0.0
  %2003 = vmatpush1.xpose.msra.mxu0 0.0
  %2004 = vmatprep.subr.mxu0 0.0
  %2005 = vmatpush1.xpose.msra.mxu0 0.0
  %2006 = vmatprep.subr.mxu0 0.0
  %2007 = vmatpush1.xpose.msra.mxu0 0.0
  %2008 = vmatprep.subr.mxu0 0.0
  %2009 = vmatpush1.xpose.msra.mxu0 0.0
  %2010 = vmatprep.subr.mxu0 0.0
  %2011 = vmatpush1.xpose.msra.mxu0 %v1980
  %2012 = vmatprep.subr.mxu0 0.0
  %2013 = vmatpush1.xpose.msra.mxu0 %v1977
  %2014 = vmatprep.subr.mxu0 0.0
  %2015 = vmatpush2.xpose.msra.mxu0 0.0
  %2016 = vmatprep.subr.mxu0 0.0
  %2017 = vmatpush2.xpose.msra.mxu0 0.0
  %2018 = vmatprep.subr.mxu0 0.0
  %2019 = vmatpush2.xpose.msra.mxu0 0.0
  %2020 = vmatprep.subr.mxu0 0.0
  %2021 = vmatpush2.xpose.msra.mxu0 0.0
  %2022 = vmatprep.subr.mxu0 0.0
  %2023 = vmatpush2.xpose.msra.mxu0 0.0
  %2024 = vmatprep.subr.mxu0 0.0
  %2025 = vmatpush2.xpose.msra.mxu0 0.0
  %2026 = vmatprep.subr.mxu0 0.0
  %2027 = vmatpush2.xpose.msra.mxu0 0.0
  %2028 = vmatprep.subr.mxu0 0.0
  %2029 = vmatpush2.xpose.msra.mxu0 0.0
  %2030 = vmatprep.subr.mxu0 0.0
  %2031 = vmatpush2.xpose.msra.mxu0 0.0
  %2032 = vmatprep.subr.mxu0 0.0
  %2033 = vmatpush2.xpose.msra.mxu0 0.0
  %2034 = vmatprep.subr.mxu0 0.0
  %2035 = vmatpush2.xpose.msra.mxu0 0.0
  %2036 = vmatprep.subr.mxu0 0.0
  %2037 = vmatpush2.xpose.msra.mxu0 0.0
  %2038 = vmatprep.subr.mxu0 0.0
  %2039 = vmatpush2.xpose.msra.mxu0 0.0
  %2040 = vmatprep.subr.mxu0 0.0
  %2041 = vmatpush2.xpose.msra.mxu0 0.0
  %2042 = vmatprep.subr.mxu0 0.0
  %2043 = vmatpush2.xpose.msra.mxu0 0.0
  %2044 = vmatprep.subr.mxu0 0.0
  %2045 = vmatpush2.xpose.msra.mxu0 0.0
  %2046 = vmatprep.mubr.f32.mxu0 0.0
  %2047 = vmatmul.mubr.f32.gmra.mxu0 %v1860
  %v2048 = vpop.f32.mrf.mxu0
  %v2049 = vadd.f32 0.0, %v2048
  %v2050 = vpop.f32.mrf.mxu0
  %2051 = vmatprep.mubr.f32.mxu0 0.0
  %2052 = vmatmul.mubr.f32.gmra.mxu0 %v1863
  %v2053 = vpop.f32.mrf.mxu0
  %v2054 = vadd.f32 0.0, %v2053
  %v2055 = vpop.f32.mrf.mxu0
  %2056 = vdwg.mxu0
  %v2057 = vmul.f32 %v2049, 0.35355338
  %v2058 = vmul.f32 %v2054, 0.35355338
  %v2059 = vadd.f32 %v2057, %v93
  %v2060 = vadd.f32 %v2058, %v94
  %v2061 = vsel %vm507, %v2059, -inf
  %2062 = vmax.xlane.f32.xlu0 %v2061
  %v2063 = vpop.xlane.xlu0 %2062
  %v2064 = vsel %vm507, %v2060, -inf
  %2065 = vmax.xlane.f32.xlu0 %v2064
  %v2066 = vpop.xlane.xlu0 %2065
  %v2067 = vsub.f32 %v2059, %v2063
  %v2068 = vsub.f32 %v2060, %v2066
  %v2069 = vmul.f32 %v2067, 1.442695
  %v2070 = vpow.pop %v2069
  %v2071 = vmul.f32 %v2068, 1.442695
  %v2072 = vpow.pop %v2071
  %v2073 = vsel %vm507, %v2070, 0.0
  %2074 = vadd.xlane.f32.xlu0 %v2073
  %v2075 = vpop.xlane.xlu0 %2074
  %v2076 = vsel %vm507, %v2072, 0.0
  %2077 = vadd.xlane.f32.xlu0 %v2076
  %v2078 = vpop.xlane.xlu0 %2077
  %v2079 = vrcp.pop %v2075
  %v2080 = vmul.f32 %v2070, %v2079
  %v2081 = vrcp.pop %v2078
  %v2082 = vmul.f32 %v2072, %v2081
  %v2084 = vsel %vm507, %v2080, 0
  %v2087 = vsel %vm507, %v2082, 0
  %2089 = vmatprep.subr.mxu0 0.0
  %2090 = vmatpush1.msra.mxu0 0.0
  %2091 = vmatprep.subr.mxu0 0.0
  %2092 = vmatpush1.msra.mxu0 0.0
  %2093 = vmatprep.subr.mxu0 0.0
  %2094 = vmatpush1.msra.mxu0 0.0
  %2095 = vmatprep.subr.mxu0 0.0
  %2096 = vmatpush1.msra.mxu0 0.0
  %2097 = vmatprep.subr.mxu0 0.0
  %2098 = vmatpush1.msra.mxu0 0.0
  %2099 = vmatprep.subr.mxu0 0.0
  %2100 = vmatpush1.msra.mxu0 0.0
  %2101 = vmatprep.subr.mxu0 0.0
  %2102 = vmatpush1.msra.mxu0 0.0
  %2103 = vmatprep.subr.mxu0 0.0
  %2104 = vmatpush1.msra.mxu0 0.0
  %2105 = vmatprep.subr.mxu0 0.0
  %2106 = vmatpush1.msra.mxu0 0.0
  %2107 = vmatprep.subr.mxu0 0.0
  %2108 = vmatpush1.msra.mxu0 0.0
  %2109 = vmatprep.subr.mxu0 0.0
  %2110 = vmatpush1.msra.mxu0 0.0
  %2111 = vmatprep.subr.mxu0 0.0
  %2112 = vmatpush1.msra.mxu0 0.0
  %2113 = vmatprep.subr.mxu0 0.0
  %2114 = vmatpush1.msra.mxu0 0.0
  %2115 = vmatprep.subr.mxu0 0.0
  %2116 = vmatpush1.msra.mxu0 0.0
  %2117 = vmatprep.subr.mxu0 0.0
  %2118 = vmatpush1.msra.mxu0 %v1975
  %2119 = vmatprep.subr.mxu0 0.0
  %2120 = vmatpush1.msra.mxu0 %v1974
  %2121 = vmatprep.subr.mxu0 0.0
  %2122 = vmatpush2.msra.mxu0 0.0
  %2123 = vmatprep.subr.mxu0 0.0
  %2124 = vmatpush2.msra.mxu0 0.0
  %2125 = vmatprep.subr.mxu0 0.0
  %2126 = vmatpush2.msra.mxu0 0.0
  %2127 = vmatprep.subr.mxu0 0.0
  %2128 = vmatpush2.msra.mxu0 0.0
  %2129 = vmatprep.subr.mxu0 0.0
  %2130 = vmatpush2.msra.mxu0 0.0
  %2131 = vmatprep.subr.mxu0 0.0
  %2132 = vmatpush2.msra.mxu0 0.0
  %2133 = vmatprep.subr.mxu0 0.0
  %2134 = vmatpush2.msra.mxu0 0.0
  %2135 = vmatprep.subr.mxu0 0.0
  %2136 = vmatpush2.msra.mxu0 0.0
  %2137 = vmatprep.subr.mxu0 0.0
  %2138 = vmatpush2.msra.mxu0 0.0
  %2139 = vmatprep.subr.mxu0 0.0
  %2140 = vmatpush2.msra.mxu0 0.0
  %2141 = vmatprep.subr.mxu0 0.0
  %2142 = vmatpush2.msra.mxu0 0.0
  %2143 = vmatprep.subr.mxu0 0.0
  %2144 = vmatpush2.msra.mxu0 0.0
  %2145 = vmatprep.subr.mxu0 0.0
  %2146 = vmatpush2.msra.mxu0 0.0
  %2147 = vmatprep.subr.mxu0 0.0
  %2148 = vmatpush2.msra.mxu0 0.0
  %2149 = vmatprep.subr.mxu0 0.0
  %2150 = vmatpush2.msra.mxu0 0.0
  %2151 = vmatprep.subr.mxu0 0.0
  %2152 = vmatpush2.msra.mxu0 0.0
  %2153 = vmatprep.mubr.f32.mxu0 0.0
  %2154 = vmatmul.mubr.f32.gmra.mxu0 %v2084
  %v2155 = vpop.f32.mrf.mxu0
  %v2156 = vadd.f32 0.0, %v2155
  %v2157 = vpop.f32.mrf.mxu0
  %2158 = vmatprep.mubr.f32.mxu0 0.0
  %2159 = vmatmul.mubr.f32.gmra.mxu0 %v2087
  %v2160 = vpop.f32.mrf.mxu0
  %v2161 = vadd.f32 0.0, %v2160
  %v2162 = vpop.f32.mrf.mxu0
  %2163 = vdwg.mxu0
  %v2165 = vsel %vm507, %v1969, 0
  %v2168 = vsel %vm507, %v1971, 0
  %2170 = vmatprep.subr.mxu0 0.0
  %2171 = vmatpush1.msra.mxu0 0.0
  %2172 = vmatprep.subr.mxu0 0.0
  %2173 = vmatpush1.msra.mxu0 0.0
  %2174 = vmatprep.subr.mxu0 0.0
  %2175 = vmatpush1.msra.mxu0 0.0
  %2176 = vmatprep.subr.mxu0 0.0
  %2177 = vmatpush1.msra.mxu0 0.0
  %2178 = vmatprep.subr.mxu0 0.0
  %2179 = vmatpush1.msra.mxu0 0.0
  %2180 = vmatprep.subr.mxu0 0.0
  %2181 = vmatpush1.msra.mxu0 0.0
  %2182 = vmatprep.subr.mxu0 0.0
  %2183 = vmatpush1.msra.mxu0 0.0
  %2184 = vmatprep.subr.mxu0 0.0
  %2185 = vmatpush1.msra.mxu0 0.0
  %2186 = vmatprep.subr.mxu0 0.0
  %2187 = vmatpush1.msra.mxu0 0.0
  %2188 = vmatprep.subr.mxu0 0.0
  %2189 = vmatpush1.msra.mxu0 0.0
  %2190 = vmatprep.subr.mxu0 0.0
  %2191 = vmatpush1.msra.mxu0 0.0
  %2192 = vmatprep.subr.mxu0 0.0
  %2193 = vmatpush1.msra.mxu0 0.0
  %2194 = vmatprep.subr.mxu0 0.0
  %2195 = vmatpush1.msra.mxu0 0.0
  %2196 = vmatprep.subr.mxu0 0.0
  %2197 = vmatpush1.msra.mxu0 0.0
  %2198 = vmatprep.subr.mxu0 0.0
  %2199 = vmatpush1.msra.mxu0 %v1858
  %2200 = vmatprep.subr.mxu0 0.0
  %2201 = vmatpush1.msra.mxu0 %v1857
  %2202 = vmatprep.subr.mxu0 0.0
  %2203 = vmatpush2.msra.mxu0 0.0
  %2204 = vmatprep.subr.mxu0 0.0
  %2205 = vmatpush2.msra.mxu0 0.0
  %2206 = vmatprep.subr.mxu0 0.0
  %2207 = vmatpush2.msra.mxu0 0.0
  %2208 = vmatprep.subr.mxu0 0.0
  %2209 = vmatpush2.msra.mxu0 0.0
  %2210 = vmatprep.subr.mxu0 0.0
  %2211 = vmatpush2.msra.mxu0 0.0
  %2212 = vmatprep.subr.mxu0 0.0
  %2213 = vmatpush2.msra.mxu0 0.0
  %2214 = vmatprep.subr.mxu0 0.0
  %2215 = vmatpush2.msra.mxu0 0.0
  %2216 = vmatprep.subr.mxu0 0.0
  %2217 = vmatpush2.msra.mxu0 0.0
  %2218 = vmatprep.subr.mxu0 0.0
  %2219 = vmatpush2.msra.mxu0 0.0
  %2220 = vmatprep.subr.mxu0 0.0
  %2221 = vmatpush2.msra.mxu0 0.0
  %2222 = vmatprep.subr.mxu0 0.0
  %2223 = vmatpush2.msra.mxu0 0.0
  %2224 = vmatprep.subr.mxu0 0.0
  %2225 = vmatpush2.msra.mxu0 0.0
  %2226 = vmatprep.subr.mxu0 0.0
  %2227 = vmatpush2.msra.mxu0 0.0
  %2228 = vmatprep.subr.mxu0 0.0
  %2229 = vmatpush2.msra.mxu0 0.0
  %2230 = vmatprep.subr.mxu0 0.0
  %2231 = vmatpush2.msra.mxu0 0.0
  %2232 = vmatprep.subr.mxu0 0.0
  %2233 = vmatpush2.msra.mxu0 0.0
  %2234 = vmatprep.mubr.f32.mxu0 0.0
  %2235 = vmatmul.mubr.f32.gmra.mxu0 %v2165
  %v2236 = vpop.f32.mrf.mxu0
  %v2237 = vadd.f32 %v2156, %v2236
  %v2238 = vpop.f32.mrf.mxu0
  %2239 = vmatprep.mubr.f32.mxu0 0.0
  %2240 = vmatmul.mubr.f32.gmra.mxu0 %v2168
  %v2241 = vpop.f32.mrf.mxu0
  %v2242 = vadd.f32 %v2161, %v2241
  %v2243 = vpop.f32.mrf.mxu0
  %2244 = vdwg.mxu0
  %v2245 = vmul.f32 %v1766, %v87
  %v2246 = vmul.f32 %v1771, %v87
  %v2247 = vmul.f32 %v1847, %v87
  %v2248 = vmul.f32 %v1852, %v87
  %v2250 = vsel %vm99, %v2245, 0
  %v2253 = vsel %vm99, %v2246, 0
  %2255 = vmatprep.subr.mxu0 0.0
  %2256 = vmatpush1.xpose.msra.mxu0 0.0
  %2257 = vmatprep.subr.mxu0 0.0
  %2258 = vmatpush1.xpose.msra.mxu0 0.0
  %2259 = vmatprep.subr.mxu0 0.0
  %2260 = vmatpush1.xpose.msra.mxu0 0.0
  %2261 = vmatprep.subr.mxu0 0.0
  %2262 = vmatpush1.xpose.msra.mxu0 0.0
  %2263 = vmatprep.subr.mxu0 0.0
  %2264 = vmatpush1.xpose.msra.mxu0 0.0
  %2265 = vmatprep.subr.mxu0 0.0
  %2266 = vmatpush1.xpose.msra.mxu0 0.0
  %2267 = vmatprep.subr.mxu0 0.0
  %2268 = vmatpush1.xpose.msra.mxu0 0.0
  %2269 = vmatprep.subr.mxu0 0.0
  %2270 = vmatpush1.xpose.msra.mxu0 0.0
  %2271 = vmatprep.subr.mxu0 0.0
  %2272 = vmatpush1.xpose.msra.mxu0 0.0
  %2273 = vmatprep.subr.mxu0 0.0
  %2274 = vmatpush1.xpose.msra.mxu0 0.0
  %2275 = vmatprep.subr.mxu0 0.0
  %2276 = vmatpush1.xpose.msra.mxu0 0.0
  %2277 = vmatprep.subr.mxu0 0.0
  %2278 = vmatpush1.xpose.msra.mxu0 0.0
  %2279 = vmatprep.subr.mxu0 0.0
  %2280 = vmatpush1.xpose.msra.mxu0 0.0
  %2281 = vmatprep.subr.mxu0 0.0
  %2282 = vmatpush1.xpose.msra.mxu0 0.0
  %2283 = vmatprep.subr.mxu0 0.0
  %2284 = vmatpush1.xpose.msra.mxu0 %v2253
  %2285 = vmatprep.subr.mxu0 0.0
  %2286 = vmatpush1.xpose.msra.mxu0 %v2250
  %2287 = vmatprep.subr.mxu0 0.0
  %2288 = vmatpush2.xpose.msra.mxu0 0.0
  %2289 = vmatprep.subr.mxu0 0.0
  %2290 = vmatpush2.xpose.msra.mxu0 0.0
  %2291 = vmatprep.subr.mxu0 0.0
  %2292 = vmatpush2.xpose.msra.mxu0 0.0
  %2293 = vmatprep.subr.mxu0 0.0
  %2294 = vmatpush2.xpose.msra.mxu0 0.0
  %2295 = vmatprep.subr.mxu0 0.0
  %2296 = vmatpush2.xpose.msra.mxu0 0.0
  %2297 = vmatprep.subr.mxu0 0.0
  %2298 = vmatpush2.xpose.msra.mxu0 0.0
  %2299 = vmatprep.subr.mxu0 0.0
  %2300 = vmatpush2.xpose.msra.mxu0 0.0
  %2301 = vmatprep.subr.mxu0 0.0
  %2302 = vmatpush2.xpose.msra.mxu0 0.0
  %2303 = vmatprep.subr.mxu0 0.0
  %2304 = vmatpush2.xpose.msra.mxu0 0.0
  %2305 = vmatprep.subr.mxu0 0.0
  %2306 = vmatpush2.xpose.msra.mxu0 0.0
  %2307 = vmatprep.subr.mxu0 0.0
  %2308 = vmatpush2.xpose.msra.mxu0 0.0
  %2309 = vmatprep.subr.mxu0 0.0
  %2310 = vmatpush2.xpose.msra.mxu0 0.0
  %2311 = vmatprep.subr.mxu0 0.0
  %2312 = vmatpush2.xpose.msra.mxu0 0.0
  %2313 = vmatprep.subr.mxu0 0.0
  %2314 = vmatpush2.xpose.msra.mxu0 0.0
  %2315 = vmatprep.subr.mxu0 0.0
  %2316 = vmatpush2.xpose.msra.mxu0 0.0
  %2317 = vmatprep.subr.mxu0 0.0
  %2318 = vmatpush2.xpose.msra.mxu0 0.0
  %2319 = vmatprep.mubr.f32.mxu0 0.0
  %2320 = vmatmul.mubr.f32.gmra.mxu0 %v1860
  %v2321 = vpop.f32.mrf.mxu0
  %v2322 = vadd.f32 0.0, %v2321
  %v2323 = vpop.f32.mrf.mxu0
  %2324 = vmatprep.mubr.f32.mxu0 0.0
  %2325 = vmatmul.mubr.f32.gmra.mxu0 %v1863
  %v2326 = vpop.f32.mrf.mxu0
  %v2327 = vadd.f32 0.0, %v2326
  %v2328 = vpop.f32.mrf.mxu0
  %2329 = vdwg.mxu0
  %v2330 = vmul.f32 %v2322, 0.35355338
  %v2331 = vmul.f32 %v2327, 0.35355338
  %v2332 = vadd.f32 %v2330, %v93
  %v2333 = vadd.f32 %v2331, %v94
  %v2334 = vsel %vm507, %v2332, -inf
  %2335 = vmax.xlane.f32.xlu0 %v2334
  %v2336 = vpop.xlane.xlu0 %2335
  %v2337 = vsel %vm507, %v2333, -inf
  %2338 = vmax.xlane.f32.xlu0 %v2337
  %v2339 = vpop.xlane.xlu0 %2338
  %v2340 = vsub.f32 %v2332, %v2336
  %v2341 = vsub.f32 %v2333, %v2339
  %v2342 = vmul.f32 %v2340, 1.442695
  %v2343 = vpow.pop %v2342
  %v2344 = vmul.f32 %v2341, 1.442695
  %v2345 = vpow.pop %v2344
  %v2346 = vsel %vm507, %v2343, 0.0
  %2347 = vadd.xlane.f32.xlu0 %v2346
  %v2348 = vpop.xlane.xlu0 %2347
  %v2349 = vsel %vm507, %v2345, 0.0
  %2350 = vadd.xlane.f32.xlu0 %v2349
  %v2351 = vpop.xlane.xlu0 %2350
  %v2352 = vrcp.pop %v2348
  %v2353 = vmul.f32 %v2343, %v2352
  %v2354 = vrcp.pop %v2351
  %v2355 = vmul.f32 %v2345, %v2354
  %v2357 = vsel %vm507, %v2353, 0
  %v2360 = vsel %vm507, %v2355, 0
  %2362 = vmatprep.subr.mxu0 0.0
  %2363 = vmatpush1.msra.mxu0 0.0
  %2364 = vmatprep.subr.mxu0 0.0
  %2365 = vmatpush1.msra.mxu0 0.0
  %2366 = vmatprep.subr.mxu0 0.0
  %2367 = vmatpush1.msra.mxu0 0.0
  %2368 = vmatprep.subr.mxu0 0.0
  %2369 = vmatpush1.msra.mxu0 0.0
  %2370 = vmatprep.subr.mxu0 0.0
  %2371 = vmatpush1.msra.mxu0 0.0
  %2372 = vmatprep.subr.mxu0 0.0
  %2373 = vmatpush1.msra.mxu0 0.0
  %2374 = vmatprep.subr.mxu0 0.0
  %2375 = vmatpush1.msra.mxu0 0.0
  %2376 = vmatprep.subr.mxu0 0.0
  %2377 = vmatpush1.msra.mxu0 0.0
  %2378 = vmatprep.subr.mxu0 0.0
  %2379 = vmatpush1.msra.mxu0 0.0
  %2380 = vmatprep.subr.mxu0 0.0
  %2381 = vmatpush1.msra.mxu0 0.0
  %2382 = vmatprep.subr.mxu0 0.0
  %2383 = vmatpush1.msra.mxu0 0.0
  %2384 = vmatprep.subr.mxu0 0.0
  %2385 = vmatpush1.msra.mxu0 0.0
  %2386 = vmatprep.subr.mxu0 0.0
  %2387 = vmatpush1.msra.mxu0 0.0
  %2388 = vmatprep.subr.mxu0 0.0
  %2389 = vmatpush1.msra.mxu0 0.0
  %2390 = vmatprep.subr.mxu0 0.0
  %2391 = vmatpush1.msra.mxu0 %v2248
  %2392 = vmatprep.subr.mxu0 0.0
  %2393 = vmatpush1.msra.mxu0 %v2247
  %2394 = vmatprep.subr.mxu0 0.0
  %2395 = vmatpush2.msra.mxu0 0.0
  %2396 = vmatprep.subr.mxu0 0.0
  %2397 = vmatpush2.msra.mxu0 0.0
  %2398 = vmatprep.subr.mxu0 0.0
  %2399 = vmatpush2.msra.mxu0 0.0
  %2400 = vmatprep.subr.mxu0 0.0
  %2401 = vmatpush2.msra.mxu0 0.0
  %2402 = vmatprep.subr.mxu0 0.0
  %2403 = vmatpush2.msra.mxu0 0.0
  %2404 = vmatprep.subr.mxu0 0.0
  %2405 = vmatpush2.msra.mxu0 0.0
  %2406 = vmatprep.subr.mxu0 0.0
  %2407 = vmatpush2.msra.mxu0 0.0
  %2408 = vmatprep.subr.mxu0 0.0
  %2409 = vmatpush2.msra.mxu0 0.0
  %2410 = vmatprep.subr.mxu0 0.0
  %2411 = vmatpush2.msra.mxu0 0.0
  %2412 = vmatprep.subr.mxu0 0.0
  %2413 = vmatpush2.msra.mxu0 0.0
  %2414 = vmatprep.subr.mxu0 0.0
  %2415 = vmatpush2.msra.mxu0 0.0
  %2416 = vmatprep.subr.mxu0 0.0
  %2417 = vmatpush2.msra.mxu0 0.0
  %2418 = vmatprep.subr.mxu0 0.0
  %2419 = vmatpush2.msra.mxu0 0.0
  %2420 = vmatprep.subr.mxu0 0.0
  %2421 = vmatpush2.msra.mxu0 0.0
  %2422 = vmatprep.subr.mxu0 0.0
  %2423 = vmatpush2.msra.mxu0 0.0
  %2424 = vmatprep.subr.mxu0 0.0
  %2425 = vmatpush2.msra.mxu0 0.0
  %2426 = vmatprep.mubr.f32.mxu0 0.0
  %2427 = vmatmul.mubr.f32.gmra.mxu0 %v2357
  %v2428 = vpop.f32.mrf.mxu0
  %v2429 = vadd.f32 0.0, %v2428
  %v2430 = vpop.f32.mrf.mxu0
  %2431 = vmatprep.mubr.f32.mxu0 0.0
  %2432 = vmatmul.mubr.f32.gmra.mxu0 %v2360
  %v2433 = vpop.f32.mrf.mxu0
  %v2434 = vadd.f32 0.0, %v2433
  %v2435 = vpop.f32.mrf.mxu0
  %2436 = vdwg.mxu0
  %v2437 = vadd.f32 %v2237, %v2429
  %v2438 = vadd.f32 %v2242, %v2434
  %v2439 = vmul.f32 %v1766, %v92
  %v2440 = vmul.f32 %v1771, %v92
  %v2441 = vmul.f32 %v1847, %v92
  %v2442 = vmul.f32 %v1852, %v92
  %v2444 = vsel %vm99, %v2439, 0
  %v2447 = vsel %vm99, %v2440, 0
  %2449 = vmatprep.subr.mxu0 0.0
  %2450 = vmatpush1.xpose.msra.mxu0 0.0
  %2451 = vmatprep.subr.mxu0 0.0
  %2452 = vmatpush1.xpose.msra.mxu0 0.0
  %2453 = vmatprep.subr.mxu0 0.0
  %2454 = vmatpush1.xpose.msra.mxu0 0.0
  %2455 = vmatprep.subr.mxu0 0.0
  %2456 = vmatpush1.xpose.msra.mxu0 0.0
  %2457 = vmatprep.subr.mxu0 0.0
  %2458 = vmatpush1.xpose.msra.mxu0 0.0
  %2459 = vmatprep.subr.mxu0 0.0
  %2460 = vmatpush1.xpose.msra.mxu0 0.0
  %2461 = vmatprep.subr.mxu0 0.0
  %2462 = vmatpush1.xpose.msra.mxu0 0.0
  %2463 = vmatprep.subr.mxu0 0.0
  %2464 = vmatpush1.xpose.msra.mxu0 0.0
  %2465 = vmatprep.subr.mxu0 0.0
  %2466 = vmatpush1.xpose.msra.mxu0 0.0
  %2467 = vmatprep.subr.mxu0 0.0
  %2468 = vmatpush1.xpose.msra.mxu0 0.0
  %2469 = vmatprep.subr.mxu0 0.0
  %2470 = vmatpush1.xpose.msra.mxu0 0.0
  %2471 = vmatprep.subr.mxu0 0.0
  %2472 = vmatpush1.xpose.msra.mxu0 0.0
  %2473 = vmatprep.subr.mxu0 0.0
  %2474 = vmatpush1.xpose.msra.mxu0 0.0
  %2475 = vmatprep.subr.mxu0 0.0
  %2476 = vmatpush1.xpose.msra.mxu0 0.0
  %2477 = vmatprep.subr.mxu0 0.0
  %2478 = vmatpush1.xpose.msra.mxu0 %v2447
  %2479 = vmatprep.subr.mxu0 0.0
  %2480 = vmatpush1.xpose.msra.mxu0 %v2444
  %2481 = vmatprep.subr.mxu0 0.0
  %2482 = vmatpush2.xpose.msra.mxu0 0.0
  %2483 = vmatprep.subr.mxu0 0.0
  %2484 = vmatpush2.xpose.msra.mxu0 0.0
  %2485 = vmatprep.subr.mxu0 0.0
  %2486 = vmatpush2.xpose.msra.mxu0 0.0
  %2487 = vmatprep.subr.mxu0 0.0
  %2488 = vmatpush2.xpose.msra.mxu0 0.0
  %2489 = vmatprep.subr.mxu0 0.0
  %2490 = vmatpush2.xpose.msra.mxu0 0.0
  %2491 = vmatprep.subr.mxu0 0.0
  %2492 = vmatpush2.xpose.msra.mxu0 0.0
  %2493 = vmatprep.subr.mxu0 0.0
  %2494 = vmatpush2.xpose.msra.mxu0 0.0
  %2495 = vmatprep.subr.mxu0 0.0
  %2496 = vmatpush2.xpose.msra.mxu0 0.0
  %2497 = vmatprep.subr.mxu0 0.0
  %2498 = vmatpush2.xpose.msra.mxu0 0.0
  %2499 = vmatprep.subr.mxu0 0.0
  %2500 = vmatpush2.xpose.msra.mxu0 0.0
  %2501 = vmatprep.subr.mxu0 0.0
  %2502 = vmatpush2.xpose.msra.mxu0 0.0
  %2503 = vmatprep.subr.mxu0 0.0
  %2504 = vmatpush2.xpose.msra.mxu0 0.0
  %2505 = vmatprep.subr.mxu0 0.0
  %2506 = vmatpush2.xpose.msra.mxu0 0.0
  %2507 = vmatprep.subr.mxu0 0.0
  %2508 = vmatpush2.xpose.msra.mxu0 0.0
  %2509 = vmatprep.subr.mxu0 0.0
  %2510 = vmatpush2.xpose.msra.mxu0 0.0
  %2511 = vmatprep.subr.mxu0 0.0
  %2512 = vmatpush2.xpose.msra.mxu0 0.0
  %2513 = vmatprep.mubr.f32.mxu0 0.0
  %2514 = vmatmul.mubr.f32.gmra.mxu0 %v1860
  %v2515 = vpop.f32.mrf.mxu0
  %v2516 = vadd.f32 0.0, %v2515
  %v2517 = vpop.f32.mrf.mxu0
  %2518 = vmatprep.mubr.f32.mxu0 0.0
  %2519 = vmatmul.mubr.f32.gmra.mxu0 %v1863
  %v2520 = vpop.f32.mrf.mxu0
  %v2521 = vadd.f32 0.0, %v2520
  %v2522 = vpop.f32.mrf.mxu0
  %2523 = vdwg.mxu0
  %v2524 = vmul.f32 %v2516, 0.35355338
  %v2525 = vmul.f32 %v2521, 0.35355338
  %v2526 = vadd.f32 %v2524, %v93
  %v2527 = vadd.f32 %v2525, %v94
  %v2528 = vsel %vm507, %v2526, -inf
  %2529 = vmax.xlane.f32.xlu0 %v2528
  %v2530 = vpop.xlane.xlu0 %2529
  %v2531 = vsel %vm507, %v2527, -inf
  %2532 = vmax.xlane.f32.xlu0 %v2531
  %v2533 = vpop.xlane.xlu0 %2532
  %v2534 = vsub.f32 %v2526, %v2530
  %v2535 = vsub.f32 %v2527, %v2533
  %v2536 = vmul.f32 %v2534, 1.442695
  %v2537 = vpow.pop %v2536
  %v2538 = vmul.f32 %v2535, 1.442695
  %v2539 = vpow.pop %v2538
  %v2540 = vsel %vm507, %v2537, 0.0
  %2541 = vadd.xlane.f32.xlu0 %v2540
  %v2542 = vpop.xlane.xlu0 %2541
  %v2543 = vsel %vm507, %v2539, 0.0
  %2544 = vadd.xlane.f32.xlu0 %v2543
  %v2545 = vpop.xlane.xlu0 %2544
  %v2546 = vrcp.pop %v2542
  %v2547 = vmul.f32 %v2537, %v2546
  %v2548 = vrcp.pop %v2545
  %v2549 = vmul.f32 %v2539, %v2548
  %v2551 = vsel %vm507, %v2547, 0
  %v2554 = vsel %vm507, %v2549, 0
  %2556 = vmatprep.subr.mxu0 0.0
  %2557 = vmatpush1.msra.mxu0 0.0
  %2558 = vmatprep.subr.mxu0 0.0
  %2559 = vmatpush1.msra.mxu0 0.0
  %2560 = vmatprep.subr.mxu0 0.0
  %2561 = vmatpush1.msra.mxu0 0.0
  %2562 = vmatprep.subr.mxu0 0.0
  %2563 = vmatpush1.msra.mxu0 0.0
  %2564 = vmatprep.subr.mxu0 0.0
  %2565 = vmatpush1.msra.mxu0 0.0
  %2566 = vmatprep.subr.mxu0 0.0
  %2567 = vmatpush1.msra.mxu0 0.0
  %2568 = vmatprep.subr.mxu0 0.0
  %2569 = vmatpush1.msra.mxu0 0.0
  %2570 = vmatprep.subr.mxu0 0.0
  %2571 = vmatpush1.msra.mxu0 0.0
  %2572 = vmatprep.subr.mxu0 0.0
  %2573 = vmatpush1.msra.mxu0 0.0
  %2574 = vmatprep.subr.mxu0 0.0
  %2575 = vmatpush1.msra.mxu0 0.0
  %2576 = vmatprep.subr.mxu0 0.0
  %2577 = vmatpush1.msra.mxu0 0.0
  %2578 = vmatprep.subr.mxu0 0.0
  %2579 = vmatpush1.msra.mxu0 0.0
  %2580 = vmatprep.subr.mxu0 0.0
  %2581 = vmatpush1.msra.mxu0 0.0
  %2582 = vmatprep.subr.mxu0 0.0
  %2583 = vmatpush1.msra.mxu0 0.0
  %2584 = vmatprep.subr.mxu0 0.0
  %2585 = vmatpush1.msra.mxu0 %v2442
  %2586 = vmatprep.subr.mxu0 0.0
  %2587 = vmatpush1.msra.mxu0 %v2441
  %2588 = vmatprep.subr.mxu0 0.0
  %2589 = vmatpush2.msra.mxu0 0.0
  %2590 = vmatprep.subr.mxu0 0.0
  %2591 = vmatpush2.msra.mxu0 0.0
  %2592 = vmatprep.subr.mxu0 0.0
  %2593 = vmatpush2.msra.mxu0 0.0
  %2594 = vmatprep.subr.mxu0 0.0
  %2595 = vmatpush2.msra.mxu0 0.0
  %2596 = vmatprep.subr.mxu0 0.0
  %2597 = vmatpush2.msra.mxu0 0.0
  %2598 = vmatprep.subr.mxu0 0.0
  %2599 = vmatpush2.msra.mxu0 0.0
  %2600 = vmatprep.subr.mxu0 0.0
  %2601 = vmatpush2.msra.mxu0 0.0
  %2602 = vmatprep.subr.mxu0 0.0
  %2603 = vmatpush2.msra.mxu0 0.0
  %2604 = vmatprep.subr.mxu0 0.0
  %2605 = vmatpush2.msra.mxu0 0.0
  %2606 = vmatprep.subr.mxu0 0.0
  %2607 = vmatpush2.msra.mxu0 0.0
  %2608 = vmatprep.subr.mxu0 0.0
  %2609 = vmatpush2.msra.mxu0 0.0
  %2610 = vmatprep.subr.mxu0 0.0
  %2611 = vmatpush2.msra.mxu0 0.0
  %2612 = vmatprep.subr.mxu0 0.0
  %2613 = vmatpush2.msra.mxu0 0.0
  %2614 = vmatprep.subr.mxu0 0.0
  %2615 = vmatpush2.msra.mxu0 0.0
  %2616 = vmatprep.subr.mxu0 0.0
  %2617 = vmatpush2.msra.mxu0 0.0
  %2618 = vmatprep.subr.mxu0 0.0
  %2619 = vmatpush2.msra.mxu0 0.0
  %2620 = vmatprep.mubr.f32.mxu0 0.0
  %2621 = vmatmul.mubr.f32.gmra.mxu0 %v2551
  %v2622 = vpop.f32.mrf.mxu0
  %v2623 = vadd.f32 0.0, %v2622
  %v2624 = vpop.f32.mrf.mxu0
  %2625 = vmatprep.mubr.f32.mxu0 0.0
  %2626 = vmatmul.mubr.f32.gmra.mxu0 %v2554
  %v2627 = vpop.f32.mrf.mxu0
  %v2628 = vadd.f32 0.0, %v2627
  %v2629 = vpop.f32.mrf.mxu0
  %2630 = vdwg.mxu0
  %v2631 = vadd.f32 %v2437, %v2623
  %v2632 = vadd.f32 %v2438, %v2628
  %v2634 = vlaneseq
  %v2635 = vshrl.u32 %v2634, 7
  %v2636 = vsub.s32 0, %v2635
  %v2637 = vrot.slane %v1605, %v2636
  %v2640 = vsel %vm99, %v2631, 0
  %v2643 = vsel %vm99, %v2632, 0
  %2645 = vmatprep.subr.mxu0 0.0
  %2646 = vmatpush1.msra.mxu0 0.0
  %2647 = vmatprep.subr.mxu0 0.0
  %2648 = vmatpush1.msra.mxu0 0.0
  %2649 = vmatprep.subr.mxu0 0.0
  %2650 = vmatpush1.msra.mxu0 0.0
  %2651 = vmatprep.subr.mxu0 0.0
  %2652 = vmatpush1.msra.mxu0 0.0
  %2653 = vmatprep.subr.mxu0 0.0
  %2654 = vmatpush1.msra.mxu0 0.0
  %2655 = vmatprep.subr.mxu0 0.0
  %2656 = vmatpush1.msra.mxu0 0.0
  %2657 = vmatprep.subr.mxu0 0.0
  %2658 = vmatpush1.msra.mxu0 0.0
  %2659 = vmatprep.subr.mxu0 0.0
  %2660 = vmatpush1.msra.mxu0 0.0
  %2661 = vmatprep.subr.mxu0 0.0
  %2662 = vmatpush1.msra.mxu0 0.0
  %2663 = vmatprep.subr.mxu0 0.0
  %2664 = vmatpush1.msra.mxu0 0.0
  %2665 = vmatprep.subr.mxu0 0.0
  %2666 = vmatpush1.msra.mxu0 0.0
  %2667 = vmatprep.subr.mxu0 0.0
  %2668 = vmatpush1.msra.mxu0 0.0
  %2669 = vmatprep.subr.mxu0 0.0
  %2670 = vmatpush1.msra.mxu0 %v1603
  %2671 = vmatprep.subr.mxu0 0.0
  %2672 = vmatpush1.msra.mxu0 %v1602
  %2673 = vmatprep.subr.mxu0 0.0
  %2674 = vmatpush1.msra.mxu0 %v1601
  %2675 = vmatprep.subr.mxu0 0.0
  %2676 = vmatpush1.msra.mxu0 %v1600
  %2677 = vmatprep.subr.mxu0 0.0
  %2678 = vmatpush2.msra.mxu0 0.0
  %2679 = vmatprep.subr.mxu0 0.0
  %2680 = vmatpush2.msra.mxu0 0.0
  %2681 = vmatprep.subr.mxu0 0.0
  %2682 = vmatpush2.msra.mxu0 0.0
  %2683 = vmatprep.subr.mxu0 0.0
  %2684 = vmatpush2.msra.mxu0 0.0
  %2685 = vmatprep.subr.mxu0 0.0
  %2686 = vmatpush2.msra.mxu0 0.0
  %2687 = vmatprep.subr.mxu0 0.0
  %2688 = vmatpush2.msra.mxu0 0.0
  %2689 = vmatprep.subr.mxu0 0.0
  %2690 = vmatpush2.msra.mxu0 0.0
  %2691 = vmatprep.subr.mxu0 0.0
  %2692 = vmatpush2.msra.mxu0 0.0
  %2693 = vmatprep.subr.mxu0 0.0
  %2694 = vmatpush2.msra.mxu0 0.0
  %2695 = vmatprep.subr.mxu0 0.0
  %2696 = vmatpush2.msra.mxu0 0.0
  %2697 = vmatprep.subr.mxu0 0.0
  %2698 = vmatpush2.msra.mxu0 0.0
  %2699 = vmatprep.subr.mxu0 0.0
  %2700 = vmatpush2.msra.mxu0 0.0
  %2701 = vmatprep.subr.mxu0 0.0
  %2702 = vmatpush2.msra.mxu0 0.0
  %2703 = vmatprep.subr.mxu0 0.0
  %2704 = vmatpush2.msra.mxu0 0.0
  %2705 = vmatprep.subr.mxu0 0.0
  %2706 = vmatpush2.msra.mxu0 0.0
  %2707 = vmatprep.subr.mxu0 0.0
  %2708 = vmatpush2.msra.mxu0 0.0
  %2709 = vmatprep.mubr.f32.mxu0 0.0
  %2710 = vmatmul.mubr.f32.gmra.mxu0 %v2640
  %v2711 = vpop.f32.mrf.mxu0
  %v2712 = vadd.f32 %v2637, %v2711
  %v2713 = vpop.f32.mrf.mxu0
  %2714 = vmatprep.mubr.f32.mxu0 0.0
  %2715 = vmatmul.mubr.f32.gmra.mxu0 %v2643
  %v2716 = vpop.f32.mrf.mxu0
  %v2717 = vadd.f32 %v2637, %v2716
  %v2718 = vpop.f32.mrf.mxu0
  %2719 = vdwg.mxu0
  %v2720 = vadd.f32 %v2712, %v1576
  %v2721 = vadd.f32 %v2717, %v1577
  %s2722 = scalar_lea.vmem %s12, 1
  %v2723 = vld [vmem:[%s2722] sm:$0x1]
  %s2724 = scalar_lea.vmem %s13, 1
  %v2725 = vld [vmem:[%s2724] sm:$0x1]
  %v2726 = vsel %vm99, %v2720, 0.0
  %2727 = vadd.xlane.f32.xlu0 %v2726
  %v2728 = vpop.xlane.xlu0 %2727
  %v2729 = vsel %vm99, %v2721, 0.0
  %2730 = vadd.xlane.f32.xlu0 %v2729
  %v2731 = vpop.xlane.xlu0 %2730
  %v2732 = vmul.f32 %v2728, %v106
  %v2733 = vmul.f32 %v2731, %v106
  %v2734 = vsub.f32 %v2720, %v2732
  %v2735 = vsub.f32 %v2721, %v2733
  %v2736 = vmul.f32 %v2734, %v2734
  %v2737 = vmul.f32 %v2735, %v2735
  %v2738 = vsel %vm99, %v2736, 0.0
  %2739 = vadd.xlane.f32.xlu0 %v2738
  %v2740 = vpop.xlane.xlu0 %2739
  %v2741 = vsel %vm99, %v2737, 0.0
  %2742 = vadd.xlane.f32.xlu0 %v2741
  %v2743 = vpop.xlane.xlu0 %2742
  %v2744 = vmul.f32 %v2740, %v106
  %v2745 = vmul.f32 %v2743, %v106
  %v2746 = vadd.f32 %v2744, 1e-05
  %v2747 = vadd.f32 %v2745, 1e-05
  %v2748 = vrsqrt.pop %v2746
  %v2749 = vrsqrt.pop %v2747
  %v2750 = vmul.f32 %v2734, %v2748
  %v2751 = vmul.f32 %v2735, %v2749
  %v2753 = vlaneseq
  %v2754 = vshrl.u32 %v2753, 7
  %v2755 = vsub.s32 0, %v2754
  %v2756 = vrot.slane %v2723, %v2755
  %v2758 = vmul.f32 %v2750, %v2756
  %v2759 = vmul.f32 %v2751, %v2756
  %v2761 = vlaneseq
  %v2762 = vshrl.u32 %v2761, 7
  %v2763 = vsub.s32 0, %v2762
  %v2764 = vrot.slane %v2725, %v2763
  %v2766 = vadd.f32 %v2758, %v2764
  %v2767 = vadd.f32 %v2759, %v2764
  %s2768 = scalar_lea.vmem %s14, 32
  %v2769 = vld [vmem:[%s2768] sm:$0xff]
  %v2770 = vld [vmem:[%s2768 + $0x8] sm:$0xff]
  %v2771 = vld [vmem:[%s2768 + $0x10] sm:$0xff]
  %v2772 = vld [vmem:[%s2768 + $0x18] sm:$0xff]
  %s2773 = scalar_lea.vmem %s15, 1
  %v2774 = vld [vmem:[%s2773] sm:$0x1]
  %v2776 = vlaneseq
  %v2777 = vshrl.u32 %v2776, 7
  %v2778 = vsub.s32 0, %v2777
  %v2779 = vrot.slane %v2774, %v2778
  %v2782 = vsel %vm99, %v2766, 0
  %v2785 = vsel %vm99, %v2767, 0
  %2787 = vmatprep.subr.mxu0 0.0
  %2788 = vmatpush1.msra.mxu0 0.0
  %2789 = vmatprep.subr.mxu0 0.0
  %2790 = vmatpush1.msra.mxu0 0.0
  %2791 = vmatprep.subr.mxu0 0.0
  %2792 = vmatpush1.msra.mxu0 0.0
  %2793 = vmatprep.subr.mxu0 0.0
  %2794 = vmatpush1.msra.mxu0 0.0
  %2795 = vmatprep.subr.mxu0 0.0
  %2796 = vmatpush1.msra.mxu0 0.0
  %2797 = vmatprep.subr.mxu0 0.0
  %2798 = vmatpush1.msra.mxu0 0.0
  %2799 = vmatprep.subr.mxu0 0.0
  %2800 = vmatpush1.msra.mxu0 0.0
  %2801 = vmatprep.subr.mxu0 0.0
  %2802 = vmatpush1.msra.mxu0 0.0
  %2803 = vmatprep.subr.mxu0 0.0
  %2804 = vmatpush1.msra.mxu0 0.0
  %2805 = vmatprep.subr.mxu0 0.0
  %2806 = vmatpush1.msra.mxu0 0.0
  %2807 = vmatprep.subr.mxu0 0.0
  %2808 = vmatpush1.msra.mxu0 0.0
  %2809 = vmatprep.subr.mxu0 0.0
  %2810 = vmatpush1.msra.mxu0 0.0
  %2811 = vmatprep.subr.mxu0 0.0
  %2812 = vmatpush1.msra.mxu0 %v2772
  %2813 = vmatprep.subr.mxu0 0.0
  %2814 = vmatpush1.msra.mxu0 %v2771
  %2815 = vmatprep.subr.mxu0 0.0
  %2816 = vmatpush1.msra.mxu0 %v2770
  %2817 = vmatprep.subr.mxu0 0.0
  %2818 = vmatpush1.msra.mxu0 %v2769
  %2819 = vmatprep.subr.mxu0 0.0
  %2820 = vmatpush2.msra.mxu0 0.0
  %2821 = vmatprep.subr.mxu0 0.0
  %2822 = vmatpush2.msra.mxu0 0.0
  %2823 = vmatprep.subr.mxu0 0.0
  %2824 = vmatpush2.msra.mxu0 0.0
  %2825 = vmatprep.subr.mxu0 0.0
  %2826 = vmatpush2.msra.mxu0 0.0
  %2827 = vmatprep.subr.mxu0 0.0
  %2828 = vmatpush2.msra.mxu0 0.0
  %2829 = vmatprep.subr.mxu0 0.0
  %2830 = vmatpush2.msra.mxu0 0.0
  %2831 = vmatprep.subr.mxu0 0.0
  %2832 = vmatpush2.msra.mxu0 0.0
  %2833 = vmatprep.subr.mxu0 0.0
  %2834 = vmatpush2.msra.mxu0 0.0
  %2835 = vmatprep.subr.mxu0 0.0
  %2836 = vmatpush2.msra.mxu0 0.0
  %2837 = vmatprep.subr.mxu0 0.0
  %2838 = vmatpush2.msra.mxu0 0.0
  %2839 = vmatprep.subr.mxu0 0.0
  %2840 = vmatpush2.msra.mxu0 0.0
  %2841 = vmatprep.subr.mxu0 0.0
  %2842 = vmatpush2.msra.mxu0 0.0
  %2843 = vmatprep.subr.mxu0 0.0
  %2844 = vmatpush2.msra.mxu0 0.0
  %2845 = vmatprep.subr.mxu0 0.0
  %2846 = vmatpush2.msra.mxu0 0.0
  %2847 = vmatprep.subr.mxu0 0.0
  %2848 = vmatpush2.msra.mxu0 0.0
  %2849 = vmatprep.subr.mxu0 0.0
  %2850 = vmatpush2.msra.mxu0 0.0
  %2851 = vmatprep.mubr.f32.mxu0 0.0
  %2852 = vmatmul.mubr.f32.gmra.mxu0 %v2782
  %v2853 = vpop.f32.mrf.mxu0
  %v2854 = vadd.f32 %v2779, %v2853
  %v2855 = vpop.f32.mrf.mxu0
  %2856 = vmatprep.mubr.f32.mxu0 0.0
  %2857 = vmatmul.mubr.f32.gmra.mxu0 %v2785
  %v2858 = vpop.f32.mrf.mxu0
  %v2859 = vadd.f32 %v2779, %v2858
  %v2860 = vpop.f32.mrf.mxu0
  %2861 = vdwg.mxu0
  %v2862 = vmul.f32 %v2854, 0.5
  %v2863 = vmul.f32 %v2859, 0.5
  %v2864 = vmul.f32 %v2854, 0.044715
  %v2865 = vmul.f32 %v2859, 0.044715
  %v2866 = vmul.f32 %v2864, %v2854
  %v2867 = vmul.f32 %v2865, %v2859
  %v2868 = vmul.f32 %v2866, %v2854
  %v2869 = vmul.f32 %v2867, %v2859
  %v2870 = vadd.f32 %v2854, %v2868
  %v2871 = vadd.f32 %v2859, %v2869
  %v2872 = vmul.f32 %v2870, 0.7978846
  %v2873 = vmul.f32 %v2871, 0.7978846
  %v2874 = vtanh.pop %v2872
  %v2875 = vtanh.pop %v2873
  %v2876 = vadd.f32 %v2874, 1.0
  %v2877 = vadd.f32 %v2875, 1.0
  %v2878 = vmul.f32 %v2862, %v2876
  %v2879 = vmul.f32 %v2863, %v2877
  %s2880 = scalar_lea.vmem %s16, 128
  %v2881 = vld [vmem:[%s2880] sm:$0xff]
  %v2882 = vld [vmem:[%s2880 + $0x8] sm:$0xff]
  %v2883 = vld [vmem:[%s2880 + $0x10] sm:$0xff]
  %v2884 = vld [vmem:[%s2880 + $0x18] sm:$0xff]
  %v2885 = vld [vmem:[%s2880 + $0x20] sm:$0xff]
  %v2886 = vld [vmem:[%s2880 + $0x28] sm:$0xff]
  %v2887 = vld [vmem:[%s2880 + $0x30] sm:$0xff]
  %v2888 = vld [vmem:[%s2880 + $0x38] sm:$0xff]
  %v2889 = vld [vmem:[%s2880 + $0x40] sm:$0xff]
  %v2890 = vld [vmem:[%s2880 + $0x48] sm:$0xff]
  %v2891 = vld [vmem:[%s2880 + $0x50] sm:$0xff]
  %v2892 = vld [vmem:[%s2880 + $0x58] sm:$0xff]
  %v2893 = vld [vmem:[%s2880 + $0x60] sm:$0xff]
  %v2894 = vld [vmem:[%s2880 + $0x68] sm:$0xff]
  %v2895 = vld [vmem:[%s2880 + $0x70] sm:$0xff]
  %v2896 = vld [vmem:[%s2880 + $0x78] sm:$0xff]
  %s2897 = scalar_lea.vmem %s17, 1
  %v2898 = vld [vmem:[%s2897] sm:$0x1]
  %v2900 = vlaneseq
  %v2901 = vshrl.u32 %v2900, 7
  %v2902 = vsub.s32 0, %v2901
  %v2903 = vrot.slane %v2898, %v2902
  %2905 = vmatprep.subr.mxu0 0.0
  %2906 = vmatpush1.msra.mxu0 %v2896
  %2907 = vmatprep.subr.mxu0 0.0
  %2908 = vmatpush1.msra.mxu0 %v2895
  %2909 = vmatprep.subr.mxu0 0.0
  %2910 = vmatpush1.msra.mxu0 %v2894
  %2911 = vmatprep.subr.mxu0 0.0
  %2912 = vmatpush1.msra.mxu0 %v2893
  %2913 = vmatprep.subr.mxu0 0.0
  %2914 = vmatpush1.msra.mxu0 %v2892
  %2915 = vmatprep.subr.mxu0 0.0
  %2916 = vmatpush1.msra.mxu0 %v2891
  %2917 = vmatprep.subr.mxu0 0.0
  %2918 = vmatpush1.msra.mxu0 %v2890
  %2919 = vmatprep.subr.mxu0 0.0
  %2920 = vmatpush1.msra.mxu0 %v2889
  %2921 = vmatprep.subr.mxu0 0.0
  %2922 = vmatpush1.msra.mxu0 %v2888
  %2923 = vmatprep.subr.mxu0 0.0
  %2924 = vmatpush1.msra.mxu0 %v2887
  %2925 = vmatprep.subr.mxu0 0.0
  %2926 = vmatpush1.msra.mxu0 %v2886
  %2927 = vmatprep.subr.mxu0 0.0
  %2928 = vmatpush1.msra.mxu0 %v2885
  %2929 = vmatprep.subr.mxu0 0.0
  %2930 = vmatpush1.msra.mxu0 %v2884
  %2931 = vmatprep.subr.mxu0 0.0
  %2932 = vmatpush1.msra.mxu0 %v2883
  %2933 = vmatprep.subr.mxu0 0.0
  %2934 = vmatpush1.msra.mxu0 %v2882
  %2935 = vmatprep.subr.mxu0 0.0
  %2936 = vmatpush1.msra.mxu0 %v2881
  %2937 = vmatprep.subr.mxu0 0.0
  %2938 = vmatpush2.msra.mxu0 0.0
  %2939 = vmatprep.subr.mxu0 0.0
  %2940 = vmatpush2.msra.mxu0 0.0
  %2941 = vmatprep.subr.mxu0 0.0
  %2942 = vmatpush2.msra.mxu0 0.0
  %2943 = vmatprep.subr.mxu0 0.0
  %2944 = vmatpush2.msra.mxu0 0.0
  %2945 = vmatprep.subr.mxu0 0.0
  %2946 = vmatpush2.msra.mxu0 0.0
  %2947 = vmatprep.subr.mxu0 0.0
  %2948 = vmatpush2.msra.mxu0 0.0
  %2949 = vmatprep.subr.mxu0 0.0
  %2950 = vmatpush2.msra.mxu0 0.0
  %2951 = vmatprep.subr.mxu0 0.0
  %2952 = vmatpush2.msra.mxu0 0.0
  %2953 = vmatprep.subr.mxu0 0.0
  %2954 = vmatpush2.msra.mxu0 0.0
  %2955 = vmatprep.subr.mxu0 0.0
  %2956 = vmatpush2.msra.mxu0 0.0
  %2957 = vmatprep.subr.mxu0 0.0
  %2958 = vmatpush2.msra.mxu0 0.0
  %2959 = vmatprep.subr.mxu0 0.0
  %2960 = vmatpush2.msra.mxu0 0.0
  %2961 = vmatprep.subr.mxu0 0.0
  %2962 = vmatpush2.msra.mxu0 0.0
  %2963 = vmatprep.subr.mxu0 0.0
  %2964 = vmatpush2.msra.mxu0 0.0
  %2965 = vmatprep.subr.mxu0 0.0
  %2966 = vmatpush2.msra.mxu0 0.0
  %2967 = vmatprep.subr.mxu0 0.0
  %2968 = vmatpush2.msra.mxu0 0.0
  %2969 = vmatprep.mubr.f32.mxu0 0.0
  %2970 = vmatmul.mubr.f32.gmra.mxu0 %v2878
  %v2971 = vpop.f32.mrf.mxu0
  %v2972 = vadd.f32 %v2903, %v2971
  %v2973 = vpop.f32.mrf.mxu0
  %2974 = vmatprep.mubr.f32.mxu0 0.0
  %2975 = vmatmul.mubr.f32.gmra.mxu0 %v2879
  %v2976 = vpop.f32.mrf.mxu0
  %v2977 = vadd.f32 %v2903, %v2976
  %v2978 = vpop.f32.mrf.mxu0
  %2979 = vdwg.mxu0
  %v2980 = vadd.f32 %v2972, %v2766
  %v2981 = vadd.f32 %v2977, %v2767
  %s2982 = scalar_lea.vmem %s18, 1
  %v2983 = vld [vmem:[%s2982] sm:$0x1]
  %s2984 = scalar_lea.vmem %s19, 1
  %v2985 = vld [vmem:[%s2984] sm:$0x1]
  %v2986 = vsel %vm99, %v2980, 0.0
  %2987 = vadd.xlane.f32.xlu0 %v2986
  %v2988 = vpop.xlane.xlu0 %2987
  %v2989 = vsel %vm99, %v2981, 0.0
  %2990 = vadd.xlane.f32.xlu0 %v2989
  %v2991 = vpop.xlane.xlu0 %2990
  %v2992 = vmul.f32 %v2988, %v106
  %v2993 = vmul.f32 %v2991, %v106
  %v2994 = vsub.f32 %v2980, %v2992
  %v2995 = vsub.f32 %v2981, %v2993
  %v2996 = vmul.f32 %v2994, %v2994
  %v2997 = vmul.f32 %v2995, %v2995
  %v2998 = vsel %vm99, %v2996, 0.0
  %2999 = vadd.xlane.f32.xlu0 %v2998
  %v3000 = vpop.xlane.xlu0 %2999
  %v3001 = vsel %vm99, %v2997, 0.0
  %3002 = vadd.xlane.f32.xlu0 %v3001
  %v3003 = vpop.xlane.xlu0 %3002
  %v3004 = vmul.f32 %v3000, %v106
  %v3005 = vmul.f32 %v3003, %v106
  %v3006 = vadd.f32 %v3004, 1e-05
  %v3007 = vadd.f32 %v3005, 1e-05
  %v3008 = vrsqrt.pop %v3006
  %v3009 = vrsqrt.pop %v3007
  %v3010 = vmul.f32 %v2994, %v3008
  %v3011 = vmul.f32 %v2995, %v3009
  %v3013 = vlaneseq
  %v3014 = vshrl.u32 %v3013, 7
  %v3015 = vsub.s32 0, %v3014
  %v3016 = vrot.slane %v2983, %v3015
  %v3018 = vmul.f32 %v3010, %v3016
  %v3019 = vmul.f32 %v3011, %v3016
  %v3021 = vlaneseq
  %v3022 = vshrl.u32 %v3021, 7
  %v3023 = vsub.s32 0, %v3022
  %v3024 = vrot.slane %v2985, %v3023
  %v3026 = vadd.f32 %v3018, %v3024
  %v3027 = vadd.f32 %v3019, %v3024
  %v3028 = vlaneseq
  %v3029 = vshrl.u32 %v3028, 7
  %v3030 = vmul.u32 %v3029, 8
  %vm3031 = vcmp.eq.s32.totalorder %v72, %v3030
  %v3032 = vsel %vm3031, 1, 0
  %v3033 = vcvt.s32.f32 %v3032
  %v3035 = vsel %vm507, %v3033, 0
  %3037 = vmatprep.subr.mxu0 0.0
  %3038 = vmatpush1.msra.mxu0 0.0
  %3039 = vmatprep.subr.mxu0 0.0
  %3040 = vmatpush1.msra.mxu0 0.0
  %3041 = vmatprep.subr.mxu0 0.0
  %3042 = vmatpush1.msra.mxu0 0.0
  %3043 = vmatprep.subr.mxu0 0.0
  %3044 = vmatpush1.msra.mxu0 0.0
  %3045 = vmatprep.subr.mxu0 0.0
  %3046 = vmatpush1.msra.mxu0 0.0
  %3047 = vmatprep.subr.mxu0 0.0
  %3048 = vmatpush1.msra.mxu0 0.0
  %3049 = vmatprep.subr.mxu0 0.0
  %3050 = vmatpush1.msra.mxu0 0.0
  %3051 = vmatprep.subr.mxu0 0.0
  %3052 = vmatpush1.msra.mxu0 0.0
  %3053 = vmatprep.subr.mxu0 0.0
  %3054 = vmatpush1.msra.mxu0 0.0
  %3055 = vmatprep.subr.mxu0 0.0
  %3056 = vmatpush1.msra.mxu0 0.0
  %3057 = vmatprep.subr.mxu0 0.0
  %3058 = vmatpush1.msra.mxu0 0.0
  %3059 = vmatprep.subr.mxu0 0.0
  %3060 = vmatpush1.msra.mxu0 0.0
  %3061 = vmatprep.subr.mxu0 0.0
  %3062 = vmatpush1.msra.mxu0 0.0
  %3063 = vmatprep.subr.mxu0 0.0
  %3064 = vmatpush1.msra.mxu0 0.0
  %3065 = vmatprep.subr.mxu0 0.0
  %3066 = vmatpush1.msra.mxu0 %v3027
  %3067 = vmatprep.subr.mxu0 0.0
  %3068 = vmatpush1.msra.mxu0 %v3026
  %3069 = vmatprep.subr.mxu0 0.0
  %3070 = vmatpush2.msra.mxu0 0.0
  %3071 = vmatprep.subr.mxu0 0.0
  %3072 = vmatpush2.msra.mxu0 0.0
  %3073 = vmatprep.subr.mxu0 0.0
  %3074 = vmatpush2.msra.mxu0 0.0
  %3075 = vmatprep.subr.mxu0 0.0
  %3076 = vmatpush2.msra.mxu0 0.0
  %3077 = vmatprep.subr.mxu0 0.0
  %3078 = vmatpush2.msra.mxu0 0.0
  %3079 = vmatprep.subr.mxu0 0.0
  %3080 = vmatpush2.msra.mxu0 0.0
  %3081 = vmatprep.subr.mxu0 0.0
  %3082 = vmatpush2.msra.mxu0 0.0
  %3083 = vmatprep.subr.mxu0 0.0
  %3084 = vmatpush2.msra.mxu0 0.0
  %3085 = vmatprep.subr.mxu0 0.0
  %3086 = vmatpush2.msra.mxu0 0.0
  %3087 = vmatprep.subr.mxu0 0.0
  %3088 = vmatpush2.msra.mxu0 0.0
  %3089 = vmatprep.subr.mxu0 0.0
  %3090 = vmatpush2.msra.mxu0 0.0
  %3091 = vmatprep.subr.mxu0 0.0
  %3092 = vmatpush2.msra.mxu0 0.0
  %3093 = vmatprep.subr.mxu0 0.0
  %3094 = vmatpush2.msra.mxu0 0.0
  %3095 = vmatprep.subr.mxu0 0.0
  %3096 = vmatpush2.msra.mxu0 0.0
  %3097 = vmatprep.subr.mxu0 0.0
  %3098 = vmatpush2.msra.mxu0 0.0
  %3099 = vmatprep.subr.mxu0 0.0
  %3100 = vmatpush2.msra.mxu0 0.0
  %3101 = vmatprep.mubr.f32.mxu0 0.0
  %3102 = vmatmul.mubr.f32.gmra.mxu0 %v3035
  %v3103 = vpop.f32.mrf.mxu0
  %v3104 = vadd.f32 0.0, %v3103
  %v3105 = vpop.f32.mrf.mxu0
  %3106 = vdwg.mxu0
  %v3107 = vld [vmem:[%s20] sm:$0xff]
  %v3108 = vld [vmem:[%s20 + $0x8] sm:$0xff]
  %v3109 = vld [vmem:[%s20 + $0x10] sm:$0xff]
  %v3110 = vld [vmem:[%s20 + $0x18] sm:$0xff]
  %v3111 = vld [vmem:[%s21] sm:$0x1]
  %v3113 = vlaneseq
  %v3114 = vshrl.u32 %v3113, 7
  %v3115 = vsub.s32 0, %v3114
  %v3116 = vrot.slane %v3111, %v3115
  %v3119 = vsel %vm99, %v3104, 0
  %3121 = vmatprep.subr.mxu0 0.0
  %3122 = vmatpush1.msra.mxu0 0.0
  %3123 = vmatprep.subr.mxu0 0.0
  %3124 = vmatpush1.msra.mxu0 0.0
  %3125 = vmatprep.subr.mxu0 0.0
  %3126 = vmatpush1.msra.mxu0 0.0
  %3127 = vmatprep.subr.mxu0 0.0
  %3128 = vmatpush1.msra.mxu0 0.0
  %3129 = vmatprep.subr.mxu0 0.0
  %3130 = vmatpush1.msra.mxu0 0.0
  %3131 = vmatprep.subr.mxu0 0.0
  %3132 = vmatpush1.msra.mxu0 0.0
  %3133 = vmatprep.subr.mxu0 0.0
  %3134 = vmatpush1.msra.mxu0 0.0
  %3135 = vmatprep.subr.mxu0 0.0
  %3136 = vmatpush1.msra.mxu0 0.0
  %3137 = vmatprep.subr.mxu0 0.0
  %3138 = vmatpush1.msra.mxu0 0.0
  %3139 = vmatprep.subr.mxu0 0.0
  %3140 = vmatpush1.msra.mxu0 0.0
  %3141 = vmatprep.subr.mxu0 0.0
  %3142 = vmatpush1.msra.mxu0 0.0
  %3143 = vmatprep.subr.mxu0 0.0
  %3144 = vmatpush1.msra.mxu0 0.0
  %3145 = vmatprep.subr.mxu0 0.0
  %3146 = vmatpush1.msra.mxu0 %v3110
  %3147 = vmatprep.subr.mxu0 0.0
  %3148 = vmatpush1.msra.mxu0 %v3109
  %3149 = vmatprep.subr.mxu0 0.0
  %3150 = vmatpush1.msra.mxu0 %v3108
  %3151 = vmatprep.subr.mxu0 0.0
  %3152 = vmatpush1.msra.mxu0 %v3107
  %3153 = vmatprep.subr.mxu0 0.0
  %3154 = vmatpush2.msra.mxu0 0.0
  %3155 = vmatprep.subr.mxu0 0.0
  %3156 = vmatpush2.msra.mxu0 0.0
  %3157 = vmatprep.subr.mxu0 0.0
  %3158 = vmatpush2.msra.mxu0 0.0
  %3159 = vmatprep.subr.mxu0 0.0
  %3160 = vmatpush2.msra.mxu0 0.0
  %3161 = vmatprep.subr.mxu0 0.0
  %3162 = vmatpush2.msra.mxu0 0.0
  %3163 = vmatprep.subr.mxu0 0.0
  %3164 = vmatpush2.msra.mxu0 0.0
  %3165 = vmatprep.subr.mxu0 0.0
  %3166 = vmatpush2.msra.mxu0 0.0
  %3167 = vmatprep.subr.mxu0 0.0
  %3168 = vmatpush2.msra.mxu0 0.0
  %3169 = vmatprep.subr.mxu0 0.0
  %3170 = vmatpush2.msra.mxu0 0.0
  %3171 = vmatprep.subr.mxu0 0.0
  %3172 = vmatpush2.msra.mxu0 0.0
  %3173 = vmatprep.subr.mxu0 0.0
  %3174 = vmatpush2.msra.mxu0 0.0
  %3175 = vmatprep.subr.mxu0 0.0
  %3176 = vmatpush2.msra.mxu0 0.0
  %3177 = vmatprep.subr.mxu0 0.0
  %3178 = vmatpush2.msra.mxu0 0.0
  %3179 = vmatprep.subr.mxu0 0.0
  %3180 = vmatpush2.msra.mxu0 0.0
  %3181 = vmatprep.subr.mxu0 0.0
  %3182 = vmatpush2.msra.mxu0 0.0
  %3183 = vmatprep.subr.mxu0 0.0
  %3184 = vmatpush2.msra.mxu0 0.0
  %3185 = vmatprep.mubr.f32.mxu0 0.0
  %3186 = vmatmul.mubr.f32.gmra.mxu0 %v3119
  %v3187 = vpop.f32.mrf.mxu0
  %v3188 = vadd.f32 %v3116, %v3187
  %v3189 = vpop.f32.mrf.mxu0
  %3190 = vdwg.mxu0
  %v3191 = vtanh.pop %v3188
  %vm3192 = vcmask 254976
  %3193 = vst.msk [vmem:[%s22] sm:$0x3] %vm3192, %v3191
  // Predicated region
  $region90: #{model_forward.2} parent=0 // pred_check
    _
  $region91: #{model_forward.2} parent=0 // pred_check_branch
    %3195 = sbr.rel (0) target = $region93
  $region92: #{model_forward.2} parent=0 // pred_region
    _
  $region93: #{model_forward.2} parent=0 // pred_fallthru
    _
  // Predicated region
  $region94: #{model_forward.2} parent=0 // pred_check
    _
  $region95: #{model_forward.2} parent=0 // pred_check_branch
    %3197 = sbr.rel (0) target = $region97
  $region96: #{model_forward.2} parent=0 // pred_region
    _
  $region97: #{model_forward.2} parent=0 // pred_fallthru
    _

// kernel: model_forward.3
$region0: #{model_forward.3}
  #allocation0 [shape = 'u32[]', space=smem, size = 0x4, offset = 0x4, fixed_abs, tag = 'smem constant byte address 0x4 - core index']
  #allocation1 [shape = 'u32[144,128]{1,0:T(1,128)}', space=vmem, size = 0x12000, scoped, tag = 'internal scratch']
  %s0 = inlined_call_operand.vmem [shape: f32[16,192], index: 0, kind: input, shape index: {}]
  %s1 = inlined_call_operand.vmem [shape: f32[16,48], index: 1, kind: input, shape index: {}]
  %s2 = inlined_call_operand.vmem [shape: f32[16,16], index: 2, kind: input, shape index: {}]
  %s3 = inlined_call_operand.vmem [shape: f32[2,32], index: 3, kind: input, shape index: {}]
  %s4 = inlined_call_operand.vmem [shape: f32[192,48], index: 4, kind: input, shape index: {}]
  %s5 = inlined_call_operand.vmem [shape: f32[1,48], index: 5, kind: input, shape index: {}]
  %s6 = inlined_call_operand.vmem [shape: f32[1,48], index: 6, kind: input, shape index: {}]
  %s7 = inlined_call_operand.vmem [shape: f32[2,48,48], index: 7, kind: input, shape index: {}]
  %s8 = inlined_call_operand.vmem [shape: f32[2,1,48], index: 8, kind: input, shape index: {}]
  %s9 = inlined_call_operand.vmem [shape: f32[2,48,48], index: 9, kind: input, shape index: {}]
  %s10 = inlined_call_operand.vmem [shape: f32[2,1,48], index: 10, kind: input, shape index: {}]
  %s11 = inlined_call_operand.vmem [shape: f32[2,48,48], index: 11, kind: input, shape index: {}]
  %s12 = inlined_call_operand.vmem [shape: f32[2,1,48], index: 12, kind: input, shape index: {}]
  %s13 = inlined_call_operand.vmem [shape: f32[2,48,48], index: 13, kind: input, shape index: {}]
  %s14 = inlined_call_operand.vmem [shape: f32[2,1,48], index: 14, kind: input, shape index: {}]
  %s15 = inlined_call_operand.vmem [shape: f32[2,1,48], index: 15, kind: input, shape index: {}]
  %s16 = inlined_call_operand.vmem [shape: f32[2,1,48], index: 16, kind: input, shape index: {}]
  %s17 = inlined_call_operand.vmem [shape: f32[2,1,48], index: 17, kind: input, shape index: {}]
  %s18 = inlined_call_operand.vmem [shape: f32[2,1,48], index: 18, kind: input, shape index: {}]
  %s19 = inlined_call_operand.vmem [shape: f32[2,48,192], index: 19, kind: input, shape index: {}]
  %s20 = inlined_call_operand.vmem [shape: f32[2,1,192], index: 20, kind: input, shape index: {}]
  %s21 = inlined_call_operand.vmem [shape: f32[2,192,48], index: 21, kind: input, shape index: {}]
  %s22 = inlined_call_operand.vmem [shape: f32[2,1,48], index: 22, kind: input, shape index: {}]
  %s23 = inlined_call_operand.vmem [shape: f32[1,48], index: 23, kind: input, shape index: {}]
  %s24 = inlined_call_operand.vmem [shape: f32[1,48], index: 24, kind: input, shape index: {}]
  %s25 = inlined_call_operand.vmem [shape: f32[32,3], index: 25, kind: input, shape index: {}]
  %s26 = inlined_call_operand.vmem [shape: f32[48,3], index: 26, kind: input, shape index: {}]
  %s27 = inlined_call_operand.hbm [shape: f32[1,3], index: 27, kind: input, shape index: {}]
  %s28 = inlined_call_operand.hbm [shape: f32[2,3], index: 28, kind: output, shape index: {}]
  %s29 = sld [smem:[#allocation0]]
  $region126: #{model_forward.3} parent=0
    _
  %s31 = ssub.s32 1, %s29
  %s32 = scalar_select 0, %s31, %s29
  $region1: #{model_forward.3} parent=0
    #allocation2 [shape = 'u8[512]{0}', space=vmem, size = 0x400, scoped, tag = 'input window, operand 27, single buffered']
    #allocation3 [shape = 's32[1]{0}', space=sflag, size = 0x4, scoped, tag = 'scoped memory for model_forward.3']
    #allocation4 [shape = 's32[1]{0}', space=sflag, size = 0x4, scoped, tag = 'scoped memory for model_forward.3']
    #allocation5 [shape = 'u8[1024]{0}', space=vmem, size = 0x400, scoped, tag = 'output window, operand 0, single buffered']
    %33 = vsyncpa [#allocation3], 0
    %34 = vsyncpa [#allocation4], 0
    // Predicated region
    $region2: #{model_forward.3} parent=1 // pred_check
      _
    $region3: #{model_forward.3} parent=1 // pred_check_branch
      %36 = sbr.rel (0) target = $region5
    $region4: #{model_forward.3} parent=1 // pred_region
      _
    $region5: #{model_forward.3} parent=1 // pred_fallthru
      _
    // Predicated region
    $region6: #{model_forward.3} parent=1 // pred_check
      _
    $region7: #{model_forward.3} parent=1 // pred_check_branch
      %38 = sbr.rel (0) target = $region9
    $region8: #{model_forward.3} parent=1 // pred_region
      _
    $region9: #{model_forward.3} parent=1 // pred_fallthru
      _
    // Predicated region
    $region10: #{model_forward.3} parent=1 // pred_check
      _
    $region11: #{model_forward.3} parent=1 // pred_check_branch
      %40 = sbr.rel (0) target = $region13
    $region12: #{model_forward.3} parent=1 // pred_region
      _
    $region13: #{model_forward.3} parent=1 // pred_fallthru
      _
    // Predicated region
    $region14: #{model_forward.3} parent=1 // pred_check
      _
    $region15: #{model_forward.3} parent=1 // pred_check_branch
      %42 = sbr.rel (0) target = $region17
    $region16: #{model_forward.3} parent=1 // pred_region
      _
    $region17: #{model_forward.3} parent=1 // pred_fallthru
      _
    // Predicated region
    $region18: #{model_forward.3} parent=1 // pred_check
      _
    $region19: #{model_forward.3} parent=1 // pred_check_branch
      %44 = sbr.rel (0) target = $region21
    $region20: #{model_forward.3} parent=1 // pred_region
      _
    $region21: #{model_forward.3} parent=1 // pred_fallthru
      _
    // Predicated region
    $region22: #{model_forward.3} parent=1 // pred_check
      _
    $region23: #{model_forward.3} parent=1 // pred_check_branch
      %46 = sbr.rel (0) target = $region25
    $region24: #{model_forward.3} parent=1 // pred_region
      _
    $region25: #{model_forward.3} parent=1 // pred_fallthru
      _
    // Predicated region
    $region26: #{model_forward.3} parent=1 // pred_check
      _
    $region27: #{model_forward.3} parent=1 // pred_check_branch
      %48 = sbr.rel (0) target = $region29
    $region28: #{model_forward.3} parent=1 // pred_region
      _
    $region29: #{model_forward.3} parent=1 // pred_fallthru
      _
    // Predicated region
    $region30: #{model_forward.3} parent=1 // pred_check
      _
    $region31: #{model_forward.3} parent=1 // pred_check_branch
      %50 = sbr.rel (0) target = $region33
    $region32: #{model_forward.3} parent=1 // pred_region
      _
    $region33: #{model_forward.3} parent=1 // pred_fallthru
      _
    // Predicated region
    $region34: #{model_forward.3} parent=1 // pred_check
      _
    $region35: #{model_forward.3} parent=1 // pred_check_branch
      %52 = sbr.rel (0) target = $region37
    $region36: #{model_forward.3} parent=1 // pred_region
      _
    $region37: #{model_forward.3} parent=1 // pred_fallthru
      _
    // Predicated region
    $region38: #{model_forward.3} parent=1 // pred_check
      _
    $region39: #{model_forward.3} parent=1 // pred_check_branch
      %54 = sbr.rel (0) target = $region41
    $region40: #{model_forward.3} parent=1 // pred_region
      _
    $region41: #{model_forward.3} parent=1 // pred_fallthru
      _
    // Predicated region
    $region42: #{model_forward.3} parent=1 // pred_check
      _
    $region43: #{model_forward.3} parent=1 // pred_check_branch
      %56 = sbr.rel (0) target = $region45
    $region44: #{model_forward.3} parent=1 // pred_region
      _
    $region45: #{model_forward.3} parent=1 // pred_fallthru
      _
    // Predicated region
    $region46: #{model_forward.3} parent=1 // pred_check
      _
    $region47: #{model_forward.3} parent=1 // pred_check_branch
      %58 = sbr.rel (0) target = $region49
    $region48: #{model_forward.3} parent=1 // pred_region
      _
    $region49: #{model_forward.3} parent=1 // pred_fallthru
      _
    // Predicated region
    $region50: #{model_forward.3} parent=1 // pred_check
      _
    $region51: #{model_forward.3} parent=1 // pred_check_branch
      %60 = sbr.rel (0) target = $region53
    $region52: #{model_forward.3} parent=1 // pred_region
      _
    $region53: #{model_forward.3} parent=1 // pred_fallthru
      _
    // Predicated region
    $region54: #{model_forward.3} parent=1 // pred_check
      _
    $region55: #{model_forward.3} parent=1 // pred_check_branch
      %62 = sbr.rel (0) target = $region57
    $region56: #{model_forward.3} parent=1 // pred_region
      _
    $region57: #{model_forward.3} parent=1 // pred_fallthru
      _
    // Predicated region
    $region58: #{model_forward.3} parent=1 // pred_check
      _
    $region59: #{model_forward.3} parent=1 // pred_check_branch
      %64 = sbr.rel (0) target = $region61
    $region60: #{model_forward.3} parent=1 // pred_region
      _
    $region61: #{model_forward.3} parent=1 // pred_fallthru
      _
    // Predicated region
    $region62: #{model_forward.3} parent=1 // pred_check
      _
    $region63: #{model_forward.3} parent=1 // pred_check_branch
      %66 = sbr.rel (0) target = $region65
    $region64: #{model_forward.3} parent=1 // pred_region
      _
    $region65: #{model_forward.3} parent=1 // pred_fallthru
      _
    // Predicated region
    $region66: #{model_forward.3} parent=1 // pred_check
      _
    $region67: #{model_forward.3} parent=1 // pred_check_branch
      %68 = sbr.rel (0) target = $region69
    $region68: #{model_forward.3} parent=1 // pred_region
      _
    $region69: #{model_forward.3} parent=1 // pred_fallthru
      _
    // Predicated region
    $region70: #{model_forward.3} parent=1 // pred_check
      _
    $region71: #{model_forward.3} parent=1 // pred_check_branch
      %70 = sbr.rel (0) target = $region73
    $region72: #{model_forward.3} parent=1 // pred_region
      _
    $region73: #{model_forward.3} parent=1 // pred_fallthru
      _
    // Predicated region
    $region74: #{model_forward.3} parent=1 // pred_check
      _
    $region75: #{model_forward.3} parent=1 // pred_check_branch
      %72 = sbr.rel (0) target = $region77
    $region76: #{model_forward.3} parent=1 // pred_region
      _
    $region77: #{model_forward.3} parent=1 // pred_fallthru
      _
    // Predicated region
    $region78: #{model_forward.3} parent=1 // pred_check
      _
    $region79: #{model_forward.3} parent=1 // pred_check_branch
      %74 = sbr.rel (0) target = $region81
    $region80: #{model_forward.3} parent=1 // pred_region
      _
    $region81: #{model_forward.3} parent=1 // pred_fallthru
      _
    // Predicated region
    $region82: #{model_forward.3} parent=1 // pred_check
      _
    $region83: #{model_forward.3} parent=1 // pred_check_branch
      %76 = sbr.rel (0) target = $region85
    $region84: #{model_forward.3} parent=1 // pred_region
      _
    $region85: #{model_forward.3} parent=1 // pred_fallthru
      _
    // Predicated region
    $region86: #{model_forward.3} parent=1 // pred_check
      _
    $region87: #{model_forward.3} parent=1 // pred_check_branch
      %78 = sbr.rel (0) target = $region89
    $region88: #{model_forward.3} parent=1 // pred_region
      _
    $region89: #{model_forward.3} parent=1 // pred_fallthru
      _
    // Predicated region
    $region90: #{model_forward.3} parent=1 // pred_check
      _
    $region91: #{model_forward.3} parent=1 // pred_check_branch
      %80 = sbr.rel (0) target = $region93
    $region92: #{model_forward.3} parent=1 // pred_region
      _
    $region93: #{model_forward.3} parent=1 // pred_fallthru
      _
    // Predicated region
    $region94: #{model_forward.3} parent=1 // pred_check
      _
    $region95: #{model_forward.3} parent=1 // pred_check_branch
      %82 = sbr.rel (0) target = $region97
    $region96: #{model_forward.3} parent=1 // pred_region
      _
    $region97: #{model_forward.3} parent=1 // pred_fallthru
      _
    // Predicated region
    $region98: #{model_forward.3} parent=1 // pred_check
      _
    $region99: #{model_forward.3} parent=1 // pred_check_branch
      %84 = sbr.rel (0) target = $region101
    $region100: #{model_forward.3} parent=1 // pred_region
      _
    $region101: #{model_forward.3} parent=1 // pred_fallthru
      _
    // Predicated region
    $region102: #{model_forward.3} parent=1 // pred_check
      _
    $region103: #{model_forward.3} parent=1 // pred_check_branch
      %86 = sbr.rel (0) target = $region105
    $region104: #{model_forward.3} parent=1 // pred_region
      _
    $region105: #{model_forward.3} parent=1 // pred_fallthru
      _
    // Predicated region
    $region106: #{model_forward.3} parent=1 // pred_check
      _
    $region107: #{model_forward.3} parent=1 // pred_check_branch
      %88 = sbr.rel (0) target = $region109
    $region108: #{model_forward.3} parent=1 // pred_region
      _
    $region109: #{model_forward.3} parent=1 // pred_fallthru
      _
    // Predicated region
    $region110: #{model_forward.3} parent=1 // pred_check
      _
    $region111: #{model_forward.3} parent=1 // pred_check_branch
      %90 = sbr.rel (0) target = $region113
    $region112: #{model_forward.3} parent=1 // pred_region
      %s92 = ssub.s32 16, 16
      %93 = vsyncadd [#allocation3], %s92
      %s95 = sshll.u32 [#allocation2], 4
      %s96 = int_to_ptr.vmem [resolvable:$true] %s95
      %98 = dma.hbm_to_vmem [thread:$0]  %s27, 16, %s96, [#allocation3]
    $region113: #{model_forward.3} parent=1 // pred_fallthru
      _
    // Predicated region
    $region114: #{model_forward.3} parent=1 // pred_check
      _
    $region115: #{model_forward.3} parent=1 // pred_check_branch
      %100 = sbr.rel (0) target = $region117
    $region116: #{model_forward.3} parent=1 // pred_region
      %101 = dma.done [#allocation3], 16
    $region117: #{model_forward.3} parent=1 // pred_fallthru
      _
    %v102 = vlaneseq
    %v103 = vand.u32 %v102, 127
    %vm104 = vcmp.ge.s32.totalorder %v103, 0
    %vm105 = vcmp.lt.s32.totalorder %v103, 12
    %vm106 = vmand %vm104, %vm105
    %v107 = vsel %vm106, 1, 0
    %v108 = vcvt.s32.f32 %v107
    %vm109 = vcmp.ge.s32.totalorder %v103, 12
    %vm110 = vcmp.lt.s32.totalorder %v103, 24
    %vm111 = vmand %vm109, %vm110
    %v112 = vsel %vm111, 1, 0
    %v113 = vcvt.s32.f32 %v112
    %vm114 = vcmp.ge.s32.totalorder %v103, 24
    %vm115 = vcmp.lt.s32.totalorder %v103, 36
    %vm116 = vmand %vm114, %vm115
    %v117 = vsel %vm116, 1, 0
    %v118 = vcvt.s32.f32 %v117
    %vm119 = vcmp.ge.s32.totalorder %v103, 36
    %vm120 = vcmp.lt.s32.totalorder %v103, 48
    %vm121 = vmand %vm119, %vm120
    %v122 = vsel %vm121, 1, 0
    %v123 = vcvt.s32.f32 %v122
    %v124 = vld [vmem:[%s2] sm:$0xff]
    %v125 = vld [vmem:[%s2 + $0x8] sm:$0xff]
    %v126 = vld [vmem:[%s0] sm:$0xff]
    %v127 = vld [vmem:[%s0 + $0x8] sm:$0xff]
    %v128 = vld [vmem:[%s0 + $0x10] sm:$0xff]
    %v129 = vld [vmem:[%s0 + $0x18] sm:$0xff]
    %v130 = vld [vmem:[%s4] sm:$0xff]
    %v131 = vld [vmem:[%s4 + $0x8] sm:$0xff]
    %v132 = vld [vmem:[%s4 + $0x10] sm:$0xff]
    %v133 = vld [vmem:[%s4 + $0x18] sm:$0xff]
    %v134 = vld [vmem:[%s4 + $0x20] sm:$0xff]
    %v135 = vld [vmem:[%s4 + $0x28] sm:$0xff]
    %v136 = vld [vmem:[%s4 + $0x30] sm:$0xff]
    %v137 = vld [vmem:[%s4 + $0x38] sm:$0xff]
    %v138 = vld [vmem:[%s4 + $0x40] sm:$0xff]
    %v139 = vld [vmem:[%s4 + $0x48] sm:$0xff]
    %v140 = vld [vmem:[%s4 + $0x50] sm:$0xff]
    %v141 = vld [vmem:[%s4 + $0x58] sm:$0xff]
    %v142 = vld [vmem:[%s4 + $0x60] sm:$0xff]
    %v143 = vld [vmem:[%s4 + $0x68] sm:$0xff]
    %v144 = vld [vmem:[%s4 + $0x70] sm:$0xff]
    %v145 = vld [vmem:[%s4 + $0x78] sm:$0xff]
    %v146 = vld [vmem:[%s4 + $0x80] sm:$0xff]
    %v147 = vld [vmem:[%s4 + $0x88] sm:$0xff]
    %v148 = vld [vmem:[%s4 + $0x90] sm:$0xff]
    %v149 = vld [vmem:[%s4 + $0x98] sm:$0xff]
    %v150 = vld [vmem:[%s4 + $0xa0] sm:$0xff]
    %v151 = vld [vmem:[%s4 + $0xa8] sm:$0xff]
    %v152 = vld [vmem:[%s4 + $0xb0] sm:$0xff]
    %v153 = vld [vmem:[%s4 + $0xb8] sm:$0xff]
    %v154 = vld [vmem:[%s1] sm:$0xff]
    %v155 = vld [vmem:[%s1 + $0x8] sm:$0xff]
    %vm156 = vcmask 523264
    %v158 = vsel %vm156, %v127, 0
    %v161 = vsel %vm156, %v129, 0
    %163 = vmatprep.subr.mxu0 0.0
    %164 = vmatpush1.msra.mxu0 %v145
    %165 = vmatprep.subr.mxu0 0.0
    %166 = vmatpush1.msra.mxu0 %v144
    %167 = vmatprep.subr.mxu0 0.0
    %168 = vmatpush1.msra.mxu0 %v143
    %169 = vmatprep.subr.mxu0 0.0
    %170 = vmatpush1.msra.mxu0 %v142
    %171 = vmatprep.subr.mxu0 0.0
    %172 = vmatpush1.msra.mxu0 %v141
    %173 = vmatprep.subr.mxu0 0.0
    %174 = vmatpush1.msra.mxu0 %v140
    %175 = vmatprep.subr.mxu0 0.0
    %176 = vmatpush1.msra.mxu0 %v139
    %177 = vmatprep.subr.mxu0 0.0
    %178 = vmatpush1.msra.mxu0 %v138
    %179 = vmatprep.subr.mxu0 0.0
    %180 = vmatpush1.msra.mxu0 %v137
    %181 = vmatprep.subr.mxu0 0.0
    %182 = vmatpush1.msra.mxu0 %v136
    %183 = vmatprep.subr.mxu0 0.0
    %184 = vmatpush1.msra.mxu0 %v135
    %185 = vmatprep.subr.mxu0 0.0
    %186 = vmatpush1.msra.mxu0 %v134
    %187 = vmatprep.subr.mxu0 0.0
    %188 = vmatpush1.msra.mxu0 %v133
    %189 = vmatprep.subr.mxu0 0.0
    %190 = vmatpush1.msra.mxu0 %v132
    %191 = vmatprep.subr.mxu0 0.0
    %192 = vmatpush1.msra.mxu0 %v131
    %193 = vmatprep.subr.mxu0 0.0
    %194 = vmatpush1.msra.mxu0 %v130
    %195 = vmatprep.subr.mxu0 0.0
    %196 = vmatpush2.msra.mxu0 0.0
    %197 = vmatprep.subr.mxu0 0.0
    %198 = vmatpush2.msra.mxu0 0.0
    %199 = vmatprep.subr.mxu0 0.0
    %200 = vmatpush2.msra.mxu0 0.0
    %201 = vmatprep.subr.mxu0 0.0
    %202 = vmatpush2.msra.mxu0 0.0
    %203 = vmatprep.subr.mxu0 0.0
    %204 = vmatpush2.msra.mxu0 0.0
    %205 = vmatprep.subr.mxu0 0.0
    %206 = vmatpush2.msra.mxu0 0.0
    %207 = vmatprep.subr.mxu0 0.0
    %208 = vmatpush2.msra.mxu0 0.0
    %209 = vmatprep.subr.mxu0 0.0
    %210 = vmatpush2.msra.mxu0 0.0
    %211 = vmatprep.subr.mxu0 0.0
    %212 = vmatpush2.msra.mxu0 %v153
    %213 = vmatprep.subr.mxu0 0.0
    %214 = vmatpush2.msra.mxu0 %v152
    %215 = vmatprep.subr.mxu0 0.0
    %216 = vmatpush2.msra.mxu0 %v151
    %217 = vmatprep.subr.mxu0 0.0
    %218 = vmatpush2.msra.mxu0 %v150
    %219 = vmatprep.subr.mxu0 0.0
    %220 = vmatpush2.msra.mxu0 %v149
    %221 = vmatprep.subr.mxu0 0.0
    %222 = vmatpush2.msra.mxu0 %v148
    %223 = vmatprep.subr.mxu0 0.0
    %224 = vmatpush2.msra.mxu0 %v147
    %225 = vmatprep.subr.mxu0 0.0
    %226 = vmatpush2.msra.mxu0 %v146
    %227 = vmatprep.mubr.f32.mxu0 %v158
    %228 = vmatmul.mubr.f32.gmra.mxu0 %v126
    %v229 = vpop.f32.mrf.mxu0
    %v230 = vadd.f32 %v154, %v229
    %v231 = vpop.f32.mrf.mxu0
    %232 = vmatprep.mubr.f32.mxu0 %v161
    %233 = vmatmul.mubr.f32.gmra.mxu0 %v128
    %v234 = vpop.f32.mrf.mxu0
    %v235 = vadd.f32 %v155, %v234
    %v236 = vpop.f32.mrf.mxu0
    %237 = vdwg.mxu0
    %v238 = vld [vmem:[%s5] sm:$0x1]
    %v239 = vld [vmem:[%s6] sm:$0x1]
    %vm240 = vcmask 392192
    %v241 = vsel %vm240, %v230, 0.0
    %242 = vadd.xlane.f32.xlu0 %v241
    %v243 = vpop.xlane.xlu0 %242
    %v244 = vsel %vm240, %v235, 0.0
    %245 = vadd.xlane.f32.xlu0 %v244
    %v246 = vpop.xlane.xlu0 %245
    %v247 = vrcp.pop 48.0
    %v248 = vmul.f32 %v243, %v247
    %v249 = vmul.f32 %v246, %v247
    %v250 = vsub.f32 %v230, %v248
    %v251 = vsub.f32 %v235, %v249
    %v252 = vmul.f32 %v250, %v250
    %v253 = vmul.f32 %v251, %v251
    %v254 = vsel %vm240, %v252, 0.0
    %255 = vadd.xlane.f32.xlu0 %v254
    %v256 = vpop.xlane.xlu0 %255
    %v257 = vsel %vm240, %v253, 0.0
    %258 = vadd.xlane.f32.xlu0 %v257
    %v259 = vpop.xlane.xlu0 %258
    %v260 = vmul.f32 %v256, %v247
    %v261 = vmul.f32 %v259, %v247
    %v262 = vadd.f32 %v260, 1e-05
    %v263 = vadd.f32 %v261, 1e-05
    %v264 = vrsqrt.pop %v262
    %v265 = vrsqrt.pop %v263
    %v266 = vmul.f32 %v250, %v264
    %v267 = vmul.f32 %v251, %v265
    %v269 = vlaneseq
    %v270 = vshrl.u32 %v269, 7
    %v271 = vsub.s32 0, %v270
    %v272 = vrot.slane %v238, %v271
    %v274 = vmul.f32 %v266, %v272
    %v275 = vmul.f32 %v267, %v272
    %v277 = vlaneseq
    %v278 = vshrl.u32 %v277, 7
    %v279 = vsub.s32 0, %v278
    %v280 = vrot.slane %v239, %v279
    %v282 = vadd.f32 %v274, %v280
    %v283 = vadd.f32 %v275, %v280
    %v284 = vld [vmem:[%s15] sm:$0x1]
    %v285 = vld [vmem:[%s16] sm:$0x1]
    %v286 = vsel %vm240, %v282, 0.0
    %287 = vadd.xlane.f32.xlu0 %v286
    %v288 = vpop.xlane.xlu0 %287
    %v289 = vsel %vm240, %v283, 0.0
    %290 = vadd.xlane.f32.xlu0 %v289
    %v291 = vpop.xlane.xlu0 %290
    %v292 = vmul.f32 %v288, %v247
    %v293 = vmul.f32 %v291, %v247
    %v294 = vsub.f32 %v282, %v292
    %v295 = vsub.f32 %v283, %v293
    %v296 = vmul.f32 %v294, %v294
    %v297 = vmul.f32 %v295, %v295
    %v298 = vsel %vm240, %v296, 0.0
    %299 = vadd.xlane.f32.xlu0 %v298
    %v300 = vpop.xlane.xlu0 %299
    %v301 = vsel %vm240, %v297, 0.0
    %302 = vadd.xlane.f32.xlu0 %v301
    %v303 = vpop.xlane.xlu0 %302
    %v304 = vmul.f32 %v300, %v247
    %v305 = vmul.f32 %v303, %v247
    %v306 = vadd.f32 %v304, 1e-05
    %v307 = vadd.f32 %v305, 1e-05
    %v308 = vrsqrt.pop %v306
    %v309 = vrsqrt.pop %v307
    %v310 = vmul.f32 %v294, %v308
    %v311 = vmul.f32 %v295, %v309
    %v313 = vlaneseq
    %v314 = vshrl.u32 %v313, 7
    %v315 = vsub.s32 0, %v314
    %v316 = vrot.slane %v284, %v315
    %v318 = vmul.f32 %v310, %v316
    %v319 = vmul.f32 %v311, %v316
    %v321 = vlaneseq
    %v322 = vshrl.u32 %v321, 7
    %v323 = vsub.s32 0, %v322
    %v324 = vrot.slane %v285, %v323
    %v326 = vadd.f32 %v318, %v324
    %v327 = vadd.f32 %v319, %v324
    %v328 = vld [vmem:[%s7] sm:$0xff]
    %v329 = vld [vmem:[%s7 + $0x8] sm:$0xff]
    %v330 = vld [vmem:[%s7 + $0x10] sm:$0xff]
    %v331 = vld [vmem:[%s7 + $0x18] sm:$0xff]
    %v332 = vld [vmem:[%s7 + $0x20] sm:$0xff]
    %v333 = vld [vmem:[%s7 + $0x28] sm:$0xff]
    %v334 = vld [vmem:[%s8] sm:$0x1]
    %v335 = vld [vmem:[%s9] sm:$0xff]
    %v336 = vld [vmem:[%s9 + $0x8] sm:$0xff]
    %v337 = vld [vmem:[%s9 + $0x10] sm:$0xff]
    %v338 = vld [vmem:[%s9 + $0x18] sm:$0xff]
    %v339 = vld [vmem:[%s9 + $0x20] sm:$0xff]
    %v340 = vld [vmem:[%s9 + $0x28] sm:$0xff]
    %v341 = vld [vmem:[%s10] sm:$0x1]
    %v342 = vld [vmem:[%s11] sm:$0xff]
    %v343 = vld [vmem:[%s11 + $0x8] sm:$0xff]
    %v344 = vld [vmem:[%s11 + $0x10] sm:$0xff]
    %v345 = vld [vmem:[%s11 + $0x18] sm:$0xff]
    %v346 = vld [vmem:[%s11 + $0x20] sm:$0xff]
    %v347 = vld [vmem:[%s11 + $0x28] sm:$0xff]
    %v348 = vld [vmem:[%s12] sm:$0x1]
    %v349 = vld [vmem:[%s13] sm:$0xff]
    %v350 = vld [vmem:[%s13 + $0x8] sm:$0xff]
    %v351 = vld [vmem:[%s13 + $0x10] sm:$0xff]
    %v352 = vld [vmem:[%s13 + $0x18] sm:$0xff]
    %v353 = vld [vmem:[%s13 + $0x20] sm:$0xff]
    %v354 = vld [vmem:[%s13 + $0x28] sm:$0xff]
    %v355 = vld [vmem:[%s14] sm:$0x1]
    %v357 = vlaneseq
    %v358 = vshrl.u32 %v357, 7
    %v359 = vsub.s32 0, %v358
    %v360 = vrot.slane %v334, %v359
    %v363 = vsel %vm240, %v326, 0
    %v366 = vsel %vm240, %v327, 0
    %368 = vmatprep.subr.mxu0 0.0
    %369 = vmatpush1.msra.mxu0 0.0
    %370 = vmatprep.subr.mxu0 0.0
    %371 = vmatpush1.msra.mxu0 0.0
    %372 = vmatprep.subr.mxu0 0.0
    %373 = vmatpush1.msra.mxu0 0.0
    %374 = vmatprep.subr.mxu0 0.0
    %375 = vmatpush1.msra.mxu0 0.0
    %376 = vmatprep.subr.mxu0 0.0
    %377 = vmatpush1.msra.mxu0 0.0
    %378 = vmatprep.subr.mxu0 0.0
    %379 = vmatpush1.msra.mxu0 0.0
    %380 = vmatprep.subr.mxu0 0.0
    %381 = vmatpush1.msra.mxu0 0.0
    %382 = vmatprep.subr.mxu0 0.0
    %383 = vmatpush1.msra.mxu0 0.0
    %384 = vmatprep.subr.mxu0 0.0
    %385 = vmatpush1.msra.mxu0 0.0
    %386 = vmatprep.subr.mxu0 0.0
    %387 = vmatpush1.msra.mxu0 0.0
    %388 = vmatprep.subr.mxu0 0.0
    %389 = vmatpush1.msra.mxu0 %v333
    %390 = vmatprep.subr.mxu0 0.0
    %391 = vmatpush1.msra.mxu0 %v332
    %392 = vmatprep.subr.mxu0 0.0
    %393 = vmatpush1.msra.mxu0 %v331
    %394 = vmatprep.subr.mxu0 0.0
    %395 = vmatpush1.msra.mxu0 %v330
    %396 = vmatprep.subr.mxu0 0.0
    %397 = vmatpush1.msra.mxu0 %v329
    %398 = vmatprep.subr.mxu0 0.0
    %399 = vmatpush1.msra.mxu0 %v328
    %400 = vmatprep.subr.mxu0 0.0
    %401 = vmatpush2.msra.mxu0 0.0
    %402 = vmatprep.subr.mxu0 0.0
    %403 = vmatpush2.msra.mxu0 0.0
    %404 = vmatprep.subr.mxu0 0.0
    %405 = vmatpush2.msra.mxu0 0.0
    %406 = vmatprep.subr.mxu0 0.0
    %407 = vmatpush2.msra.mxu0 0.0
    %408 = vmatprep.subr.mxu0 0.0
    %409 = vmatpush2.msra.mxu0 0.0
    %410 = vmatprep.subr.mxu0 0.0
    %411 = vmatpush2.msra.mxu0 0.0
    %412 = vmatprep.subr.mxu0 0.0
    %413 = vmatpush2.msra.mxu0 0.0
    %414 = vmatprep.subr.mxu0 0.0
    %415 = vmatpush2.msra.mxu0 0.0
    %416 = vmatprep.subr.mxu0 0.0
    %417 = vmatpush2.msra.mxu0 0.0
    %418 = vmatprep.subr.mxu0 0.0
    %419 = vmatpush2.msra.mxu0 0.0
    %420 = vmatprep.subr.mxu0 0.0
    %421 = vmatpush2.msra.mxu0 0.0
    %422 = vmatprep.subr.mxu0 0.0
    %423 = vmatpush2.msra.mxu0 0.0
    %424 = vmatprep.subr.mxu0 0.0
    %425 = vmatpush2.msra.mxu0 0.0
    %426 = vmatprep.subr.mxu0 0.0
    %427 = vmatpush2.msra.mxu0 0.0
    %428 = vmatprep.subr.mxu0 0.0
    %429 = vmatpush2.msra.mxu0 0.0
    %430 = vmatprep.subr.mxu0 0.0
    %431 = vmatpush2.msra.mxu0 0.0
    %432 = vmatprep.mubr.f32.mxu0 0.0
    %433 = vmatmul.mubr.f32.gmra.mxu0 %v363
    %v434 = vpop.f32.mrf.mxu0
    %v435 = vadd.f32 %v360, %v434
    %v436 = vpop.f32.mrf.mxu0
    %437 = vmatprep.mubr.f32.mxu0 0.0
    %438 = vmatmul.mubr.f32.gmra.mxu0 %v366
    %v439 = vpop.f32.mrf.mxu0
    %v440 = vadd.f32 %v360, %v439
    %v441 = vpop.f32.mrf.mxu0
    %442 = vdwg.mxu0
    %v444 = vlaneseq
    %v445 = vshrl.u32 %v444, 7
    %v446 = vsub.s32 0, %v445
    %v447 = vrot.slane %v341, %v446
    %449 = vmatprep.subr.mxu0 0.0
    %450 = vmatpush1.msra.mxu0 0.0
    %451 = vmatprep.subr.mxu0 0.0
    %452 = vmatpush1.msra.mxu0 0.0
    %453 = vmatprep.subr.mxu0 0.0
    %454 = vmatpush1.msra.mxu0 0.0
    %455 = vmatprep.subr.mxu0 0.0
    %456 = vmatpush1.msra.mxu0 0.0
    %457 = vmatprep.subr.mxu0 0.0
    %458 = vmatpush1.msra.mxu0 0.0
    %459 = vmatprep.subr.mxu0 0.0
    %460 = vmatpush1.msra.mxu0 0.0
    %461 = vmatprep.subr.mxu0 0.0
    %462 = vmatpush1.msra.mxu0 0.0
    %463 = vmatprep.subr.mxu0 0.0
    %464 = vmatpush1.msra.mxu0 0.0
    %465 = vmatprep.subr.mxu0 0.0
    %466 = vmatpush1.msra.mxu0 0.0
    %467 = vmatprep.subr.mxu0 0.0
    %468 = vmatpush1.msra.mxu0 0.0
    %469 = vmatprep.subr.mxu0 0.0
    %470 = vmatpush1.msra.mxu0 %v340
    %471 = vmatprep.subr.mxu0 0.0
    %472 = vmatpush1.msra.mxu0 %v339
    %473 = vmatprep.subr.mxu0 0.0
    %474 = vmatpush1.msra.mxu0 %v338
    %475 = vmatprep.subr.mxu0 0.0
    %476 = vmatpush1.msra.mxu0 %v337
    %477 = vmatprep.subr.mxu0 0.0
    %478 = vmatpush1.msra.mxu0 %v336
    %479 = vmatprep.subr.mxu0 0.0
    %480 = vmatpush1.msra.mxu0 %v335
    %481 = vmatprep.subr.mxu0 0.0
    %482 = vmatpush2.msra.mxu0 0.0
    %483 = vmatprep.subr.mxu0 0.0
    %484 = vmatpush2.msra.mxu0 0.0
    %485 = vmatprep.subr.mxu0 0.0
    %486 = vmatpush2.msra.mxu0 0.0
    %487 = vmatprep.subr.mxu0 0.0
    %488 = vmatpush2.msra.mxu0 0.0
    %489 = vmatprep.subr.mxu0 0.0
    %490 = vmatpush2.msra.mxu0 0.0
    %491 = vmatprep.subr.mxu0 0.0
    %492 = vmatpush2.msra.mxu0 0.0
    %493 = vmatprep.subr.mxu0 0.0
    %494 = vmatpush2.msra.mxu0 0.0
    %495 = vmatprep.subr.mxu0 0.0
    %496 = vmatpush2.msra.mxu0 0.0
    %497 = vmatprep.subr.mxu0 0.0
    %498 = vmatpush2.msra.mxu0 0.0
    %499 = vmatprep.subr.mxu0 0.0
    %500 = vmatpush2.msra.mxu0 0.0
    %501 = vmatprep.subr.mxu0 0.0
    %502 = vmatpush2.msra.mxu0 0.0
    %503 = vmatprep.subr.mxu0 0.0
    %504 = vmatpush2.msra.mxu0 0.0
    %505 = vmatprep.subr.mxu0 0.0
    %506 = vmatpush2.msra.mxu0 0.0
    %507 = vmatprep.subr.mxu0 0.0
    %508 = vmatpush2.msra.mxu0 0.0
    %509 = vmatprep.subr.mxu0 0.0
    %510 = vmatpush2.msra.mxu0 0.0
    %511 = vmatprep.subr.mxu0 0.0
    %512 = vmatpush2.msra.mxu0 0.0
    %513 = vmatprep.mubr.f32.mxu0 0.0
    %514 = vmatmul.mubr.f32.gmra.mxu0 %v363
    %v515 = vpop.f32.mrf.mxu0
    %v516 = vadd.f32 %v447, %v515
    %v517 = vpop.f32.mrf.mxu0
    %518 = vmatprep.mubr.f32.mxu0 0.0
    %519 = vmatmul.mubr.f32.gmra.mxu0 %v366
    %v520 = vpop.f32.mrf.mxu0
    %v521 = vadd.f32 %v447, %v520
    %v522 = vpop.f32.mrf.mxu0
    %523 = vdwg.mxu0
    %v525 = vlaneseq
    %v526 = vshrl.u32 %v525, 7
    %v527 = vsub.s32 0, %v526
    %v528 = vrot.slane %v348, %v527
    %530 = vmatprep.subr.mxu0 0.0
    %531 = vmatpush1.msra.mxu0 0.0
    %532 = vmatprep.subr.mxu0 0.0
    %533 = vmatpush1.msra.mxu0 0.0
    %534 = vmatprep.subr.mxu0 0.0
    %535 = vmatpush1.msra.mxu0 0.0
    %536 = vmatprep.subr.mxu0 0.0
    %537 = vmatpush1.msra.mxu0 0.0
    %538 = vmatprep.subr.mxu0 0.0
    %539 = vmatpush1.msra.mxu0 0.0
    %540 = vmatprep.subr.mxu0 0.0
    %541 = vmatpush1.msra.mxu0 0.0
    %542 = vmatprep.subr.mxu0 0.0
    %543 = vmatpush1.msra.mxu0 0.0
    %544 = vmatprep.subr.mxu0 0.0
    %545 = vmatpush1.msra.mxu0 0.0
    %546 = vmatprep.subr.mxu0 0.0
    %547 = vmatpush1.msra.mxu0 0.0
    %548 = vmatprep.subr.mxu0 0.0
    %549 = vmatpush1.msra.mxu0 0.0
    %550 = vmatprep.subr.mxu0 0.0
    %551 = vmatpush1.msra.mxu0 %v347
    %552 = vmatprep.subr.mxu0 0.0
    %553 = vmatpush1.msra.mxu0 %v346
    %554 = vmatprep.subr.mxu0 0.0
    %555 = vmatpush1.msra.mxu0 %v345
    %556 = vmatprep.subr.mxu0 0.0
    %557 = vmatpush1.msra.mxu0 %v344
    %558 = vmatprep.subr.mxu0 0.0
    %559 = vmatpush1.msra.mxu0 %v343
    %560 = vmatprep.subr.mxu0 0.0
    %561 = vmatpush1.msra.mxu0 %v342
    %562 = vmatprep.subr.mxu0 0.0
    %563 = vmatpush2.msra.mxu0 0.0
    %564 = vmatprep.subr.mxu0 0.0
    %565 = vmatpush2.msra.mxu0 0.0
    %566 = vmatprep.subr.mxu0 0.0
    %567 = vmatpush2.msra.mxu0 0.0
    %568 = vmatprep.subr.mxu0 0.0
    %569 = vmatpush2.msra.mxu0 0.0
    %570 = vmatprep.subr.mxu0 0.0
    %571 = vmatpush2.msra.mxu0 0.0
    %572 = vmatprep.subr.mxu0 0.0
    %573 = vmatpush2.msra.mxu0 0.0
    %574 = vmatprep.subr.mxu0 0.0
    %575 = vmatpush2.msra.mxu0 0.0
    %576 = vmatprep.subr.mxu0 0.0
    %577 = vmatpush2.msra.mxu0 0.0
    %578 = vmatprep.subr.mxu0 0.0
    %579 = vmatpush2.msra.mxu0 0.0
    %580 = vmatprep.subr.mxu0 0.0
    %581 = vmatpush2.msra.mxu0 0.0
    %582 = vmatprep.subr.mxu0 0.0
    %583 = vmatpush2.msra.mxu0 0.0
    %584 = vmatprep.subr.mxu0 0.0
    %585 = vmatpush2.msra.mxu0 0.0
    %586 = vmatprep.subr.mxu0 0.0
    %587 = vmatpush2.msra.mxu0 0.0
    %588 = vmatprep.subr.mxu0 0.0
    %589 = vmatpush2.msra.mxu0 0.0
    %590 = vmatprep.subr.mxu0 0.0
    %591 = vmatpush2.msra.mxu0 0.0
    %592 = vmatprep.subr.mxu0 0.0
    %593 = vmatpush2.msra.mxu0 0.0
    %594 = vmatprep.mubr.f32.mxu0 0.0
    %595 = vmatmul.mubr.f32.gmra.mxu0 %v363
    %v596 = vpop.f32.mrf.mxu0
    %v597 = vadd.f32 %v528, %v596
    %v598 = vpop.f32.mrf.mxu0
    %599 = vmatprep.mubr.f32.mxu0 0.0
    %600 = vmatmul.mubr.f32.gmra.mxu0 %v366
    %v601 = vpop.f32.mrf.mxu0
    %v602 = vadd.f32 %v528, %v601
    %v603 = vpop.f32.mrf.mxu0
    %604 = vdwg.mxu0
    %v605 = vmul.f32 %v516, %v108
    %v606 = vmul.f32 %v521, %v108
    %v607 = vmul.f32 %v597, %v108
    %v608 = vmul.f32 %v602, %v108
    %v610 = vsel %vm240, %v435, 0
    %v613 = vsel %vm240, %v440, 0
    %v616 = vsel %vm240, %v605, 0
    %v619 = vsel %vm240, %v606, 0
    %621 = vmatprep.subr.mxu0 0.0
    %622 = vmatpush1.xpose.msra.mxu0 0.0
    %623 = vmatprep.subr.mxu0 0.0
    %624 = vmatpush1.xpose.msra.mxu0 0.0
    %625 = vmatprep.subr.mxu0 0.0
    %626 = vmatpush1.xpose.msra.mxu0 0.0
    %627 = vmatprep.subr.mxu0 0.0
    %628 = vmatpush1.xpose.msra.mxu0 0.0
    %629 = vmatprep.subr.mxu0 0.0
    %630 = vmatpush1.xpose.msra.mxu0 0.0
    %631 = vmatprep.subr.mxu0 0.0
    %632 = vmatpush1.xpose.msra.mxu0 0.0
    %633 = vmatprep.subr.mxu0 0.0
    %634 = vmatpush1.xpose.msra.mxu0 0.0
    %635 = vmatprep.subr.mxu0 0.0
    %636 = vmatpush1.xpose.msra.mxu0 0.0
    %637 = vmatprep.subr.mxu0 0.0
    %638 = vmatpush1.xpose.msra.mxu0 0.0
    %639 = vmatprep.subr.mxu0 0.0
    %640 = vmatpush1.xpose.msra.mxu0 0.0
    %641 = vmatprep.subr.mxu0 0.0
    %642 = vmatpush1.xpose.msra.mxu0 0.0
    %643 = vmatprep.subr.mxu0 0.0
    %644 = vmatpush1.xpose.msra.mxu0 0.0
    %645 = vmatprep.subr.mxu0 0.0
    %646 = vmatpush1.xpose.msra.mxu0 0.0
    %647 = vmatprep.subr.mxu0 0.0
    %648 = vmatpush1.xpose.msra.mxu0 0.0
    %649 = vmatprep.subr.mxu0 0.0
    %650 = vmatpush1.xpose.msra.mxu0 %v619
    %651 = vmatprep.subr.mxu0 0.0
    %652 = vmatpush1.xpose.msra.mxu0 %v616
    %653 = vmatprep.subr.mxu0 0.0
    %654 = vmatpush2.xpose.msra.mxu0 0.0
    %655 = vmatprep.subr.mxu0 0.0
    %656 = vmatpush2.xpose.msra.mxu0 0.0
    %657 = vmatprep.subr.mxu0 0.0
    %658 = vmatpush2.xpose.msra.mxu0 0.0
    %659 = vmatprep.subr.mxu0 0.0
    %660 = vmatpush2.xpose.msra.mxu0 0.0
    %661 = vmatprep.subr.mxu0 0.0
    %662 = vmatpush2.xpose.msra.mxu0 0.0
    %663 = vmatprep.subr.mxu0 0.0
    %664 = vmatpush2.xpose.msra.mxu0 0.0
    %665 = vmatprep.subr.mxu0 0.0
    %666 = vmatpush2.xpose.msra.mxu0 0.0
    %667 = vmatprep.subr.mxu0 0.0
    %668 = vmatpush2.xpose.msra.mxu0 0.0
    %669 = vmatprep.subr.mxu0 0.0
    %670 = vmatpush2.xpose.msra.mxu0 0.0
    %671 = vmatprep.subr.mxu0 0.0
    %672 = vmatpush2.xpose.msra.mxu0 0.0
    %673 = vmatprep.subr.mxu0 0.0
    %674 = vmatpush2.xpose.msra.mxu0 0.0
    %675 = vmatprep.subr.mxu0 0.0
    %676 = vmatpush2.xpose.msra.mxu0 0.0
    %677 = vmatprep.subr.mxu0 0.0
    %678 = vmatpush2.xpose.msra.mxu0 0.0
    %679 = vmatprep.subr.mxu0 0.0
    %680 = vmatpush2.xpose.msra.mxu0 0.0
    %681 = vmatprep.subr.mxu0 0.0
    %682 = vmatpush2.xpose.msra.mxu0 0.0
    %683 = vmatprep.subr.mxu0 0.0
    %684 = vmatpush2.xpose.msra.mxu0 0.0
    %685 = vmatprep.mubr.f32.mxu0 0.0
    %686 = vmatmul.mubr.f32.gmra.mxu0 %v610
    %v687 = vpop.f32.mrf.mxu0
    %v688 = vadd.f32 0.0, %v687
    %v689 = vpop.f32.mrf.mxu0
    %690 = vmatprep.mubr.f32.mxu0 0.0
    %691 = vmatmul.mubr.f32.gmra.mxu0 %v613
    %v692 = vpop.f32.mrf.mxu0
    %v693 = vadd.f32 0.0, %v692
    %v694 = vpop.f32.mrf.mxu0
    %695 = vdwg.mxu0
    %v696 = vmul.f32 %v688, 0.28867513
    %v697 = vmul.f32 %v693, 0.28867513
    %v698 = vadd.f32 %v696, %v124
    %v699 = vadd.f32 %v697, %v125
    %vm700 = vcmask 130048
    %v701 = vsel %vm700, %v698, -inf
    %702 = vmax.xlane.f32.xlu0 %v701
    %v703 = vpop.xlane.xlu0 %702
    %v704 = vsel %vm700, %v699, -inf
    %705 = vmax.xlane.f32.xlu0 %v704
    %v706 = vpop.xlane.xlu0 %705
    %v707 = vsub.f32 %v698, %v703
    %v708 = vsub.f32 %v699, %v706
    %v709 = vmul.f32 %v707, 1.442695
    %v710 = vpow.pop %v709
    %v711 = vmul.f32 %v708, 1.442695
    %v712 = vpow.pop %v711
    %v713 = vsel %vm700, %v710, 0.0
    %714 = vadd.xlane.f32.xlu0 %v713
    %v715 = vpop.xlane.xlu0 %714
    %v716 = vsel %vm700, %v712, 0.0
    %717 = vadd.xlane.f32.xlu0 %v716
    %v718 = vpop.xlane.xlu0 %717
    %v719 = vrcp.pop %v715
    %v720 = vmul.f32 %v710, %v719
    %v721 = vrcp.pop %v718
    %v722 = vmul.f32 %v712, %v721
    %v723 = vmul.f32 %v516, %v113
    %v724 = vmul.f32 %v521, %v113
    %v725 = vmul.f32 %v597, %v113
    %v726 = vmul.f32 %v602, %v113
    %v728 = vsel %vm240, %v723, 0
    %v731 = vsel %vm240, %v724, 0
    %733 = vmatprep.subr.mxu0 0.0
    %734 = vmatpush1.xpose.msra.mxu0 0.0
    %735 = vmatprep.subr.mxu0 0.0
    %736 = vmatpush1.xpose.msra.mxu0 0.0
    %737 = vmatprep.subr.mxu0 0.0
    %738 = vmatpush1.xpose.msra.mxu0 0.0
    %739 = vmatprep.subr.mxu0 0.0
    %740 = vmatpush1.xpose.msra.mxu0 0.0
    %741 = vmatprep.subr.mxu0 0.0
    %742 = vmatpush1.xpose.msra.mxu0 0.0
    %743 = vmatprep.subr.mxu0 0.0
    %744 = vmatpush1.xpose.msra.mxu0 0.0
    %745 = vmatprep.subr.mxu0 0.0
    %746 = vmatpush1.xpose.msra.mxu0 0.0
    %747 = vmatprep.subr.mxu0 0.0
    %748 = vmatpush1.xpose.msra.mxu0 0.0
    %749 = vmatprep.subr.mxu0 0.0
    %750 = vmatpush1.xpose.msra.mxu0 0.0
    %751 = vmatprep.subr.mxu0 0.0
    %752 = vmatpush1.xpose.msra.mxu0 0.0
    %753 = vmatprep.subr.mxu0 0.0
    %754 = vmatpush1.xpose.msra.mxu0 0.0
    %755 = vmatprep.subr.mxu0 0.0
    %756 = vmatpush1.xpose.msra.mxu0 0.0
    %757 = vmatprep.subr.mxu0 0.0
    %758 = vmatpush1.xpose.msra.mxu0 0.0
    %759 = vmatprep.subr.mxu0 0.0
    %760 = vmatpush1.xpose.msra.mxu0 0.0
    %761 = vmatprep.subr.mxu0 0.0
    %762 = vmatpush1.xpose.msra.mxu0 %v731
    %763 = vmatprep.subr.mxu0 0.0
    %764 = vmatpush1.xpose.msra.mxu0 %v728
    %765 = vmatprep.subr.mxu0 0.0
    %766 = vmatpush2.xpose.msra.mxu0 0.0
    %767 = vmatprep.subr.mxu0 0.0
    %768 = vmatpush2.xpose.msra.mxu0 0.0
    %769 = vmatprep.subr.mxu0 0.0
    %770 = vmatpush2.xpose.msra.mxu0 0.0
    %771 = vmatprep.subr.mxu0 0.0
    %772 = vmatpush2.xpose.msra.mxu0 0.0
    %773 = vmatprep.subr.mxu0 0.0
    %774 = vmatpush2.xpose.msra.mxu0 0.0
    %775 = vmatprep.subr.mxu0 0.0
    %776 = vmatpush2.xpose.msra.mxu0 0.0
    %777 = vmatprep.subr.mxu0 0.0
    %778 = vmatpush2.xpose.msra.mxu0 0.0
    %779 = vmatprep.subr.mxu0 0.0
    %780 = vmatpush2.xpose.msra.mxu0 0.0
    %781 = vmatprep.subr.mxu0 0.0
    %782 = vmatpush2.xpose.msra.mxu0 0.0
    %783 = vmatprep.subr.mxu0 0.0
    %784 = vmatpush2.xpose.msra.mxu0 0.0
    %785 = vmatprep.subr.mxu0 0.0
    %786 = vmatpush2.xpose.msra.mxu0 0.0
    %787 = vmatprep.subr.mxu0 0.0
    %788 = vmatpush2.xpose.msra.mxu0 0.0
    %789 = vmatprep.subr.mxu0 0.0
    %790 = vmatpush2.xpose.msra.mxu0 0.0
    %791 = vmatprep.subr.mxu0 0.0
    %792 = vmatpush2.xpose.msra.mxu0 0.0
    %793 = vmatprep.subr.mxu0 0.0
    %794 = vmatpush2.xpose.msra.mxu0 0.0
    %795 = vmatprep.subr.mxu0 0.0
    %796 = vmatpush2.xpose.msra.mxu0 0.0
    %797 = vmatprep.mubr.f32.mxu0 0.0
    %798 = vmatmul.mubr.f32.gmra.mxu0 %v610
    %v799 = vpop.f32.mrf.mxu0
    %v800 = vadd.f32 0.0, %v799
    %v801 = vpop.f32.mrf.mxu0
    %802 = vmatprep.mubr.f32.mxu0 0.0
    %803 = vmatmul.mubr.f32.gmra.mxu0 %v613
    %v804 = vpop.f32.mrf.mxu0
    %v805 = vadd.f32 0.0, %v804
    %v806 = vpop.f32.mrf.mxu0
    %807 = vdwg.mxu0
    %v808 = vmul.f32 %v800, 0.28867513
    %v809 = vmul.f32 %v805, 0.28867513
    %v810 = vadd.f32 %v808, %v124
    %v811 = vadd.f32 %v809, %v125
    %v812 = vsel %vm700, %v810, -inf
    %813 = vmax.xlane.f32.xlu0 %v812
    %v814 = vpop.xlane.xlu0 %813
    %v815 = vsel %vm700, %v811, -inf
    %816 = vmax.xlane.f32.xlu0 %v815
    %v817 = vpop.xlane.xlu0 %816
    %v818 = vsub.f32 %v810, %v814
    %v819 = vsub.f32 %v811, %v817
    %v820 = vmul.f32 %v818, 1.442695
    %v821 = vpow.pop %v820
    %v822 = vmul.f32 %v819, 1.442695
    %v823 = vpow.pop %v822
    %v824 = vsel %vm700, %v821, 0.0
    %825 = vadd.xlane.f32.xlu0 %v824
    %v826 = vpop.xlane.xlu0 %825
    %v827 = vsel %vm700, %v823, 0.0
    %828 = vadd.xlane.f32.xlu0 %v827
    %v829 = vpop.xlane.xlu0 %828
    %v830 = vrcp.pop %v826
    %v831 = vmul.f32 %v821, %v830
    %v832 = vrcp.pop %v829
    %v833 = vmul.f32 %v823, %v832
    %v835 = vsel %vm700, %v831, 0
    %v838 = vsel %vm700, %v833, 0
    %840 = vmatprep.subr.mxu0 0.0
    %841 = vmatpush1.msra.mxu0 0.0
    %842 = vmatprep.subr.mxu0 0.0
    %843 = vmatpush1.msra.mxu0 0.0
    %844 = vmatprep.subr.mxu0 0.0
    %845 = vmatpush1.msra.mxu0 0.0
    %846 = vmatprep.subr.mxu0 0.0
    %847 = vmatpush1.msra.mxu0 0.0
    %848 = vmatprep.subr.mxu0 0.0
    %849 = vmatpush1.msra.mxu0 0.0
    %850 = vmatprep.subr.mxu0 0.0
    %851 = vmatpush1.msra.mxu0 0.0
    %852 = vmatprep.subr.mxu0 0.0
    %853 = vmatpush1.msra.mxu0 0.0
    %854 = vmatprep.subr.mxu0 0.0
    %855 = vmatpush1.msra.mxu0 0.0
    %856 = vmatprep.subr.mxu0 0.0
    %857 = vmatpush1.msra.mxu0 0.0
    %858 = vmatprep.subr.mxu0 0.0
    %859 = vmatpush1.msra.mxu0 0.0
    %860 = vmatprep.subr.mxu0 0.0
    %861 = vmatpush1.msra.mxu0 0.0
    %862 = vmatprep.subr.mxu0 0.0
    %863 = vmatpush1.msra.mxu0 0.0
    %864 = vmatprep.subr.mxu0 0.0
    %865 = vmatpush1.msra.mxu0 0.0
    %866 = vmatprep.subr.mxu0 0.0
    %867 = vmatpush1.msra.mxu0 0.0
    %868 = vmatprep.subr.mxu0 0.0
    %869 = vmatpush1.msra.mxu0 %v726
    %870 = vmatprep.subr.mxu0 0.0
    %871 = vmatpush1.msra.mxu0 %v725
    %872 = vmatprep.subr.mxu0 0.0
    %873 = vmatpush2.msra.mxu0 0.0
    %874 = vmatprep.subr.mxu0 0.0
    %875 = vmatpush2.msra.mxu0 0.0
    %876 = vmatprep.subr.mxu0 0.0
    %877 = vmatpush2.msra.mxu0 0.0
    %878 = vmatprep.subr.mxu0 0.0
    %879 = vmatpush2.msra.mxu0 0.0
    %880 = vmatprep.subr.mxu0 0.0
    %881 = vmatpush2.msra.mxu0 0.0
    %882 = vmatprep.subr.mxu0 0.0
    %883 = vmatpush2.msra.mxu0 0.0
    %884 = vmatprep.subr.mxu0 0.0
    %885 = vmatpush2.msra.mxu0 0.0
    %886 = vmatprep.subr.mxu0 0.0
    %887 = vmatpush2.msra.mxu0 0.0
    %888 = vmatprep.subr.mxu0 0.0
    %889 = vmatpush2.msra.mxu0 0.0
    %890 = vmatprep.subr.mxu0 0.0
    %891 = vmatpush2.msra.mxu0 0.0
    %892 = vmatprep.subr.mxu0 0.0
    %893 = vmatpush2.msra.mxu0 0.0
    %894 = vmatprep.subr.mxu0 0.0
    %895 = vmatpush2.msra.mxu0 0.0
    %896 = vmatprep.subr.mxu0 0.0
    %897 = vmatpush2.msra.mxu0 0.0
    %898 = vmatprep.subr.mxu0 0.0
    %899 = vmatpush2.msra.mxu0 0.0
    %900 = vmatprep.subr.mxu0 0.0
    %901 = vmatpush2.msra.mxu0 0.0
    %902 = vmatprep.subr.mxu0 0.0
    %903 = vmatpush2.msra.mxu0 0.0
    %904 = vmatprep.mubr.f32.mxu0 0.0
    %905 = vmatmul.mubr.f32.gmra.mxu0 %v835
    %v906 = vpop.f32.mrf.mxu0
    %v907 = vadd.f32 0.0, %v906
    %v908 = vpop.f32.mrf.mxu0
    %909 = vmatprep.mubr.f32.mxu0 0.0
    %910 = vmatmul.mubr.f32.gmra.mxu0 %v838
    %v911 = vpop.f32.mrf.mxu0
    %v912 = vadd.f32 0.0, %v911
    %v913 = vpop.f32.mrf.mxu0
    %914 = vdwg.mxu0
    %v916 = vsel %vm700, %v720, 0
    %v919 = vsel %vm700, %v722, 0
    %921 = vmatprep.subr.mxu0 0.0
    %922 = vmatpush1.msra.mxu0 0.0
    %923 = vmatprep.subr.mxu0 0.0
    %924 = vmatpush1.msra.mxu0 0.0
    %925 = vmatprep.subr.mxu0 0.0
    %926 = vmatpush1.msra.mxu0 0.0
    %927 = vmatprep.subr.mxu0 0.0
    %928 = vmatpush1.msra.mxu0 0.0
    %929 = vmatprep.subr.mxu0 0.0
    %930 = vmatpush1.msra.mxu0 0.0
    %931 = vmatprep.subr.mxu0 0.0
    %932 = vmatpush1.msra.mxu0 0.0
    %933 = vmatprep.subr.mxu0 0.0
    %934 = vmatpush1.msra.mxu0 0.0
    %935 = vmatprep.subr.mxu0 0.0
    %936 = vmatpush1.msra.mxu0 0.0
    %937 = vmatprep.subr.mxu0 0.0
    %938 = vmatpush1.msra.mxu0 0.0
    %939 = vmatprep.subr.mxu0 0.0
    %940 = vmatpush1.msra.mxu0 0.0
    %941 = vmatprep.subr.mxu0 0.0
    %942 = vmatpush1.msra.mxu0 0.0
    %943 = vmatprep.subr.mxu0 0.0
    %944 = vmatpush1.msra.mxu0 0.0
    %945 = vmatprep.subr.mxu0 0.0
    %946 = vmatpush1.msra.mxu0 0.0
    %947 = vmatprep.subr.mxu0 0.0
    %948 = vmatpush1.msra.mxu0 0.0
    %949 = vmatprep.subr.mxu0 0.0
    %950 = vmatpush1.msra.mxu0 %v608
    %951 = vmatprep.subr.mxu0 0.0
    %952 = vmatpush1.msra.mxu0 %v607
    %953 = vmatprep.subr.mxu0 0.0
    %954 = vmatpush2.msra.mxu0 0.0
    %955 = vmatprep.subr.mxu0 0.0
    %956 = vmatpush2.msra.mxu0 0.0
    %957 = vmatprep.subr.mxu0 0.0
    %958 = vmatpush2.msra.mxu0 0.0
    %959 = vmatprep.subr.mxu0 0.0
    %960 = vmatpush2.msra.mxu0 0.0
    %961 = vmatprep.subr.mxu0 0.0
    %962 = vmatpush2.msra.mxu0 0.0
    %963 = vmatprep.subr.mxu0 0.0
    %964 = vmatpush2.msra.mxu0 0.0
    %965 = vmatprep.subr.mxu0 0.0
    %966 = vmatpush2.msra.mxu0 0.0
    %967 = vmatprep.subr.mxu0 0.0
    %968 = vmatpush2.msra.mxu0 0.0
    %969 = vmatprep.subr.mxu0 0.0
    %970 = vmatpush2.msra.mxu0 0.0
    %971 = vmatprep.subr.mxu0 0.0
    %972 = vmatpush2.msra.mxu0 0.0
    %973 = vmatprep.subr.mxu0 0.0
    %974 = vmatpush2.msra.mxu0 0.0
    %975 = vmatprep.subr.mxu0 0.0
    %976 = vmatpush2.msra.mxu0 0.0
    %977 = vmatprep.subr.mxu0 0.0
    %978 = vmatpush2.msra.mxu0 0.0
    %979 = vmatprep.subr.mxu0 0.0
    %980 = vmatpush2.msra.mxu0 0.0
    %981 = vmatprep.subr.mxu0 0.0
    %982 = vmatpush2.msra.mxu0 0.0
    %983 = vmatprep.subr.mxu0 0.0
    %984 = vmatpush2.msra.mxu0 0.0
    %985 = vmatprep.mubr.f32.mxu0 0.0
    %986 = vmatmul.mubr.f32.gmra.mxu0 %v916
    %v987 = vpop.f32.mrf.mxu0
    %v988 = vadd.f32 %v907, %v987
    %v989 = vpop.f32.mrf.mxu0
    %990 = vmatprep.mubr.f32.mxu0 0.0
    %991 = vmatmul.mubr.f32.gmra.mxu0 %v919
    %v992 = vpop.f32.mrf.mxu0
    %v993 = vadd.f32 %v912, %v992
    %v994 = vpop.f32.mrf.mxu0
    %995 = vdwg.mxu0
    %v996 = vmul.f32 %v516, %v118
    %v997 = vmul.f32 %v521, %v118
    %v998 = vmul.f32 %v597, %v118
    %v999 = vmul.f32 %v602, %v118
    %v1001 = vsel %vm240, %v996, 0
    %v1004 = vsel %vm240, %v997, 0
    %1006 = vmatprep.subr.mxu0 0.0
    %1007 = vmatpush1.xpose.msra.mxu0 0.0
    %1008 = vmatprep.subr.mxu0 0.0
    %1009 = vmatpush1.xpose.msra.mxu0 0.0
    %1010 = vmatprep.subr.mxu0 0.0
    %1011 = vmatpush1.xpose.msra.mxu0 0.0
    %1012 = vmatprep.subr.mxu0 0.0
    %1013 = vmatpush1.xpose.msra.mxu0 0.0
    %1014 = vmatprep.subr.mxu0 0.0
    %1015 = vmatpush1.xpose.msra.mxu0 0.0
    %1016 = vmatprep.subr.mxu0 0.0
    %1017 = vmatpush1.xpose.msra.mxu0 0.0
    %1018 = vmatprep.subr.mxu0 0.0
    %1019 = vmatpush1.xpose.msra.mxu0 0.0
    %1020 = vmatprep.subr.mxu0 0.0
    %1021 = vmatpush1.xpose.msra.mxu0 0.0
    %1022 = vmatprep.subr.mxu0 0.0
    %1023 = vmatpush1.xpose.msra.mxu0 0.0
    %1024 = vmatprep.subr.mxu0 0.0
    %1025 = vmatpush1.xpose.msra.mxu0 0.0
    %1026 = vmatprep.subr.mxu0 0.0
    %1027 = vmatpush1.xpose.msra.mxu0 0.0
    %1028 = vmatprep.subr.mxu0 0.0
    %1029 = vmatpush1.xpose.msra.mxu0 0.0
    %1030 = vmatprep.subr.mxu0 0.0
    %1031 = vmatpush1.xpose.msra.mxu0 0.0
    %1032 = vmatprep.subr.mxu0 0.0
    %1033 = vmatpush1.xpose.msra.mxu0 0.0
    %1034 = vmatprep.subr.mxu0 0.0
    %1035 = vmatpush1.xpose.msra.mxu0 %v1004
    %1036 = vmatprep.subr.mxu0 0.0
    %1037 = vmatpush1.xpose.msra.mxu0 %v1001
    %1038 = vmatprep.subr.mxu0 0.0
    %1039 = vmatpush2.xpose.msra.mxu0 0.0
    %1040 = vmatprep.subr.mxu0 0.0
    %1041 = vmatpush2.xpose.msra.mxu0 0.0
    %1042 = vmatprep.subr.mxu0 0.0
    %1043 = vmatpush2.xpose.msra.mxu0 0.0
    %1044 = vmatprep.subr.mxu0 0.0
    %1045 = vmatpush2.xpose.msra.mxu0 0.0
    %1046 = vmatprep.subr.mxu0 0.0
    %1047 = vmatpush2.xpose.msra.mxu0 0.0
    %1048 = vmatprep.subr.mxu0 0.0
    %1049 = vmatpush2.xpose.msra.mxu0 0.0
    %1050 = vmatprep.subr.mxu0 0.0
    %1051 = vmatpush2.xpose.msra.mxu0 0.0
    %1052 = vmatprep.subr.mxu0 0.0
    %1053 = vmatpush2.xpose.msra.mxu0 0.0
    %1054 = vmatprep.subr.mxu0 0.0
    %1055 = vmatpush2.xpose.msra.mxu0 0.0
    %1056 = vmatprep.subr.mxu0 0.0
    %1057 = vmatpush2.xpose.msra.mxu0 0.0
    %1058 = vmatprep.subr.mxu0 0.0
    %1059 = vmatpush2.xpose.msra.mxu0 0.0
    %1060 = vmatprep.subr.mxu0 0.0
    %1061 = vmatpush2.xpose.msra.mxu0 0.0
    %1062 = vmatprep.subr.mxu0 0.0
    %1063 = vmatpush2.xpose.msra.mxu0 0.0
    %1064 = vmatprep.subr.mxu0 0.0
    %1065 = vmatpush2.xpose.msra.mxu0 0.0
    %1066 = vmatprep.subr.mxu0 0.0
    %1067 = vmatpush2.xpose.msra.mxu0 0.0
    %1068 = vmatprep.subr.mxu0 0.0
    %1069 = vmatpush2.xpose.msra.mxu0 0.0
    %1070 = vmatprep.mubr.f32.mxu0 0.0
    %1071 = vmatmul.mubr.f32.gmra.mxu0 %v610
    %v1072 = vpop.f32.mrf.mxu0
    %v1073 = vadd.f32 0.0, %v1072
    %v1074 = vpop.f32.mrf.mxu0
    %1075 = vmatprep.mubr.f32.mxu0 0.0
    %1076 = vmatmul.mubr.f32.gmra.mxu0 %v613
    %v1077 = vpop.f32.mrf.mxu0
    %v1078 = vadd.f32 0.0, %v1077
    %v1079 = vpop.f32.mrf.mxu0
    %1080 = vdwg.mxu0
    %v1081 = vmul.f32 %v1073, 0.28867513
    %v1082 = vmul.f32 %v1078, 0.28867513
    %v1083 = vadd.f32 %v1081, %v124
    %v1084 = vadd.f32 %v1082, %v125
    %v1085 = vsel %vm700, %v1083, -inf
    %1086 = vmax.xlane.f32.xlu0 %v1085
    %v1087 = vpop.xlane.xlu0 %1086
    %v1088 = vsel %vm700, %v1084, -inf
    %1089 = vmax.xlane.f32.xlu0 %v1088
    %v1090 = vpop.xlane.xlu0 %1089
    %v1091 = vsub.f32 %v1083, %v1087
    %v1092 = vsub.f32 %v1084, %v1090
    %v1093 = vmul.f32 %v1091, 1.442695
    %v1094 = vpow.pop %v1093
    %v1095 = vmul.f32 %v1092, 1.442695
    %v1096 = vpow.pop %v1095
    %v1097 = vsel %vm700, %v1094, 0.0
    %1098 = vadd.xlane.f32.xlu0 %v1097
    %v1099 = vpop.xlane.xlu0 %1098
    %v1100 = vsel %vm700, %v1096, 0.0
    %1101 = vadd.xlane.f32.xlu0 %v1100
    %v1102 = vpop.xlane.xlu0 %1101
    %v1103 = vrcp.pop %v1099
    %v1104 = vmul.f32 %v1094, %v1103
    %v1105 = vrcp.pop %v1102
    %v1106 = vmul.f32 %v1096, %v1105
    %v1108 = vsel %vm700, %v1104, 0
    %v1111 = vsel %vm700, %v1106, 0
    %1113 = vmatprep.subr.mxu0 0.0
    %1114 = vmatpush1.msra.mxu0 0.0
    %1115 = vmatprep.subr.mxu0 0.0
    %1116 = vmatpush1.msra.mxu0 0.0
    %1117 = vmatprep.subr.mxu0 0.0
    %1118 = vmatpush1.msra.mxu0 0.0
    %1119 = vmatprep.subr.mxu0 0.0
    %1120 = vmatpush1.msra.mxu0 0.0
    %1121 = vmatprep.subr.mxu0 0.0
    %1122 = vmatpush1.msra.mxu0 0.0
    %1123 = vmatprep.subr.mxu0 0.0
    %1124 = vmatpush1.msra.mxu0 0.0
    %1125 = vmatprep.subr.mxu0 0.0
    %1126 = vmatpush1.msra.mxu0 0.0
    %1127 = vmatprep.subr.mxu0 0.0
    %1128 = vmatpush1.msra.mxu0 0.0
    %1129 = vmatprep.subr.mxu0 0.0
    %1130 = vmatpush1.msra.mxu0 0.0
    %1131 = vmatprep.subr.mxu0 0.0
    %1132 = vmatpush1.msra.mxu0 0.0
    %1133 = vmatprep.subr.mxu0 0.0
    %1134 = vmatpush1.msra.mxu0 0.0
    %1135 = vmatprep.subr.mxu0 0.0
    %1136 = vmatpush1.msra.mxu0 0.0
    %1137 = vmatprep.subr.mxu0 0.0
    %1138 = vmatpush1.msra.mxu0 0.0
    %1139 = vmatprep.subr.mxu0 0.0
    %1140 = vmatpush1.msra.mxu0 0.0
    %1141 = vmatprep.subr.mxu0 0.0
    %1142 = vmatpush1.msra.mxu0 %v999
    %1143 = vmatprep.subr.mxu0 0.0
    %1144 = vmatpush1.msra.mxu0 %v998
    %1145 = vmatprep.subr.mxu0 0.0
    %1146 = vmatpush2.msra.mxu0 0.0
    %1147 = vmatprep.subr.mxu0 0.0
    %1148 = vmatpush2.msra.mxu0 0.0
    %1149 = vmatprep.subr.mxu0 0.0
    %1150 = vmatpush2.msra.mxu0 0.0
    %1151 = vmatprep.subr.mxu0 0.0
    %1152 = vmatpush2.msra.mxu0 0.0
    %1153 = vmatprep.subr.mxu0 0.0
    %1154 = vmatpush2.msra.mxu0 0.0
    %1155 = vmatprep.subr.mxu0 0.0
    %1156 = vmatpush2.msra.mxu0 0.0
    %1157 = vmatprep.subr.mxu0 0.0
    %1158 = vmatpush2.msra.mxu0 0.0
    %1159 = vmatprep.subr.mxu0 0.0
    %1160 = vmatpush2.msra.mxu0 0.0
    %1161 = vmatprep.subr.mxu0 0.0
    %1162 = vmatpush2.msra.mxu0 0.0
    %1163 = vmatprep.subr.mxu0 0.0
    %1164 = vmatpush2.msra.mxu0 0.0
    %1165 = vmatprep.subr.mxu0 0.0
    %1166 = vmatpush2.msra.mxu0 0.0
    %1167 = vmatprep.subr.mxu0 0.0
    %1168 = vmatpush2.msra.mxu0 0.0
    %1169 = vmatprep.subr.mxu0 0.0
    %1170 = vmatpush2.msra.mxu0 0.0
    %1171 = vmatprep.subr.mxu0 0.0
    %1172 = vmatpush2.msra.mxu0 0.0
    %1173 = vmatprep.subr.mxu0 0.0
    %1174 = vmatpush2.msra.mxu0 0.0
    %1175 = vmatprep.subr.mxu0 0.0
    %1176 = vmatpush2.msra.mxu0 0.0
    %1177 = vmatprep.mubr.f32.mxu0 0.0
    %1178 = vmatmul.mubr.f32.gmra.mxu0 %v1108
    %v1179 = vpop.f32.mrf.mxu0
    %v1180 = vadd.f32 0.0, %v1179
    %v1181 = vpop.f32.mrf.mxu0
    %1182 = vmatprep.mubr.f32.mxu0 0.0
    %1183 = vmatmul.mubr.f32.gmra.mxu0 %v1111
    %v1184 = vpop.f32.mrf.mxu0
    %v1185 = vadd.f32 0.0, %v1184
    %v1186 = vpop.f32.mrf.mxu0
    %1187 = vdwg.mxu0
    %v1188 = vadd.f32 %v988, %v1180
    %v1189 = vadd.f32 %v993, %v1185
    %v1190 = vmul.f32 %v516, %v123
    %v1191 = vmul.f32 %v521, %v123
    %v1192 = vmul.f32 %v597, %v123
    %v1193 = vmul.f32 %v602, %v123
    %v1195 = vsel %vm240, %v1190, 0
    %v1198 = vsel %vm240, %v1191, 0
    %1200 = vmatprep.subr.mxu0 0.0
    %1201 = vmatpush1.xpose.msra.mxu0 0.0
    %1202 = vmatprep.subr.mxu0 0.0
    %1203 = vmatpush1.xpose.msra.mxu0 0.0
    %1204 = vmatprep.subr.mxu0 0.0
    %1205 = vmatpush1.xpose.msra.mxu0 0.0
    %1206 = vmatprep.subr.mxu0 0.0
    %1207 = vmatpush1.xpose.msra.mxu0 0.0
    %1208 = vmatprep.subr.mxu0 0.0
    %1209 = vmatpush1.xpose.msra.mxu0 0.0
    %1210 = vmatprep.subr.mxu0 0.0
    %1211 = vmatpush1.xpose.msra.mxu0 0.0
    %1212 = vmatprep.subr.mxu0 0.0
    %1213 = vmatpush1.xpose.msra.mxu0 0.0
    %1214 = vmatprep.subr.mxu0 0.0
    %1215 = vmatpush1.xpose.msra.mxu0 0.0
    %1216 = vmatprep.subr.mxu0 0.0
    %1217 = vmatpush1.xpose.msra.mxu0 0.0
    %1218 = vmatprep.subr.mxu0 0.0
    %1219 = vmatpush1.xpose.msra.mxu0 0.0
    %1220 = vmatprep.subr.mxu0 0.0
    %1221 = vmatpush1.xpose.msra.mxu0 0.0
    %1222 = vmatprep.subr.mxu0 0.0
    %1223 = vmatpush1.xpose.msra.mxu0 0.0
    %1224 = vmatprep.subr.mxu0 0.0
    %1225 = vmatpush1.xpose.msra.mxu0 0.0
    %1226 = vmatprep.subr.mxu0 0.0
    %1227 = vmatpush1.xpose.msra.mxu0 0.0
    %1228 = vmatprep.subr.mxu0 0.0
    %1229 = vmatpush1.xpose.msra.mxu0 %v1198
    %1230 = vmatprep.subr.mxu0 0.0
    %1231 = vmatpush1.xpose.msra.mxu0 %v1195
    %1232 = vmatprep.subr.mxu0 0.0
    %1233 = vmatpush2.xpose.msra.mxu0 0.0
    %1234 = vmatprep.subr.mxu0 0.0
    %1235 = vmatpush2.xpose.msra.mxu0 0.0
    %1236 = vmatprep.subr.mxu0 0.0
    %1237 = vmatpush2.xpose.msra.mxu0 0.0
    %1238 = vmatprep.subr.mxu0 0.0
    %1239 = vmatpush2.xpose.msra.mxu0 0.0
    %1240 = vmatprep.subr.mxu0 0.0
    %1241 = vmatpush2.xpose.msra.mxu0 0.0
    %1242 = vmatprep.subr.mxu0 0.0
    %1243 = vmatpush2.xpose.msra.mxu0 0.0
    %1244 = vmatprep.subr.mxu0 0.0
    %1245 = vmatpush2.xpose.msra.mxu0 0.0
    %1246 = vmatprep.subr.mxu0 0.0
    %1247 = vmatpush2.xpose.msra.mxu0 0.0
    %1248 = vmatprep.subr.mxu0 0.0
    %1249 = vmatpush2.xpose.msra.mxu0 0.0
    %1250 = vmatprep.subr.mxu0 0.0
    %1251 = vmatpush2.xpose.msra.mxu0 0.0
    %1252 = vmatprep.subr.mxu0 0.0
    %1253 = vmatpush2.xpose.msra.mxu0 0.0
    %1254 = vmatprep.subr.mxu0 0.0
    %1255 = vmatpush2.xpose.msra.mxu0 0.0
    %1256 = vmatprep.subr.mxu0 0.0
    %1257 = vmatpush2.xpose.msra.mxu0 0.0
    %1258 = vmatprep.subr.mxu0 0.0
    %1259 = vmatpush2.xpose.msra.mxu0 0.0
    %1260 = vmatprep.subr.mxu0 0.0
    %1261 = vmatpush2.xpose.msra.mxu0 0.0
    %1262 = vmatprep.subr.mxu0 0.0
    %1263 = vmatpush2.xpose.msra.mxu0 0.0
    %1264 = vmatprep.mubr.f32.mxu0 0.0
    %1265 = vmatmul.mubr.f32.gmra.mxu0 %v610
    %v1266 = vpop.f32.mrf.mxu0
    %v1267 = vadd.f32 0.0, %v1266
    %v1268 = vpop.f32.mrf.mxu0
    %1269 = vmatprep.mubr.f32.mxu0 0.0
    %1270 = vmatmul.mubr.f32.gmra.mxu0 %v613
    %v1271 = vpop.f32.mrf.mxu0
    %v1272 = vadd.f32 0.0, %v1271
    %v1273 = vpop.f32.mrf.mxu0
    %1274 = vdwg.mxu0
    %v1275 = vmul.f32 %v1267, 0.28867513
    %v1276 = vmul.f32 %v1272, 0.28867513
    %v1277 = vadd.f32 %v1275, %v124
    %v1278 = vadd.f32 %v1276, %v125
    %v1279 = vsel %vm700, %v1277, -inf
    %1280 = vmax.xlane.f32.xlu0 %v1279
    %v1281 = vpop.xlane.xlu0 %1280
    %v1282 = vsel %vm700, %v1278, -inf
    %1283 = vmax.xlane.f32.xlu0 %v1282
    %v1284 = vpop.xlane.xlu0 %1283
    %v1285 = vsub.f32 %v1277, %v1281
    %v1286 = vsub.f32 %v1278, %v1284
    %v1287 = vmul.f32 %v1285, 1.442695
    %v1288 = vpow.pop %v1287
    %v1289 = vmul.f32 %v1286, 1.442695
    %v1290 = vpow.pop %v1289
    %v1291 = vsel %vm700, %v1288, 0.0
    %1292 = vadd.xlane.f32.xlu0 %v1291
    %v1293 = vpop.xlane.xlu0 %1292
    %v1294 = vsel %vm700, %v1290, 0.0
    %1295 = vadd.xlane.f32.xlu0 %v1294
    %v1296 = vpop.xlane.xlu0 %1295
    %v1297 = vrcp.pop %v1293
    %v1298 = vmul.f32 %v1288, %v1297
    %v1299 = vrcp.pop %v1296
    %v1300 = vmul.f32 %v1290, %v1299
    %v1302 = vsel %vm700, %v1298, 0
    %v1305 = vsel %vm700, %v1300, 0
    %1307 = vmatprep.subr.mxu0 0.0
    %1308 = vmatpush1.msra.mxu0 0.0
    %1309 = vmatprep.subr.mxu0 0.0
    %1310 = vmatpush1.msra.mxu0 0.0
    %1311 = vmatprep.subr.mxu0 0.0
    %1312 = vmatpush1.msra.mxu0 0.0
    %1313 = vmatprep.subr.mxu0 0.0
    %1314 = vmatpush1.msra.mxu0 0.0
    %1315 = vmatprep.subr.mxu0 0.0
    %1316 = vmatpush1.msra.mxu0 0.0
    %1317 = vmatprep.subr.mxu0 0.0
    %1318 = vmatpush1.msra.mxu0 0.0
    %1319 = vmatprep.subr.mxu0 0.0
    %1320 = vmatpush1.msra.mxu0 0.0
    %1321 = vmatprep.subr.mxu0 0.0
    %1322 = vmatpush1.msra.mxu0 0.0
    %1323 = vmatprep.subr.mxu0 0.0
    %1324 = vmatpush1.msra.mxu0 0.0
    %1325 = vmatprep.subr.mxu0 0.0
    %1326 = vmatpush1.msra.mxu0 0.0
    %1327 = vmatprep.subr.mxu0 0.0
    %1328 = vmatpush1.msra.mxu0 0.0
    %1329 = vmatprep.subr.mxu0 0.0
    %1330 = vmatpush1.msra.mxu0 0.0
    %1331 = vmatprep.subr.mxu0 0.0
    %1332 = vmatpush1.msra.mxu0 0.0
    %1333 = vmatprep.subr.mxu0 0.0
    %1334 = vmatpush1.msra.mxu0 0.0
    %1335 = vmatprep.subr.mxu0 0.0
    %1336 = vmatpush1.msra.mxu0 %v1193
    %1337 = vmatprep.subr.mxu0 0.0
    %1338 = vmatpush1.msra.mxu0 %v1192
    %1339 = vmatprep.subr.mxu0 0.0
    %1340 = vmatpush2.msra.mxu0 0.0
    %1341 = vmatprep.subr.mxu0 0.0
    %1342 = vmatpush2.msra.mxu0 0.0
    %1343 = vmatprep.subr.mxu0 0.0
    %1344 = vmatpush2.msra.mxu0 0.0
    %1345 = vmatprep.subr.mxu0 0.0
    %1346 = vmatpush2.msra.mxu0 0.0
    %1347 = vmatprep.subr.mxu0 0.0
    %1348 = vmatpush2.msra.mxu0 0.0
    %1349 = vmatprep.subr.mxu0 0.0
    %1350 = vmatpush2.msra.mxu0 0.0
    %1351 = vmatprep.subr.mxu0 0.0
    %1352 = vmatpush2.msra.mxu0 0.0
    %1353 = vmatprep.subr.mxu0 0.0
    %1354 = vmatpush2.msra.mxu0 0.0
    %1355 = vmatprep.subr.mxu0 0.0
    %1356 = vmatpush2.msra.mxu0 0.0
    %1357 = vmatprep.subr.mxu0 0.0
    %1358 = vmatpush2.msra.mxu0 0.0
    %1359 = vmatprep.subr.mxu0 0.0
    %1360 = vmatpush2.msra.mxu0 0.0
    %1361 = vmatprep.subr.mxu0 0.0
    %1362 = vmatpush2.msra.mxu0 0.0
    %1363 = vmatprep.subr.mxu0 0.0
    %1364 = vmatpush2.msra.mxu0 0.0
    %1365 = vmatprep.subr.mxu0 0.0
    %1366 = vmatpush2.msra.mxu0 0.0
    %1367 = vmatprep.subr.mxu0 0.0
    %1368 = vmatpush2.msra.mxu0 0.0
    %1369 = vmatprep.subr.mxu0 0.0
    %1370 = vmatpush2.msra.mxu0 0.0
    %1371 = vmatprep.mubr.f32.mxu0 0.0
    %1372 = vmatmul.mubr.f32.gmra.mxu0 %v1302
    %v1373 = vpop.f32.mrf.mxu0
    %v1374 = vadd.f32 0.0, %v1373
    %v1375 = vpop.f32.mrf.mxu0
    %1376 = vmatprep.mubr.f32.mxu0 0.0
    %1377 = vmatmul.mubr.f32.gmra.mxu0 %v1305
    %v1378 = vpop.f32.mrf.mxu0
    %v1379 = vadd.f32 0.0, %v1378
    %v1380 = vpop.f32.mrf.mxu0
    %1381 = vdwg.mxu0
    %v1382 = vadd.f32 %v1188, %v1374
    %v1383 = vadd.f32 %v1189, %v1379
    %v1385 = vlaneseq
    %v1386 = vshrl.u32 %v1385, 7
    %v1387 = vsub.s32 0, %v1386
    %v1388 = vrot.slane %v355, %v1387
    %v1391 = vsel %vm240, %v1382, 0
    %v1394 = vsel %vm240, %v1383, 0
    %1396 = vmatprep.subr.mxu0 0.0
    %1397 = vmatpush1.msra.mxu0 0.0
    %1398 = vmatprep.subr.mxu0 0.0
    %1399 = vmatpush1.msra.mxu0 0.0
    %1400 = vmatprep.subr.mxu0 0.0
    %1401 = vmatpush1.msra.mxu0 0.0
    %1402 = vmatprep.subr.mxu0 0.0
    %1403 = vmatpush1.msra.mxu0 0.0
    %1404 = vmatprep.subr.mxu0 0.0
    %1405 = vmatpush1.msra.mxu0 0.0
    %1406 = vmatprep.subr.mxu0 0.0
    %1407 = vmatpush1.msra.mxu0 0.0
    %1408 = vmatprep.subr.mxu0 0.0
    %1409 = vmatpush1.msra.mxu0 0.0
    %1410 = vmatprep.subr.mxu0 0.0
    %1411 = vmatpush1.msra.mxu0 0.0
    %1412 = vmatprep.subr.mxu0 0.0
    %1413 = vmatpush1.msra.mxu0 0.0
    %1414 = vmatprep.subr.mxu0 0.0
    %1415 = vmatpush1.msra.mxu0 0.0
    %1416 = vmatprep.subr.mxu0 0.0
    %1417 = vmatpush1.msra.mxu0 %v354
    %1418 = vmatprep.subr.mxu0 0.0
    %1419 = vmatpush1.msra.mxu0 %v353
    %1420 = vmatprep.subr.mxu0 0.0
    %1421 = vmatpush1.msra.mxu0 %v352
    %1422 = vmatprep.subr.mxu0 0.0
    %1423 = vmatpush1.msra.mxu0 %v351
    %1424 = vmatprep.subr.mxu0 0.0
    %1425 = vmatpush1.msra.mxu0 %v350
    %1426 = vmatprep.subr.mxu0 0.0
    %1427 = vmatpush1.msra.mxu0 %v349
    %1428 = vmatprep.subr.mxu0 0.0
    %1429 = vmatpush2.msra.mxu0 0.0
    %1430 = vmatprep.subr.mxu0 0.0
    %1431 = vmatpush2.msra.mxu0 0.0
    %1432 = vmatprep.subr.mxu0 0.0
    %1433 = vmatpush2.msra.mxu0 0.0
    %1434 = vmatprep.subr.mxu0 0.0
    %1435 = vmatpush2.msra.mxu0 0.0
    %1436 = vmatprep.subr.mxu0 0.0
    %1437 = vmatpush2.msra.mxu0 0.0
    %1438 = vmatprep.subr.mxu0 0.0
    %1439 = vmatpush2.msra.mxu0 0.0
    %1440 = vmatprep.subr.mxu0 0.0
    %1441 = vmatpush2.msra.mxu0 0.0
    %1442 = vmatprep.subr.mxu0 0.0
    %1443 = vmatpush2.msra.mxu0 0.0
    %1444 = vmatprep.subr.mxu0 0.0
    %1445 = vmatpush2.msra.mxu0 0.0
    %1446 = vmatprep.subr.mxu0 0.0
    %1447 = vmatpush2.msra.mxu0 0.0
    %1448 = vmatprep.subr.mxu0 0.0
    %1449 = vmatpush2.msra.mxu0 0.0
    %1450 = vmatprep.subr.mxu0 0.0
    %1451 = vmatpush2.msra.mxu0 0.0
    %1452 = vmatprep.subr.mxu0 0.0
    %1453 = vmatpush2.msra.mxu0 0.0
    %1454 = vmatprep.subr.mxu0 0.0
    %1455 = vmatpush2.msra.mxu0 0.0
    %1456 = vmatprep.subr.mxu0 0.0
    %1457 = vmatpush2.msra.mxu0 0.0
    %1458 = vmatprep.subr.mxu0 0.0
    %1459 = vmatpush2.msra.mxu0 0.0
    %1460 = vmatprep.mubr.f32.mxu0 0.0
    %1461 = vmatmul.mubr.f32.gmra.mxu0 %v1391
    %v1462 = vpop.f32.mrf.mxu0
    %v1463 = vadd.f32 %v1388, %v1462
    %v1464 = vpop.f32.mrf.mxu0
    %1465 = vmatprep.mubr.f32.mxu0 0.0
    %1466 = vmatmul.mubr.f32.gmra.mxu0 %v1394
    %v1467 = vpop.f32.mrf.mxu0
    %v1468 = vadd.f32 %v1388, %v1467
    %v1469 = vpop.f32.mrf.mxu0
    %1470 = vdwg.mxu0
    %v1471 = vadd.f32 %v282, %v1463
    %v1472 = vadd.f32 %v283, %v1468
    %v1473 = vld [vmem:[%s17] sm:$0x1]
    %v1474 = vld [vmem:[%s18] sm:$0x1]
    %v1475 = vsel %vm240, %v1471, 0.0
    %1476 = vadd.xlane.f32.xlu0 %v1475
    %v1477 = vpop.xlane.xlu0 %1476
    %v1478 = vsel %vm240, %v1472, 0.0
    %1479 = vadd.xlane.f32.xlu0 %v1478
    %v1480 = vpop.xlane.xlu0 %1479
    %v1481 = vmul.f32 %v1477, %v247
    %v1482 = vmul.f32 %v1480, %v247
    %v1483 = vsub.f32 %v1471, %v1481
    %v1484 = vsub.f32 %v1472, %v1482
    %v1485 = vmul.f32 %v1483, %v1483
    %v1486 = vmul.f32 %v1484, %v1484
    %v1487 = vsel %vm240, %v1485, 0.0
    %1488 = vadd.xlane.f32.xlu0 %v1487
    %v1489 = vpop.xlane.xlu0 %1488
    %v1490 = vsel %vm240, %v1486, 0.0
    %1491 = vadd.xlane.f32.xlu0 %v1490
    %v1492 = vpop.xlane.xlu0 %1491
    %v1493 = vmul.f32 %v1489, %v247
    %v1494 = vmul.f32 %v1492, %v247
    %v1495 = vadd.f32 %v1493, 1e-05
    %v1496 = vadd.f32 %v1494, 1e-05
    %v1497 = vrsqrt.pop %v1495
    %v1498 = vrsqrt.pop %v1496
    %v1499 = vmul.f32 %v1483, %v1497
    %v1500 = vmul.f32 %v1484, %v1498
    %v1502 = vlaneseq
    %v1503 = vshrl.u32 %v1502, 7
    %v1504 = vsub.s32 0, %v1503
    %v1505 = vrot.slane %v1473, %v1504
    %v1507 = vmul.f32 %v1499, %v1505
    %v1508 = vmul.f32 %v1500, %v1505
    %v1510 = vlaneseq
    %v1511 = vshrl.u32 %v1510, 7
    %v1512 = vsub.s32 0, %v1511
    %v1513 = vrot.slane %v1474, %v1512
    %v1515 = vadd.f32 %v1507, %v1513
    %v1516 = vadd.f32 %v1508, %v1513
    %v1517 = vld [vmem:[%s19] sm:$0xff]
    %v1518 = vld [vmem:[%s19 + $0x8] sm:$0xff]
    %v1519 = vld [vmem:[%s19 + $0x10] sm:$0xff]
    %v1520 = vld [vmem:[%s19 + $0x18] sm:$0xff]
    %v1521 = vld [vmem:[%s19 + $0x20] sm:$0xff]
    %v1522 = vld [vmem:[%s19 + $0x28] sm:$0xff]
    %v1523 = vld [vmem:[%s19 + $0x30] sm:$0xff]
    %v1524 = vld [vmem:[%s19 + $0x38] sm:$0xff]
    %v1525 = vld [vmem:[%s19 + $0x40] sm:$0xff]
    %v1526 = vld [vmem:[%s19 + $0x48] sm:$0xff]
    %v1527 = vld [vmem:[%s19 + $0x50] sm:$0xff]
    %v1528 = vld [vmem:[%s19 + $0x58] sm:$0xff]
    %v1529 = vld [vmem:[%s20] sm:$0x3]
    %v1531 = vlaneseq
    %v1532 = vshrl.u32 %v1531, 7
    %v1533 = vsub.s32 0, %v1532
    %v1534 = vrot.slane %v1529, %v1533
    %v1535 = vlaneseq
    %v1536 = vshrl.u32 %v1535, 7
    %v1537 = vsub.s32 1, %v1536
    %v1538 = vrot.slane %v1529, %v1537
    %v1542 = vsel %vm240, %v1515, 0
    %v1545 = vsel %vm240, %v1516, 0
    %1547 = vmatprep.subr.mxu0 0.0
    %1548 = vmatpush1.msra.mxu0 0.0
    %1549 = vmatprep.subr.mxu0 0.0
    %1550 = vmatpush1.msra.mxu0 0.0
    %1551 = vmatprep.subr.mxu0 0.0
    %1552 = vmatpush1.msra.mxu0 0.0
    %1553 = vmatprep.subr.mxu0 0.0
    %1554 = vmatpush1.msra.mxu0 0.0
    %1555 = vmatprep.subr.mxu0 0.0
    %1556 = vmatpush1.msra.mxu0 0.0
    %1557 = vmatprep.subr.mxu0 0.0
    %1558 = vmatpush1.msra.mxu0 0.0
    %1559 = vmatprep.subr.mxu0 0.0
    %1560 = vmatpush1.msra.mxu0 0.0
    %1561 = vmatprep.subr.mxu0 0.0
    %1562 = vmatpush1.msra.mxu0 0.0
    %1563 = vmatprep.subr.mxu0 0.0
    %1564 = vmatpush1.msra.mxu0 0.0
    %1565 = vmatprep.subr.mxu0 0.0
    %1566 = vmatpush1.msra.mxu0 0.0
    %1567 = vmatprep.subr.mxu0 %v1528
    %1568 = vmatpush1.msra.mxu0 %v1527
    %1569 = vmatprep.subr.mxu0 %v1526
    %1570 = vmatpush1.msra.mxu0 %v1525
    %1571 = vmatprep.subr.mxu0 %v1524
    %1572 = vmatpush1.msra.mxu0 %v1523
    %1573 = vmatprep.subr.mxu0 %v1522
    %1574 = vmatpush1.msra.mxu0 %v1521
    %1575 = vmatprep.subr.mxu0 %v1520
    %1576 = vmatpush1.msra.mxu0 %v1519
    %1577 = vmatprep.subr.mxu0 %v1518
    %1578 = vmatpush1.msra.mxu0 %v1517
    %1579 = vmatprep.subr.mxu0 0.0
    %1580 = vmatpush2.msra.mxu0 0.0
    %1581 = vmatprep.subr.mxu0 0.0
    %1582 = vmatpush2.msra.mxu0 0.0
    %1583 = vmatprep.subr.mxu0 0.0
    %1584 = vmatpush2.msra.mxu0 0.0
    %1585 = vmatprep.subr.mxu0 0.0
    %1586 = vmatpush2.msra.mxu0 0.0
    %1587 = vmatprep.subr.mxu0 0.0
    %1588 = vmatpush2.msra.mxu0 0.0
    %1589 = vmatprep.subr.mxu0 0.0
    %1590 = vmatpush2.msra.mxu0 0.0
    %1591 = vmatprep.subr.mxu0 0.0
    %1592 = vmatpush2.msra.mxu0 0.0
    %1593 = vmatprep.subr.mxu0 0.0
    %1594 = vmatpush2.msra.mxu0 0.0
    %1595 = vmatprep.subr.mxu0 0.0
    %1596 = vmatpush2.msra.mxu0 0.0
    %1597 = vmatprep.subr.mxu0 0.0
    %1598 = vmatpush2.msra.mxu0 0.0
    %1599 = vmatprep.subr.mxu0 0.0
    %1600 = vmatpush2.msra.mxu0 0.0
    %1601 = vmatprep.subr.mxu0 0.0
    %1602 = vmatpush2.msra.mxu0 0.0
    %1603 = vmatprep.subr.mxu0 0.0
    %1604 = vmatpush2.msra.mxu0 0.0
    %1605 = vmatprep.subr.mxu0 0.0
    %1606 = vmatpush2.msra.mxu0 0.0
    %1607 = vmatprep.subr.mxu0 0.0
    %1608 = vmatpush2.msra.mxu0 0.0
    %1609 = vmatprep.subr.mxu0 0.0
    %1610 = vmatpush2.msra.mxu0 0.0
    %1611 = vmatprep.mubr.f32.mxu0 0.0
    %1612 = vmatmul.mubr.f32.gmra.mxu0 %v1542
    %v1613 = vpop.f32.mrf.mxu0
    %v1614 = vadd.f32 %v1534, %v1613
    %v1615 = vpop.f32.mrf.mxu0
    %v1616 = vadd.f32 %v1538, %v1615
    %1617 = vmatprep.mubr.f32.mxu0 0.0
    %1618 = vmatmul.mubr.f32.gmra.mxu0 %v1545
    %v1619 = vpop.f32.mrf.mxu0
    %v1620 = vadd.f32 %v1534, %v1619
    %v1621 = vpop.f32.mrf.mxu0
    %v1622 = vadd.f32 %v1538, %v1621
    %1623 = vdwg.mxu0
    %v1624 = vmul.f32 %v1614, 1.702
    %v1625 = vmul.f32 %v1616, 1.702
    %v1626 = vmul.f32 %v1620, 1.702
    %v1627 = vmul.f32 %v1622, 1.702
    %v1628 = vxor.u32 %v1624, 2147483648
    %v1629 = vxor.u32 %v1625, 2147483648
    %v1630 = vxor.u32 %v1626, 2147483648
    %v1631 = vxor.u32 %v1627, 2147483648
    %v1632 = vmul.f32 %v1628, 1.442695
    %v1633 = vpow.pop %v1632
    %v1634 = vmul.f32 %v1629, 1.442695
    %v1635 = vpow.pop %v1634
    %v1636 = vmul.f32 %v1630, 1.442695
    %v1637 = vpow.pop %v1636
    %v1638 = vmul.f32 %v1631, 1.442695
    %v1639 = vpow.pop %v1638
    %v1640 = vadd.f32 %v1633, 1.0
    %v1641 = vadd.f32 %v1635, 1.0
    %v1642 = vadd.f32 %v1637, 1.0
    %v1643 = vadd.f32 %v1639, 1.0
    %v1644 = vrcp.pop %v1640
    %v1645 = vmul.f32 1.0, %v1644
    %v1646 = vrcp.pop %v1641
    %v1647 = vmul.f32 1.0, %v1646
    %v1648 = vrcp.pop %v1642
    %v1649 = vmul.f32 1.0, %v1648
    %v1650 = vrcp.pop %v1643
    %v1651 = vmul.f32 1.0, %v1650
    %v1652 = vmul.f32 %v1614, %v1645
    %v1653 = vmul.f32 %v1616, %v1647
    %v1654 = vmul.f32 %v1620, %v1649
    %v1655 = vmul.f32 %v1622, %v1651
    %v1656 = vld [vmem:[%s21] sm:$0xff]
    %v1657 = vld [vmem:[%s21 + $0x8] sm:$0xff]
    %v1658 = vld [vmem:[%s21 + $0x10] sm:$0xff]
    %v1659 = vld [vmem:[%s21 + $0x18] sm:$0xff]
    %v1660 = vld [vmem:[%s21 + $0x20] sm:$0xff]
    %v1661 = vld [vmem:[%s21 + $0x28] sm:$0xff]
    %v1662 = vld [vmem:[%s21 + $0x30] sm:$0xff]
    %v1663 = vld [vmem:[%s21 + $0x38] sm:$0xff]
    %v1664 = vld [vmem:[%s21 + $0x40] sm:$0xff]
    %v1665 = vld [vmem:[%s21 + $0x48] sm:$0xff]
    %v1666 = vld [vmem:[%s21 + $0x50] sm:$0xff]
    %v1667 = vld [vmem:[%s21 + $0x58] sm:$0xff]
    %v1668 = vld [vmem:[%s21 + $0x60] sm:$0xff]
    %v1669 = vld [vmem:[%s21 + $0x68] sm:$0xff]
    %v1670 = vld [vmem:[%s21 + $0x70] sm:$0xff]
    %v1671 = vld [vmem:[%s21 + $0x78] sm:$0xff]
    %v1672 = vld [vmem:[%s21 + $0x80] sm:$0xff]
    %v1673 = vld [vmem:[%s21 + $0x88] sm:$0xff]
    %v1674 = vld [vmem:[%s21 + $0x90] sm:$0xff]
    %v1675 = vld [vmem:[%s21 + $0x98] sm:$0xff]
    %v1676 = vld [vmem:[%s21 + $0xa0] sm:$0xff]
    %v1677 = vld [vmem:[%s21 + $0xa8] sm:$0xff]
    %v1678 = vld [vmem:[%s21 + $0xb0] sm:$0xff]
    %v1679 = vld [vmem:[%s21 + $0xb8] sm:$0xff]
    %v1680 = vld [vmem:[%s22] sm:$0x1]
    %v1682 = vlaneseq
    %v1683 = vshrl.u32 %v1682, 7
    %v1684 = vsub.s32 0, %v1683
    %v1685 = vrot.slane %v1680, %v1684
    %v1688 = vsel %vm156, %v1653, 0
    %v1691 = vsel %vm156, %v1655, 0
    %1693 = vmatprep.subr.mxu0 0.0
    %1694 = vmatpush1.msra.mxu0 %v1671
    %1695 = vmatprep.subr.mxu0 0.0
    %1696 = vmatpush1.msra.mxu0 %v1670
    %1697 = vmatprep.subr.mxu0 0.0
    %1698 = vmatpush1.msra.mxu0 %v1669
    %1699 = vmatprep.subr.mxu0 0.0
    %1700 = vmatpush1.msra.mxu0 %v1668
    %1701 = vmatprep.subr.mxu0 0.0
    %1702 = vmatpush1.msra.mxu0 %v1667
    %1703 = vmatprep.subr.mxu0 0.0
    %1704 = vmatpush1.msra.mxu0 %v1666
    %1705 = vmatprep.subr.mxu0 0.0
    %1706 = vmatpush1.msra.mxu0 %v1665
    %1707 = vmatprep.subr.mxu0 0.0
    %1708 = vmatpush1.msra.mxu0 %v1664
    %1709 = vmatprep.subr.mxu0 0.0
    %1710 = vmatpush1.msra.mxu0 %v1663
    %1711 = vmatprep.subr.mxu0 0.0
    %1712 = vmatpush1.msra.mxu0 %v1662
    %1713 = vmatprep.subr.mxu0 0.0
    %1714 = vmatpush1.msra.mxu0 %v1661
    %1715 = vmatprep.subr.mxu0 0.0
    %1716 = vmatpush1.msra.mxu0 %v1660
    %1717 = vmatprep.subr.mxu0 0.0
    %1718 = vmatpush1.msra.mxu0 %v1659
    %1719 = vmatprep.subr.mxu0 0.0
    %1720 = vmatpush1.msra.mxu0 %v1658
    %1721 = vmatprep.subr.mxu0 0.0
    %1722 = vmatpush1.msra.mxu0 %v1657
    %1723 = vmatprep.subr.mxu0 0.0
    %1724 = vmatpush1.msra.mxu0 %v1656
    %1725 = vmatprep.subr.mxu0 0.0
    %1726 = vmatpush2.msra.mxu0 0.0
    %1727 = vmatprep.subr.mxu0 0.0
    %1728 = vmatpush2.msra.mxu0 0.0
    %1729 = vmatprep.subr.mxu0 0.0
    %1730 = vmatpush2.msra.mxu0 0.0
    %1731 = vmatprep.subr.mxu0 0.0
    %1732 = vmatpush2.msra.mxu0 0.0
    %1733 = vmatprep.subr.mxu0 0.0
    %1734 = vmatpush2.msra.mxu0 0.0
    %1735 = vmatprep.subr.mxu0 0.0
    %1736 = vmatpush2.msra.mxu0 0.0
    %1737 = vmatprep.subr.mxu0 0.0
    %1738 = vmatpush2.msra.mxu0 0.0
    %1739 = vmatprep.subr.mxu0 0.0
    %1740 = vmatpush2.msra.mxu0 0.0
    %1741 = vmatprep.subr.mxu0 0.0
    %1742 = vmatpush2.msra.mxu0 %v1679
    %1743 = vmatprep.subr.mxu0 0.0
    %1744 = vmatpush2.msra.mxu0 %v1678
    %1745 = vmatprep.subr.mxu0 0.0
    %1746 = vmatpush2.msra.mxu0 %v1677
    %1747 = vmatprep.subr.mxu0 0.0
    %1748 = vmatpush2.msra.mxu0 %v1676
    %1749 = vmatprep.subr.mxu0 0.0
    %1750 = vmatpush2.msra.mxu0 %v1675
    %1751 = vmatprep.subr.mxu0 0.0
    %1752 = vmatpush2.msra.mxu0 %v1674
    %1753 = vmatprep.subr.mxu0 0.0
    %1754 = vmatpush2.msra.mxu0 %v1673
    %1755 = vmatprep.subr.mxu0 0.0
    %1756 = vmatpush2.msra.mxu0 %v1672
    %1757 = vmatprep.mubr.f32.mxu0 %v1688
    %1758 = vmatmul.mubr.f32.gmra.mxu0 %v1652
    %v1759 = vpop.f32.mrf.mxu0
    %v1760 = vadd.f32 %v1685, %v1759
    %v1761 = vpop.f32.mrf.mxu0
    %1762 = vmatprep.mubr.f32.mxu0 %v1691
    %1763 = vmatmul.mubr.f32.gmra.mxu0 %v1654
    %v1764 = vpop.f32.mrf.mxu0
    %v1765 = vadd.f32 %v1685, %v1764
    %v1766 = vpop.f32.mrf.mxu0
    %1767 = vdwg.mxu0
    %v1768 = vadd.f32 %v1471, %v1760
    %v1769 = vadd.f32 %v1472, %v1765
    %s1770 = scalar_lea.vmem %s15, 1
    %v1771 = vld [vmem:[%s1770] sm:$0x1]
    %s1772 = scalar_lea.vmem %s16, 1
    %v1773 = vld [vmem:[%s1772] sm:$0x1]
    %v1774 = vsel %vm240, %v1768, 0.0
    %1775 = vadd.xlane.f32.xlu0 %v1774
    %v1776 = vpop.xlane.xlu0 %1775
    %v1777 = vsel %vm240, %v1769, 0.0
    %1778 = vadd.xlane.f32.xlu0 %v1777
    %v1779 = vpop.xlane.xlu0 %1778
    %v1780 = vmul.f32 %v1776, %v247
    %v1781 = vmul.f32 %v1779, %v247
    %v1782 = vsub.f32 %v1768, %v1780
    %v1783 = vsub.f32 %v1769, %v1781
    %v1784 = vmul.f32 %v1782, %v1782
    %v1785 = vmul.f32 %v1783, %v1783
    %v1786 = vsel %vm240, %v1784, 0.0
    %1787 = vadd.xlane.f32.xlu0 %v1786
    %v1788 = vpop.xlane.xlu0 %1787
    %v1789 = vsel %vm240, %v1785, 0.0
    %1790 = vadd.xlane.f32.xlu0 %v1789
    %v1791 = vpop.xlane.xlu0 %1790
    %v1792 = vmul.f32 %v1788, %v247
    %v1793 = vmul.f32 %v1791, %v247
    %v1794 = vadd.f32 %v1792, 1e-05
    %v1795 = vadd.f32 %v1793, 1e-05
    %v1796 = vrsqrt.pop %v1794
    %v1797 = vrsqrt.pop %v1795
    %v1798 = vmul.f32 %v1782, %v1796
    %v1799 = vmul.f32 %v1783, %v1797
    %v1801 = vlaneseq
    %v1802 = vshrl.u32 %v1801, 7
    %v1803 = vsub.s32 0, %v1802
    %v1804 = vrot.slane %v1771, %v1803
    %v1806 = vmul.f32 %v1798, %v1804
    %v1807 = vmul.f32 %v1799, %v1804
    %v1809 = vlaneseq
    %v1810 = vshrl.u32 %v1809, 7
    %v1811 = vsub.s32 0, %v1810
    %v1812 = vrot.slane %v1773, %v1811
    %v1814 = vadd.f32 %v1806, %v1812
    %v1815 = vadd.f32 %v1807, %v1812
    %s1816 = scalar_lea.vmem %s7, 48
    %v1817 = vld [vmem:[%s1816] sm:$0xff]
    %v1818 = vld [vmem:[%s1816 + $0x8] sm:$0xff]
    %v1819 = vld [vmem:[%s1816 + $0x10] sm:$0xff]
    %v1820 = vld [vmem:[%s1816 + $0x18] sm:$0xff]
    %v1821 = vld [vmem:[%s1816 + $0x20] sm:$0xff]
    %v1822 = vld [vmem:[%s1816 + $0x28] sm:$0xff]
    %s1823 = scalar_lea.vmem %s8, 1
    %v1824 = vld [vmem:[%s1823] sm:$0x1]
    %s1825 = scalar_lea.vmem %s9, 48
    %v1826 = vld [vmem:[%s1825] sm:$0xff]
    %v1827 = vld [vmem:[%s1825 + $0x8] sm:$0xff]
    %v1828 = vld [vmem:[%s1825 + $0x10] sm:$0xff]
    %v1829 = vld [vmem:[%s1825 + $0x18] sm:$0xff]
    %v1830 = vld [vmem:[%s1825 + $0x20] sm:$0xff]
    %v1831 = vld [vmem:[%s1825 + $0x28] sm:$0xff]
    %s1832 = scalar_lea.vmem %s10, 1
    %v1833 = vld [vmem:[%s1832] sm:$0x1]
    %s1834 = scalar_lea.vmem %s11, 48
    %v1835 = vld [vmem:[%s1834] sm:$0xff]
    %v1836 = vld [vmem:[%s1834 + $0x8] sm:$0xff]
    %v1837 = vld [vmem:[%s1834 + $0x10] sm:$0xff]
    %v1838 = vld [vmem:[%s1834 + $0x18] sm:$0xff]
    %v1839 = vld [vmem:[%s1834 + $0x20] sm:$0xff]
    %v1840 = vld [vmem:[%s1834 + $0x28] sm:$0xff]
    %s1841 = scalar_lea.vmem %s12, 1
    %v1842 = vld [vmem:[%s1841] sm:$0x1]
    %s1843 = scalar_lea.vmem %s13, 48
    %v1844 = vld [vmem:[%s1843] sm:$0xff]
    %v1845 = vld [vmem:[%s1843 + $0x8] sm:$0xff]
    %v1846 = vld [vmem:[%s1843 + $0x10] sm:$0xff]
    %v1847 = vld [vmem:[%s1843 + $0x18] sm:$0xff]
    %v1848 = vld [vmem:[%s1843 + $0x20] sm:$0xff]
    %v1849 = vld [vmem:[%s1843 + $0x28] sm:$0xff]
    %s1850 = scalar_lea.vmem %s14, 1
    %v1851 = vld [vmem:[%s1850] sm:$0x1]
    %v1853 = vlaneseq
    %v1854 = vshrl.u32 %v1853, 7
    %v1855 = vsub.s32 0, %v1854
    %v1856 = vrot.slane %v1824, %v1855
    %v1859 = vsel %vm240, %v1814, 0
    %v1862 = vsel %vm240, %v1815, 0
    %1864 = vmatprep.subr.mxu0 0.0
    %1865 = vmatpush1.msra.mxu0 0.0
    %1866 = vmatprep.subr.mxu0 0.0
    %1867 = vmatpush1.msra.mxu0 0.0
    %1868 = vmatprep.subr.mxu0 0.0
    %1869 = vmatpush1.msra.mxu0 0.0
    %1870 = vmatprep.subr.mxu0 0.0
    %1871 = vmatpush1.msra.mxu0 0.0
    %1872 = vmatprep.subr.mxu0 0.0
    %1873 = vmatpush1.msra.mxu0 0.0
    %1874 = vmatprep.subr.mxu0 0.0
    %1875 = vmatpush1.msra.mxu0 0.0
    %1876 = vmatprep.subr.mxu0 0.0
    %1877 = vmatpush1.msra.mxu0 0.0
    %1878 = vmatprep.subr.mxu0 0.0
    %1879 = vmatpush1.msra.mxu0 0.0
    %1880 = vmatprep.subr.mxu0 0.0
    %1881 = vmatpush1.msra.mxu0 0.0
    %1882 = vmatprep.subr.mxu0 0.0
    %1883 = vmatpush1.msra.mxu0 0.0
    %1884 = vmatprep.subr.mxu0 0.0
    %1885 = vmatpush1.msra.mxu0 %v1822
    %1886 = vmatprep.subr.mxu0 0.0
    %1887 = vmatpush1.msra.mxu0 %v1821
    %1888 = vmatprep.subr.mxu0 0.0
    %1889 = vmatpush1.msra.mxu0 %v1820
    %1890 = vmatprep.subr.mxu0 0.0
    %1891 = vmatpush1.msra.mxu0 %v1819
    %1892 = vmatprep.subr.mxu0 0.0
    %1893 = vmatpush1.msra.mxu0 %v1818
    %1894 = vmatprep.subr.mxu0 0.0
    %1895 = vmatpush1.msra.mxu0 %v1817
    %1896 = vmatprep.subr.mxu0 0.0
    %1897 = vmatpush2.msra.mxu0 0.0
    %1898 = vmatprep.subr.mxu0 0.0
    %1899 = vmatpush2.msra.mxu0 0.0
    %1900 = vmatprep.subr.mxu0 0.0
    %1901 = vmatpush2.msra.mxu0 0.0
    %1902 = vmatprep.subr.mxu0 0.0
    %1903 = vmatpush2.msra.mxu0 0.0
    %1904 = vmatprep.subr.mxu0 0.0
    %1905 = vmatpush2.msra.mxu0 0.0
    %1906 = vmatprep.subr.mxu0 0.0
    %1907 = vmatpush2.msra.mxu0 0.0
    %1908 = vmatprep.subr.mxu0 0.0
    %1909 = vmatpush2.msra.mxu0 0.0
    %1910 = vmatprep.subr.mxu0 0.0
    %1911 = vmatpush2.msra.mxu0 0.0
    %1912 = vmatprep.subr.mxu0 0.0
    %1913 = vmatpush2.msra.mxu0 0.0
    %1914 = vmatprep.subr.mxu0 0.0
    %1915 = vmatpush2.msra.mxu0 0.0
    %1916 = vmatprep.subr.mxu0 0.0
    %1917 = vmatpush2.msra.mxu0 0.0
    %1918 = vmatprep.subr.mxu0 0.0
    %1919 = vmatpush2.msra.mxu0 0.0
    %1920 = vmatprep.subr.mxu0 0.0
    %1921 = vmatpush2.msra.mxu0 0.0
    %1922 = vmatprep.subr.mxu0 0.0
    %1923 = vmatpush2.msra.mxu0 0.0
    %1924 = vmatprep.subr.mxu0 0.0
    %1925 = vmatpush2.msra.mxu0 0.0
    %1926 = vmatprep.subr.mxu0 0.0
    %1927 = vmatpush2.msra.mxu0 0.0
    %1928 = vmatprep.mubr.f32.mxu0 0.0
    %1929 = vmatmul.mubr.f32.gmra.mxu0 %v1859
    %v1930 = vpop.f32.mrf.mxu0
    %v1931 = vadd.f32 %v1856, %v1930
    %v1932 = vpop.f32.mrf.mxu0
    %1933 = vmatprep.mubr.f32.mxu0 0.0
    %1934 = vmatmul.mubr.f32.gmra.mxu0 %v1862
    %v1935 = vpop.f32.mrf.mxu0
    %v1936 = vadd.f32 %v1856, %v1935
    %v1937 = vpop.f32.mrf.mxu0
    %1938 = vdwg.mxu0
    %v1940 = vlaneseq
    %v1941 = vshrl.u32 %v1940, 7
    %v1942 = vsub.s32 0, %v1941
    %v1943 = vrot.slane %v1833, %v1942
    %1945 = vmatprep.subr.mxu0 0.0
    %1946 = vmatpush1.msra.mxu0 0.0
    %1947 = vmatprep.subr.mxu0 0.0
    %1948 = vmatpush1.msra.mxu0 0.0
    %1949 = vmatprep.subr.mxu0 0.0
    %1950 = vmatpush1.msra.mxu0 0.0
    %1951 = vmatprep.subr.mxu0 0.0
    %1952 = vmatpush1.msra.mxu0 0.0
    %1953 = vmatprep.subr.mxu0 0.0
    %1954 = vmatpush1.msra.mxu0 0.0
    %1955 = vmatprep.subr.mxu0 0.0
    %1956 = vmatpush1.msra.mxu0 0.0
    %1957 = vmatprep.subr.mxu0 0.0
    %1958 = vmatpush1.msra.mxu0 0.0
    %1959 = vmatprep.subr.mxu0 0.0
    %1960 = vmatpush1.msra.mxu0 0.0
    %1961 = vmatprep.subr.mxu0 0.0
    %1962 = vmatpush1.msra.mxu0 0.0
    %1963 = vmatprep.subr.mxu0 0.0
    %1964 = vmatpush1.msra.mxu0 0.0
    %1965 = vmatprep.subr.mxu0 0.0
    %1966 = vmatpush1.msra.mxu0 %v1831
    %1967 = vmatprep.subr.mxu0 0.0
    %1968 = vmatpush1.msra.mxu0 %v1830
    %1969 = vmatprep.subr.mxu0 0.0
    %1970 = vmatpush1.msra.mxu0 %v1829
    %1971 = vmatprep.subr.mxu0 0.0
    %1972 = vmatpush1.msra.mxu0 %v1828
    %1973 = vmatprep.subr.mxu0 0.0
    %1974 = vmatpush1.msra.mxu0 %v1827
    %1975 = vmatprep.subr.mxu0 0.0
    %1976 = vmatpush1.msra.mxu0 %v1826
    %1977 = vmatprep.subr.mxu0 0.0
    %1978 = vmatpush2.msra.mxu0 0.0
    %1979 = vmatprep.subr.mxu0 0.0
    %1980 = vmatpush2.msra.mxu0 0.0
    %1981 = vmatprep.subr.mxu0 0.0
    %1982 = vmatpush2.msra.mxu0 0.0
    %1983 = vmatprep.subr.mxu0 0.0
    %1984 = vmatpush2.msra.mxu0 0.0
    %1985 = vmatprep.subr.mxu0 0.0
    %1986 = vmatpush2.msra.mxu0 0.0
    %1987 = vmatprep.subr.mxu0 0.0
    %1988 = vmatpush2.msra.mxu0 0.0
    %1989 = vmatprep.subr.mxu0 0.0
    %1990 = vmatpush2.msra.mxu0 0.0
    %1991 = vmatprep.subr.mxu0 0.0
    %1992 = vmatpush2.msra.mxu0 0.0
    %1993 = vmatprep.subr.mxu0 0.0
    %1994 = vmatpush2.msra.mxu0 0.0
    %1995 = vmatprep.subr.mxu0 0.0
    %1996 = vmatpush2.msra.mxu0 0.0
    %1997 = vmatprep.subr.mxu0 0.0
    %1998 = vmatpush2.msra.mxu0 0.0
    %1999 = vmatprep.subr.mxu0 0.0
    %2000 = vmatpush2.msra.mxu0 0.0
    %2001 = vmatprep.subr.mxu0 0.0
    %2002 = vmatpush2.msra.mxu0 0.0
    %2003 = vmatprep.subr.mxu0 0.0
    %2004 = vmatpush2.msra.mxu0 0.0
    %2005 = vmatprep.subr.mxu0 0.0
    %2006 = vmatpush2.msra.mxu0 0.0
    %2007 = vmatprep.subr.mxu0 0.0
    %2008 = vmatpush2.msra.mxu0 0.0
    %2009 = vmatprep.mubr.f32.mxu0 0.0
    %2010 = vmatmul.mubr.f32.gmra.mxu0 %v1859
    %v2011 = vpop.f32.mrf.mxu0
    %v2012 = vadd.f32 %v1943, %v2011
    %v2013 = vpop.f32.mrf.mxu0
    %2014 = vmatprep.mubr.f32.mxu0 0.0
    %2015 = vmatmul.mubr.f32.gmra.mxu0 %v1862
    %v2016 = vpop.f32.mrf.mxu0
    %v2017 = vadd.f32 %v1943, %v2016
    %v2018 = vpop.f32.mrf.mxu0
    %2019 = vdwg.mxu0
    %v2021 = vlaneseq
    %v2022 = vshrl.u32 %v2021, 7
    %v2023 = vsub.s32 0, %v2022
    %v2024 = vrot.slane %v1842, %v2023
    %2026 = vmatprep.subr.mxu0 0.0
    %2027 = vmatpush1.msra.mxu0 0.0
    %2028 = vmatprep.subr.mxu0 0.0
    %2029 = vmatpush1.msra.mxu0 0.0
    %2030 = vmatprep.subr.mxu0 0.0
    %2031 = vmatpush1.msra.mxu0 0.0
    %2032 = vmatprep.subr.mxu0 0.0
    %2033 = vmatpush1.msra.mxu0 0.0
    %2034 = vmatprep.subr.mxu0 0.0
    %2035 = vmatpush1.msra.mxu0 0.0
    %2036 = vmatprep.subr.mxu0 0.0
    %2037 = vmatpush1.msra.mxu0 0.0
    %2038 = vmatprep.subr.mxu0 0.0
    %2039 = vmatpush1.msra.mxu0 0.0
    %2040 = vmatprep.subr.mxu0 0.0
    %2041 = vmatpush1.msra.mxu0 0.0
    %2042 = vmatprep.subr.mxu0 0.0
    %2043 = vmatpush1.msra.mxu0 0.0
    %2044 = vmatprep.subr.mxu0 0.0
    %2045 = vmatpush1.msra.mxu0 0.0
    %2046 = vmatprep.subr.mxu0 0.0
    %2047 = vmatpush1.msra.mxu0 %v1840
    %2048 = vmatprep.subr.mxu0 0.0
    %2049 = vmatpush1.msra.mxu0 %v1839
    %2050 = vmatprep.subr.mxu0 0.0
    %2051 = vmatpush1.msra.mxu0 %v1838
    %2052 = vmatprep.subr.mxu0 0.0
    %2053 = vmatpush1.msra.mxu0 %v1837
    %2054 = vmatprep.subr.mxu0 0.0
    %2055 = vmatpush1.msra.mxu0 %v1836
    %2056 = vmatprep.subr.mxu0 0.0
    %2057 = vmatpush1.msra.mxu0 %v1835
    %2058 = vmatprep.subr.mxu0 0.0
    %2059 = vmatpush2.msra.mxu0 0.0
    %2060 = vmatprep.subr.mxu0 0.0
    %2061 = vmatpush2.msra.mxu0 0.0
    %2062 = vmatprep.subr.mxu0 0.0
    %2063 = vmatpush2.msra.mxu0 0.0
    %2064 = vmatprep.subr.mxu0 0.0
    %2065 = vmatpush2.msra.mxu0 0.0
    %2066 = vmatprep.subr.mxu0 0.0
    %2067 = vmatpush2.msra.mxu0 0.0
    %2068 = vmatprep.subr.mxu0 0.0
    %2069 = vmatpush2.msra.mxu0 0.0
    %2070 = vmatprep.subr.mxu0 0.0
    %2071 = vmatpush2.msra.mxu0 0.0
    %2072 = vmatprep.subr.mxu0 0.0
    %2073 = vmatpush2.msra.mxu0 0.0
    %2074 = vmatprep.subr.mxu0 0.0
    %2075 = vmatpush2.msra.mxu0 0.0
    %2076 = vmatprep.subr.mxu0 0.0
    %2077 = vmatpush2.msra.mxu0 0.0
    %2078 = vmatprep.subr.mxu0 0.0
    %2079 = vmatpush2.msra.mxu0 0.0
    %2080 = vmatprep.subr.mxu0 0.0
    %2081 = vmatpush2.msra.mxu0 0.0
    %2082 = vmatprep.subr.mxu0 0.0
    %2083 = vmatpush2.msra.mxu0 0.0
    %2084 = vmatprep.subr.mxu0 0.0
    %2085 = vmatpush2.msra.mxu0 0.0
    %2086 = vmatprep.subr.mxu0 0.0
    %2087 = vmatpush2.msra.mxu0 0.0
    %2088 = vmatprep.subr.mxu0 0.0
    %2089 = vmatpush2.msra.mxu0 0.0
    %2090 = vmatprep.mubr.f32.mxu0 0.0
    %2091 = vmatmul.mubr.f32.gmra.mxu0 %v1859
    %v2092 = vpop.f32.mrf.mxu0
    %v2093 = vadd.f32 %v2024, %v2092
    %v2094 = vpop.f32.mrf.mxu0
    %2095 = vmatprep.mubr.f32.mxu0 0.0
    %2096 = vmatmul.mubr.f32.gmra.mxu0 %v1862
    %v2097 = vpop.f32.mrf.mxu0
    %v2098 = vadd.f32 %v2024, %v2097
    %v2099 = vpop.f32.mrf.mxu0
    %2100 = vdwg.mxu0
    %v2101 = vmul.f32 %v2012, %v108
    %v2102 = vmul.f32 %v2017, %v108
    %v2103 = vmul.f32 %v2093, %v108
    %v2104 = vmul.f32 %v2098, %v108
    %v2106 = vsel %vm240, %v1931, 0
    %v2109 = vsel %vm240, %v1936, 0
    %v2112 = vsel %vm240, %v2101, 0
    %v2115 = vsel %vm240, %v2102, 0
    %2117 = vmatprep.subr.mxu0 0.0
    %2118 = vmatpush1.xpose.msra.mxu0 0.0
    %2119 = vmatprep.subr.mxu0 0.0
    %2120 = vmatpush1.xpose.msra.mxu0 0.0
    %2121 = vmatprep.subr.mxu0 0.0
    %2122 = vmatpush1.xpose.msra.mxu0 0.0
    %2123 = vmatprep.subr.mxu0 0.0
    %2124 = vmatpush1.xpose.msra.mxu0 0.0
    %2125 = vmatprep.subr.mxu0 0.0
    %2126 = vmatpush1.xpose.msra.mxu0 0.0
    %2127 = vmatprep.subr.mxu0 0.0
    %2128 = vmatpush1.xpose.msra.mxu0 0.0
    %2129 = vmatprep.subr.mxu0 0.0
    %2130 = vmatpush1.xpose.msra.mxu0 0.0
    %2131 = vmatprep.subr.mxu0 0.0
    %2132 = vmatpush1.xpose.msra.mxu0 0.0
    %2133 = vmatprep.subr.mxu0 0.0
    %2134 = vmatpush1.xpose.msra.mxu0 0.0
    %2135 = vmatprep.subr.mxu0 0.0
    %2136 = vmatpush1.xpose.msra.mxu0 0.0
    %2137 = vmatprep.subr.mxu0 0.0
    %2138 = vmatpush1.xpose.msra.mxu0 0.0
    %2139 = vmatprep.subr.mxu0 0.0
    %2140 = vmatpush1.xpose.msra.mxu0 0.0
    %2141 = vmatprep.subr.mxu0 0.0
    %2142 = vmatpush1.xpose.msra.mxu0 0.0
    %2143 = vmatprep.subr.mxu0 0.0
    %2144 = vmatpush1.xpose.msra.mxu0 0.0
    %2145 = vmatprep.subr.mxu0 0.0
    %2146 = vmatpush1.xpose.msra.mxu0 %v2115
    %2147 = vmatprep.subr.mxu0 0.0
    %2148 = vmatpush1.xpose.msra.mxu0 %v2112
    %2149 = vmatprep.subr.mxu0 0.0
    %2150 = vmatpush2.xpose.msra.mxu0 0.0
    %2151 = vmatprep.subr.mxu0 0.0
    %2152 = vmatpush2.xpose.msra.mxu0 0.0
    %2153 = vmatprep.subr.mxu0 0.0
    %2154 = vmatpush2.xpose.msra.mxu0 0.0
    %2155 = vmatprep.subr.mxu0 0.0
    %2156 = vmatpush2.xpose.msra.mxu0 0.0
    %2157 = vmatprep.subr.mxu0 0.0
    %2158 = vmatpush2.xpose.msra.mxu0 0.0
    %2159 = vmatprep.subr.mxu0 0.0
    %2160 = vmatpush2.xpose.msra.mxu0 0.0
    %2161 = vmatprep.subr.mxu0 0.0
    %2162 = vmatpush2.xpose.msra.mxu0 0.0
    %2163 = vmatprep.subr.mxu0 0.0
    %2164 = vmatpush2.xpose.msra.mxu0 0.0
    %2165 = vmatprep.subr.mxu0 0.0
    %2166 = vmatpush2.xpose.msra.mxu0 0.0
    %2167 = vmatprep.subr.mxu0 0.0
    %2168 = vmatpush2.xpose.msra.mxu0 0.0
    %2169 = vmatprep.subr.mxu0 0.0
    %2170 = vmatpush2.xpose.msra.mxu0 0.0
    %2171 = vmatprep.subr.mxu0 0.0
    %2172 = vmatpush2.xpose.msra.mxu0 0.0
    %2173 = vmatprep.subr.mxu0 0.0
    %2174 = vmatpush2.xpose.msra.mxu0 0.0
    %2175 = vmatprep.subr.mxu0 0.0
    %2176 = vmatpush2.xpose.msra.mxu0 0.0
    %2177 = vmatprep.subr.mxu0 0.0
    %2178 = vmatpush2.xpose.msra.mxu0 0.0
    %2179 = vmatprep.subr.mxu0 0.0
    %2180 = vmatpush2.xpose.msra.mxu0 0.0
    %2181 = vmatprep.mubr.f32.mxu0 0.0
    %2182 = vmatmul.mubr.f32.gmra.mxu0 %v2106
    %v2183 = vpop.f32.mrf.mxu0
    %v2184 = vadd.f32 0.0, %v2183
    %v2185 = vpop.f32.mrf.mxu0
    %2186 = vmatprep.mubr.f32.mxu0 0.0
    %2187 = vmatmul.mubr.f32.gmra.mxu0 %v2109
    %v2188 = vpop.f32.mrf.mxu0
    %v2189 = vadd.f32 0.0, %v2188
    %v2190 = vpop.f32.mrf.mxu0
    %2191 = vdwg.mxu0
    %v2192 = vmul.f32 %v2184, 0.28867513
    %v2193 = vmul.f32 %v2189, 0.28867513
    %v2194 = vadd.f32 %v2192, %v124
    %v2195 = vadd.f32 %v2193, %v125
    %v2196 = vsel %vm700, %v2194, -inf
    %2197 = vmax.xlane.f32.xlu0 %v2196
    %v2198 = vpop.xlane.xlu0 %2197
    %v2199 = vsel %vm700, %v2195, -inf
    %2200 = vmax.xlane.f32.xlu0 %v2199
    %v2201 = vpop.xlane.xlu0 %2200
    %v2202 = vsub.f32 %v2194, %v2198
    %v2203 = vsub.f32 %v2195, %v2201
    %v2204 = vmul.f32 %v2202, 1.442695
    %v2205 = vpow.pop %v2204
    %v2206 = vmul.f32 %v2203, 1.442695
    %v2207 = vpow.pop %v2206
    %v2208 = vsel %vm700, %v2205, 0.0
    %2209 = vadd.xlane.f32.xlu0 %v2208
    %v2210 = vpop.xlane.xlu0 %2209
    %v2211 = vsel %vm700, %v2207, 0.0
    %2212 = vadd.xlane.f32.xlu0 %v2211
    %v2213 = vpop.xlane.xlu0 %2212
    %v2214 = vrcp.pop %v2210
    %v2215 = vmul.f32 %v2205, %v2214
    %v2216 = vrcp.pop %v2213
    %v2217 = vmul.f32 %v2207, %v2216
    %v2218 = vmul.f32 %v2012, %v113
    %v2219 = vmul.f32 %v2017, %v113
    %v2220 = vmul.f32 %v2093, %v113
    %v2221 = vmul.f32 %v2098, %v113
    %v2223 = vsel %vm240, %v2218, 0
    %v2226 = vsel %vm240, %v2219, 0
    %2228 = vmatprep.subr.mxu0 0.0
    %2229 = vmatpush1.xpose.msra.mxu0 0.0
    %2230 = vmatprep.subr.mxu0 0.0
    %2231 = vmatpush1.xpose.msra.mxu0 0.0
    %2232 = vmatprep.subr.mxu0 0.0
    %2233 = vmatpush1.xpose.msra.mxu0 0.0
    %2234 = vmatprep.subr.mxu0 0.0
    %2235 = vmatpush1.xpose.msra.mxu0 0.0
    %2236 = vmatprep.subr.mxu0 0.0
    %2237 = vmatpush1.xpose.msra.mxu0 0.0
    %2238 = vmatprep.subr.mxu0 0.0
    %2239 = vmatpush1.xpose.msra.mxu0 0.0
    %2240 = vmatprep.subr.mxu0 0.0
    %2241 = vmatpush1.xpose.msra.mxu0 0.0
    %2242 = vmatprep.subr.mxu0 0.0
    %2243 = vmatpush1.xpose.msra.mxu0 0.0
    %2244 = vmatprep.subr.mxu0 0.0
    %2245 = vmatpush1.xpose.msra.mxu0 0.0
    %2246 = vmatprep.subr.mxu0 0.0
    %2247 = vmatpush1.xpose.msra.mxu0 0.0
    %2248 = vmatprep.subr.mxu0 0.0
    %2249 = vmatpush1.xpose.msra.mxu0 0.0
    %2250 = vmatprep.subr.mxu0 0.0
    %2251 = vmatpush1.xpose.msra.mxu0 0.0
    %2252 = vmatprep.subr.mxu0 0.0
    %2253 = vmatpush1.xpose.msra.mxu0 0.0
    %2254 = vmatprep.subr.mxu0 0.0
    %2255 = vmatpush1.xpose.msra.mxu0 0.0
    %2256 = vmatprep.subr.mxu0 0.0
    %2257 = vmatpush1.xpose.msra.mxu0 %v2226
    %2258 = vmatprep.subr.mxu0 0.0
    %2259 = vmatpush1.xpose.msra.mxu0 %v2223
    %2260 = vmatprep.subr.mxu0 0.0
    %2261 = vmatpush2.xpose.msra.mxu0 0.0
    %2262 = vmatprep.subr.mxu0 0.0
    %2263 = vmatpush2.xpose.msra.mxu0 0.0
    %2264 = vmatprep.subr.mxu0 0.0
    %2265 = vmatpush2.xpose.msra.mxu0 0.0
    %2266 = vmatprep.subr.mxu0 0.0
    %2267 = vmatpush2.xpose.msra.mxu0 0.0
    %2268 = vmatprep.subr.mxu0 0.0
    %2269 = vmatpush2.xpose.msra.mxu0 0.0
    %2270 = vmatprep.subr.mxu0 0.0
    %2271 = vmatpush2.xpose.msra.mxu0 0.0
    %2272 = vmatprep.subr.mxu0 0.0
    %2273 = vmatpush2.xpose.msra.mxu0 0.0
    %2274 = vmatprep.subr.mxu0 0.0
    %2275 = vmatpush2.xpose.msra.mxu0 0.0
    %2276 = vmatprep.subr.mxu0 0.0
    %2277 = vmatpush2.xpose.msra.mxu0 0.0
    %2278 = vmatprep.subr.mxu0 0.0
    %2279 = vmatpush2.xpose.msra.mxu0 0.0
    %2280 = vmatprep.subr.mxu0 0.0
    %2281 = vmatpush2.xpose.msra.mxu0 0.0
    %2282 = vmatprep.subr.mxu0 0.0
    %2283 = vmatpush2.xpose.msra.mxu0 0.0
    %2284 = vmatprep.subr.mxu0 0.0
    %2285 = vmatpush2.xpose.msra.mxu0 0.0
    %2286 = vmatprep.subr.mxu0 0.0
    %2287 = vmatpush2.xpose.msra.mxu0 0.0
    %2288 = vmatprep.subr.mxu0 0.0
    %2289 = vmatpush2.xpose.msra.mxu0 0.0
    %2290 = vmatprep.subr.mxu0 0.0
    %2291 = vmatpush2.xpose.msra.mxu0 0.0
    %2292 = vmatprep.mubr.f32.mxu0 0.0
    %2293 = vmatmul.mubr.f32.gmra.mxu0 %v2106
    %v2294 = vpop.f32.mrf.mxu0
    %v2295 = vadd.f32 0.0, %v2294
    %v2296 = vpop.f32.mrf.mxu0
    %2297 = vmatprep.mubr.f32.mxu0 0.0
    %2298 = vmatmul.mubr.f32.gmra.mxu0 %v2109
    %v2299 = vpop.f32.mrf.mxu0
    %v2300 = vadd.f32 0.0, %v2299
    %v2301 = vpop.f32.mrf.mxu0
    %2302 = vdwg.mxu0
    %v2303 = vmul.f32 %v2295, 0.28867513
    %v2304 = vmul.f32 %v2300, 0.28867513
    %v2305 = vadd.f32 %v2303, %v124
    %v2306 = vadd.f32 %v2304, %v125
    %v2307 = vsel %vm700, %v2305, -inf
    %2308 = vmax.xlane.f32.xlu0 %v2307
    %v2309 = vpop.xlane.xlu0 %2308
    %v2310 = vsel %vm700, %v2306, -inf
    %2311 = vmax.xlane.f32.xlu0 %v2310
    %v2312 = vpop.xlane.xlu0 %2311
    %v2313 = vsub.f32 %v2305, %v2309
    %v2314 = vsub.f32 %v2306, %v2312
    %v2315 = vmul.f32 %v2313, 1.442695
    %v2316 = vpow.pop %v2315
    %v2317 = vmul.f32 %v2314, 1.442695
    %v2318 = vpow.pop %v2317
    %v2319 = vsel %vm700, %v2316, 0.0
    %2320 = vadd.xlane.f32.xlu0 %v2319
    %v2321 = vpop.xlane.xlu0 %2320
    %v2322 = vsel %vm700, %v2318, 0.0
    %2323 = vadd.xlane.f32.xlu0 %v2322
    %v2324 = vpop.xlane.xlu0 %2323
    %v2325 = vrcp.pop %v2321
    %v2326 = vmul.f32 %v2316, %v2325
    %v2327 = vrcp.pop %v2324
    %v2328 = vmul.f32 %v2318, %v2327
    %v2330 = vsel %vm700, %v2326, 0
    %v2333 = vsel %vm700, %v2328, 0
    %2335 = vmatprep.subr.mxu0 0.0
    %2336 = vmatpush1.msra.mxu0 0.0
    %2337 = vmatprep.subr.mxu0 0.0
    %2338 = vmatpush1.msra.mxu0 0.0
    %2339 = vmatprep.subr.mxu0 0.0
    %2340 = vmatpush1.msra.mxu0 0.0
    %2341 = vmatprep.subr.mxu0 0.0
    %2342 = vmatpush1.msra.mxu0 0.0
    %2343 = vmatprep.subr.mxu0 0.0
    %2344 = vmatpush1.msra.mxu0 0.0
    %2345 = vmatprep.subr.mxu0 0.0
    %2346 = vmatpush1.msra.mxu0 0.0
    %2347 = vmatprep.subr.mxu0 0.0
    %2348 = vmatpush1.msra.mxu0 0.0
    %2349 = vmatprep.subr.mxu0 0.0
    %2350 = vmatpush1.msra.mxu0 0.0
    %2351 = vmatprep.subr.mxu0 0.0
    %2352 = vmatpush1.msra.mxu0 0.0
    %2353 = vmatprep.subr.mxu0 0.0
    %2354 = vmatpush1.msra.mxu0 0.0
    %2355 = vmatprep.subr.mxu0 0.0
    %2356 = vmatpush1.msra.mxu0 0.0
    %2357 = vmatprep.subr.mxu0 0.0
    %2358 = vmatpush1.msra.mxu0 0.0
    %2359 = vmatprep.subr.mxu0 0.0
    %2360 = vmatpush1.msra.mxu0 0.0
    %2361 = vmatprep.subr.mxu0 0.0
    %2362 = vmatpush1.msra.mxu0 0.0
    %2363 = vmatprep.subr.mxu0 0.0
    %2364 = vmatpush1.msra.mxu0 %v2221
    %2365 = vmatprep.subr.mxu0 0.0
    %2366 = vmatpush1.msra.mxu0 %v2220
    %2367 = vmatprep.subr.mxu0 0.0
    %2368 = vmatpush2.msra.mxu0 0.0
    %2369 = vmatprep.subr.mxu0 0.0
    %2370 = vmatpush2.msra.mxu0 0.0
    %2371 = vmatprep.subr.mxu0 0.0
    %2372 = vmatpush2.msra.mxu0 0.0
    %2373 = vmatprep.subr.mxu0 0.0
    %2374 = vmatpush2.msra.mxu0 0.0
    %2375 = vmatprep.subr.mxu0 0.0
    %2376 = vmatpush2.msra.mxu0 0.0
    %2377 = vmatprep.subr.mxu0 0.0
    %2378 = vmatpush2.msra.mxu0 0.0
    %2379 = vmatprep.subr.mxu0 0.0
    %2380 = vmatpush2.msra.mxu0 0.0
    %2381 = vmatprep.subr.mxu0 0.0
    %2382 = vmatpush2.msra.mxu0 0.0
    %2383 = vmatprep.subr.mxu0 0.0
    %2384 = vmatpush2.msra.mxu0 0.0
    %2385 = vmatprep.subr.mxu0 0.0
    %2386 = vmatpush2.msra.mxu0 0.0
    %2387 = vmatprep.subr.mxu0 0.0
    %2388 = vmatpush2.msra.mxu0 0.0
    %2389 = vmatprep.subr.mxu0 0.0
    %2390 = vmatpush2.msra.mxu0 0.0
    %2391 = vmatprep.subr.mxu0 0.0
    %2392 = vmatpush2.msra.mxu0 0.0
    %2393 = vmatprep.subr.mxu0 0.0
    %2394 = vmatpush2.msra.mxu0 0.0
    %2395 = vmatprep.subr.mxu0 0.0
    %2396 = vmatpush2.msra.mxu0 0.0
    %2397 = vmatprep.subr.mxu0 0.0
    %2398 = vmatpush2.msra.mxu0 0.0
    %2399 = vmatprep.mubr.f32.mxu0 0.0
    %2400 = vmatmul.mubr.f32.gmra.mxu0 %v2330
    %v2401 = vpop.f32.mrf.mxu0
    %v2402 = vadd.f32 0.0, %v2401
    %v2403 = vpop.f32.mrf.mxu0
    %2404 = vmatprep.mubr.f32.mxu0 0.0
    %2405 = vmatmul.mubr.f32.gmra.mxu0 %v2333
    %v2406 = vpop.f32.mrf.mxu0
    %v2407 = vadd.f32 0.0, %v2406
    %v2408 = vpop.f32.mrf.mxu0
    %2409 = vdwg.mxu0
    %v2411 = vsel %vm700, %v2215, 0
    %v2414 = vsel %vm700, %v2217, 0
    %2416 = vmatprep.subr.mxu0 0.0
    %2417 = vmatpush1.msra.mxu0 0.0
    %2418 = vmatprep.subr.mxu0 0.0
    %2419 = vmatpush1.msra.mxu0 0.0
    %2420 = vmatprep.subr.mxu0 0.0
    %2421 = vmatpush1.msra.mxu0 0.0
    %2422 = vmatprep.subr.mxu0 0.0
    %2423 = vmatpush1.msra.mxu0 0.0
    %2424 = vmatprep.subr.mxu0 0.0
    %2425 = vmatpush1.msra.mxu0 0.0
    %2426 = vmatprep.subr.mxu0 0.0
    %2427 = vmatpush1.msra.mxu0 0.0
    %2428 = vmatprep.subr.mxu0 0.0
    %2429 = vmatpush1.msra.mxu0 0.0
    %2430 = vmatprep.subr.mxu0 0.0
    %2431 = vmatpush1.msra.mxu0 0.0
    %2432 = vmatprep.subr.mxu0 0.0
    %2433 = vmatpush1.msra.mxu0 0.0
    %2434 = vmatprep.subr.mxu0 0.0
    %2435 = vmatpush1.msra.mxu0 0.0
    %2436 = vmatprep.subr.mxu0 0.0
    %2437 = vmatpush1.msra.mxu0 0.0
    %2438 = vmatprep.subr.mxu0 0.0
    %2439 = vmatpush1.msra.mxu0 0.0
    %2440 = vmatprep.subr.mxu0 0.0
    %2441 = vmatpush1.msra.mxu0 0.0
    %2442 = vmatprep.subr.mxu0 0.0
    %2443 = vmatpush1.msra.mxu0 0.0
    %2444 = vmatprep.subr.mxu0 0.0
    %2445 = vmatpush1.msra.mxu0 %v2104
    %2446 = vmatprep.subr.mxu0 0.0
    %2447 = vmatpush1.msra.mxu0 %v2103
    %2448 = vmatprep.subr.mxu0 0.0
    %2449 = vmatpush2.msra.mxu0 0.0
    %2450 = vmatprep.subr.mxu0 0.0
    %2451 = vmatpush2.msra.mxu0 0.0
    %2452 = vmatprep.subr.mxu0 0.0
    %2453 = vmatpush2.msra.mxu0 0.0
    %2454 = vmatprep.subr.mxu0 0.0
    %2455 = vmatpush2.msra.mxu0 0.0
    %2456 = vmatprep.subr.mxu0 0.0
    %2457 = vmatpush2.msra.mxu0 0.0
    %2458 = vmatprep.subr.mxu0 0.0
    %2459 = vmatpush2.msra.mxu0 0.0
    %2460 = vmatprep.subr.mxu0 0.0
    %2461 = vmatpush2.msra.mxu0 0.0
    %2462 = vmatprep.subr.mxu0 0.0
    %2463 = vmatpush2.msra.mxu0 0.0
    %2464 = vmatprep.subr.mxu0 0.0
    %2465 = vmatpush2.msra.mxu0 0.0
    %2466 = vmatprep.subr.mxu0 0.0
    %2467 = vmatpush2.msra.mxu0 0.0
    %2468 = vmatprep.subr.mxu0 0.0
    %2469 = vmatpush2.msra.mxu0 0.0
    %2470 = vmatprep.subr.mxu0 0.0
    %2471 = vmatpush2.msra.mxu0 0.0
    %2472 = vmatprep.subr.mxu0 0.0
    %2473 = vmatpush2.msra.mxu0 0.0
    %2474 = vmatprep.subr.mxu0 0.0
    %2475 = vmatpush2.msra.mxu0 0.0
    %2476 = vmatprep.subr.mxu0 0.0
    %2477 = vmatpush2.msra.mxu0 0.0
    %2478 = vmatprep.subr.mxu0 0.0
    %2479 = vmatpush2.msra.mxu0 0.0
    %2480 = vmatprep.mubr.f32.mxu0 0.0
    %2481 = vmatmul.mubr.f32.gmra.mxu0 %v2411
    %v2482 = vpop.f32.mrf.mxu0
    %v2483 = vadd.f32 %v2402, %v2482
    %v2484 = vpop.f32.mrf.mxu0
    %2485 = vmatprep.mubr.f32.mxu0 0.0
    %2486 = vmatmul.mubr.f32.gmra.mxu0 %v2414
    %v2487 = vpop.f32.mrf.mxu0
    %v2488 = vadd.f32 %v2407, %v2487
    %v2489 = vpop.f32.mrf.mxu0
    %2490 = vdwg.mxu0
    %v2491 = vmul.f32 %v2012, %v118
    %v2492 = vmul.f32 %v2017, %v118
    %v2493 = vmul.f32 %v2093, %v118
    %v2494 = vmul.f32 %v2098, %v118
    %v2496 = vsel %vm240, %v2491, 0
    %v2499 = vsel %vm240, %v2492, 0
    %2501 = vmatprep.subr.mxu0 0.0
    %2502 = vmatpush1.xpose.msra.mxu0 0.0
    %2503 = vmatprep.subr.mxu0 0.0
    %2504 = vmatpush1.xpose.msra.mxu0 0.0
    %2505 = vmatprep.subr.mxu0 0.0
    %2506 = vmatpush1.xpose.msra.mxu0 0.0
    %2507 = vmatprep.subr.mxu0 0.0
    %2508 = vmatpush1.xpose.msra.mxu0 0.0
    %2509 = vmatprep.subr.mxu0 0.0
    %2510 = vmatpush1.xpose.msra.mxu0 0.0
    %2511 = vmatprep.subr.mxu0 0.0
    %2512 = vmatpush1.xpose.msra.mxu0 0.0
    %2513 = vmatprep.subr.mxu0 0.0
    %2514 = vmatpush1.xpose.msra.mxu0 0.0
    %2515 = vmatprep.subr.mxu0 0.0
    %2516 = vmatpush1.xpose.msra.mxu0 0.0
    %2517 = vmatprep.subr.mxu0 0.0
    %2518 = vmatpush1.xpose.msra.mxu0 0.0
    %2519 = vmatprep.subr.mxu0 0.0
    %2520 = vmatpush1.xpose.msra.mxu0 0.0
    %2521 = vmatprep.subr.mxu0 0.0
    %2522 = vmatpush1.xpose.msra.mxu0 0.0
    %2523 = vmatprep.subr.mxu0 0.0
    %2524 = vmatpush1.xpose.msra.mxu0 0.0
    %2525 = vmatprep.subr.mxu0 0.0
    %2526 = vmatpush1.xpose.msra.mxu0 0.0
    %2527 = vmatprep.subr.mxu0 0.0
    %2528 = vmatpush1.xpose.msra.mxu0 0.0
    %2529 = vmatprep.subr.mxu0 0.0
    %2530 = vmatpush1.xpose.msra.mxu0 %v2499
    %2531 = vmatprep.subr.mxu0 0.0
    %2532 = vmatpush1.xpose.msra.mxu0 %v2496
    %2533 = vmatprep.subr.mxu0 0.0
    %2534 = vmatpush2.xpose.msra.mxu0 0.0
    %2535 = vmatprep.subr.mxu0 0.0
    %2536 = vmatpush2.xpose.msra.mxu0 0.0
    %2537 = vmatprep.subr.mxu0 0.0
    %2538 = vmatpush2.xpose.msra.mxu0 0.0
    %2539 = vmatprep.subr.mxu0 0.0
    %2540 = vmatpush2.xpose.msra.mxu0 0.0
    %2541 = vmatprep.subr.mxu0 0.0
    %2542 = vmatpush2.xpose.msra.mxu0 0.0
    %2543 = vmatprep.subr.mxu0 0.0
    %2544 = vmatpush2.xpose.msra.mxu0 0.0
    %2545 = vmatprep.subr.mxu0 0.0
    %2546 = vmatpush2.xpose.msra.mxu0 0.0
    %2547 = vmatprep.subr.mxu0 0.0
    %2548 = vmatpush2.xpose.msra.mxu0 0.0
    %2549 = vmatprep.subr.mxu0 0.0
    %2550 = vmatpush2.xpose.msra.mxu0 0.0
    %2551 = vmatprep.subr.mxu0 0.0
    %2552 = vmatpush2.xpose.msra.mxu0 0.0
    %2553 = vmatprep.subr.mxu0 0.0
    %2554 = vmatpush2.xpose.msra.mxu0 0.0
    %2555 = vmatprep.subr.mxu0 0.0
    %2556 = vmatpush2.xpose.msra.mxu0 0.0
    %2557 = vmatprep.subr.mxu0 0.0
    %2558 = vmatpush2.xpose.msra.mxu0 0.0
    %2559 = vmatprep.subr.mxu0 0.0
    %2560 = vmatpush2.xpose.msra.mxu0 0.0
    %2561 = vmatprep.subr.mxu0 0.0
    %2562 = vmatpush2.xpose.msra.mxu0 0.0
    %2563 = vmatprep.subr.mxu0 0.0
    %2564 = vmatpush2.xpose.msra.mxu0 0.0
    %2565 = vmatprep.mubr.f32.mxu0 0.0
    %2566 = vmatmul.mubr.f32.gmra.mxu0 %v2106
    %v2567 = vpop.f32.mrf.mxu0
    %v2568 = vadd.f32 0.0, %v2567
    %v2569 = vpop.f32.mrf.mxu0
    %2570 = vmatprep.mubr.f32.mxu0 0.0
    %2571 = vmatmul.mubr.f32.gmra.mxu0 %v2109
    %v2572 = vpop.f32.mrf.mxu0
    %v2573 = vadd.f32 0.0, %v2572
    %v2574 = vpop.f32.mrf.mxu0
    %2575 = vdwg.mxu0
    %v2576 = vmul.f32 %v2568, 0.28867513
    %v2577 = vmul.f32 %v2573, 0.28867513
    %v2578 = vadd.f32 %v2576, %v124
    %v2579 = vadd.f32 %v2577, %v125
    %v2580 = vsel %vm700, %v2578, -inf
    %2581 = vmax.xlane.f32.xlu0 %v2580
    %v2582 = vpop.xlane.xlu0 %2581
    %v2583 = vsel %vm700, %v2579, -inf
    %2584 = vmax.xlane.f32.xlu0 %v2583
    %v2585 = vpop.xlane.xlu0 %2584
    %v2586 = vsub.f32 %v2578, %v2582
    %v2587 = vsub.f32 %v2579, %v2585
    %v2588 = vmul.f32 %v2586, 1.442695
    %v2589 = vpow.pop %v2588
    %v2590 = vmul.f32 %v2587, 1.442695
    %v2591 = vpow.pop %v2590
    %v2592 = vsel %vm700, %v2589, 0.0
    %2593 = vadd.xlane.f32.xlu0 %v2592
    %v2594 = vpop.xlane.xlu0 %2593
    %v2595 = vsel %vm700, %v2591, 0.0
    %2596 = vadd.xlane.f32.xlu0 %v2595
    %v2597 = vpop.xlane.xlu0 %2596
    %v2598 = vrcp.pop %v2594
    %v2599 = vmul.f32 %v2589, %v2598
    %v2600 = vrcp.pop %v2597
    %v2601 = vmul.f32 %v2591, %v2600
    %v2603 = vsel %vm700, %v2599, 0
    %v2606 = vsel %vm700, %v2601, 0
    %2608 = vmatprep.subr.mxu0 0.0
    %2609 = vmatpush1.msra.mxu0 0.0
    %2610 = vmatprep.subr.mxu0 0.0
    %2611 = vmatpush1.msra.mxu0 0.0
    %2612 = vmatprep.subr.mxu0 0.0
    %2613 = vmatpush1.msra.mxu0 0.0
    %2614 = vmatprep.subr.mxu0 0.0
    %2615 = vmatpush1.msra.mxu0 0.0
    %2616 = vmatprep.subr.mxu0 0.0
    %2617 = vmatpush1.msra.mxu0 0.0
    %2618 = vmatprep.subr.mxu0 0.0
    %2619 = vmatpush1.msra.mxu0 0.0
    %2620 = vmatprep.subr.mxu0 0.0
    %2621 = vmatpush1.msra.mxu0 0.0
    %2622 = vmatprep.subr.mxu0 0.0
    %2623 = vmatpush1.msra.mxu0 0.0
    %2624 = vmatprep.subr.mxu0 0.0
    %2625 = vmatpush1.msra.mxu0 0.0
    %2626 = vmatprep.subr.mxu0 0.0
    %2627 = vmatpush1.msra.mxu0 0.0
    %2628 = vmatprep.subr.mxu0 0.0
    %2629 = vmatpush1.msra.mxu0 0.0
    %2630 = vmatprep.subr.mxu0 0.0
    %2631 = vmatpush1.msra.mxu0 0.0
    %2632 = vmatprep.subr.mxu0 0.0
    %2633 = vmatpush1.msra.mxu0 0.0
    %2634 = vmatprep.subr.mxu0 0.0
    %2635 = vmatpush1.msra.mxu0 0.0
    %2636 = vmatprep.subr.mxu0 0.0
    %2637 = vmatpush1.msra.mxu0 %v2494
    %2638 = vmatprep.subr.mxu0 0.0
    %2639 = vmatpush1.msra.mxu0 %v2493
    %2640 = vmatprep.subr.mxu0 0.0
    %2641 = vmatpush2.msra.mxu0 0.0
    %2642 = vmatprep.subr.mxu0 0.0
    %2643 = vmatpush2.msra.mxu0 0.0
    %2644 = vmatprep.subr.mxu0 0.0
    %2645 = vmatpush2.msra.mxu0 0.0
    %2646 = vmatprep.subr.mxu0 0.0
    %2647 = vmatpush2.msra.mxu0 0.0
    %2648 = vmatprep.subr.mxu0 0.0
    %2649 = vmatpush2.msra.mxu0 0.0
    %2650 = vmatprep.subr.mxu0 0.0
    %2651 = vmatpush2.msra.mxu0 0.0
    %2652 = vmatprep.subr.mxu0 0.0
    %2653 = vmatpush2.msra.mxu0 0.0
    %2654 = vmatprep.subr.mxu0 0.0
    %2655 = vmatpush2.msra.mxu0 0.0
    %2656 = vmatprep.subr.mxu0 0.0
    %2657 = vmatpush2.msra.mxu0 0.0
    %2658 = vmatprep.subr.mxu0 0.0
    %2659 = vmatpush2.msra.mxu0 0.0
    %2660 = vmatprep.subr.mxu0 0.0
    %2661 = vmatpush2.msra.mxu0 0.0
    %2662 = vmatprep.subr.mxu0 0.0
    %2663 = vmatpush2.msra.mxu0 0.0
    %2664 = vmatprep.subr.mxu0 0.0
    %2665 = vmatpush2.msra.mxu0 0.0
    %2666 = vmatprep.subr.mxu0 0.0
    %2667 = vmatpush2.msra.mxu0 0.0
    %2668 = vmatprep.subr.mxu0 0.0
    %2669 = vmatpush2.msra.mxu0 0.0
    %2670 = vmatprep.subr.mxu0 0.0
    %2671 = vmatpush2.msra.mxu0 0.0
    %2672 = vmatprep.mubr.f32.mxu0 0.0
    %2673 = vmatmul.mubr.f32.gmra.mxu0 %v2603
    %v2674 = vpop.f32.mrf.mxu0
    %v2675 = vadd.f32 0.0, %v2674
    %v2676 = vpop.f32.mrf.mxu0
    %2677 = vmatprep.mubr.f32.mxu0 0.0
    %2678 = vmatmul.mubr.f32.gmra.mxu0 %v2606
    %v2679 = vpop.f32.mrf.mxu0
    %v2680 = vadd.f32 0.0, %v2679
    %v2681 = vpop.f32.mrf.mxu0
    %2682 = vdwg.mxu0
    %v2683 = vadd.f32 %v2483, %v2675
    %v2684 = vadd.f32 %v2488, %v2680
    %v2685 = vmul.f32 %v2012, %v123
    %v2686 = vmul.f32 %v2017, %v123
    %v2687 = vmul.f32 %v2093, %v123
    %v2688 = vmul.f32 %v2098, %v123
    %v2690 = vsel %vm240, %v2685, 0
    %v2693 = vsel %vm240, %v2686, 0
    %2695 = vmatprep.subr.mxu0 0.0
    %2696 = vmatpush1.xpose.msra.mxu0 0.0
    %2697 = vmatprep.subr.mxu0 0.0
    %2698 = vmatpush1.xpose.msra.mxu0 0.0
    %2699 = vmatprep.subr.mxu0 0.0
    %2700 = vmatpush1.xpose.msra.mxu0 0.0
    %2701 = vmatprep.subr.mxu0 0.0
    %2702 = vmatpush1.xpose.msra.mxu0 0.0
    %2703 = vmatprep.subr.mxu0 0.0
    %2704 = vmatpush1.xpose.msra.mxu0 0.0
    %2705 = vmatprep.subr.mxu0 0.0
    %2706 = vmatpush1.xpose.msra.mxu0 0.0
    %2707 = vmatprep.subr.mxu0 0.0
    %2708 = vmatpush1.xpose.msra.mxu0 0.0
    %2709 = vmatprep.subr.mxu0 0.0
    %2710 = vmatpush1.xpose.msra.mxu0 0.0
    %2711 = vmatprep.subr.mxu0 0.0
    %2712 = vmatpush1.xpose.msra.mxu0 0.0
    %2713 = vmatprep.subr.mxu0 0.0
    %2714 = vmatpush1.xpose.msra.mxu0 0.0
    %2715 = vmatprep.subr.mxu0 0.0
    %2716 = vmatpush1.xpose.msra.mxu0 0.0
    %2717 = vmatprep.subr.mxu0 0.0
    %2718 = vmatpush1.xpose.msra.mxu0 0.0
    %2719 = vmatprep.subr.mxu0 0.0
    %2720 = vmatpush1.xpose.msra.mxu0 0.0
    %2721 = vmatprep.subr.mxu0 0.0
    %2722 = vmatpush1.xpose.msra.mxu0 0.0
    %2723 = vmatprep.subr.mxu0 0.0
    %2724 = vmatpush1.xpose.msra.mxu0 %v2693
    %2725 = vmatprep.subr.mxu0 0.0
    %2726 = vmatpush1.xpose.msra.mxu0 %v2690
    %2727 = vmatprep.subr.mxu0 0.0
    %2728 = vmatpush2.xpose.msra.mxu0 0.0
    %2729 = vmatprep.subr.mxu0 0.0
    %2730 = vmatpush2.xpose.msra.mxu0 0.0
    %2731 = vmatprep.subr.mxu0 0.0
    %2732 = vmatpush2.xpose.msra.mxu0 0.0
    %2733 = vmatprep.subr.mxu0 0.0
    %2734 = vmatpush2.xpose.msra.mxu0 0.0
    %2735 = vmatprep.subr.mxu0 0.0
    %2736 = vmatpush2.xpose.msra.mxu0 0.0
    %2737 = vmatprep.subr.mxu0 0.0
    %2738 = vmatpush2.xpose.msra.mxu0 0.0
    %2739 = vmatprep.subr.mxu0 0.0
    %2740 = vmatpush2.xpose.msra.mxu0 0.0
    %2741 = vmatprep.subr.mxu0 0.0
    %2742 = vmatpush2.xpose.msra.mxu0 0.0
    %2743 = vmatprep.subr.mxu0 0.0
    %2744 = vmatpush2.xpose.msra.mxu0 0.0
    %2745 = vmatprep.subr.mxu0 0.0
    %2746 = vmatpush2.xpose.msra.mxu0 0.0
    %2747 = vmatprep.subr.mxu0 0.0
    %2748 = vmatpush2.xpose.msra.mxu0 0.0
    %2749 = vmatprep.subr.mxu0 0.0
    %2750 = vmatpush2.xpose.msra.mxu0 0.0
    %2751 = vmatprep.subr.mxu0 0.0
    %2752 = vmatpush2.xpose.msra.mxu0 0.0
    %2753 = vmatprep.subr.mxu0 0.0
    %2754 = vmatpush2.xpose.msra.mxu0 0.0
    %2755 = vmatprep.subr.mxu0 0.0
    %2756 = vmatpush2.xpose.msra.mxu0 0.0
    %2757 = vmatprep.subr.mxu0 0.0
    %2758 = vmatpush2.xpose.msra.mxu0 0.0
    %2759 = vmatprep.mubr.f32.mxu0 0.0
    %2760 = vmatmul.mubr.f32.gmra.mxu0 %v2106
    %v2761 = vpop.f32.mrf.mxu0
    %v2762 = vadd.f32 0.0, %v2761
    %v2763 = vpop.f32.mrf.mxu0
    %2764 = vmatprep.mubr.f32.mxu0 0.0
    %2765 = vmatmul.mubr.f32.gmra.mxu0 %v2109
    %v2766 = vpop.f32.mrf.mxu0
    %v2767 = vadd.f32 0.0, %v2766
    %v2768 = vpop.f32.mrf.mxu0
    %2769 = vdwg.mxu0
    %v2770 = vmul.f32 %v2762, 0.28867513
    %v2771 = vmul.f32 %v2767, 0.28867513
    %v2772 = vadd.f32 %v2770, %v124
    %v2773 = vadd.f32 %v2771, %v125
    %v2774 = vsel %vm700, %v2772, -inf
    %2775 = vmax.xlane.f32.xlu0 %v2774
    %v2776 = vpop.xlane.xlu0 %2775
    %v2777 = vsel %vm700, %v2773, -inf
    %2778 = vmax.xlane.f32.xlu0 %v2777
    %v2779 = vpop.xlane.xlu0 %2778
    %v2780 = vsub.f32 %v2772, %v2776
    %v2781 = vsub.f32 %v2773, %v2779
    %v2782 = vmul.f32 %v2780, 1.442695
    %v2783 = vpow.pop %v2782
    %v2784 = vmul.f32 %v2781, 1.442695
    %v2785 = vpow.pop %v2784
    %v2786 = vsel %vm700, %v2783, 0.0
    %2787 = vadd.xlane.f32.xlu0 %v2786
    %v2788 = vpop.xlane.xlu0 %2787
    %v2789 = vsel %vm700, %v2785, 0.0
    %2790 = vadd.xlane.f32.xlu0 %v2789
    %v2791 = vpop.xlane.xlu0 %2790
    %v2792 = vrcp.pop %v2788
    %v2793 = vmul.f32 %v2783, %v2792
    %v2794 = vrcp.pop %v2791
    %v2795 = vmul.f32 %v2785, %v2794
    %v2797 = vsel %vm700, %v2793, 0
    %v2800 = vsel %vm700, %v2795, 0
    %2802 = vmatprep.subr.mxu0 0.0
    %2803 = vmatpush1.msra.mxu0 0.0
    %2804 = vmatprep.subr.mxu0 0.0
    %2805 = vmatpush1.msra.mxu0 0.0
    %2806 = vmatprep.subr.mxu0 0.0
    %2807 = vmatpush1.msra.mxu0 0.0
    %2808 = vmatprep.subr.mxu0 0.0
    %2809 = vmatpush1.msra.mxu0 0.0
    %2810 = vmatprep.subr.mxu0 0.0
    %2811 = vmatpush1.msra.mxu0 0.0
    %2812 = vmatprep.subr.mxu0 0.0
    %2813 = vmatpush1.msra.mxu0 0.0
    %2814 = vmatprep.subr.mxu0 0.0
    %2815 = vmatpush1.msra.mxu0 0.0
    %2816 = vmatprep.subr.mxu0 0.0
    %2817 = vmatpush1.msra.mxu0 0.0
    %2818 = vmatprep.subr.mxu0 0.0
    %2819 = vmatpush1.msra.mxu0 0.0
    %2820 = vmatprep.subr.mxu0 0.0
    %2821 = vmatpush1.msra.mxu0 0.0
    %2822 = vmatprep.subr.mxu0 0.0
    %2823 = vmatpush1.msra.mxu0 0.0
    %2824 = vmatprep.subr.mxu0 0.0
    %2825 = vmatpush1.msra.mxu0 0.0
    %2826 = vmatprep.subr.mxu0 0.0
    %2827 = vmatpush1.msra.mxu0 0.0
    %2828 = vmatprep.subr.mxu0 0.0
    %2829 = vmatpush1.msra.mxu0 0.0
    %2830 = vmatprep.subr.mxu0 0.0
    %2831 = vmatpush1.msra.mxu0 %v2688
    %2832 = vmatprep.subr.mxu0 0.0
    %2833 = vmatpush1.msra.mxu0 %v2687
    %2834 = vmatprep.subr.mxu0 0.0
    %2835 = vmatpush2.msra.mxu0 0.0
    %2836 = vmatprep.subr.mxu0 0.0
    %2837 = vmatpush2.msra.mxu0 0.0
    %2838 = vmatprep.subr.mxu0 0.0
    %2839 = vmatpush2.msra.mxu0 0.0
    %2840 = vmatprep.subr.mxu0 0.0
    %2841 = vmatpush2.msra.mxu0 0.0
    %2842 = vmatprep.subr.mxu0 0.0
    %2843 = vmatpush2.msra.mxu0 0.0
    %2844 = vmatprep.subr.mxu0 0.0
    %2845 = vmatpush2.msra.mxu0 0.0
    %2846 = vmatprep.subr.mxu0 0.0
    %2847 = vmatpush2.msra.mxu0 0.0
    %2848 = vmatprep.subr.mxu0 0.0
    %2849 = vmatpush2.msra.mxu0 0.0
    %2850 = vmatprep.subr.mxu0 0.0
    %2851 = vmatpush2.msra.mxu0 0.0
    %2852 = vmatprep.subr.mxu0 0.0
    %2853 = vmatpush2.msra.mxu0 0.0
    %2854 = vmatprep.subr.mxu0 0.0
    %2855 = vmatpush2.msra.mxu0 0.0
    %2856 = vmatprep.subr.mxu0 0.0
    %2857 = vmatpush2.msra.mxu0 0.0
    %2858 = vmatprep.subr.mxu0 0.0
    %2859 = vmatpush2.msra.mxu0 0.0
    %2860 = vmatprep.subr.mxu0 0.0
    %2861 = vmatpush2.msra.mxu0 0.0
    %2862 = vmatprep.subr.mxu0 0.0
    %2863 = vmatpush2.msra.mxu0 0.0
    %2864 = vmatprep.subr.mxu0 0.0
    %2865 = vmatpush2.msra.mxu0 0.0
    %2866 = vmatprep.mubr.f32.mxu0 0.0
    %2867 = vmatmul.mubr.f32.gmra.mxu0 %v2797
    %v2868 = vpop.f32.mrf.mxu0
    %v2869 = vadd.f32 0.0, %v2868
    %v2870 = vpop.f32.mrf.mxu0
    %2871 = vmatprep.mubr.f32.mxu0 0.0
    %2872 = vmatmul.mubr.f32.gmra.mxu0 %v2800
    %v2873 = vpop.f32.mrf.mxu0
    %v2874 = vadd.f32 0.0, %v2873
    %v2875 = vpop.f32.mrf.mxu0
    %2876 = vdwg.mxu0
    %v2877 = vadd.f32 %v2683, %v2869
    %v2878 = vadd.f32 %v2684, %v2874
    %v2880 = vlaneseq
    %v2881 = vshrl.u32 %v2880, 7
    %v2882 = vsub.s32 0, %v2881
    %v2883 = vrot.slane %v1851, %v2882
    %v2886 = vsel %vm240, %v2877, 0
    %v2889 = vsel %vm240, %v2878, 0
    %2891 = vmatprep.subr.mxu0 0.0
    %2892 = vmatpush1.msra.mxu0 0.0
    %2893 = vmatprep.subr.mxu0 0.0
    %2894 = vmatpush1.msra.mxu0 0.0
    %2895 = vmatprep.subr.mxu0 0.0
    %2896 = vmatpush1.msra.mxu0 0.0
    %2897 = vmatprep.subr.mxu0 0.0
    %2898 = vmatpush1.msra.mxu0 0.0
    %2899 = vmatprep.subr.mxu0 0.0
    %2900 = vmatpush1.msra.mxu0 0.0
    %2901 = vmatprep.subr.mxu0 0.0
    %2902 = vmatpush1.msra.mxu0 0.0
    %2903 = vmatprep.subr.mxu0 0.0
    %2904 = vmatpush1.msra.mxu0 0.0
    %2905 = vmatprep.subr.mxu0 0.0
    %2906 = vmatpush1.msra.mxu0 0.0
    %2907 = vmatprep.subr.mxu0 0.0
    %2908 = vmatpush1.msra.mxu0 0.0
    %2909 = vmatprep.subr.mxu0 0.0
    %2910 = vmatpush1.msra.mxu0 0.0
    %2911 = vmatprep.subr.mxu0 0.0
    %2912 = vmatpush1.msra.mxu0 %v1849
    %2913 = vmatprep.subr.mxu0 0.0
    %2914 = vmatpush1.msra.mxu0 %v1848
    %2915 = vmatprep.subr.mxu0 0.0
    %2916 = vmatpush1.msra.mxu0 %v1847
    %2917 = vmatprep.subr.mxu0 0.0
    %2918 = vmatpush1.msra.mxu0 %v1846
    %2919 = vmatprep.subr.mxu0 0.0
    %2920 = vmatpush1.msra.mxu0 %v1845
    %2921 = vmatprep.subr.mxu0 0.0
    %2922 = vmatpush1.msra.mxu0 %v1844
    %2923 = vmatprep.subr.mxu0 0.0
    %2924 = vmatpush2.msra.mxu0 0.0
    %2925 = vmatprep.subr.mxu0 0.0
    %2926 = vmatpush2.msra.mxu0 0.0
    %2927 = vmatprep.subr.mxu0 0.0
    %2928 = vmatpush2.msra.mxu0 0.0
    %2929 = vmatprep.subr.mxu0 0.0
    %2930 = vmatpush2.msra.mxu0 0.0
    %2931 = vmatprep.subr.mxu0 0.0
    %2932 = vmatpush2.msra.mxu0 0.0
    %2933 = vmatprep.subr.mxu0 0.0
    %2934 = vmatpush2.msra.mxu0 0.0
    %2935 = vmatprep.subr.mxu0 0.0
    %2936 = vmatpush2.msra.mxu0 0.0
    %2937 = vmatprep.subr.mxu0 0.0
    %2938 = vmatpush2.msra.mxu0 0.0
    %2939 = vmatprep.subr.mxu0 0.0
    %2940 = vmatpush2.msra.mxu0 0.0
    %2941 = vmatprep.subr.mxu0 0.0
    %2942 = vmatpush2.msra.mxu0 0.0
    %2943 = vmatprep.subr.mxu0 0.0
    %2944 = vmatpush2.msra.mxu0 0.0
    %2945 = vmatprep.subr.mxu0 0.0
    %2946 = vmatpush2.msra.mxu0 0.0
    %2947 = vmatprep.subr.mxu0 0.0
    %2948 = vmatpush2.msra.mxu0 0.0
    %2949 = vmatprep.subr.mxu0 0.0
    %2950 = vmatpush2.msra.mxu0 0.0
    %2951 = vmatprep.subr.mxu0 0.0
    %2952 = vmatpush2.msra.mxu0 0.0
    %2953 = vmatprep.subr.mxu0 0.0
    %2954 = vmatpush2.msra.mxu0 0.0
    %2955 = vmatprep.mubr.f32.mxu0 0.0
    %2956 = vmatmul.mubr.f32.gmra.mxu0 %v2886
    %v2957 = vpop.f32.mrf.mxu0
    %v2958 = vadd.f32 %v2883, %v2957
    %v2959 = vpop.f32.mrf.mxu0
    %2960 = vmatprep.mubr.f32.mxu0 0.0
    %2961 = vmatmul.mubr.f32.gmra.mxu0 %v2889
    %v2962 = vpop.f32.mrf.mxu0
    %v2963 = vadd.f32 %v2883, %v2962
    %v2964 = vpop.f32.mrf.mxu0
    %2965 = vdwg.mxu0
    %v2966 = vadd.f32 %v1768, %v2958
    %v2967 = vadd.f32 %v1769, %v2963
    %s2968 = scalar_lea.vmem %s17, 1
    %v2969 = vld [vmem:[%s2968] sm:$0x1]
    %s2970 = scalar_lea.vmem %s18, 1
    %v2971 = vld [vmem:[%s2970] sm:$0x1]
    %v2972 = vsel %vm240, %v2966, 0.0
    %2973 = vadd.xlane.f32.xlu0 %v2972
    %v2974 = vpop.xlane.xlu0 %2973
    %v2975 = vsel %vm240, %v2967, 0.0
    %2976 = vadd.xlane.f32.xlu0 %v2975
    %v2977 = vpop.xlane.xlu0 %2976
    %v2978 = vmul.f32 %v2974, %v247
    %v2979 = vmul.f32 %v2977, %v247
    %v2980 = vsub.f32 %v2966, %v2978
    %v2981 = vsub.f32 %v2967, %v2979
    %v2982 = vmul.f32 %v2980, %v2980
    %v2983 = vmul.f32 %v2981, %v2981
    %v2984 = vsel %vm240, %v2982, 0.0
    %2985 = vadd.xlane.f32.xlu0 %v2984
    %v2986 = vpop.xlane.xlu0 %2985
    %v2987 = vsel %vm240, %v2983, 0.0
    %2988 = vadd.xlane.f32.xlu0 %v2987
    %v2989 = vpop.xlane.xlu0 %2988
    %v2990 = vmul.f32 %v2986, %v247
    %v2991 = vmul.f32 %v2989, %v247
    %v2992 = vadd.f32 %v2990, 1e-05
    %v2993 = vadd.f32 %v2991, 1e-05
    %v2994 = vrsqrt.pop %v2992
    %v2995 = vrsqrt.pop %v2993
    %v2996 = vmul.f32 %v2980, %v2994
    %v2997 = vmul.f32 %v2981, %v2995
    %v2999 = vlaneseq
    %v3000 = vshrl.u32 %v2999, 7
    %v3001 = vsub.s32 0, %v3000
    %v3002 = vrot.slane %v2969, %v3001
    %v3004 = vmul.f32 %v2996, %v3002
    %v3005 = vmul.f32 %v2997, %v3002
    %v3007 = vlaneseq
    %v3008 = vshrl.u32 %v3007, 7
    %v3009 = vsub.s32 0, %v3008
    %v3010 = vrot.slane %v2971, %v3009
    %v3012 = vadd.f32 %v3004, %v3010
    %v3013 = vadd.f32 %v3005, %v3010
    %s3014 = scalar_lea.vmem %s19, 96
    %v3015 = vld [vmem:[%s3014] sm:$0xff]
    %v3016 = vld [vmem:[%s3014 + $0x8] sm:$0xff]
    %v3017 = vld [vmem:[%s3014 + $0x10] sm:$0xff]
    %v3018 = vld [vmem:[%s3014 + $0x18] sm:$0xff]
    %v3019 = vld [vmem:[%s3014 + $0x20] sm:$0xff]
    %v3020 = vld [vmem:[%s3014 + $0x28] sm:$0xff]
    %v3021 = vld [vmem:[%s3014 + $0x30] sm:$0xff]
    %v3022 = vld [vmem:[%s3014 + $0x38] sm:$0xff]
    %v3023 = vld [vmem:[%s3014 + $0x40] sm:$0xff]
    %v3024 = vld [vmem:[%s3014 + $0x48] sm:$0xff]
    %v3025 = vld [vmem:[%s3014 + $0x50] sm:$0xff]
    %v3026 = vld [vmem:[%s3014 + $0x58] sm:$0xff]
    %s3027 = scalar_lea.vmem %s20, 2
    %v3028 = vld [vmem:[%s3027] sm:$0x3]
    %v3030 = vlaneseq
    %v3031 = vshrl.u32 %v3030, 7
    %v3032 = vsub.s32 0, %v3031
    %v3033 = vrot.slane %v3028, %v3032
    %v3034 = vlaneseq
    %v3035 = vshrl.u32 %v3034, 7
    %v3036 = vsub.s32 1, %v3035
    %v3037 = vrot.slane %v3028, %v3036
    %v3041 = vsel %vm240, %v3012, 0
    %v3044 = vsel %vm240, %v3013, 0
    %3046 = vmatprep.subr.mxu0 0.0
    %3047 = vmatpush1.msra.mxu0 0.0
    %3048 = vmatprep.subr.mxu0 0.0
    %3049 = vmatpush1.msra.mxu0 0.0
    %3050 = vmatprep.subr.mxu0 0.0
    %3051 = vmatpush1.msra.mxu0 0.0
    %3052 = vmatprep.subr.mxu0 0.0
    %3053 = vmatpush1.msra.mxu0 0.0
    %3054 = vmatprep.subr.mxu0 0.0
    %3055 = vmatpush1.msra.mxu0 0.0
    %3056 = vmatprep.subr.mxu0 0.0
    %3057 = vmatpush1.msra.mxu0 0.0
    %3058 = vmatprep.subr.mxu0 0.0
    %3059 = vmatpush1.msra.mxu0 0.0
    %3060 = vmatprep.subr.mxu0 0.0
    %3061 = vmatpush1.msra.mxu0 0.0
    %3062 = vmatprep.subr.mxu0 0.0
    %3063 = vmatpush1.msra.mxu0 0.0
    %3064 = vmatprep.subr.mxu0 0.0
    %3065 = vmatpush1.msra.mxu0 0.0
    %3066 = vmatprep.subr.mxu0 %v3026
    %3067 = vmatpush1.msra.mxu0 %v3025
    %3068 = vmatprep.subr.mxu0 %v3024
    %3069 = vmatpush1.msra.mxu0 %v3023
    %3070 = vmatprep.subr.mxu0 %v3022
    %3071 = vmatpush1.msra.mxu0 %v3021
    %3072 = vmatprep.subr.mxu0 %v3020
    %3073 = vmatpush1.msra.mxu0 %v3019
    %3074 = vmatprep.subr.mxu0 %v3018
    %3075 = vmatpush1.msra.mxu0 %v3017
    %3076 = vmatprep.subr.mxu0 %v3016
    %3077 = vmatpush1.msra.mxu0 %v3015
    %3078 = vmatprep.subr.mxu0 0.0
    %3079 = vmatpush2.msra.mxu0 0.0
    %3080 = vmatprep.subr.mxu0 0.0
    %3081 = vmatpush2.msra.mxu0 0.0
    %3082 = vmatprep.subr.mxu0 0.0
    %3083 = vmatpush2.msra.mxu0 0.0
    %3084 = vmatprep.subr.mxu0 0.0
    %3085 = vmatpush2.msra.mxu0 0.0
    %3086 = vmatprep.subr.mxu0 0.0
    %3087 = vmatpush2.msra.mxu0 0.0
    %3088 = vmatprep.subr.mxu0 0.0
    %3089 = vmatpush2.msra.mxu0 0.0
    %3090 = vmatprep.subr.mxu0 0.0
    %3091 = vmatpush2.msra.mxu0 0.0
    %3092 = vmatprep.subr.mxu0 0.0
    %3093 = vmatpush2.msra.mxu0 0.0
    %3094 = vmatprep.subr.mxu0 0.0
    %3095 = vmatpush2.msra.mxu0 0.0
    %3096 = vmatprep.subr.mxu0 0.0
    %3097 = vmatpush2.msra.mxu0 0.0
    %3098 = vmatprep.subr.mxu0 0.0
    %3099 = vmatpush2.msra.mxu0 0.0
    %3100 = vmatprep.subr.mxu0 0.0
    %3101 = vmatpush2.msra.mxu0 0.0
    %3102 = vmatprep.subr.mxu0 0.0
    %3103 = vmatpush2.msra.mxu0 0.0
    %3104 = vmatprep.subr.mxu0 0.0
    %3105 = vmatpush2.msra.mxu0 0.0
    %3106 = vmatprep.subr.mxu0 0.0
    %3107 = vmatpush2.msra.mxu0 0.0
    %3108 = vmatprep.subr.mxu0 0.0
    %3109 = vmatpush2.msra.mxu0 0.0
    %3110 = vmatprep.mubr.f32.mxu0 0.0
    %3111 = vmatmul.mubr.f32.gmra.mxu0 %v3041
    %v3112 = vpop.f32.mrf.mxu0
    %v3113 = vadd.f32 %v3033, %v3112
    %v3114 = vpop.f32.mrf.mxu0
    %v3115 = vadd.f32 %v3037, %v3114
    %3116 = vmatprep.mubr.f32.mxu0 0.0
    %3117 = vmatmul.mubr.f32.gmra.mxu0 %v3044
    %v3118 = vpop.f32.mrf.mxu0
    %v3119 = vadd.f32 %v3033, %v3118
    %v3120 = vpop.f32.mrf.mxu0
    %v3121 = vadd.f32 %v3037, %v3120
    %3122 = vdwg.mxu0
    %v3123 = vmul.f32 %v3113, 1.702
    %v3124 = vmul.f32 %v3115, 1.702
    %v3125 = vmul.f32 %v3119, 1.702
    %v3126 = vmul.f32 %v3121, 1.702
    %v3127 = vxor.u32 %v3123, 2147483648
    %v3128 = vxor.u32 %v3124, 2147483648
    %v3129 = vxor.u32 %v3125, 2147483648
    %v3130 = vxor.u32 %v3126, 2147483648
    %v3131 = vmul.f32 %v3127, 1.442695
    %v3132 = vpow.pop %v3131
    %v3133 = vmul.f32 %v3128, 1.442695
    %v3134 = vpow.pop %v3133
    %v3135 = vmul.f32 %v3129, 1.442695
    %v3136 = vpow.pop %v3135
    %v3137 = vmul.f32 %v3130, 1.442695
    %v3138 = vpow.pop %v3137
    %v3139 = vadd.f32 %v3132, 1.0
    %v3140 = vadd.f32 %v3134, 1.0
    %v3141 = vadd.f32 %v3136, 1.0
    %v3142 = vadd.f32 %v3138, 1.0
    %v3143 = vrcp.pop %v3139
    %v3144 = vmul.f32 1.0, %v3143
    %v3145 = vrcp.pop %v3140
    %v3146 = vmul.f32 1.0, %v3145
    %v3147 = vrcp.pop %v3141
    %v3148 = vmul.f32 1.0, %v3147
    %v3149 = vrcp.pop %v3142
    %v3150 = vmul.f32 1.0, %v3149
    %v3151 = vmul.f32 %v3113, %v3144
    %v3152 = vmul.f32 %v3115, %v3146
    %v3153 = vmul.f32 %v3119, %v3148
    %v3154 = vmul.f32 %v3121, %v3150
    %s3155 = scalar_lea.vmem %s21, 192
    %v3156 = vld [vmem:[%s3155] sm:$0xff]
    %v3157 = vld [vmem:[%s3155 + $0x8] sm:$0xff]
    %v3158 = vld [vmem:[%s3155 + $0x10] sm:$0xff]
    %v3159 = vld [vmem:[%s3155 + $0x18] sm:$0xff]
    %v3160 = vld [vmem:[%s3155 + $0x20] sm:$0xff]
    %v3161 = vld [vmem:[%s3155 + $0x28] sm:$0xff]
    %v3162 = vld [vmem:[%s3155 + $0x30] sm:$0xff]
    %v3163 = vld [vmem:[%s3155 + $0x38] sm:$0xff]
    %v3164 = vld [vmem:[%s3155 + $0x40] sm:$0xff]
    %v3165 = vld [vmem:[%s3155 + $0x48] sm:$0xff]
    %v3166 = vld [vmem:[%s3155 + $0x50] sm:$0xff]
    %v3167 = vld [vmem:[%s3155 + $0x58] sm:$0xff]
    %v3168 = vld [vmem:[%s3155 + $0x60] sm:$0xff]
    %v3169 = vld [vmem:[%s3155 + $0x68] sm:$0xff]
    %v3170 = vld [vmem:[%s3155 + $0x70] sm:$0xff]
    %v3171 = vld [vmem:[%s3155 + $0x78] sm:$0xff]
    %v3172 = vld [vmem:[%s3155 + $0x80] sm:$0xff]
    %v3173 = vld [vmem:[%s3155 + $0x88] sm:$0xff]
    %v3174 = vld [vmem:[%s3155 + $0x90] sm:$0xff]
    %v3175 = vld [vmem:[%s3155 + $0x98] sm:$0xff]
    %v3176 = vld [vmem:[%s3155 + $0xa0] sm:$0xff]
    %v3177 = vld [vmem:[%s3155 + $0xa8] sm:$0xff]
    %v3178 = vld [vmem:[%s3155 + $0xb0] sm:$0xff]
    %v3179 = vld [vmem:[%s3155 + $0xb8] sm:$0xff]
    %s3180 = scalar_lea.vmem %s22, 1
    %v3181 = vld [vmem:[%s3180] sm:$0x1]
    %v3183 = vlaneseq
    %v3184 = vshrl.u32 %v3183, 7
    %v3185 = vsub.s32 0, %v3184
    %v3186 = vrot.slane %v3181, %v3185
    %v3189 = vsel %vm156, %v3152, 0
    %v3192 = vsel %vm156, %v3154, 0
    %3194 = vmatprep.subr.mxu0 0.0
    %3195 = vmatpush1.msra.mxu0 %v3171
    %3196 = vmatprep.subr.mxu0 0.0
    %3197 = vmatpush1.msra.mxu0 %v3170
    %3198 = vmatprep.subr.mxu0 0.0
    %3199 = vmatpush1.msra.mxu0 %v3169
    %3200 = vmatprep.subr.mxu0 0.0
    %3201 = vmatpush1.msra.mxu0 %v3168
    %3202 = vmatprep.subr.mxu0 0.0
    %3203 = vmatpush1.msra.mxu0 %v3167
    %3204 = vmatprep.subr.mxu0 0.0
    %3205 = vmatpush1.msra.mxu0 %v3166
    %3206 = vmatprep.subr.mxu0 0.0
    %3207 = vmatpush1.msra.mxu0 %v3165
    %3208 = vmatprep.subr.mxu0 0.0
    %3209 = vmatpush1.msra.mxu0 %v3164
    %3210 = vmatprep.subr.mxu0 0.0
    %3211 = vmatpush1.msra.mxu0 %v3163
    %3212 = vmatprep.subr.mxu0 0.0
    %3213 = vmatpush1.msra.mxu0 %v3162
    %3214 = vmatprep.subr.mxu0 0.0
    %3215 = vmatpush1.msra.mxu0 %v3161
    %3216 = vmatprep.subr.mxu0 0.0
    %3217 = vmatpush1.msra.mxu0 %v3160
    %3218 = vmatprep.subr.mxu0 0.0
    %3219 = vmatpush1.msra.mxu0 %v3159
    %3220 = vmatprep.subr.mxu0 0.0
    %3221 = vmatpush1.msra.mxu0 %v3158
    %3222 = vmatprep.subr.mxu0 0.0
    %3223 = vmatpush1.msra.mxu0 %v3157
    %3224 = vmatprep.subr.mxu0 0.0
    %3225 = vmatpush1.msra.mxu0 %v3156
    %3226 = vmatprep.subr.mxu0 0.0
    %3227 = vmatpush2.msra.mxu0 0.0
    %3228 = vmatprep.subr.mxu0 0.0
    %3229 = vmatpush2.msra.mxu0 0.0
    %3230 = vmatprep.subr.mxu0 0.0
    %3231 = vmatpush2.msra.mxu0 0.0
    %3232 = vmatprep.subr.mxu0 0.0
    %3233 = vmatpush2.msra.mxu0 0.0
    %3234 = vmatprep.subr.mxu0 0.0
    %3235 = vmatpush2.msra.mxu0 0.0
    %3236 = vmatprep.subr.mxu0 0.0
    %3237 = vmatpush2.msra.mxu0 0.0
    %3238 = vmatprep.subr.mxu0 0.0
    %3239 = vmatpush2.msra.mxu0 0.0
    %3240 = vmatprep.subr.mxu0 0.0
    %3241 = vmatpush2.msra.mxu0 0.0
    %3242 = vmatprep.subr.mxu0 0.0
    %3243 = vmatpush2.msra.mxu0 %v3179
    %3244 = vmatprep.subr.mxu0 0.0
    %3245 = vmatpush2.msra.mxu0 %v3178
    %3246 = vmatprep.subr.mxu0 0.0
    %3247 = vmatpush2.msra.mxu0 %v3177
    %3248 = vmatprep.subr.mxu0 0.0
    %3249 = vmatpush2.msra.mxu0 %v3176
    %3250 = vmatprep.subr.mxu0 0.0
    %3251 = vmatpush2.msra.mxu0 %v3175
    %3252 = vmatprep.subr.mxu0 0.0
    %3253 = vmatpush2.msra.mxu0 %v3174
    %3254 = vmatprep.subr.mxu0 0.0
    %3255 = vmatpush2.msra.mxu0 %v3173
    %3256 = vmatprep.subr.mxu0 0.0
    %3257 = vmatpush2.msra.mxu0 %v3172
    %3258 = vmatprep.mubr.f32.mxu0 %v3189
    %3259 = vmatmul.mubr.f32.gmra.mxu0 %v3151
    %v3260 = vpop.f32.mrf.mxu0
    %v3261 = vadd.f32 %v3186, %v3260
    %v3262 = vpop.f32.mrf.mxu0
    %3263 = vmatprep.mubr.f32.mxu0 %v3192
    %3264 = vmatmul.mubr.f32.gmra.mxu0 %v3153
    %v3265 = vpop.f32.mrf.mxu0
    %v3266 = vadd.f32 %v3186, %v3265
    %v3267 = vpop.f32.mrf.mxu0
    %3268 = vdwg.mxu0
    %v3269 = vadd.f32 %v2966, %v3261
    %v3270 = vadd.f32 %v2967, %v3266
    %v3271 = vlaneseq
    %v3272 = vshrl.u32 %v3271, 7
    %v3273 = vmul.u32 %v3272, 8
    %vm3274 = vcmp.eq.s32.totalorder %v103, %v3273
    %v3275 = vsel %vm3274, 1, 0
    %v3276 = vcvt.s32.f32 %v3275
    %v3278 = vsel %vm700, %v3276, 0
    %3280 = vmatprep.subr.mxu0 0.0
    %3281 = vmatpush1.msra.mxu0 0.0
    %3282 = vmatprep.subr.mxu0 0.0
    %3283 = vmatpush1.msra.mxu0 0.0
    %3284 = vmatprep.subr.mxu0 0.0
    %3285 = vmatpush1.msra.mxu0 0.0
    %3286 = vmatprep.subr.mxu0 0.0
    %3287 = vmatpush1.msra.mxu0 0.0
    %3288 = vmatprep.subr.mxu0 0.0
    %3289 = vmatpush1.msra.mxu0 0.0
    %3290 = vmatprep.subr.mxu0 0.0
    %3291 = vmatpush1.msra.mxu0 0.0
    %3292 = vmatprep.subr.mxu0 0.0
    %3293 = vmatpush1.msra.mxu0 0.0
    %3294 = vmatprep.subr.mxu0 0.0
    %3295 = vmatpush1.msra.mxu0 0.0
    %3296 = vmatprep.subr.mxu0 0.0
    %3297 = vmatpush1.msra.mxu0 0.0
    %3298 = vmatprep.subr.mxu0 0.0
    %3299 = vmatpush1.msra.mxu0 0.0
    %3300 = vmatprep.subr.mxu0 0.0
    %3301 = vmatpush1.msra.mxu0 0.0
    %3302 = vmatprep.subr.mxu0 0.0
    %3303 = vmatpush1.msra.mxu0 0.0
    %3304 = vmatprep.subr.mxu0 0.0
    %3305 = vmatpush1.msra.mxu0 0.0
    %3306 = vmatprep.subr.mxu0 0.0
    %3307 = vmatpush1.msra.mxu0 0.0
    %3308 = vmatprep.subr.mxu0 0.0
    %3309 = vmatpush1.msra.mxu0 %v3270
    %3310 = vmatprep.subr.mxu0 0.0
    %3311 = vmatpush1.msra.mxu0 %v3269
    %3312 = vmatprep.subr.mxu0 0.0
    %3313 = vmatpush2.msra.mxu0 0.0
    %3314 = vmatprep.subr.mxu0 0.0
    %3315 = vmatpush2.msra.mxu0 0.0
    %3316 = vmatprep.subr.mxu0 0.0
    %3317 = vmatpush2.msra.mxu0 0.0
    %3318 = vmatprep.subr.mxu0 0.0
    %3319 = vmatpush2.msra.mxu0 0.0
    %3320 = vmatprep.subr.mxu0 0.0
    %3321 = vmatpush2.msra.mxu0 0.0
    %3322 = vmatprep.subr.mxu0 0.0
    %3323 = vmatpush2.msra.mxu0 0.0
    %3324 = vmatprep.subr.mxu0 0.0
    %3325 = vmatpush2.msra.mxu0 0.0
    %3326 = vmatprep.subr.mxu0 0.0
    %3327 = vmatpush2.msra.mxu0 0.0
    %3328 = vmatprep.subr.mxu0 0.0
    %3329 = vmatpush2.msra.mxu0 0.0
    %3330 = vmatprep.subr.mxu0 0.0
    %3331 = vmatpush2.msra.mxu0 0.0
    %3332 = vmatprep.subr.mxu0 0.0
    %3333 = vmatpush2.msra.mxu0 0.0
    %3334 = vmatprep.subr.mxu0 0.0
    %3335 = vmatpush2.msra.mxu0 0.0
    %3336 = vmatprep.subr.mxu0 0.0
    %3337 = vmatpush2.msra.mxu0 0.0
    %3338 = vmatprep.subr.mxu0 0.0
    %3339 = vmatpush2.msra.mxu0 0.0
    %3340 = vmatprep.subr.mxu0 0.0
    %3341 = vmatpush2.msra.mxu0 0.0
    %3342 = vmatprep.subr.mxu0 0.0
    %3343 = vmatpush2.msra.mxu0 0.0
    %3344 = vmatprep.mubr.f32.mxu0 0.0
    %3345 = vmatmul.mubr.f32.gmra.mxu0 %v3278
    %v3346 = vpop.f32.mrf.mxu0
    %v3347 = vadd.f32 0.0, %v3346
    %v3348 = vpop.f32.mrf.mxu0
    %3349 = vdwg.mxu0
    %v3350 = vld [vmem:[%s23] sm:$0x1]
    %v3351 = vld [vmem:[%s24] sm:$0x1]
    %vm3352 = vcmask 386048
    %v3353 = vsel %vm3352, %v3347, 0.0
    %3354 = vadd.xlane.f32.xlu0 %v3353
    %v3355 = vpop.xlane.xlu0 %3354
    %v3356 = vmul.f32 %v3355, %v247
    %v3357 = vsub.f32 %v3347, %v3356
    %v3358 = vmul.f32 %v3357, %v3357
    %v3359 = vsel %vm3352, %v3358, 0.0
    %3360 = vadd.xlane.f32.xlu0 %v3359
    %v3361 = vpop.xlane.xlu0 %3360
    %v3362 = vmul.f32 %v3361, %v247
    %v3363 = vadd.f32 %v3362, 1e-05
    %v3364 = vrsqrt.pop %v3363
    %v3365 = vmul.f32 %v3357, %v3364
    %v3367 = vlaneseq
    %v3368 = vshrl.u32 %v3367, 7
    %v3369 = vsub.s32 0, %v3368
    %v3370 = vrot.slane %v3350, %v3369
    %v3372 = vmul.f32 %v3365, %v3370
    %v3374 = vlaneseq
    %v3375 = vshrl.u32 %v3374, 7
    %v3376 = vsub.s32 0, %v3375
    %v3377 = vrot.slane %v3351, %v3376
    %v3379 = vadd.f32 %v3372, %v3377
    %v3380 = vld [vmem:[%s3] sm:$0x3]
    %v3381 = vld [vmem:[%s25] sm:$0xff]
    %v3382 = vld [vmem:[%s25 + $0x8] sm:$0xff]
    %v3383 = vld [vmem:[%s25 + $0x10] sm:$0xff]
    %v3384 = vld [vmem:[%s25 + $0x18] sm:$0xff]
    %v3385 = vld [vmem:[%s26] sm:$0xff]
    %v3386 = vld [vmem:[%s26 + $0x8] sm:$0xff]
    %v3387 = vld [vmem:[%s26 + $0x10] sm:$0xff]
    %v3388 = vld [vmem:[%s26 + $0x18] sm:$0xff]
    %v3389 = vld [vmem:[%s26 + $0x20] sm:$0xff]
    %v3390 = vld [vmem:[%s26 + $0x28] sm:$0xff]
    %v3392 = vsel %vm240, %v3379, 0
    %3394 = vmatprep.subr.mxu0 0.0
    %3395 = vmatpush1.msra.mxu0 0.0
    %3396 = vmatprep.subr.mxu0 0.0
    %3397 = vmatpush1.msra.mxu0 0.0
    %3398 = vmatprep.subr.mxu0 0.0
    %3399 = vmatpush1.msra.mxu0 0.0
    %3400 = vmatprep.subr.mxu0 0.0
    %3401 = vmatpush1.msra.mxu0 0.0
    %3402 = vmatprep.subr.mxu0 0.0
    %3403 = vmatpush1.msra.mxu0 0.0
    %3404 = vmatprep.subr.mxu0 0.0
    %3405 = vmatpush1.msra.mxu0 0.0
    %3406 = vmatprep.subr.mxu0 0.0
    %3407 = vmatpush1.msra.mxu0 0.0
    %3408 = vmatprep.subr.mxu0 0.0
    %3409 = vmatpush1.msra.mxu0 0.0
    %3410 = vmatprep.subr.mxu0 0.0
    %3411 = vmatpush1.msra.mxu0 0.0
    %3412 = vmatprep.subr.mxu0 0.0
    %3413 = vmatpush1.msra.mxu0 0.0
    %3414 = vmatprep.subr.mxu0 0.0
    %3415 = vmatpush1.msra.mxu0 %v3390
    %3416 = vmatprep.subr.mxu0 0.0
    %3417 = vmatpush1.msra.mxu0 %v3389
    %3418 = vmatprep.subr.mxu0 0.0
    %3419 = vmatpush1.msra.mxu0 %v3388
    %3420 = vmatprep.subr.mxu0 0.0
    %3421 = vmatpush1.msra.mxu0 %v3387
    %3422 = vmatprep.subr.mxu0 0.0
    %3423 = vmatpush1.msra.mxu0 %v3386
    %3424 = vmatprep.subr.mxu0 0.0
    %3425 = vmatpush1.msra.mxu0 %v3385
    %3426 = vmatprep.subr.mxu0 0.0
    %3427 = vmatpush2.msra.mxu0 0.0
    %3428 = vmatprep.subr.mxu0 0.0
    %3429 = vmatpush2.msra.mxu0 0.0
    %3430 = vmatprep.subr.mxu0 0.0
    %3431 = vmatpush2.msra.mxu0 0.0
    %3432 = vmatprep.subr.mxu0 0.0
    %3433 = vmatpush2.msra.mxu0 0.0
    %3434 = vmatprep.subr.mxu0 0.0
    %3435 = vmatpush2.msra.mxu0 0.0
    %3436 = vmatprep.subr.mxu0 0.0
    %3437 = vmatpush2.msra.mxu0 0.0
    %3438 = vmatprep.subr.mxu0 0.0
    %3439 = vmatpush2.msra.mxu0 0.0
    %3440 = vmatprep.subr.mxu0 0.0
    %3441 = vmatpush2.msra.mxu0 0.0
    %3442 = vmatprep.subr.mxu0 0.0
    %3443 = vmatpush2.msra.mxu0 0.0
    %3444 = vmatprep.subr.mxu0 0.0
    %3445 = vmatpush2.msra.mxu0 0.0
    %3446 = vmatprep.subr.mxu0 0.0
    %3447 = vmatpush2.msra.mxu0 0.0
    %3448 = vmatprep.subr.mxu0 0.0
    %3449 = vmatpush2.msra.mxu0 0.0
    %3450 = vmatprep.subr.mxu0 0.0
    %3451 = vmatpush2.msra.mxu0 0.0
    %3452 = vmatprep.subr.mxu0 0.0
    %3453 = vmatpush2.msra.mxu0 0.0
    %3454 = vmatprep.subr.mxu0 0.0
    %3455 = vmatpush2.msra.mxu0 0.0
    %3456 = vmatprep.subr.mxu0 0.0
    %3457 = vmatpush2.msra.mxu0 0.0
    %3458 = vmatprep.mubr.f32.mxu0 0.0
    %3459 = vmatmul.mubr.f32.gmra.mxu0 %v3392
    %v3460 = vpop.f32.mrf.mxu0
    %v3461 = vadd.f32 0.0, %v3460
    %v3462 = vpop.f32.mrf.mxu0
    %3463 = vdwg.mxu0
    %vm3464 = vcmask 261120
    %v3466 = vsel %vm3464, %v3380, 0
    %3468 = vmatprep.subr.mxu0 0.0
    %3469 = vmatpush1.msra.mxu0 0.0
    %3470 = vmatprep.subr.mxu0 0.0
    %3471 = vmatpush1.msra.mxu0 0.0
    %3472 = vmatprep.subr.mxu0 0.0
    %3473 = vmatpush1.msra.mxu0 0.0
    %3474 = vmatprep.subr.mxu0 0.0
    %3475 = vmatpush1.msra.mxu0 0.0
    %3476 = vmatprep.subr.mxu0 0.0
    %3477 = vmatpush1.msra.mxu0 0.0
    %3478 = vmatprep.subr.mxu0 0.0
    %3479 = vmatpush1.msra.mxu0 0.0
    %3480 = vmatprep.subr.mxu0 0.0
    %3481 = vmatpush1.msra.mxu0 0.0
    %3482 = vmatprep.subr.mxu0 0.0
    %3483 = vmatpush1.msra.mxu0 0.0
    %3484 = vmatprep.subr.mxu0 0.0
    %3485 = vmatpush1.msra.mxu0 0.0
    %3486 = vmatprep.subr.mxu0 0.0
    %3487 = vmatpush1.msra.mxu0 0.0
    %3488 = vmatprep.subr.mxu0 0.0
    %3489 = vmatpush1.msra.mxu0 0.0
    %3490 = vmatprep.subr.mxu0 0.0
    %3491 = vmatpush1.msra.mxu0 0.0
    %3492 = vmatprep.subr.mxu0 0.0
    %3493 = vmatpush1.msra.mxu0 %v3384
    %3494 = vmatprep.subr.mxu0 0.0
    %3495 = vmatpush1.msra.mxu0 %v3383
    %3496 = vmatprep.subr.mxu0 0.0
    %3497 = vmatpush1.msra.mxu0 %v3382
    %3498 = vmatprep.subr.mxu0 0.0
    %3499 = vmatpush1.msra.mxu0 %v3381
    %3500 = vmatprep.subr.mxu0 0.0
    %3501 = vmatpush2.msra.mxu0 0.0
    %3502 = vmatprep.subr.mxu0 0.0
    %3503 = vmatpush2.msra.mxu0 0.0
    %3504 = vmatprep.subr.mxu0 0.0
    %3505 = vmatpush2.msra.mxu0 0.0
    %3506 = vmatprep.subr.mxu0 0.0
    %3507 = vmatpush2.msra.mxu0 0.0
    %3508 = vmatprep.subr.mxu0 0.0
    %3509 = vmatpush2.msra.mxu0 0.0
    %3510 = vmatprep.subr.mxu0 0.0
    %3511 = vmatpush2.msra.mxu0 0.0
    %3512 = vmatprep.subr.mxu0 0.0
    %3513 = vmatpush2.msra.mxu0 0.0
    %3514 = vmatprep.subr.mxu0 0.0
    %3515 = vmatpush2.msra.mxu0 0.0
    %3516 = vmatprep.subr.mxu0 0.0
    %3517 = vmatpush2.msra.mxu0 0.0
    %3518 = vmatprep.subr.mxu0 0.0
    %3519 = vmatpush2.msra.mxu0 0.0
    %3520 = vmatprep.subr.mxu0 0.0
    %3521 = vmatpush2.msra.mxu0 0.0
    %3522 = vmatprep.subr.mxu0 0.0
    %3523 = vmatpush2.msra.mxu0 0.0
    %3524 = vmatprep.subr.mxu0 0.0
    %3525 = vmatpush2.msra.mxu0 0.0
    %3526 = vmatprep.subr.mxu0 0.0
    %3527 = vmatpush2.msra.mxu0 0.0
    %3528 = vmatprep.subr.mxu0 0.0
    %3529 = vmatpush2.msra.mxu0 0.0
    %3530 = vmatprep.subr.mxu0 0.0
    %3531 = vmatpush2.msra.mxu0 0.0
    %3532 = vmatprep.mubr.f32.mxu0 0.0
    %3533 = vmatmul.mubr.f32.gmra.mxu0 %v3466
    %v3534 = vpop.f32.mrf.mxu0
    %v3535 = vadd.f32 %v3461, %v3534
    %v3536 = vpop.f32.mrf.mxu0
    %3537 = vdwg.mxu0
    %v3538 = vld [vmem:[#allocation2] sm:$0x1]
    %v3540 = vlaneseq
    %v3541 = vshrl.u32 %v3540, 7
    %v3542 = vsub.s32 0, %v3541
    %v3543 = vrot.slane %v3538, %v3542
    %v3545 = vadd.f32 %v3535, %v3543
    %vm3546 = vcmask 17408
    %3547 = vst.msk [vmem:[#allocation5] sm:$0x3] %vm3546, %v3545
    // Predicated region
    $region118: #{model_forward.3} parent=1 // pred_check
      _
    $region119: #{model_forward.3} parent=1 // pred_check_branch
      %3549 = sbr.rel (0) target = $region121
    $region120: #{model_forward.3} parent=1 // pred_region
      %s3551 = ssub.s32 32, 32
      %3552 = vsyncadd [#allocation4], %s3551
      %s3554 = sshll.u32 [#allocation5], 4
      %s3555 = int_to_ptr.vmem [resolvable:$true] %s3554
      %3557 = dma.vmem_to_hbm [thread:$0]  %s3555, 32, %s28, [#allocation4]
    $region121: #{model_forward.3} parent=1 // pred_fallthru
      _
    // Predicated region
    $region122: #{model_forward.3} parent=1 // pred_check
      _
    $region123: #{model_forward.3} parent=1 // pred_check_branch
      %3559 = sbr.rel (0) target = $region125
    $region124: #{model_forward.3} parent=1 // pred_region
      %3560 = dma.done [#allocation4], 32
    $region125: #{model_forward.3} parent=1 // pred_fallthru
      _
    %3561 = vsyncpa [#allocation3], 1
    %3562 = vsyncpa [#allocation4], 1

</llo_original>
